<compile_context>
chip_gen: v7x
topology: tpu7x:2x2x1
jax: 0.10.0
libtpu: 0.0.40
codegen_flags: <defaults>
</compile_context>

<pallas_src>
import functools
import numpy as np
import jax
import jax.numpy as jnp
from jax.experimental import pallas as pl
from jax.experimental.pallas import tpu as pltpu

F = 16            # EEGNet feature maps
K1, P1 = 25, 12   # conv1 temporal kernel / padding
K2, P2 = 16, 8    # separable depthwise temporal kernel / padding
BN_EPS = 1e-5
HI = jax.lax.Precision.HIGHEST   # used on the XLA side (reference / folding)


def _elu(v):
    return jnp.where(v > 0, v, jnp.exp(jnp.minimum(v, 0.0)) - 1.0)


def _gelu(v):  # exact (erf) GELU == torch.nn.functional.gelu default
    return 0.5 * v * (1.0 + jax.lax.erf(v * 0.7071067811865476))


# ------------------------------------------------------------------
# Fused Pallas kernel
# ------------------------------------------------------------------
def _gat_attend(xh_all, scores, adj, heads, gc):
    """One GATConv aggregation (heads averaged).  Dense adjacency w/ self-loops.

    xh_all : (N, heads*gc) projected features
    scores : (N, 2*heads)  columns [0:heads]=src scores, [heads:2*heads]=dst
    """
    scores_t = jnp.transpose(scores)                     # (2*heads, N)
    acc = None
    for h in range(heads):                               # heads=4, unrolled
        xh = xh_all[:, h * gc:(h + 1) * gc]
        # e[i, j] = a_dst[i] + a_src[j]   for edge j -> i
        e = scores[:, heads + h:heads + h + 1] + scores_t[h:h + 1, :]
        e = jnp.where(e > 0, e, 0.2 * e)                 # leaky_relu(0.2)
        e = jnp.where(adj > 0, e, jnp.float32(-1e30))    # softmax over edges only
        p = jnp.exp(e - jnp.max(e, axis=-1, keepdims=True))
        alpha = p / jnp.sum(p, axis=-1, keepdims=True)
        contrib = jnp.dot(alpha, xh, preferred_element_type=jnp.float32)
        acc = contrib if acc is None else acc + contrib
    return acc * (1.0 / heads)


def _make_kernel(TF, ToF, heads, gc, hg, nc):
    def kernel(xp_ref, wc1_ref, evec_ref, m2_ref, pw_ref, attn_ref,
               wh_ref, gvec_ref, adj_ref, pool_ref, out_ref):
        f32 = jnp.float32
        # ------------- EEGNet stage (lanes = time*F + feature-map) -----------
        # conv1 (banded matrix, bn1 scale folded) + bn1 bias + ELU
        x = jnp.dot(xp_ref[...], wc1_ref[...], preferred_element_type=f32)
        x = _elu(x + evec_ref[0:1, :TF])
        # depthwise(1x1) folded with bn2 scale, + bn2 bias + ELU
        x = _elu(x * evec_ref[1:2, :TF] + evec_ref[2:3, :TF])
        # separable conv (depthwise + pointwise) with bn3 scale folded, + bias, ELU
        x = jnp.dot(x, m2_ref[...], preferred_element_type=f32)
        x = _elu(x + evec_ref[3:4, :ToF])
        # mean-over-time pool folded with [gat1 lin | skip lin] projections
        big = jnp.dot(x, pw_ref[...], preferred_element_type=f32)   # (N, hg+gc)
        xh1 = big[:, :hg]
        skip = big[:, hg:hg + gc] + gvec_ref[3:4, :]                # + skip bias
        adj = adj_ref[...]

        # ------------- GraphBlock (GATConv x2, heads=4, concat=False) --------
        sc1 = jnp.dot(xh1, attn_ref[:, :2 * heads], preferred_element_type=f32)
        xa = _gat_attend(xh1, sc1, adj, heads, gc) + gvec_ref[0:1, :]   # + gat1 bias
        xa = xa * gvec_ref[1:2, :] + gvec_ref[2:3, :]                   # bn1 (eval)
        xa = _gelu(xa + skip)
        # dropout: identity in eval mode

        xh2 = jnp.dot(xa, wh_ref[:, :hg], preferred_element_type=f32)
        sc2 = jnp.dot(xh2, attn_ref[:, 2 * heads:4 * heads],
                      preferred_element_type=f32)
        xb = _gat_attend(xh2, sc2, adj, heads, gc) + gvec_ref[4:5, :]   # + gat2 bias
        xb = xb * gvec_ref[5:6, :] + gvec_ref[6:7, :]                   # bn2 (eval)
        xb = _gelu(xb + xa)

        # global_mean_pool + classifier
        pooled = jnp.dot(pool_ref[...], xb, preferred_element_type=f32)
        out_ref[...] = (jnp.dot(pooled, wh_ref[:, hg:hg + nc],
                                preferred_element_type=f32) + gvec_ref[7:8, :nc])
    return kernel


# ------------------------------------------------------------------
# Parameter folding (done ONCE, on the XLA side)
# ------------------------------------------------------------------
def _band_conv1(w1_scaled, T):
    """(Tp, T*F): M[tp, t*F+f] = w1_scaled[f, tp-t] for 0 <= tp-t < K1."""
    Tp = T + 2 * P1
    k = jnp.arange(Tp)[:, None] - jnp.arange(T)[None, :]
    valid = (k >= 0) & (k < K1)
    kc = jnp.clip(k, 0, K1 - 1)
    m = jnp.where(valid[:, :, None], w1_scaled.T[kc], 0.0)        # (Tp, T, F)
    return m.reshape(Tp, T * F).astype(jnp.float32)


def _band_separable(dw2, pw, s3, T):
    """(T*F, To*F): M[tp*F+fi, t*F+fo] = s3[fo]*pw[fo,fi]*dw2[fi, tp-t+P2]."""
    To = T + 2 * P2 - K2 + 1
    k = jnp.arange(T)[:, None] - jnp.arange(To)[None, :] + P2
    valid = (k >= 0) & (k < K2)
    kc = jnp.clip(k, 0, K2 - 1)
    band = jnp.where(valid[:, :, None], dw2.T[kc], 0.0)           # (T, To, Fi)
    pws = pw * s3[:, None]                                        # (Fo, Fi)
    m = jnp.einsum('pqi,oi->piqo', band, pws)                     # (T, Fi, To, Fo)
    return m.reshape(T * F, To * F).astype(jnp.float32)


def _attn_matrix(a_src, a_dst):
    heads, gc = a_src.shape
    a = jnp.zeros((heads * gc, 2 * heads), jnp.float32)
    for h in range(heads):
        a = a.at[h * gc:(h + 1) * gc, h].set(a_src[h])
        a = a.at[h * gc:(h + 1) * gc, heads + h].set(a_dst[h])
    return a


def fold_params(p, n_samples):
    """Fold eval-mode BN into the conv banded matrices, tile per-feature-map
    vectors into the interleaved lane layout, and pack the tiny GNN tensors
    into a few VMEM slabs (fewer DMAs)."""
    T = n_samples
    To = T + 2 * P2 - K2 + 1
    TF, ToF = T * F, To * F

    wc1 = _band_conv1(p["w1"] * p["s1"][:, None], T)              # (Tp, TF)
    m2 = _band_separable(p["dw2"], p["pw"], p["s3"], T)           # (TF, ToF)
    # TODO(synk): for realistic n_samples (e.g. 500) the dense banded m2 matrix
    # gets large; switch the depthwise part back to K2 lane-shifted MACs and
    # tile over time so the working set fits v7x's 64 MiB VMEM.
    pad = ToF - TF
    eeg_vec = jnp.stack([
        jnp.pad(jnp.tile(p["b1"], T), (0, pad)),                  # bn1 bias
        jnp.pad(jnp.tile(p["dw1"] * p["s2"], T), (0, pad)),       # depthwise*bn2 scale
        jnp.pad(jnp.tile(p["b2"], T), (0, pad)),                  # bn2 bias
        jnp.tile(p["b3"], To),                                    # bn3 bias
    ]).astype(jnp.float32)                                        # (4, ToF)

    # mean-over-time pool folded into the two consumers of the pooled features
    pool_t = jnp.tile(jnp.eye(F, dtype=jnp.float32), (To, 1)) / To          # (ToF, F)
    w_in = jnp.concatenate([p["gw1"], p["skw"]], axis=1)                    # (F, hg+gc)
    pw_proj = jnp.dot(pool_t, w_in, precision=HI)                           # (ToF, hg+gc)

    attn = jnp.concatenate([_attn_matrix(p["as1"], p["ad1"]),
                            _attn_matrix(p["as2"], p["ad2"])], axis=1)      # (hg, 4*heads)
    w_h = jnp.concatenate([p["gw2"], p["wc"]], axis=1)                      # (gc, hg+nc)

    gc = p["gb1"].shape[-1]
    nc = p["bc"].shape[-1]
    gvec = jnp.stack([
        p["gb1"].reshape(-1), p["bn1s"].reshape(-1), p["bn1b"].reshape(-1),
        p["skb"].reshape(-1), p["gb2"].reshape(-1), p["bn2s"].reshape(-1),
        p["bn2b"].reshape(-1), jnp.pad(p["bc"].reshape(-1), (0, gc - nc)),
    ]).astype(jnp.float32)                                                  # (8, gc)

    return {"wc1": wc1, "m2": m2, "eeg_vec": eeg_vec, "pw_proj": pw_proj,
            "attn": attn, "w_h": w_h, "gvec": gvec}


# ------------------------------------------------------------------
# Wrapper
# ------------------------------------------------------------------
def build_dense_graph(edge_index, batch_index, num_nodes, num_graphs):
    adj = jnp.zeros((num_nodes, num_nodes), jnp.float32)
    adj = adj.at[edge_index[1], edge_index[0]].set(1.0)      # message src -> dst
    diag = jnp.arange(num_nodes)
    adj = adj.at[diag, diag].set(1.0)                        # GATConv add_self_loops
    onehot = (batch_index[None, :] == jnp.arange(num_graphs)[:, None]).astype(jnp.float32)
    pool = onehot / jnp.maximum(onehot.sum(axis=1, keepdims=True), 1.0)
    return adj, pool


@functools.partial(jax.jit, static_argnames=("num_graphs",))
def hybrid_eeg_gnn_forward(x, edge_index, batch_index, fp, num_graphs):
    B, _, C, T = x.shape
    R = B * C
    xp = jnp.pad(x.astype(jnp.float32).reshape(R, T), ((0, 0), (P1, P1)))
    adj, pool = build_dense_graph(edge_index, batch_index, R, num_graphs)

    TF = fp["wc1"].shape[1]
    ToF = fp["eeg_vec"].shape[1]
    hg = fp["attn"].shape[0]
    heads = fp["attn"].shape[1] // 4
    gc = fp["gvec"].shape[1]
    nc = fp["w_h"].shape[1] - hg

    vmem = pl.BlockSpec(memory_space=pltpu.MemorySpace.VMEM)
    kernel = _make_kernel(TF, ToF, heads, gc, hg, nc)
    # TODO(synk): at this toy size one grid step on one TensorCore is optimal;
    # if B/T grow, add a "parallel" row-tile grid axis (v7x has 2 TCs) and
    # re-derive tiling against v7x's 64 MiB VMEM.
    return pl.pallas_call(
        kernel,
        out_shape=jax.ShapeDtypeStruct((num_graphs, nc), jnp.float32),
        in_specs=[vmem] * 10,
        out_specs=vmem,
        compiler_params=pltpu.CompilerParams(vmem_limit_bytes=32 * 1024 * 1024),
    )(xp, fp["wc1"], fp["eeg_vec"], fp["m2"], fp["pw_proj"], fp["attn"],
      fp["w_h"], fp["gvec"], adj, pool)


# ------------------------------------------------------------------
# Pure-JAX reference (uses the RAW, un-folded parameters)
# ------------------------------------------------------------------
def eegnet_reference(x, p):
    B, _, C, T = x.shape
    R = B * C
    xp = jnp.pad(x.astype(jnp.float32).reshape(R, T), ((0, 0), (P1, P1)))
    cols = jnp.stack([xp[:, k:k + T] for k in range(K1)], axis=-1)        # (R,T,K1)
    y = jnp.einsum('rtk,fk->frt', cols, p["w1"], precision=HI)            # (F,R,T)
    y = _elu(y * p["s1"][:, None, None] + p["b1"][:, None, None])
    y = _elu(y * (p["dw1"] * p["s2"])[:, None, None] + p["b2"][:, None, None])
    To = T + 2 * P2 - K2 + 1
    yp = jnp.pad(y, ((0, 0), (0, 0), (P2, P2)))
    cols2 = jnp.stack([yp[:, :, k:k + To] for k in range(K2)], axis=-1)   # (F,R,To,K2)
    ydw = jnp.einsum('frtk,fk->frt', cols2, p["dw2"], precision=HI)
    y3 = jnp.einsum('irt,oi->ort', ydw, p["pw"], precision=HI)
    y3 = _elu(y3 * p["s3"][:, None, None] + p["b3"][:, None, None])
    return jnp.mean(y3, axis=-1).T                                        # (R, F)


def _gat_layer_ref(h, adj, w, a_src, a_dst, bias):
    heads, fout = a_src.shape
    xh_all = jnp.dot(h, w, precision=HI)
    n = h.shape[0]
    out = jnp.zeros((n, fout), jnp.float32)
    for hd in range(heads):
        xh = xh_all[:, hd * fout:(hd + 1) * fout]
        a_s = jnp.sum(xh * a_src[hd][None, :], axis=-1, keepdims=True)
        a_d = jnp.sum(xh * a_dst[hd][None, :], axis=-1, keepdims=True)
        e = a_d + jnp.transpose(a_s)
        e = jnp.where(e > 0, e, 0.2 * e)
        e = jnp.where(adj > 0, e, jnp.float32(-1e30))
        pr = jnp.exp(e - jnp.max(e, axis=-1, keepdims=True))
        alpha = pr / jnp.sum(pr, axis=-1, keepdims=True)
        out = out + jnp.dot(alpha, xh, precision=HI)
    return out / heads + bias


def reference_forward(x, edge_index, batch_index, p, num_graphs):
    feat = eegnet_reference(x, p)
    adj, pool = build_dense_graph(edge_index, batch_index, feat.shape[0], num_graphs)
    h = _gat_layer_ref(feat, adj, p["gw1"], p["as1"], p["ad1"], p["gb1"])
    h = h * p["bn1s"] + p["bn1b"]
    skip = jnp.dot(feat, p["skw"], precision=HI) + p["skb"]
    h = _gelu(h + skip)
    h2 = _gat_layer_ref(h, adj, p["gw2"], p["as2"], p["ad2"], p["gb2"])
    h2 = h2 * p["bn2s"] + p["bn2b"]
    h2 = _gelu(h2 + h)
    pooled = jnp.dot(pool, h2, precision=HI)
    return jnp.dot(pooled, p["wc"], precision=HI) + p["bc"]


# ------------------------------------------------------------------
# Deterministic parameter initialisation (eval-mode BN folded to scale/bias)
# ------------------------------------------------------------------
def init_params(key, gcn_channels=32, gat_heads=4, num_classes=2):
    keys = iter(jax.random.split(key, 64))

    def nrm(shape, scale=0.1):
        return (scale * jax.random.normal(next(keys), shape)).astype(jnp.float32)

    def bn_fold(n):
        gamma = 1.0 + nrm((n,))
        beta = nrm((n,))
        mean = nrm((n,))
        var = 1.0 + jnp.abs(nrm((n,)))
        scale = gamma / jnp.sqrt(var + BN_EPS)
        return scale.astype(jnp.float32), (beta - mean * scale).astype(jnp.float32)

    p = {}
    # EEGNet2D_Hybrid
    p["w1"] = nrm((F, K1), 0.3)                 # conv1 (16,1,1,25) -> (16,25)
    p["s1"], p["b1"] = bn_fold(F)
    p["dw1"] = 1.0 + nrm((F,), 0.3)             # depthwise (1,1) -> per-channel scalar
    p["s2"], p["b2"] = bn_fold(F)
    p["dw2"] = nrm((F, K2), 0.3)                # separable depthwise (16,1,1,16)
    p["pw"] = nrm((F, F), 0.3)                  # pointwise (out,in)
    p["s3"], p["b3"] = bn_fold(F)
    # GraphBlock (GATConv heads=4, concat=False) + classifier
    hg = gat_heads * gcn_channels
    p["gw1"] = nrm((F, hg), 0.2)
    p["as1"] = nrm((gat_heads, gcn_channels), 0.2)
    p["ad1"] = nrm((gat_heads, gcn_channels), 0.2)
    p["gb1"] = nrm((1, gcn_channels), 0.2)
    s, b = bn_fold(gcn_channels)
    p["bn1s"], p["bn1b"] = s.reshape(1, -1), b.reshape(1, -1)
    p["skw"] = nrm((F, gcn_channels), 0.2)
    p["skb"] = nrm((1, gcn_channels), 0.2)
    p["gw2"] = nrm((gcn_channels, hg), 0.2)
    p["as2"] = nrm((gat_heads, gcn_channels), 0.2)
    p["ad2"] = nrm((gat_heads, gcn_channels), 0.2)
    p["gb2"] = nrm((1, gcn_channels), 0.2)
    s, b = bn_fold(gcn_channels)
    p["bn2s"], p["bn2b"] = s.reshape(1, -1), b.reshape(1, -1)
    p["wc"] = nrm((gcn_channels, num_classes), 0.2)
    p["bc"] = nrm((1, num_classes), 0.2)
    return p


if __name__ == "__main__":
    B, C, T = 2, 16, 64          # batch, EEG channels (n_channels), samples (n_samples)
    key = jax.random.PRNGKey(0)
    kx, kp = jax.random.split(key)
    x = jax.random.normal(kx, (B, 1, C, T), dtype=jnp.float32)
    params = init_params(kp)
    folded = fold_params(params, n_samples=T)

    # deterministic bidirectional ring graph over each sample's channel nodes
    src, dst = [], []
    for b in range(B):
        for c in range(C):
            u, v = b * C + c, b * C + (c + 1) % C
            src += [u, v]
            dst += [v, u]
    edge_index = jnp.array([src, dst], dtype=jnp.int32)
    batch_index = jnp.repeat(jnp.arange(B, dtype=jnp.int32), C)

    logits = hybrid_eeg_gnn_forward(x, edge_index, batch_index, folded, B)
    logits = jax.block_until_ready(logits)
    assert logits.shape == (B, 2)

    ref = jax.block_until_ready(reference_forward(x, edge_index, batch_index, params, B))
    # tolerance accounts for MXU f32 matmul accumulation-order differences
    np.testing.assert_allclose(np.asarray(logits), np.asarray(ref), rtol=2e-2, atol=2e-2)

    print("KERNEL_OK")
</pallas_src>

<mosaic_0001>
module attributes {stable_mosaic.version = 11 : i64} {
  func.func @kernel(%arg0: memref<32x88xf32, #tpu.memory_space<vmem>>, %arg1: memref<88x1024xf32, #tpu.memory_space<vmem>>, %arg2: memref<4x1040xf32, #tpu.memory_space<vmem>>, %arg3: memref<1024x1040xf32, #tpu.memory_space<vmem>>, %arg4: memref<1040x160xf32, #tpu.memory_space<vmem>>, %arg5: memref<128x16xf32, #tpu.memory_space<vmem>>, %arg6: memref<32x130xf32, #tpu.memory_space<vmem>>, %arg7: memref<8x32xf32, #tpu.memory_space<vmem>>, %arg8: memref<32x32xf32, #tpu.memory_space<vmem>>, %arg9: memref<2x32xf32, #tpu.memory_space<vmem>>, %arg10: memref<2x2xf32, #tpu.memory_space<vmem>>) attributes {dimension_semantics = [], scalar_prefetch = 0 : i64, scratch_operands = 0 : i64, tpu.core_type = #tpu.core_type<tc>} {
    %c0 = arith.constant 0 : index
    %c0_0 = arith.constant 0 : index
    %0 = vector.load %arg0[%c0, %c0_0] : memref<32x88xf32, #tpu.memory_space<vmem>>, vector<32x88xf32>
    %c0_1 = arith.constant 0 : index
    %c0_2 = arith.constant 0 : index
    %1 = vector.load %arg1[%c0_1, %c0_2] : memref<88x1024xf32, #tpu.memory_space<vmem>>, vector<88x1024xf32>
    %cst = arith.constant dense<0.000000e+00> : vector<32x1024xf32>
    %2 = tpu.matmul %0, %1, %cst {dimension_numbers = #tpu.dot_dimension_numbers<[1], [0], [0], [1], [0, 0, 1, 1], [], []>} : vector<32x88xf32>, vector<88x1024xf32>, vector<32x1024xf32> -> vector<32x1024xf32>
    %c0_3 = arith.constant 0 : index
    %c0_4 = arith.constant 0 : index
    %3 = vector.load %arg2[%c0_3, %c0_4] : memref<4x1040xf32, #tpu.memory_space<vmem>>, vector<1x1024xf32>
    %4 = vector.broadcast %3 : vector<1x1024xf32> to vector<32x1024xf32>
    %5 = arith.addf %2, %4 : vector<32x1024xf32>
    %cst_5 = arith.constant 0.000000e+00 : f32
    %6 = vector.broadcast %cst_5 : f32 to vector<32x1024xf32>
    %7 = arith.cmpf ogt, %5, %6 : vector<32x1024xf32>
    %cst_6 = arith.constant 0.000000e+00 : f32
    %8 = vector.broadcast %cst_6 : f32 to vector<32x1024xf32>
    %9 = arith.minimumf %5, %8 : vector<32x1024xf32>
    %10 = math.exp %9 : vector<32x1024xf32>
    %cst_7 = arith.constant 1.000000e+00 : f32
    %11 = vector.broadcast %cst_7 : f32 to vector<32x1024xf32>
    %12 = arith.subf %10, %11 : vector<32x1024xf32>
    %13 = arith.select %7, %5, %12 : vector<32x1024xi1>, vector<32x1024xf32>
    %c1 = arith.constant 1 : index
    %c0_8 = arith.constant 0 : index
    %14 = vector.load %arg2[%c1, %c0_8] : memref<4x1040xf32, #tpu.memory_space<vmem>>, vector<1x1024xf32>
    %15 = vector.broadcast %14 : vector<1x1024xf32> to vector<32x1024xf32>
    %16 = arith.mulf %13, %15 : vector<32x1024xf32>
    %c2 = arith.constant 2 : index
    %c0_9 = arith.constant 0 : index
    %17 = vector.load %arg2[%c2, %c0_9] : memref<4x1040xf32, #tpu.memory_space<vmem>>, vector<1x1024xf32>
    %18 = vector.broadcast %17 : vector<1x1024xf32> to vector<32x1024xf32>
    %19 = arith.addf %16, %18 : vector<32x1024xf32>
    %cst_10 = arith.constant 0.000000e+00 : f32
    %20 = vector.broadcast %cst_10 : f32 to vector<32x1024xf32>
    %21 = arith.cmpf ogt, %19, %20 : vector<32x1024xf32>
    %cst_11 = arith.constant 0.000000e+00 : f32
    %22 = vector.broadcast %cst_11 : f32 to vector<32x1024xf32>
    %23 = arith.minimumf %19, %22 : vector<32x1024xf32>
    %24 = math.exp %23 : vector<32x1024xf32>
    %cst_12 = arith.constant 1.000000e+00 : f32
    %25 = vector.broadcast %cst_12 : f32 to vector<32x1024xf32>
    %26 = arith.subf %24, %25 : vector<32x1024xf32>
    %27 = arith.select %21, %19, %26 : vector<32x1024xi1>, vector<32x1024xf32>
    %c0_13 = arith.constant 0 : index
    %c0_14 = arith.constant 0 : index
    %28 = vector.load %arg3[%c0_13, %c0_14] : memref<1024x1040xf32, #tpu.memory_space<vmem>>, vector<1024x1040xf32>
    %cst_15 = arith.constant dense<0.000000e+00> : vector<32x1040xf32>
    %29 = tpu.matmul %27, %28, %cst_15 {dimension_numbers = #tpu.dot_dimension_numbers<[1], [0], [0], [1], [0, 0, 1, 1], [], []>} : vector<32x1024xf32>, vector<1024x1040xf32>, vector<32x1040xf32> -> vector<32x1040xf32>
    %c3 = arith.constant 3 : index
    %c0_16 = arith.constant 0 : index
    %30 = vector.load %arg2[%c3, %c0_16] : memref<4x1040xf32, #tpu.memory_space<vmem>>, vector<1x1040xf32>
    %31 = vector.broadcast %30 : vector<1x1040xf32> to vector<32x1040xf32>
    %32 = arith.addf %29, %31 : vector<32x1040xf32>
    %cst_17 = arith.constant 0.000000e+00 : f32
    %33 = vector.broadcast %cst_17 : f32 to vector<32x1040xf32>
    %34 = arith.cmpf ogt, %32, %33 : vector<32x1040xf32>
    %cst_18 = arith.constant 0.000000e+00 : f32
    %35 = vector.broadcast %cst_18 : f32 to vector<32x1040xf32>
    %36 = arith.minimumf %32, %35 : vector<32x1040xf32>
    %37 = math.exp %36 : vector<32x1040xf32>
    %cst_19 = arith.constant 1.000000e+00 : f32
    %38 = vector.broadcast %cst_19 : f32 to vector<32x1040xf32>
    %39 = arith.subf %37, %38 : vector<32x1040xf32>
    %40 = arith.select %34, %32, %39 : vector<32x1040xi1>, vector<32x1040xf32>
    %c0_20 = arith.constant 0 : index
    %c0_21 = arith.constant 0 : index
    %41 = vector.load %arg4[%c0_20, %c0_21] : memref<1040x160xf32, #tpu.memory_space<vmem>>, vector<1040x160xf32>
    %cst_22 = arith.constant dense<0.000000e+00> : vector<32x160xf32>
    %42 = tpu.matmul %40, %41, %cst_22 {dimension_numbers = #tpu.dot_dimension_numbers<[1], [0], [0], [1], [0, 0, 1, 1], [], []>} : vector<32x1040xf32>, vector<1040x160xf32>, vector<32x160xf32> -> vector<32x160xf32>
    %43 = vector.extract_strided_slice %42 {offsets = [0, 0], sizes = [32, 128], strides = [1, 1]} : vector<32x160xf32> to vector<32x128xf32>
    %44 = vector.extract_strided_slice %42 {offsets = [0, 128], sizes = [32, 32], strides = [1, 1]} : vector<32x160xf32> to vector<32x32xf32>
    %c3_23 = arith.constant 3 : index
    %c0_24 = arith.constant 0 : index
    %45 = vector.load %arg7[%c3_23, %c0_24] : memref<8x32xf32, #tpu.memory_space<vmem>>, vector<1x32xf32>
    %46 = vector.broadcast %45 : vector<1x32xf32> to vector<32x32xf32>
    %47 = arith.addf %44, %46 : vector<32x32xf32>
    %c0_25 = arith.constant 0 : index
    %c0_26 = arith.constant 0 : index
    %48 = vector.load %arg8[%c0_25, %c0_26] : memref<32x32xf32, #tpu.memory_space<vmem>>, vector<32x32xf32>
    %c0_27 = arith.constant 0 : index
    %c0_28 = arith.constant 0 : index
    %49 = vector.load %arg5[%c0_27, %c0_28] : memref<128x16xf32, #tpu.memory_space<vmem>>, vector<128x8xf32>
    %cst_29 = arith.constant dense<0.000000e+00> : vector<32x8xf32>
    %50 = tpu.matmul %43, %49, %cst_29 {dimension_numbers = #tpu.dot_dimension_numbers<[1], [0], [0], [1], [0, 0, 1, 1], [], []>} : vector<32x128xf32>, vector<128x8xf32>, vector<32x8xf32> -> vector<32x8xf32>
    %51 = tpu.transpose %50, [1, 0] : vector<32x8xf32> -> vector<8x32xf32>
    %52 = vector.extract_strided_slice %43 {offsets = [0, 0], sizes = [32, 32], strides = [1, 1]} : vector<32x128xf32> to vector<32x32xf32>
    %53 = vector.extract_strided_slice %50 {offsets = [0, 4], sizes = [32, 1], strides = [1, 1]} : vector<32x8xf32> to vector<32x1xf32>
    %54 = vector.extract_strided_slice %51 {offsets = [0, 0], sizes = [1, 32], strides = [1, 1]} : vector<8x32xf32> to vector<1x32xf32>
    %55 = vector.broadcast %53 : vector<32x1xf32> to vector<32x32xf32>
    %56 = vector.broadcast %54 : vector<1x32xf32> to vector<32x32xf32>
    %57 = arith.addf %55, %56 : vector<32x32xf32>
    %cst_30 = arith.constant 0.000000e+00 : f32
    %58 = vector.broadcast %cst_30 : f32 to vector<32x32xf32>
    %59 = arith.cmpf ogt, %57, %58 : vector<32x32xf32>
    %cst_31 = arith.constant 2.000000e-01 : f32
    %60 = vector.broadcast %cst_31 : f32 to vector<32x32xf32>
    %61 = arith.mulf %60, %57 : vector<32x32xf32>
    %62 = arith.select %59, %57, %61 : vector<32x32xi1>, vector<32x32xf32>
    %cst_32 = arith.constant 0.000000e+00 : f32
    %63 = vector.broadcast %cst_32 : f32 to vector<32x32xf32>
    %64 = arith.cmpf ogt, %48, %63 : vector<32x32xf32>
    %cst_33 = arith.constant -1.000000e+30 : f32
    %65 = vector.broadcast %cst_33 : f32 to vector<32x32xf32>
    %66 = arith.select %64, %62, %65 : vector<32x32xi1>, vector<32x32xf32>
    %cst_34 = arith.constant dense<0xFF800000> : vector<32xf32>
    %67 = vector.multi_reduction <maximumf>, %66, %cst_34 [1] : vector<32x32xf32> to vector<32xf32>
    %68 = vector.shape_cast %67 : vector<32xf32> to vector<32x1xf32>
    %69 = vector.broadcast %68 : vector<32x1xf32> to vector<32x32xf32>
    %70 = arith.subf %66, %69 : vector<32x32xf32>
    %71 = math.exp %70 : vector<32x32xf32>
    %cst_35 = arith.constant dense<0.000000e+00> : vector<32xf32>
    %72 = vector.multi_reduction <add>, %71, %cst_35 [1] : vector<32x32xf32> to vector<32xf32>
    %73 = vector.shape_cast %72 : vector<32xf32> to vector<32x1xf32>
    %74 = vector.broadcast %73 : vector<32x1xf32> to vector<32x32xf32>
    %75 = arith.divf %71, %74 : vector<32x32xf32>
    %cst_36 = arith.constant dense<0.000000e+00> : vector<32x32xf32>
    %76 = tpu.matmul %75, %52, %cst_36 {dimension_numbers = #tpu.dot_dimension_numbers<[1], [0], [0], [1], [0, 0, 1, 1], [], []>} : vector<32x32xf32>, vector<32x32xf32>, vector<32x32xf32> -> vector<32x32xf32>
    %77 = vector.extract_strided_slice %43 {offsets = [0, 32], sizes = [32, 32], strides = [1, 1]} : vector<32x128xf32> to vector<32x32xf32>
    %78 = vector.extract_strided_slice %50 {offsets = [0, 5], sizes = [32, 1], strides = [1, 1]} : vector<32x8xf32> to vector<32x1xf32>
    %79 = vector.extract_strided_slice %51 {offsets = [1, 0], sizes = [1, 32], strides = [1, 1]} : vector<8x32xf32> to vector<1x32xf32>
    %80 = vector.broadcast %78 : vector<32x1xf32> to vector<32x32xf32>
    %81 = vector.broadcast %79 : vector<1x32xf32> to vector<32x32xf32>
    %82 = arith.addf %80, %81 : vector<32x32xf32>
    %cst_37 = arith.constant 0.000000e+00 : f32
    %83 = vector.broadcast %cst_37 : f32 to vector<32x32xf32>
    %84 = arith.cmpf ogt, %82, %83 : vector<32x32xf32>
    %cst_38 = arith.constant 2.000000e-01 : f32
    %85 = vector.broadcast %cst_38 : f32 to vector<32x32xf32>
    %86 = arith.mulf %85, %82 : vector<32x32xf32>
    %87 = arith.select %84, %82, %86 : vector<32x32xi1>, vector<32x32xf32>
    %cst_39 = arith.constant 0.000000e+00 : f32
    %88 = vector.broadcast %cst_39 : f32 to vector<32x32xf32>
    %89 = arith.cmpf ogt, %48, %88 : vector<32x32xf32>
    %cst_40 = arith.constant -1.000000e+30 : f32
    %90 = vector.broadcast %cst_40 : f32 to vector<32x32xf32>
    %91 = arith.select %89, %87, %90 : vector<32x32xi1>, vector<32x32xf32>
    %cst_41 = arith.constant dense<0xFF800000> : vector<32xf32>
    %92 = vector.multi_reduction <maximumf>, %91, %cst_41 [1] : vector<32x32xf32> to vector<32xf32>
    %93 = vector.shape_cast %92 : vector<32xf32> to vector<32x1xf32>
    %94 = vector.broadcast %93 : vector<32x1xf32> to vector<32x32xf32>
    %95 = arith.subf %91, %94 : vector<32x32xf32>
    %96 = math.exp %95 : vector<32x32xf32>
    %cst_42 = arith.constant dense<0.000000e+00> : vector<32xf32>
    %97 = vector.multi_reduction <add>, %96, %cst_42 [1] : vector<32x32xf32> to vector<32xf32>
    %98 = vector.shape_cast %97 : vector<32xf32> to vector<32x1xf32>
    %99 = vector.broadcast %98 : vector<32x1xf32> to vector<32x32xf32>
    %100 = arith.divf %96, %99 : vector<32x32xf32>
    %cst_43 = arith.constant dense<0.000000e+00> : vector<32x32xf32>
    %101 = tpu.matmul %100, %77, %cst_43 {dimension_numbers = #tpu.dot_dimension_numbers<[1], [0], [0], [1], [0, 0, 1, 1], [], []>} : vector<32x32xf32>, vector<32x32xf32>, vector<32x32xf32> -> vector<32x32xf32>
    %102 = arith.addf %76, %101 : vector<32x32xf32>
    %103 = vector.extract_strided_slice %43 {offsets = [0, 64], sizes = [32, 32], strides = [1, 1]} : vector<32x128xf32> to vector<32x32xf32>
    %104 = vector.extract_strided_slice %50 {offsets = [0, 6], sizes = [32, 1], strides = [1, 1]} : vector<32x8xf32> to vector<32x1xf32>
    %105 = vector.extract_strided_slice %51 {offsets = [2, 0], sizes = [1, 32], strides = [1, 1]} : vector<8x32xf32> to vector<1x32xf32>
    %106 = vector.broadcast %104 : vector<32x1xf32> to vector<32x32xf32>
    %107 = vector.broadcast %105 : vector<1x32xf32> to vector<32x32xf32>
    %108 = arith.addf %106, %107 : vector<32x32xf32>
    %cst_44 = arith.constant 0.000000e+00 : f32
    %109 = vector.broadcast %cst_44 : f32 to vector<32x32xf32>
    %110 = arith.cmpf ogt, %108, %109 : vector<32x32xf32>
    %cst_45 = arith.constant 2.000000e-01 : f32
    %111 = vector.broadcast %cst_45 : f32 to vector<32x32xf32>
    %112 = arith.mulf %111, %108 : vector<32x32xf32>
    %113 = arith.select %110, %108, %112 : vector<32x32xi1>, vector<32x32xf32>
    %cst_46 = arith.constant 0.000000e+00 : f32
    %114 = vector.broadcast %cst_46 : f32 to vector<32x32xf32>
    %115 = arith.cmpf ogt, %48, %114 : vector<32x32xf32>
    %cst_47 = arith.constant -1.000000e+30 : f32
    %116 = vector.broadcast %cst_47 : f32 to vector<32x32xf32>
    %117 = arith.select %115, %113, %116 : vector<32x32xi1>, vector<32x32xf32>
    %cst_48 = arith.constant dense<0xFF800000> : vector<32xf32>
    %118 = vector.multi_reduction <maximumf>, %117, %cst_48 [1] : vector<32x32xf32> to vector<32xf32>
    %119 = vector.shape_cast %118 : vector<32xf32> to vector<32x1xf32>
    %120 = vector.broadcast %119 : vector<32x1xf32> to vector<32x32xf32>
    %121 = arith.subf %117, %120 : vector<32x32xf32>
    %122 = math.exp %121 : vector<32x32xf32>
    %cst_49 = arith.constant dense<0.000000e+00> : vector<32xf32>
    %123 = vector.multi_reduction <add>, %122, %cst_49 [1] : vector<32x32xf32> to vector<32xf32>
    %124 = vector.shape_cast %123 : vector<32xf32> to vector<32x1xf32>
    %125 = vector.broadcast %124 : vector<32x1xf32> to vector<32x32xf32>
    %126 = arith.divf %122, %125 : vector<32x32xf32>
    %cst_50 = arith.constant dense<0.000000e+00> : vector<32x32xf32>
    %127 = tpu.matmul %126, %103, %cst_50 {dimension_numbers = #tpu.dot_dimension_numbers<[1], [0], [0], [1], [0, 0, 1, 1], [], []>} : vector<32x32xf32>, vector<32x32xf32>, vector<32x32xf32> -> vector<32x32xf32>
    %128 = arith.addf %102, %127 : vector<32x32xf32>
    %129 = vector.extract_strided_slice %43 {offsets = [0, 96], sizes = [32, 32], strides = [1, 1]} : vector<32x128xf32> to vector<32x32xf32>
    %130 = vector.extract_strided_slice %50 {offsets = [0, 7], sizes = [32, 1], strides = [1, 1]} : vector<32x8xf32> to vector<32x1xf32>
    %131 = vector.extract_strided_slice %51 {offsets = [3, 0], sizes = [1, 32], strides = [1, 1]} : vector<8x32xf32> to vector<1x32xf32>
    %132 = vector.broadcast %130 : vector<32x1xf32> to vector<32x32xf32>
    %133 = vector.broadcast %131 : vector<1x32xf32> to vector<32x32xf32>
    %134 = arith.addf %132, %133 : vector<32x32xf32>
    %cst_51 = arith.constant 0.000000e+00 : f32
    %135 = vector.broadcast %cst_51 : f32 to vector<32x32xf32>
    %136 = arith.cmpf ogt, %134, %135 : vector<32x32xf32>
    %cst_52 = arith.constant 2.000000e-01 : f32
    %137 = vector.broadcast %cst_52 : f32 to vector<32x32xf32>
    %138 = arith.mulf %137, %134 : vector<32x32xf32>
    %139 = arith.select %136, %134, %138 : vector<32x32xi1>, vector<32x32xf32>
    %cst_53 = arith.constant 0.000000e+00 : f32
    %140 = vector.broadcast %cst_53 : f32 to vector<32x32xf32>
    %141 = arith.cmpf ogt, %48, %140 : vector<32x32xf32>
    %cst_54 = arith.constant -1.000000e+30 : f32
    %142 = vector.broadcast %cst_54 : f32 to vector<32x32xf32>
    %143 = arith.select %141, %139, %142 : vector<32x32xi1>, vector<32x32xf32>
    %cst_55 = arith.constant dense<0xFF800000> : vector<32xf32>
    %144 = vector.multi_reduction <maximumf>, %143, %cst_55 [1] : vector<32x32xf32> to vector<32xf32>
    %145 = vector.shape_cast %144 : vector<32xf32> to vector<32x1xf32>
    %146 = vector.broadcast %145 : vector<32x1xf32> to vector<32x32xf32>
    %147 = arith.subf %143, %146 : vector<32x32xf32>
    %148 = math.exp %147 : vector<32x32xf32>
    %cst_56 = arith.constant dense<0.000000e+00> : vector<32xf32>
    %149 = vector.multi_reduction <add>, %148, %cst_56 [1] : vector<32x32xf32> to vector<32xf32>
    %150 = vector.shape_cast %149 : vector<32xf32> to vector<32x1xf32>
    %151 = vector.broadcast %150 : vector<32x1xf32> to vector<32x32xf32>
    %152 = arith.divf %148, %151 : vector<32x32xf32>
    %cst_57 = arith.constant dense<0.000000e+00> : vector<32x32xf32>
    %153 = tpu.matmul %152, %129, %cst_57 {dimension_numbers = #tpu.dot_dimension_numbers<[1], [0], [0], [1], [0, 0, 1, 1], [], []>} : vector<32x32xf32>, vector<32x32xf32>, vector<32x32xf32> -> vector<32x32xf32>
    %154 = arith.addf %128, %153 : vector<32x32xf32>
    %cst_58 = arith.constant 2.500000e-01 : f32
    %155 = vector.broadcast %cst_58 : f32 to vector<32x32xf32>
    %156 = arith.mulf %154, %155 : vector<32x32xf32>
    %c0_59 = arith.constant 0 : index
    %c0_60 = arith.constant 0 : index
    %157 = vector.load %arg7[%c0_59, %c0_60] : memref<8x32xf32, #tpu.memory_space<vmem>>, vector<1x32xf32>
    %158 = vector.broadcast %157 : vector<1x32xf32> to vector<32x32xf32>
    %159 = arith.addf %156, %158 : vector<32x32xf32>
    %c1_61 = arith.constant 1 : index
    %c0_62 = arith.constant 0 : index
    %160 = vector.load %arg7[%c1_61, %c0_62] : memref<8x32xf32, #tpu.memory_space<vmem>>, vector<1x32xf32>
    %161 = vector.broadcast %160 : vector<1x32xf32> to vector<32x32xf32>
    %162 = arith.mulf %159, %161 : vector<32x32xf32>
    %c2_63 = arith.constant 2 : index
    %c0_64 = arith.constant 0 : index
    %163 = vector.load %arg7[%c2_63, %c0_64] : memref<8x32xf32, #tpu.memory_space<vmem>>, vector<1x32xf32>
    %164 = vector.broadcast %163 : vector<1x32xf32> to vector<32x32xf32>
    %165 = arith.addf %162, %164 : vector<32x32xf32>
    %166 = arith.addf %165, %47 : vector<32x32xf32>
    %cst_65 = arith.constant 5.000000e-01 : f32
    %167 = vector.broadcast %cst_65 : f32 to vector<32x32xf32>
    %168 = arith.mulf %167, %166 : vector<32x32xf32>
    %cst_66 = arith.constant 0.707106769 : f32
    %169 = vector.broadcast %cst_66 : f32 to vector<32x32xf32>
    %170 = arith.mulf %166, %169 : vector<32x32xf32>
    %171 = math.erf %170 : vector<32x32xf32>
    %cst_67 = arith.constant 1.000000e+00 : f32
    %172 = vector.broadcast %cst_67 : f32 to vector<32x32xf32>
    %173 = arith.addf %172, %171 : vector<32x32xf32>
    %174 = arith.mulf %168, %173 : vector<32x32xf32>
    %c0_68 = arith.constant 0 : index
    %c0_69 = arith.constant 0 : index
    %175 = vector.load %arg6[%c0_68, %c0_69] : memref<32x130xf32, #tpu.memory_space<vmem>>, vector<32x128xf32>
    %cst_70 = arith.constant dense<0.000000e+00> : vector<32x128xf32>
    %176 = tpu.matmul %174, %175, %cst_70 {dimension_numbers = #tpu.dot_dimension_numbers<[1], [0], [0], [1], [0, 0, 1, 1], [], []>} : vector<32x32xf32>, vector<32x128xf32>, vector<32x128xf32> -> vector<32x128xf32>
    %c0_71 = arith.constant 0 : index
    %c8 = arith.constant 8 : index
    %177 = vector.load %arg5[%c0_71, %c8] : memref<128x16xf32, #tpu.memory_space<vmem>>, vector<128x8xf32>
    %cst_72 = arith.constant dense<0.000000e+00> : vector<32x8xf32>
    %178 = tpu.matmul %176, %177, %cst_72 {dimension_numbers = #tpu.dot_dimension_numbers<[1], [0], [0], [1], [0, 0, 1, 1], [], []>} : vector<32x128xf32>, vector<128x8xf32>, vector<32x8xf32> -> vector<32x8xf32>
    %179 = tpu.transpose %178, [1, 0] : vector<32x8xf32> -> vector<8x32xf32>
    %180 = vector.extract_strided_slice %176 {offsets = [0, 0], sizes = [32, 32], strides = [1, 1]} : vector<32x128xf32> to vector<32x32xf32>
    %181 = vector.extract_strided_slice %178 {offsets = [0, 4], sizes = [32, 1], strides = [1, 1]} : vector<32x8xf32> to vector<32x1xf32>
    %182 = vector.extract_strided_slice %179 {offsets = [0, 0], sizes = [1, 32], strides = [1, 1]} : vector<8x32xf32> to vector<1x32xf32>
    %183 = vector.broadcast %181 : vector<32x1xf32> to vector<32x32xf32>
    %184 = vector.broadcast %182 : vector<1x32xf32> to vector<32x32xf32>
    %185 = arith.addf %183, %184 : vector<32x32xf32>
    %cst_73 = arith.constant 0.000000e+00 : f32
    %186 = vector.broadcast %cst_73 : f32 to vector<32x32xf32>
    %187 = arith.cmpf ogt, %185, %186 : vector<32x32xf32>
    %cst_74 = arith.constant 2.000000e-01 : f32
    %188 = vector.broadcast %cst_74 : f32 to vector<32x32xf32>
    %189 = arith.mulf %188, %185 : vector<32x32xf32>
    %190 = arith.select %187, %185, %189 : vector<32x32xi1>, vector<32x32xf32>
    %cst_75 = arith.constant 0.000000e+00 : f32
    %191 = vector.broadcast %cst_75 : f32 to vector<32x32xf32>
    %192 = arith.cmpf ogt, %48, %191 : vector<32x32xf32>
    %cst_76 = arith.constant -1.000000e+30 : f32
    %193 = vector.broadcast %cst_76 : f32 to vector<32x32xf32>
    %194 = arith.select %192, %190, %193 : vector<32x32xi1>, vector<32x32xf32>
    %cst_77 = arith.constant dense<0xFF800000> : vector<32xf32>
    %195 = vector.multi_reduction <maximumf>, %194, %cst_77 [1] : vector<32x32xf32> to vector<32xf32>
    %196 = vector.shape_cast %195 : vector<32xf32> to vector<32x1xf32>
    %197 = vector.broadcast %196 : vector<32x1xf32> to vector<32x32xf32>
    %198 = arith.subf %194, %197 : vector<32x32xf32>
    %199 = math.exp %198 : vector<32x32xf32>
    %cst_78 = arith.constant dense<0.000000e+00> : vector<32xf32>
    %200 = vector.multi_reduction <add>, %199, %cst_78 [1] : vector<32x32xf32> to vector<32xf32>
    %201 = vector.shape_cast %200 : vector<32xf32> to vector<32x1xf32>
    %202 = vector.broadcast %201 : vector<32x1xf32> to vector<32x32xf32>
    %203 = arith.divf %199, %202 : vector<32x32xf32>
    %cst_79 = arith.constant dense<0.000000e+00> : vector<32x32xf32>
    %204 = tpu.matmul %203, %180, %cst_79 {dimension_numbers = #tpu.dot_dimension_numbers<[1], [0], [0], [1], [0, 0, 1, 1], [], []>} : vector<32x32xf32>, vector<32x32xf32>, vector<32x32xf32> -> vector<32x32xf32>
    %205 = vector.extract_strided_slice %176 {offsets = [0, 32], sizes = [32, 32], strides = [1, 1]} : vector<32x128xf32> to vector<32x32xf32>
    %206 = vector.extract_strided_slice %178 {offsets = [0, 5], sizes = [32, 1], strides = [1, 1]} : vector<32x8xf32> to vector<32x1xf32>
    %207 = vector.extract_strided_slice %179 {offsets = [1, 0], sizes = [1, 32], strides = [1, 1]} : vector<8x32xf32> to vector<1x32xf32>
    %208 = vector.broadcast %206 : vector<32x1xf32> to vector<32x32xf32>
    %209 = vector.broadcast %207 : vector<1x32xf32> to vector<32x32xf32>
    %210 = arith.addf %208, %209 : vector<32x32xf32>
    %cst_80 = arith.constant 0.000000e+00 : f32
    %211 = vector.broadcast %cst_80 : f32 to vector<32x32xf32>
    %212 = arith.cmpf ogt, %210, %211 : vector<32x32xf32>
    %cst_81 = arith.constant 2.000000e-01 : f32
    %213 = vector.broadcast %cst_81 : f32 to vector<32x32xf32>
    %214 = arith.mulf %213, %210 : vector<32x32xf32>
    %215 = arith.select %212, %210, %214 : vector<32x32xi1>, vector<32x32xf32>
    %cst_82 = arith.constant 0.000000e+00 : f32
    %216 = vector.broadcast %cst_82 : f32 to vector<32x32xf32>
    %217 = arith.cmpf ogt, %48, %216 : vector<32x32xf32>
    %cst_83 = arith.constant -1.000000e+30 : f32
    %218 = vector.broadcast %cst_83 : f32 to vector<32x32xf32>
    %219 = arith.select %217, %215, %218 : vector<32x32xi1>, vector<32x32xf32>
    %cst_84 = arith.constant dense<0xFF800000> : vector<32xf32>
    %220 = vector.multi_reduction <maximumf>, %219, %cst_84 [1] : vector<32x32xf32> to vector<32xf32>
    %221 = vector.shape_cast %220 : vector<32xf32> to vector<32x1xf32>
    %222 = vector.broadcast %221 : vector<32x1xf32> to vector<32x32xf32>
    %223 = arith.subf %219, %222 : vector<32x32xf32>
    %224 = math.exp %223 : vector<32x32xf32>
    %cst_85 = arith.constant dense<0.000000e+00> : vector<32xf32>
    %225 = vector.multi_reduction <add>, %224, %cst_85 [1] : vector<32x32xf32> to vector<32xf32>
    %226 = vector.shape_cast %225 : vector<32xf32> to vector<32x1xf32>
    %227 = vector.broadcast %226 : vector<32x1xf32> to vector<32x32xf32>
    %228 = arith.divf %224, %227 : vector<32x32xf32>
    %cst_86 = arith.constant dense<0.000000e+00> : vector<32x32xf32>
    %229 = tpu.matmul %228, %205, %cst_86 {dimension_numbers = #tpu.dot_dimension_numbers<[1], [0], [0], [1], [0, 0, 1, 1], [], []>} : vector<32x32xf32>, vector<32x32xf32>, vector<32x32xf32> -> vector<32x32xf32>
    %230 = arith.addf %204, %229 : vector<32x32xf32>
    %231 = vector.extract_strided_slice %176 {offsets = [0, 64], sizes = [32, 32], strides = [1, 1]} : vector<32x128xf32> to vector<32x32xf32>
    %232 = vector.extract_strided_slice %178 {offsets = [0, 6], sizes = [32, 1], strides = [1, 1]} : vector<32x8xf32> to vector<32x1xf32>
    %233 = vector.extract_strided_slice %179 {offsets = [2, 0], sizes = [1, 32], strides = [1, 1]} : vector<8x32xf32> to vector<1x32xf32>
    %234 = vector.broadcast %232 : vector<32x1xf32> to vector<32x32xf32>
    %235 = vector.broadcast %233 : vector<1x32xf32> to vector<32x32xf32>
    %236 = arith.addf %234, %235 : vector<32x32xf32>
    %cst_87 = arith.constant 0.000000e+00 : f32
    %237 = vector.broadcast %cst_87 : f32 to vector<32x32xf32>
    %238 = arith.cmpf ogt, %236, %237 : vector<32x32xf32>
    %cst_88 = arith.constant 2.000000e-01 : f32
    %239 = vector.broadcast %cst_88 : f32 to vector<32x32xf32>
    %240 = arith.mulf %239, %236 : vector<32x32xf32>
    %241 = arith.select %238, %236, %240 : vector<32x32xi1>, vector<32x32xf32>
    %cst_89 = arith.constant 0.000000e+00 : f32
    %242 = vector.broadcast %cst_89 : f32 to vector<32x32xf32>
    %243 = arith.cmpf ogt, %48, %242 : vector<32x32xf32>
    %cst_90 = arith.constant -1.000000e+30 : f32
    %244 = vector.broadcast %cst_90 : f32 to vector<32x32xf32>
    %245 = arith.select %243, %241, %244 : vector<32x32xi1>, vector<32x32xf32>
    %cst_91 = arith.constant dense<0xFF800000> : vector<32xf32>
    %246 = vector.multi_reduction <maximumf>, %245, %cst_91 [1] : vector<32x32xf32> to vector<32xf32>
    %247 = vector.shape_cast %246 : vector<32xf32> to vector<32x1xf32>
    %248 = vector.broadcast %247 : vector<32x1xf32> to vector<32x32xf32>
    %249 = arith.subf %245, %248 : vector<32x32xf32>
    %250 = math.exp %249 : vector<32x32xf32>
    %cst_92 = arith.constant dense<0.000000e+00> : vector<32xf32>
    %251 = vector.multi_reduction <add>, %250, %cst_92 [1] : vector<32x32xf32> to vector<32xf32>
    %252 = vector.shape_cast %251 : vector<32xf32> to vector<32x1xf32>
    %253 = vector.broadcast %252 : vector<32x1xf32> to vector<32x32xf32>
    %254 = arith.divf %250, %253 : vector<32x32xf32>
    %cst_93 = arith.constant dense<0.000000e+00> : vector<32x32xf32>
    %255 = tpu.matmul %254, %231, %cst_93 {dimension_numbers = #tpu.dot_dimension_numbers<[1], [0], [0], [1], [0, 0, 1, 1], [], []>} : vector<32x32xf32>, vector<32x32xf32>, vector<32x32xf32> -> vector<32x32xf32>
    %256 = arith.addf %230, %255 : vector<32x32xf32>
    %257 = vector.extract_strided_slice %176 {offsets = [0, 96], sizes = [32, 32], strides = [1, 1]} : vector<32x128xf32> to vector<32x32xf32>
    %258 = vector.extract_strided_slice %178 {offsets = [0, 7], sizes = [32, 1], strides = [1, 1]} : vector<32x8xf32> to vector<32x1xf32>
    %259 = vector.extract_strided_slice %179 {offsets = [3, 0], sizes = [1, 32], strides = [1, 1]} : vector<8x32xf32> to vector<1x32xf32>
    %260 = vector.broadcast %258 : vector<32x1xf32> to vector<32x32xf32>
    %261 = vector.broadcast %259 : vector<1x32xf32> to vector<32x32xf32>
    %262 = arith.addf %260, %261 : vector<32x32xf32>
    %cst_94 = arith.constant 0.000000e+00 : f32
    %263 = vector.broadcast %cst_94 : f32 to vector<32x32xf32>
    %264 = arith.cmpf ogt, %262, %263 : vector<32x32xf32>
    %cst_95 = arith.constant 2.000000e-01 : f32
    %265 = vector.broadcast %cst_95 : f32 to vector<32x32xf32>
    %266 = arith.mulf %265, %262 : vector<32x32xf32>
    %267 = arith.select %264, %262, %266 : vector<32x32xi1>, vector<32x32xf32>
    %cst_96 = arith.constant 0.000000e+00 : f32
    %268 = vector.broadcast %cst_96 : f32 to vector<32x32xf32>
    %269 = arith.cmpf ogt, %48, %268 : vector<32x32xf32>
    %cst_97 = arith.constant -1.000000e+30 : f32
    %270 = vector.broadcast %cst_97 : f32 to vector<32x32xf32>
    %271 = arith.select %269, %267, %270 : vector<32x32xi1>, vector<32x32xf32>
    %cst_98 = arith.constant dense<0xFF800000> : vector<32xf32>
    %272 = vector.multi_reduction <maximumf>, %271, %cst_98 [1] : vector<32x32xf32> to vector<32xf32>
    %273 = vector.shape_cast %272 : vector<32xf32> to vector<32x1xf32>
    %274 = vector.broadcast %273 : vector<32x1xf32> to vector<32x32xf32>
    %275 = arith.subf %271, %274 : vector<32x32xf32>
    %276 = math.exp %275 : vector<32x32xf32>
    %cst_99 = arith.constant dense<0.000000e+00> : vector<32xf32>
    %277 = vector.multi_reduction <add>, %276, %cst_99 [1] : vector<32x32xf32> to vector<32xf32>
    %278 = vector.shape_cast %277 : vector<32xf32> to vector<32x1xf32>
    %279 = vector.broadcast %278 : vector<32x1xf32> to vector<32x32xf32>
    %280 = arith.divf %276, %279 : vector<32x32xf32>
    %cst_100 = arith.constant dense<0.000000e+00> : vector<32x32xf32>
    %281 = tpu.matmul %280, %257, %cst_100 {dimension_numbers = #tpu.dot_dimension_numbers<[1], [0], [0], [1], [0, 0, 1, 1], [], []>} : vector<32x32xf32>, vector<32x32xf32>, vector<32x32xf32> -> vector<32x32xf32>
    %282 = arith.addf %256, %281 : vector<32x32xf32>
    %cst_101 = arith.constant 2.500000e-01 : f32
    %283 = vector.broadcast %cst_101 : f32 to vector<32x32xf32>
    %284 = arith.mulf %282, %283 : vector<32x32xf32>
    %c4 = arith.constant 4 : index
    %c0_102 = arith.constant 0 : index
    %285 = vector.load %arg7[%c4, %c0_102] : memref<8x32xf32, #tpu.memory_space<vmem>>, vector<1x32xf32>
    %286 = vector.broadcast %285 : vector<1x32xf32> to vector<32x32xf32>
    %287 = arith.addf %284, %286 : vector<32x32xf32>
    %c5 = arith.constant 5 : index
    %c0_103 = arith.constant 0 : index
    %288 = vector.load %arg7[%c5, %c0_103] : memref<8x32xf32, #tpu.memory_space<vmem>>, vector<1x32xf32>
    %289 = vector.broadcast %288 : vector<1x32xf32> to vector<32x32xf32>
    %290 = arith.mulf %287, %289 : vector<32x32xf32>
    %c6 = arith.constant 6 : index
    %c0_104 = arith.constant 0 : index
    %291 = vector.load %arg7[%c6, %c0_104] : memref<8x32xf32, #tpu.memory_space<vmem>>, vector<1x32xf32>
    %292 = vector.broadcast %291 : vector<1x32xf32> to vector<32x32xf32>
    %293 = arith.addf %290, %292 : vector<32x32xf32>
    %294 = arith.addf %293, %174 : vector<32x32xf32>
    %cst_105 = arith.constant 5.000000e-01 : f32
    %295 = vector.broadcast %cst_105 : f32 to vector<32x32xf32>
    %296 = arith.mulf %295, %294 : vector<32x32xf32>
    %cst_106 = arith.constant 0.707106769 : f32
    %297 = vector.broadcast %cst_106 : f32 to vector<32x32xf32>
    %298 = arith.mulf %294, %297 : vector<32x32xf32>
    %299 = math.erf %298 : vector<32x32xf32>
    %cst_107 = arith.constant 1.000000e+00 : f32
    %300 = vector.broadcast %cst_107 : f32 to vector<32x32xf32>
    %301 = arith.addf %300, %299 : vector<32x32xf32>
    %302 = arith.mulf %296, %301 : vector<32x32xf32>
    %c0_108 = arith.constant 0 : index
    %c0_109 = arith.constant 0 : index
    %303 = vector.load %arg9[%c0_108, %c0_109] : memref<2x32xf32, #tpu.memory_space<vmem>>, vector<2x32xf32>
    %cst_110 = arith.constant dense<0.000000e+00> : vector<2x32xf32>
    %304 = tpu.matmul %303, %302, %cst_110 {dimension_numbers = #tpu.dot_dimension_numbers<[1], [0], [0], [1], [0, 0, 1, 1], [], []>} : vector<2x32xf32>, vector<32x32xf32>, vector<2x32xf32> -> vector<2x32xf32>
    %c0_111 = arith.constant 0 : index
    %c128 = arith.constant 128 : index
    %305 = vector.load %arg6[%c0_111, %c128] : memref<32x130xf32, #tpu.memory_space<vmem>>, vector<32x2xf32>
    %cst_112 = arith.constant dense<0.000000e+00> : vector<2x2xf32>
    %306 = tpu.matmul %304, %305, %cst_112 {dimension_numbers = #tpu.dot_dimension_numbers<[1], [0], [0], [1], [0, 0, 1, 1], [], []>} : vector<2x32xf32>, vector<32x2xf32>, vector<2x2xf32> -> vector<2x2xf32>
    %c7 = arith.constant 7 : index
    %c0_113 = arith.constant 0 : index
    %307 = vector.load %arg7[%c7, %c0_113] : memref<8x32xf32, #tpu.memory_space<vmem>>, vector<1x2xf32>
    %308 = vector.broadcast %307 : vector<1x2xf32> to vector<2x2xf32>
    %309 = arith.addf %306, %308 : vector<2x2xf32>
    %c0_114 = arith.constant 0 : index
    %c0_115 = arith.constant 0 : index
    %310 = vector.load %arg10[%c0_114, %c0_115] : memref<2x2xf32, #tpu.memory_space<vmem>>, vector<2x2xf32>
    tpu.vector_store %arg10[%c0_114, %c0_115], %309 {strides = array<i32>} : memref<2x2xf32, #tpu.memory_space<vmem>>, vector<2x2xf32>,
    return
  }
}

</mosaic_0001>

<llo_original>
// kernel: hybrid_eeg_gnn_forward.1
$region0: #{hybrid_eeg_gnn_forward.1}
  #allocation0 [shape = 'u32[]', space=smem, size = 0x4, offset = 0x4, fixed_abs, tag = 'smem constant byte address 0x4 - core index']
  #allocation1 [shape = 'u32[144,128]{1,0:T(1,128)}', space=vmem, size = 0x12000, scoped, tag = 'internal scratch']
  %s0 = inlined_call_operand.vmem [shape: f32[32,88], index: 0, kind: input, shape index: {}]
  %s1 = inlined_call_operand.vmem [shape: f32[88,1024], index: 1, kind: input, shape index: {}]
  %s2 = inlined_call_operand.vmem [shape: f32[4,1040], index: 2, kind: input, shape index: {}]
  %s3 = inlined_call_operand.vmem [shape: f32[1024,1040], index: 3, kind: input, shape index: {}]
  %s4 = inlined_call_operand.vmem [shape: f32[1040,160], index: 4, kind: input, shape index: {}]
  %s5 = inlined_call_operand.vmem [shape: f32[128,16], index: 5, kind: input, shape index: {}]
  %s6 = inlined_call_operand.vmem [shape: f32[32,130], index: 6, kind: input, shape index: {}]
  %s7 = inlined_call_operand.vmem [shape: f32[8,32], index: 7, kind: input, shape index: {}]
  %s8 = inlined_call_operand.vmem [shape: f32[32,32], index: 8, kind: input, shape index: {}]
  %s9 = inlined_call_operand.vmem [shape: f32[2,32], index: 9, kind: input, shape index: {}]
  %s10 = inlined_call_operand.hbm [shape: f32[2,2], index: 10, kind: output, shape index: {}]
  %s11 = sld [smem:[#allocation0]]
  $region50: #{hybrid_eeg_gnn_forward.1} parent=0
    _
  %s13 = ssub.s32 1, %s11
  %s14 = scalar_select 0, %s13, %s11
  $region1: #{hybrid_eeg_gnn_forward.1} parent=0
    #allocation2 [shape = 'u8[1024]{0}', space=vmem, size = 0x400, scoped, tag = 'output window, operand 0, single buffered']
    #allocation3 [shape = 's32[1]{0}', space=sflag, size = 0x4, scoped, tag = 'scoped memory for hybrid_eeg_gnn_forward.1']
    %15 = vsyncpa [#allocation3], 0
    // Predicated region
    $region2: #{hybrid_eeg_gnn_forward.1} parent=1 // pred_check
      _
    $region3: #{hybrid_eeg_gnn_forward.1} parent=1 // pred_check_branch
      %17 = sbr.rel (0) target = $region5
    $region4: #{hybrid_eeg_gnn_forward.1} parent=1 // pred_region
      _
    $region5: #{hybrid_eeg_gnn_forward.1} parent=1 // pred_fallthru
      _
    // Predicated region
    $region6: #{hybrid_eeg_gnn_forward.1} parent=1 // pred_check
      _
    $region7: #{hybrid_eeg_gnn_forward.1} parent=1 // pred_check_branch
      %19 = sbr.rel (0) target = $region9
    $region8: #{hybrid_eeg_gnn_forward.1} parent=1 // pred_region
      _
    $region9: #{hybrid_eeg_gnn_forward.1} parent=1 // pred_fallthru
      _
    // Predicated region
    $region10: #{hybrid_eeg_gnn_forward.1} parent=1 // pred_check
      _
    $region11: #{hybrid_eeg_gnn_forward.1} parent=1 // pred_check_branch
      %21 = sbr.rel (0) target = $region13
    $region12: #{hybrid_eeg_gnn_forward.1} parent=1 // pred_region
      _
    $region13: #{hybrid_eeg_gnn_forward.1} parent=1 // pred_fallthru
      _
    // Predicated region
    $region14: #{hybrid_eeg_gnn_forward.1} parent=1 // pred_check
      _
    $region15: #{hybrid_eeg_gnn_forward.1} parent=1 // pred_check_branch
      %23 = sbr.rel (0) target = $region17
    $region16: #{hybrid_eeg_gnn_forward.1} parent=1 // pred_region
      _
    $region17: #{hybrid_eeg_gnn_forward.1} parent=1 // pred_fallthru
      _
    // Predicated region
    $region18: #{hybrid_eeg_gnn_forward.1} parent=1 // pred_check
      _
    $region19: #{hybrid_eeg_gnn_forward.1} parent=1 // pred_check_branch
      %25 = sbr.rel (0) target = $region21
    $region20: #{hybrid_eeg_gnn_forward.1} parent=1 // pred_region
      _
    $region21: #{hybrid_eeg_gnn_forward.1} parent=1 // pred_fallthru
      _
    // Predicated region
    $region22: #{hybrid_eeg_gnn_forward.1} parent=1 // pred_check
      _
    $region23: #{hybrid_eeg_gnn_forward.1} parent=1 // pred_check_branch
      %27 = sbr.rel (0) target = $region25
    $region24: #{hybrid_eeg_gnn_forward.1} parent=1 // pred_region
      _
    $region25: #{hybrid_eeg_gnn_forward.1} parent=1 // pred_fallthru
      _
    // Predicated region
    $region26: #{hybrid_eeg_gnn_forward.1} parent=1 // pred_check
      _
    $region27: #{hybrid_eeg_gnn_forward.1} parent=1 // pred_check_branch
      %29 = sbr.rel (0) target = $region29
    $region28: #{hybrid_eeg_gnn_forward.1} parent=1 // pred_region
      _
    $region29: #{hybrid_eeg_gnn_forward.1} parent=1 // pred_fallthru
      _
    // Predicated region
    $region30: #{hybrid_eeg_gnn_forward.1} parent=1 // pred_check
      _
    $region31: #{hybrid_eeg_gnn_forward.1} parent=1 // pred_check_branch
      %31 = sbr.rel (0) target = $region33
    $region32: #{hybrid_eeg_gnn_forward.1} parent=1 // pred_region
      _
    $region33: #{hybrid_eeg_gnn_forward.1} parent=1 // pred_fallthru
      _
    // Predicated region
    $region34: #{hybrid_eeg_gnn_forward.1} parent=1 // pred_check
      _
    $region35: #{hybrid_eeg_gnn_forward.1} parent=1 // pred_check_branch
      %33 = sbr.rel (0) target = $region37
    $region36: #{hybrid_eeg_gnn_forward.1} parent=1 // pred_region
      _
    $region37: #{hybrid_eeg_gnn_forward.1} parent=1 // pred_fallthru
      _
    // Predicated region
    $region38: #{hybrid_eeg_gnn_forward.1} parent=1 // pred_check
      _
    $region39: #{hybrid_eeg_gnn_forward.1} parent=1 // pred_check_branch
      %35 = sbr.rel (0) target = $region41
    $region40: #{hybrid_eeg_gnn_forward.1} parent=1 // pred_region
      _
    $region41: #{hybrid_eeg_gnn_forward.1} parent=1 // pred_fallthru
      _
    %v36 = vld [vmem:[%s0] sm:$0xff]
    %v37 = vld [vmem:[%s0 + $0x8] sm:$0xff]
    %v38 = vld [vmem:[%s0 + $0x10] sm:$0xff]
    %v39 = vld [vmem:[%s0 + $0x18] sm:$0xff]
    %v40 = vld [vmem:[%s1] sm:$0xff]
    %v41 = vld [vmem:[%s1 + $0x8] sm:$0xff]
    %v42 = vld [vmem:[%s1 + $0x10] sm:$0xff]
    %v43 = vld [vmem:[%s1 + $0x18] sm:$0xff]
    %v44 = vld [vmem:[%s1 + $0x20] sm:$0xff]
    %v45 = vld [vmem:[%s1 + $0x28] sm:$0xff]
    %v46 = vld [vmem:[%s1 + $0x30] sm:$0xff]
    %v47 = vld [vmem:[%s1 + $0x38] sm:$0xff]
    %v48 = vld [vmem:[%s1 + $0x40] sm:$0xff]
    %v49 = vld [vmem:[%s1 + $0x48] sm:$0xff]
    %v50 = vld [vmem:[%s1 + $0x50] sm:$0xff]
    %v51 = vld [vmem:[%s1 + $0x58] sm:$0xff]
    %v52 = vld [vmem:[%s1 + $0x60] sm:$0xff]
    %v53 = vld [vmem:[%s1 + $0x68] sm:$0xff]
    %v54 = vld [vmem:[%s1 + $0x70] sm:$0xff]
    %v55 = vld [vmem:[%s1 + $0x78] sm:$0xff]
    %v56 = vld [vmem:[%s1 + $0x80] sm:$0xff]
    %v57 = vld [vmem:[%s1 + $0x88] sm:$0xff]
    %v58 = vld [vmem:[%s1 + $0x90] sm:$0xff]
    %v59 = vld [vmem:[%s1 + $0x98] sm:$0xff]
    %v60 = vld [vmem:[%s1 + $0xa0] sm:$0xff]
    %v61 = vld [vmem:[%s1 + $0xa8] sm:$0xff]
    %v62 = vld [vmem:[%s1 + $0xb0] sm:$0xff]
    %v63 = vld [vmem:[%s1 + $0xb8] sm:$0xff]
    %v64 = vld [vmem:[%s1 + $0xc0] sm:$0xff]
    %v65 = vld [vmem:[%s1 + $0xc8] sm:$0xff]
    %v66 = vld [vmem:[%s1 + $0xd0] sm:$0xff]
    %v67 = vld [vmem:[%s1 + $0xd8] sm:$0xff]
    %v68 = vld [vmem:[%s1 + $0xe0] sm:$0xff]
    %v69 = vld [vmem:[%s1 + $0xe8] sm:$0xff]
    %v70 = vld [vmem:[%s1 + $0xf0] sm:$0xff]
    %v71 = vld [vmem:[%s1 + $0xf8] sm:$0xff]
    %v72 = vld [vmem:[%s1 + $0x100] sm:$0xff]
    %v73 = vld [vmem:[%s1 + $0x108] sm:$0xff]
    %v74 = vld [vmem:[%s1 + $0x110] sm:$0xff]
    %v75 = vld [vmem:[%s1 + $0x118] sm:$0xff]
    %v76 = vld [vmem:[%s1 + $0x120] sm:$0xff]
    %v77 = vld [vmem:[%s1 + $0x128] sm:$0xff]
    %v78 = vld [vmem:[%s1 + $0x130] sm:$0xff]
    %v79 = vld [vmem:[%s1 + $0x138] sm:$0xff]
    %v80 = vld [vmem:[%s1 + $0x140] sm:$0xff]
    %v81 = vld [vmem:[%s1 + $0x148] sm:$0xff]
    %v82 = vld [vmem:[%s1 + $0x150] sm:$0xff]
    %v83 = vld [vmem:[%s1 + $0x158] sm:$0xff]
    %v84 = vld [vmem:[%s1 + $0x160] sm:$0xff]
    %v85 = vld [vmem:[%s1 + $0x168] sm:$0xff]
    %v86 = vld [vmem:[%s1 + $0x170] sm:$0xff]
    %v87 = vld [vmem:[%s1 + $0x178] sm:$0xff]
    %v88 = vld [vmem:[%s1 + $0x180] sm:$0xff]
    %v89 = vld [vmem:[%s1 + $0x188] sm:$0xff]
    %v90 = vld [vmem:[%s1 + $0x190] sm:$0xff]
    %v91 = vld [vmem:[%s1 + $0x198] sm:$0xff]
    %v92 = vld [vmem:[%s1 + $0x1a0] sm:$0xff]
    %v93 = vld [vmem:[%s1 + $0x1a8] sm:$0xff]
    %v94 = vld [vmem:[%s1 + $0x1b0] sm:$0xff]
    %v95 = vld [vmem:[%s1 + $0x1b8] sm:$0xff]
    %v96 = vld [vmem:[%s1 + $0x1c0] sm:$0xff]
    %v97 = vld [vmem:[%s1 + $0x1c8] sm:$0xff]
    %v98 = vld [vmem:[%s1 + $0x1d0] sm:$0xff]
    %v99 = vld [vmem:[%s1 + $0x1d8] sm:$0xff]
    %v100 = vld [vmem:[%s1 + $0x1e0] sm:$0xff]
    %v101 = vld [vmem:[%s1 + $0x1e8] sm:$0xff]
    %v102 = vld [vmem:[%s1 + $0x1f0] sm:$0xff]
    %v103 = vld [vmem:[%s1 + $0x1f8] sm:$0xff]
    %v104 = vld [vmem:[%s1 + $0x200] sm:$0xff]
    %v105 = vld [vmem:[%s1 + $0x208] sm:$0xff]
    %v106 = vld [vmem:[%s1 + $0x210] sm:$0xff]
    %v107 = vld [vmem:[%s1 + $0x218] sm:$0xff]
    %v108 = vld [vmem:[%s1 + $0x220] sm:$0xff]
    %v109 = vld [vmem:[%s1 + $0x228] sm:$0xff]
    %v110 = vld [vmem:[%s1 + $0x230] sm:$0xff]
    %v111 = vld [vmem:[%s1 + $0x238] sm:$0xff]
    %v112 = vld [vmem:[%s1 + $0x240] sm:$0xff]
    %v113 = vld [vmem:[%s1 + $0x248] sm:$0xff]
    %v114 = vld [vmem:[%s1 + $0x250] sm:$0xff]
    %v115 = vld [vmem:[%s1 + $0x258] sm:$0xff]
    %v116 = vld [vmem:[%s1 + $0x260] sm:$0xff]
    %v117 = vld [vmem:[%s1 + $0x268] sm:$0xff]
    %v118 = vld [vmem:[%s1 + $0x270] sm:$0xff]
    %v119 = vld [vmem:[%s1 + $0x278] sm:$0xff]
    %v120 = vld [vmem:[%s1 + $0x280] sm:$0xff]
    %v121 = vld [vmem:[%s1 + $0x288] sm:$0xff]
    %v122 = vld [vmem:[%s1 + $0x290] sm:$0xff]
    %v123 = vld [vmem:[%s1 + $0x298] sm:$0xff]
    %v124 = vld [vmem:[%s1 + $0x2a0] sm:$0xff]
    %v125 = vld [vmem:[%s1 + $0x2a8] sm:$0xff]
    %v126 = vld [vmem:[%s1 + $0x2b0] sm:$0xff]
    %v127 = vld [vmem:[%s1 + $0x2b8] sm:$0xff]
    %v128 = vld [vmem:[%s2] ss:$4 sm:$0xff]
    %v130 = vlaneseq
    %v131 = vshrl.u32 %v130, 7
    %v132 = vsub.s32 0, %v131
    %v133 = vrot.slane %v128, %v132
    %v134 = vlaneseq
    %v135 = vshrl.u32 %v134, 7
    %v136 = vsub.s32 1, %v135
    %v137 = vrot.slane %v128, %v136
    %v138 = vlaneseq
    %v139 = vshrl.u32 %v138, 7
    %v140 = vsub.s32 2, %v139
    %v141 = vrot.slane %v128, %v140
    %v142 = vlaneseq
    %v143 = vshrl.u32 %v142, 7
    %v144 = vsub.s32 3, %v143
    %v145 = vrot.slane %v128, %v144
    %v146 = vlaneseq
    %v147 = vshrl.u32 %v146, 7
    %v148 = vsub.s32 4, %v147
    %v149 = vrot.slane %v128, %v148
    %v150 = vlaneseq
    %v151 = vshrl.u32 %v150, 7
    %v152 = vsub.s32 5, %v151
    %v153 = vrot.slane %v128, %v152
    %v154 = vlaneseq
    %v155 = vshrl.u32 %v154, 7
    %v156 = vsub.s32 6, %v155
    %v157 = vrot.slane %v128, %v156
    %v158 = vlaneseq
    %v159 = vshrl.u32 %v158, 7
    %v160 = vsub.s32 7, %v159
    %v161 = vrot.slane %v128, %v160
    %vm170 = vcmask 719872
    %v172 = vsel %vm170, %v36, 0
    %v175 = vsel %vm170, %v37, 0
    %v178 = vsel %vm170, %v38, 0
    %v181 = vsel %vm170, %v39, 0
    %183 = vmatprep.subr.mxu0 %v41
    %184 = vmatpush1.msra.mxu0 %v40
    %185 = vmatprep.subr.mxu0 %v49
    %186 = vmatpush1.msra.mxu0 %v48
    %187 = vmatprep.subr.mxu0 %v57
    %188 = vmatpush1.msra.mxu0 %v56
    %189 = vmatprep.subr.mxu0 %v65
    %190 = vmatpush1.msra.mxu0 %v64
    %191 = vmatprep.subr.mxu0 %v73
    %192 = vmatpush1.msra.mxu0 %v72
    %193 = vmatprep.subr.mxu0 %v81
    %194 = vmatpush1.msra.mxu0 %v80
    %195 = vmatprep.subr.mxu0 %v89
    %196 = vmatpush1.msra.mxu0 %v88
    %197 = vmatprep.subr.mxu0 %v97
    %198 = vmatpush1.msra.mxu0 %v96
    %199 = vmatprep.subr.mxu0 %v105
    %200 = vmatpush1.msra.mxu0 %v104
    %201 = vmatprep.subr.mxu0 %v113
    %202 = vmatpush1.msra.mxu0 %v112
    %203 = vmatprep.subr.mxu0 %v121
    %204 = vmatpush1.msra.mxu0 %v120
    %205 = vmatprep.subr.mxu0 0.0
    %206 = vmatpush1.msra.mxu0 0.0
    %207 = vmatprep.subr.mxu0 0.0
    %208 = vmatpush1.msra.mxu0 0.0
    %209 = vmatprep.subr.mxu0 0.0
    %210 = vmatpush1.msra.mxu0 0.0
    %211 = vmatprep.subr.mxu0 0.0
    %212 = vmatpush1.msra.mxu0 0.0
    %213 = vmatprep.subr.mxu0 0.0
    %214 = vmatpush1.msra.mxu0 0.0
    %215 = vmatprep.subr.mxu0 0.0
    %216 = vmatpush1.msra.mxu0 0.0
    %217 = vmatprep.subr.mxu0 0.0
    %218 = vmatpush1.msra.mxu0 0.0
    %219 = vmatprep.subr.mxu0 0.0
    %220 = vmatpush1.msra.mxu0 0.0
    %221 = vmatprep.subr.mxu0 0.0
    %222 = vmatpush1.msra.mxu0 0.0
    %223 = vmatprep.subr.mxu0 0.0
    %224 = vmatpush1.msra.mxu0 0.0
    %225 = vmatprep.subr.mxu0 0.0
    %226 = vmatpush1.msra.mxu0 0.0
    %227 = vmatprep.subr.mxu0 0.0
    %228 = vmatpush1.msra.mxu0 0.0
    %229 = vmatprep.subr.mxu0 0.0
    %230 = vmatpush1.msra.mxu0 0.0
    %231 = vmatprep.subr.mxu0 0.0
    %232 = vmatpush1.msra.mxu0 0.0
    %233 = vmatprep.subr.mxu0 0.0
    %234 = vmatpush1.msra.mxu0 0.0
    %235 = vmatprep.subr.mxu0 0.0
    %236 = vmatpush1.msra.mxu0 0.0
    %237 = vmatprep.subr.mxu0 0.0
    %238 = vmatpush1.msra.mxu0 0.0
    %239 = vmatprep.subr.mxu0 0.0
    %240 = vmatpush1.msra.mxu0 0.0
    %241 = vmatprep.subr.mxu0 0.0
    %242 = vmatpush1.msra.mxu0 0.0
    %243 = vmatprep.subr.mxu0 0.0
    %244 = vmatpush1.msra.mxu0 0.0
    %245 = vmatprep.subr.mxu0 0.0
    %246 = vmatpush1.msra.mxu0 0.0
    %247 = vmatprep.mubr.f32.mxu0 0.0
    %248 = vmatmul.mubr.f32.gmra.mrb[0].mxu0 %v172
    %v249 = vpop.f32.mrb[0].mxu0
    %v250 = vadd.f32 %v133, %v249
    %v251 = vpop.f32.mrb[0].mxu0
    %v252 = vadd.f32 %v137, %v251
    %253 = vmatprep.mubr.f32.mxu0 0.0
    %254 = vmatmul.mubr.f32.gmra.mrb[0].mxu0 %v175
    %v255 = vpop.f32.mrb[0].mxu0
    %v256 = vadd.f32 %v133, %v255
    %v257 = vpop.f32.mrb[0].mxu0
    %v258 = vadd.f32 %v137, %v257
    %259 = vmatprep.mubr.f32.mxu0 0.0
    %260 = vmatmul.mubr.f32.gmra.mrb[0].mxu0 %v178
    %v261 = vpop.f32.mrb[0].mxu0
    %v262 = vadd.f32 %v133, %v261
    %v263 = vpop.f32.mrb[0].mxu0
    %v264 = vadd.f32 %v137, %v263
    %265 = vmatprep.mubr.f32.mxu0 0.0
    %266 = vmatmul.mubr.f32.gmra.mrb[0].mxu0 %v181
    %v267 = vpop.f32.mrb[0].mxu0
    %v268 = vadd.f32 %v133, %v267
    %v269 = vpop.f32.mrb[0].mxu0
    %v270 = vadd.f32 %v137, %v269
    %271 = vdwg.mxu0
    %272 = vmatprep.subr.mxu0 %v43
    %273 = vmatpush1.msra.mxu0 %v42
    %274 = vmatprep.subr.mxu0 %v51
    %275 = vmatpush1.msra.mxu0 %v50
    %276 = vmatprep.subr.mxu0 %v59
    %277 = vmatpush1.msra.mxu0 %v58
    %278 = vmatprep.subr.mxu0 %v67
    %279 = vmatpush1.msra.mxu0 %v66
    %280 = vmatprep.subr.mxu0 %v75
    %281 = vmatpush1.msra.mxu0 %v74
    %282 = vmatprep.subr.mxu0 %v83
    %283 = vmatpush1.msra.mxu0 %v82
    %284 = vmatprep.subr.mxu0 %v91
    %285 = vmatpush1.msra.mxu0 %v90
    %286 = vmatprep.subr.mxu0 %v99
    %287 = vmatpush1.msra.mxu0 %v98
    %288 = vmatprep.subr.mxu0 %v107
    %289 = vmatpush1.msra.mxu0 %v106
    %290 = vmatprep.subr.mxu0 %v115
    %291 = vmatpush1.msra.mxu0 %v114
    %292 = vmatprep.subr.mxu0 %v123
    %293 = vmatpush1.msra.mxu0 %v122
    %294 = vmatprep.subr.mxu0 0.0
    %295 = vmatpush1.msra.mxu0 0.0
    %296 = vmatprep.subr.mxu0 0.0
    %297 = vmatpush1.msra.mxu0 0.0
    %298 = vmatprep.subr.mxu0 0.0
    %299 = vmatpush1.msra.mxu0 0.0
    %300 = vmatprep.subr.mxu0 0.0
    %301 = vmatpush1.msra.mxu0 0.0
    %302 = vmatprep.subr.mxu0 0.0
    %303 = vmatpush1.msra.mxu0 0.0
    %304 = vmatprep.subr.mxu0 0.0
    %305 = vmatpush1.msra.mxu0 0.0
    %306 = vmatprep.subr.mxu0 0.0
    %307 = vmatpush1.msra.mxu0 0.0
    %308 = vmatprep.subr.mxu0 0.0
    %309 = vmatpush1.msra.mxu0 0.0
    %310 = vmatprep.subr.mxu0 0.0
    %311 = vmatpush1.msra.mxu0 0.0
    %312 = vmatprep.subr.mxu0 0.0
    %313 = vmatpush1.msra.mxu0 0.0
    %314 = vmatprep.subr.mxu0 0.0
    %315 = vmatpush1.msra.mxu0 0.0
    %316 = vmatprep.subr.mxu0 0.0
    %317 = vmatpush1.msra.mxu0 0.0
    %318 = vmatprep.subr.mxu0 0.0
    %319 = vmatpush1.msra.mxu0 0.0
    %320 = vmatprep.subr.mxu0 0.0
    %321 = vmatpush1.msra.mxu0 0.0
    %322 = vmatprep.subr.mxu0 0.0
    %323 = vmatpush1.msra.mxu0 0.0
    %324 = vmatprep.subr.mxu0 0.0
    %325 = vmatpush1.msra.mxu0 0.0
    %326 = vmatprep.subr.mxu0 0.0
    %327 = vmatpush1.msra.mxu0 0.0
    %328 = vmatprep.subr.mxu0 0.0
    %329 = vmatpush1.msra.mxu0 0.0
    %330 = vmatprep.subr.mxu0 0.0
    %331 = vmatpush1.msra.mxu0 0.0
    %332 = vmatprep.subr.mxu0 0.0
    %333 = vmatpush1.msra.mxu0 0.0
    %334 = vmatprep.subr.mxu0 0.0
    %335 = vmatpush1.msra.mxu0 0.0
    %336 = vmatprep.mubr.f32.mxu0 0.0
    %337 = vmatmul.mubr.f32.gmra.mrb[0].mxu0 %v172
    %v338 = vpop.f32.mrb[0].mxu0
    %v339 = vadd.f32 %v141, %v338
    %v340 = vpop.f32.mrb[0].mxu0
    %v341 = vadd.f32 %v145, %v340
    %342 = vmatprep.mubr.f32.mxu0 0.0
    %343 = vmatmul.mubr.f32.gmra.mrb[0].mxu0 %v175
    %v344 = vpop.f32.mrb[0].mxu0
    %v345 = vadd.f32 %v141, %v344
    %v346 = vpop.f32.mrb[0].mxu0
    %v347 = vadd.f32 %v145, %v346
    %348 = vmatprep.mubr.f32.mxu0 0.0
    %349 = vmatmul.mubr.f32.gmra.mrb[0].mxu0 %v178
    %v350 = vpop.f32.mrb[0].mxu0
    %v351 = vadd.f32 %v141, %v350
    %v352 = vpop.f32.mrb[0].mxu0
    %v353 = vadd.f32 %v145, %v352
    %354 = vmatprep.mubr.f32.mxu0 0.0
    %355 = vmatmul.mubr.f32.gmra.mrb[0].mxu0 %v181
    %v356 = vpop.f32.mrb[0].mxu0
    %v357 = vadd.f32 %v141, %v356
    %v358 = vpop.f32.mrb[0].mxu0
    %v359 = vadd.f32 %v145, %v358
    %360 = vdwg.mxu0
    %361 = vmatprep.subr.mxu0 %v45
    %362 = vmatpush1.msra.mxu0 %v44
    %363 = vmatprep.subr.mxu0 %v53
    %364 = vmatpush1.msra.mxu0 %v52
    %365 = vmatprep.subr.mxu0 %v61
    %366 = vmatpush1.msra.mxu0 %v60
    %367 = vmatprep.subr.mxu0 %v69
    %368 = vmatpush1.msra.mxu0 %v68
    %369 = vmatprep.subr.mxu0 %v77
    %370 = vmatpush1.msra.mxu0 %v76
    %371 = vmatprep.subr.mxu0 %v85
    %372 = vmatpush1.msra.mxu0 %v84
    %373 = vmatprep.subr.mxu0 %v93
    %374 = vmatpush1.msra.mxu0 %v92
    %375 = vmatprep.subr.mxu0 %v101
    %376 = vmatpush1.msra.mxu0 %v100
    %377 = vmatprep.subr.mxu0 %v109
    %378 = vmatpush1.msra.mxu0 %v108
    %379 = vmatprep.subr.mxu0 %v117
    %380 = vmatpush1.msra.mxu0 %v116
    %381 = vmatprep.subr.mxu0 %v125
    %382 = vmatpush1.msra.mxu0 %v124
    %383 = vmatprep.subr.mxu0 0.0
    %384 = vmatpush1.msra.mxu0 0.0
    %385 = vmatprep.subr.mxu0 0.0
    %386 = vmatpush1.msra.mxu0 0.0
    %387 = vmatprep.subr.mxu0 0.0
    %388 = vmatpush1.msra.mxu0 0.0
    %389 = vmatprep.subr.mxu0 0.0
    %390 = vmatpush1.msra.mxu0 0.0
    %391 = vmatprep.subr.mxu0 0.0
    %392 = vmatpush1.msra.mxu0 0.0
    %393 = vmatprep.subr.mxu0 0.0
    %394 = vmatpush1.msra.mxu0 0.0
    %395 = vmatprep.subr.mxu0 0.0
    %396 = vmatpush1.msra.mxu0 0.0
    %397 = vmatprep.subr.mxu0 0.0
    %398 = vmatpush1.msra.mxu0 0.0
    %399 = vmatprep.subr.mxu0 0.0
    %400 = vmatpush1.msra.mxu0 0.0
    %401 = vmatprep.subr.mxu0 0.0
    %402 = vmatpush1.msra.mxu0 0.0
    %403 = vmatprep.subr.mxu0 0.0
    %404 = vmatpush1.msra.mxu0 0.0
    %405 = vmatprep.subr.mxu0 0.0
    %406 = vmatpush1.msra.mxu0 0.0
    %407 = vmatprep.subr.mxu0 0.0
    %408 = vmatpush1.msra.mxu0 0.0
    %409 = vmatprep.subr.mxu0 0.0
    %410 = vmatpush1.msra.mxu0 0.0
    %411 = vmatprep.subr.mxu0 0.0
    %412 = vmatpush1.msra.mxu0 0.0
    %413 = vmatprep.subr.mxu0 0.0
    %414 = vmatpush1.msra.mxu0 0.0
    %415 = vmatprep.subr.mxu0 0.0
    %416 = vmatpush1.msra.mxu0 0.0
    %417 = vmatprep.subr.mxu0 0.0
    %418 = vmatpush1.msra.mxu0 0.0
    %419 = vmatprep.subr.mxu0 0.0
    %420 = vmatpush1.msra.mxu0 0.0
    %421 = vmatprep.subr.mxu0 0.0
    %422 = vmatpush1.msra.mxu0 0.0
    %423 = vmatprep.subr.mxu0 0.0
    %424 = vmatpush1.msra.mxu0 0.0
    %425 = vmatprep.mubr.f32.mxu0 0.0
    %426 = vmatmul.mubr.f32.gmra.mrb[0].mxu0 %v172
    %v427 = vpop.f32.mrb[0].mxu0
    %v428 = vadd.f32 %v149, %v427
    %v429 = vpop.f32.mrb[0].mxu0
    %v430 = vadd.f32 %v153, %v429
    %431 = vmatprep.mubr.f32.mxu0 0.0
    %432 = vmatmul.mubr.f32.gmra.mrb[0].mxu0 %v175
    %v433 = vpop.f32.mrb[0].mxu0
    %v434 = vadd.f32 %v149, %v433
    %v435 = vpop.f32.mrb[0].mxu0
    %v436 = vadd.f32 %v153, %v435
    %437 = vmatprep.mubr.f32.mxu0 0.0
    %438 = vmatmul.mubr.f32.gmra.mrb[0].mxu0 %v178
    %v439 = vpop.f32.mrb[0].mxu0
    %v440 = vadd.f32 %v149, %v439
    %v441 = vpop.f32.mrb[0].mxu0
    %v442 = vadd.f32 %v153, %v441
    %443 = vmatprep.mubr.f32.mxu0 0.0
    %444 = vmatmul.mubr.f32.gmra.mrb[0].mxu0 %v181
    %v445 = vpop.f32.mrb[0].mxu0
    %v446 = vadd.f32 %v149, %v445
    %v447 = vpop.f32.mrb[0].mxu0
    %v448 = vadd.f32 %v153, %v447
    %449 = vdwg.mxu0
    %450 = vmatprep.subr.mxu0 %v47
    %451 = vmatpush1.msra.mxu0 %v46
    %452 = vmatprep.subr.mxu0 %v55
    %453 = vmatpush1.msra.mxu0 %v54
    %454 = vmatprep.subr.mxu0 %v63
    %455 = vmatpush1.msra.mxu0 %v62
    %456 = vmatprep.subr.mxu0 %v71
    %457 = vmatpush1.msra.mxu0 %v70
    %458 = vmatprep.subr.mxu0 %v79
    %459 = vmatpush1.msra.mxu0 %v78
    %460 = vmatprep.subr.mxu0 %v87
    %461 = vmatpush1.msra.mxu0 %v86
    %462 = vmatprep.subr.mxu0 %v95
    %463 = vmatpush1.msra.mxu0 %v94
    %464 = vmatprep.subr.mxu0 %v103
    %465 = vmatpush1.msra.mxu0 %v102
    %466 = vmatprep.subr.mxu0 %v111
    %467 = vmatpush1.msra.mxu0 %v110
    %468 = vmatprep.subr.mxu0 %v119
    %469 = vmatpush1.msra.mxu0 %v118
    %470 = vmatprep.subr.mxu0 %v127
    %471 = vmatpush1.msra.mxu0 %v126
    %472 = vmatprep.subr.mxu0 0.0
    %473 = vmatpush1.msra.mxu0 0.0
    %474 = vmatprep.subr.mxu0 0.0
    %475 = vmatpush1.msra.mxu0 0.0
    %476 = vmatprep.subr.mxu0 0.0
    %477 = vmatpush1.msra.mxu0 0.0
    %478 = vmatprep.subr.mxu0 0.0
    %479 = vmatpush1.msra.mxu0 0.0
    %480 = vmatprep.subr.mxu0 0.0
    %481 = vmatpush1.msra.mxu0 0.0
    %482 = vmatprep.subr.mxu0 0.0
    %483 = vmatpush1.msra.mxu0 0.0
    %484 = vmatprep.subr.mxu0 0.0
    %485 = vmatpush1.msra.mxu0 0.0
    %486 = vmatprep.subr.mxu0 0.0
    %487 = vmatpush1.msra.mxu0 0.0
    %488 = vmatprep.subr.mxu0 0.0
    %489 = vmatpush1.msra.mxu0 0.0
    %490 = vmatprep.subr.mxu0 0.0
    %491 = vmatpush1.msra.mxu0 0.0
    %492 = vmatprep.subr.mxu0 0.0
    %493 = vmatpush1.msra.mxu0 0.0
    %494 = vmatprep.subr.mxu0 0.0
    %495 = vmatpush1.msra.mxu0 0.0
    %496 = vmatprep.subr.mxu0 0.0
    %497 = vmatpush1.msra.mxu0 0.0
    %498 = vmatprep.subr.mxu0 0.0
    %499 = vmatpush1.msra.mxu0 0.0
    %500 = vmatprep.subr.mxu0 0.0
    %501 = vmatpush1.msra.mxu0 0.0
    %502 = vmatprep.subr.mxu0 0.0
    %503 = vmatpush1.msra.mxu0 0.0
    %504 = vmatprep.subr.mxu0 0.0
    %505 = vmatpush1.msra.mxu0 0.0
    %506 = vmatprep.subr.mxu0 0.0
    %507 = vmatpush1.msra.mxu0 0.0
    %508 = vmatprep.subr.mxu0 0.0
    %509 = vmatpush1.msra.mxu0 0.0
    %510 = vmatprep.subr.mxu0 0.0
    %511 = vmatpush1.msra.mxu0 0.0
    %512 = vmatprep.subr.mxu0 0.0
    %513 = vmatpush1.msra.mxu0 0.0
    %514 = vmatprep.mubr.f32.mxu0 0.0
    %515 = vmatmul.mubr.f32.gmra.mrb[0].mxu0 %v172
    %v516 = vpop.f32.mrb[0].mxu0
    %v517 = vadd.f32 %v157, %v516
    %v518 = vpop.f32.mrb[0].mxu0
    %v519 = vadd.f32 %v161, %v518
    %520 = vmatprep.mubr.f32.mxu0 0.0
    %521 = vmatmul.mubr.f32.gmra.mrb[0].mxu0 %v175
    %v522 = vpop.f32.mrb[0].mxu0
    %v523 = vadd.f32 %v157, %v522
    %v524 = vpop.f32.mrb[0].mxu0
    %v525 = vadd.f32 %v161, %v524
    %526 = vmatprep.mubr.f32.mxu0 0.0
    %527 = vmatmul.mubr.f32.gmra.mrb[0].mxu0 %v178
    %v528 = vpop.f32.mrb[0].mxu0
    %v529 = vadd.f32 %v157, %v528
    %v530 = vpop.f32.mrb[0].mxu0
    %v531 = vadd.f32 %v161, %v530
    %532 = vmatprep.mubr.f32.mxu0 0.0
    %533 = vmatmul.mubr.f32.gmra.mrb[0].mxu0 %v181
    %v534 = vpop.f32.mrb[0].mxu0
    %v535 = vadd.f32 %v157, %v534
    %v536 = vpop.f32.mrb[0].mxu0
    %v537 = vadd.f32 %v161, %v536
    %538 = vdwg.mxu0
    %vm539 = vcmp.gt.f32.partialorder %v250, 0.0
    %vm540 = vcmp.gt.f32.partialorder %v252, 0.0
    %vm541 = vcmp.gt.f32.partialorder %v339, 0.0
    %vm542 = vcmp.gt.f32.partialorder %v341, 0.0
    %vm543 = vcmp.gt.f32.partialorder %v428, 0.0
    %vm544 = vcmp.gt.f32.partialorder %v430, 0.0
    %vm545 = vcmp.gt.f32.partialorder %v517, 0.0
    %vm546 = vcmp.gt.f32.partialorder %v519, 0.0
    %vm547 = vcmp.gt.f32.partialorder %v256, 0.0
    %vm548 = vcmp.gt.f32.partialorder %v258, 0.0
    %vm549 = vcmp.gt.f32.partialorder %v345, 0.0
    %vm550 = vcmp.gt.f32.partialorder %v347, 0.0
    %vm551 = vcmp.gt.f32.partialorder %v434, 0.0
    %vm552 = vcmp.gt.f32.partialorder %v436, 0.0
    %vm553 = vcmp.gt.f32.partialorder %v523, 0.0
    %vm554 = vcmp.gt.f32.partialorder %v525, 0.0
    %vm555 = vcmp.gt.f32.partialorder %v262, 0.0
    %vm556 = vcmp.gt.f32.partialorder %v264, 0.0
    %vm557 = vcmp.gt.f32.partialorder %v351, 0.0
    %vm558 = vcmp.gt.f32.partialorder %v353, 0.0
    %vm559 = vcmp.gt.f32.partialorder %v440, 0.0
    %vm560 = vcmp.gt.f32.partialorder %v442, 0.0
    %vm561 = vcmp.gt.f32.partialorder %v529, 0.0
    %vm562 = vcmp.gt.f32.partialorder %v531, 0.0
    %vm563 = vcmp.gt.f32.partialorder %v268, 0.0
    %vm564 = vcmp.gt.f32.partialorder %v270, 0.0
    %vm565 = vcmp.gt.f32.partialorder %v357, 0.0
    %vm566 = vcmp.gt.f32.partialorder %v359, 0.0
    %vm567 = vcmp.gt.f32.partialorder %v446, 0.0
    %vm568 = vcmp.gt.f32.partialorder %v448, 0.0
    %vm569 = vcmp.gt.f32.partialorder %v535, 0.0
    %vm570 = vcmp.gt.f32.partialorder %v537, 0.0
    %v571 = vmin.f32 %v250, 0.0
    %v572 = vmin.f32 %v252, 0.0
    %v573 = vmin.f32 %v339, 0.0
    %v574 = vmin.f32 %v341, 0.0
    %v575 = vmin.f32 %v428, 0.0
    %v576 = vmin.f32 %v430, 0.0
    %v577 = vmin.f32 %v517, 0.0
    %v578 = vmin.f32 %v519, 0.0
    %v579 = vmin.f32 %v256, 0.0
    %v580 = vmin.f32 %v258, 0.0
    %v581 = vmin.f32 %v345, 0.0
    %v582 = vmin.f32 %v347, 0.0
    %v583 = vmin.f32 %v434, 0.0
    %v584 = vmin.f32 %v436, 0.0
    %v585 = vmin.f32 %v523, 0.0
    %v586 = vmin.f32 %v525, 0.0
    %v587 = vmin.f32 %v262, 0.0
    %v588 = vmin.f32 %v264, 0.0
    %v589 = vmin.f32 %v351, 0.0
    %v590 = vmin.f32 %v353, 0.0
    %v591 = vmin.f32 %v440, 0.0
    %v592 = vmin.f32 %v442, 0.0
    %v593 = vmin.f32 %v529, 0.0
    %v594 = vmin.f32 %v531, 0.0
    %v595 = vmin.f32 %v268, 0.0
    %v596 = vmin.f32 %v270, 0.0
    %v597 = vmin.f32 %v357, 0.0
    %v598 = vmin.f32 %v359, 0.0
    %v599 = vmin.f32 %v446, 0.0
    %v600 = vmin.f32 %v448, 0.0
    %v601 = vmin.f32 %v535, 0.0
    %v602 = vmin.f32 %v537, 0.0
    %v603 = vmul.f32 %v571, 1.442695
    %v604 = vpow.pop %v603
    %v605 = vmul.f32 %v572, 1.442695
    %v606 = vpow.pop %v605
    %v607 = vmul.f32 %v573, 1.442695
    %v608 = vpow.pop %v607
    %v609 = vmul.f32 %v574, 1.442695
    %v610 = vpow.pop %v609
    %v611 = vmul.f32 %v575, 1.442695
    %v612 = vpow.pop %v611
    %v613 = vmul.f32 %v576, 1.442695
    %v614 = vpow.pop %v613
    %v615 = vmul.f32 %v577, 1.442695
    %v616 = vpow.pop %v615
    %v617 = vmul.f32 %v578, 1.442695
    %v618 = vpow.pop %v617
    %v619 = vmul.f32 %v579, 1.442695
    %v620 = vpow.pop %v619
    %v621 = vmul.f32 %v580, 1.442695
    %v622 = vpow.pop %v621
    %v623 = vmul.f32 %v581, 1.442695
    %v624 = vpow.pop %v623
    %v625 = vmul.f32 %v582, 1.442695
    %v626 = vpow.pop %v625
    %v627 = vmul.f32 %v583, 1.442695
    %v628 = vpow.pop %v627
    %v629 = vmul.f32 %v584, 1.442695
    %v630 = vpow.pop %v629
    %v631 = vmul.f32 %v585, 1.442695
    %v632 = vpow.pop %v631
    %v633 = vmul.f32 %v586, 1.442695
    %v634 = vpow.pop %v633
    %v635 = vmul.f32 %v587, 1.442695
    %v636 = vpow.pop %v635
    %v637 = vmul.f32 %v588, 1.442695
    %v638 = vpow.pop %v637
    %v639 = vmul.f32 %v589, 1.442695
    %v640 = vpow.pop %v639
    %v641 = vmul.f32 %v590, 1.442695
    %v642 = vpow.pop %v641
    %v643 = vmul.f32 %v591, 1.442695
    %v644 = vpow.pop %v643
    %v645 = vmul.f32 %v592, 1.442695
    %v646 = vpow.pop %v645
    %v647 = vmul.f32 %v593, 1.442695
    %v648 = vpow.pop %v647
    %v649 = vmul.f32 %v594, 1.442695
    %v650 = vpow.pop %v649
    %v651 = vmul.f32 %v595, 1.442695
    %v652 = vpow.pop %v651
    %v653 = vmul.f32 %v596, 1.442695
    %v654 = vpow.pop %v653
    %v655 = vmul.f32 %v597, 1.442695
    %v656 = vpow.pop %v655
    %v657 = vmul.f32 %v598, 1.442695
    %v658 = vpow.pop %v657
    %v659 = vmul.f32 %v599, 1.442695
    %v660 = vpow.pop %v659
    %v661 = vmul.f32 %v600, 1.442695
    %v662 = vpow.pop %v661
    %v663 = vmul.f32 %v601, 1.442695
    %v664 = vpow.pop %v663
    %v665 = vmul.f32 %v602, 1.442695
    %v666 = vpow.pop %v665
    %v667 = vsub.f32 %v604, 1.0
    %v668 = vsub.f32 %v606, 1.0
    %v669 = vsub.f32 %v608, 1.0
    %v670 = vsub.f32 %v610, 1.0
    %v671 = vsub.f32 %v612, 1.0
    %v672 = vsub.f32 %v614, 1.0
    %v673 = vsub.f32 %v616, 1.0
    %v674 = vsub.f32 %v618, 1.0
    %v675 = vsub.f32 %v620, 1.0
    %v676 = vsub.f32 %v622, 1.0
    %v677 = vsub.f32 %v624, 1.0
    %v678 = vsub.f32 %v626, 1.0
    %v679 = vsub.f32 %v628, 1.0
    %v680 = vsub.f32 %v630, 1.0
    %v681 = vsub.f32 %v632, 1.0
    %v682 = vsub.f32 %v634, 1.0
    %v683 = vsub.f32 %v636, 1.0
    %v684 = vsub.f32 %v638, 1.0
    %v685 = vsub.f32 %v640, 1.0
    %v686 = vsub.f32 %v642, 1.0
    %v687 = vsub.f32 %v644, 1.0
    %v688 = vsub.f32 %v646, 1.0
    %v689 = vsub.f32 %v648, 1.0
    %v690 = vsub.f32 %v650, 1.0
    %v691 = vsub.f32 %v652, 1.0
    %v692 = vsub.f32 %v654, 1.0
    %v693 = vsub.f32 %v656, 1.0
    %v694 = vsub.f32 %v658, 1.0
    %v695 = vsub.f32 %v660, 1.0
    %v696 = vsub.f32 %v662, 1.0
    %v697 = vsub.f32 %v664, 1.0
    %v698 = vsub.f32 %v666, 1.0
    %v699 = vsel %vm539, %v250, %v667
    %v700 = vsel %vm540, %v252, %v668
    %v701 = vsel %vm541, %v339, %v669
    %v702 = vsel %vm542, %v341, %v670
    %v703 = vsel %vm543, %v428, %v671
    %v704 = vsel %vm544, %v430, %v672
    %v705 = vsel %vm545, %v517, %v673
    %v706 = vsel %vm546, %v519, %v674
    %v707 = vsel %vm547, %v256, %v675
    %v708 = vsel %vm548, %v258, %v676
    %v709 = vsel %vm549, %v345, %v677
    %v710 = vsel %vm550, %v347, %v678
    %v711 = vsel %vm551, %v434, %v679
    %v712 = vsel %vm552, %v436, %v680
    %v713 = vsel %vm553, %v523, %v681
    %v714 = vsel %vm554, %v525, %v682
    %v715 = vsel %vm555, %v262, %v683
    %v716 = vsel %vm556, %v264, %v684
    %v717 = vsel %vm557, %v351, %v685
    %v718 = vsel %vm558, %v353, %v686
    %v719 = vsel %vm559, %v440, %v687
    %v720 = vsel %vm560, %v442, %v688
    %v721 = vsel %vm561, %v529, %v689
    %v722 = vsel %vm562, %v531, %v690
    %v723 = vsel %vm563, %v268, %v691
    %v724 = vsel %vm564, %v270, %v692
    %v725 = vsel %vm565, %v357, %v693
    %v726 = vsel %vm566, %v359, %v694
    %v727 = vsel %vm567, %v446, %v695
    %v728 = vsel %vm568, %v448, %v696
    %v729 = vsel %vm569, %v535, %v697
    %v730 = vsel %vm570, %v537, %v698
    %s731 = scalar_lea.vmem %s2, 1
    %v732 = vld [vmem:[%s731] ss:$4 sm:$0xff]
    %v734 = vlaneseq
    %v735 = vshrl.u32 %v734, 7
    %v736 = vsub.s32 0, %v735
    %v737 = vrot.slane %v732, %v736
    %v738 = vlaneseq
    %v739 = vshrl.u32 %v738, 7
    %v740 = vsub.s32 1, %v739
    %v741 = vrot.slane %v732, %v740
    %v742 = vlaneseq
    %v743 = vshrl.u32 %v742, 7
    %v744 = vsub.s32 2, %v743
    %v745 = vrot.slane %v732, %v744
    %v746 = vlaneseq
    %v747 = vshrl.u32 %v746, 7
    %v748 = vsub.s32 3, %v747
    %v749 = vrot.slane %v732, %v748
    %v750 = vlaneseq
    %v751 = vshrl.u32 %v750, 7
    %v752 = vsub.s32 4, %v751
    %v753 = vrot.slane %v732, %v752
    %v754 = vlaneseq
    %v755 = vshrl.u32 %v754, 7
    %v756 = vsub.s32 5, %v755
    %v757 = vrot.slane %v732, %v756
    %v758 = vlaneseq
    %v759 = vshrl.u32 %v758, 7
    %v760 = vsub.s32 6, %v759
    %v761 = vrot.slane %v732, %v760
    %v762 = vlaneseq
    %v763 = vshrl.u32 %v762, 7
    %v764 = vsub.s32 7, %v763
    %v765 = vrot.slane %v732, %v764
    %v774 = vmul.f32 %v699, %v737
    %v775 = vmul.f32 %v700, %v741
    %v776 = vmul.f32 %v701, %v745
    %v777 = vmul.f32 %v702, %v749
    %v778 = vmul.f32 %v703, %v753
    %v779 = vmul.f32 %v704, %v757
    %v780 = vmul.f32 %v705, %v761
    %v781 = vmul.f32 %v706, %v765
    %v782 = vmul.f32 %v707, %v737
    %v783 = vmul.f32 %v708, %v741
    %v784 = vmul.f32 %v709, %v745
    %v785 = vmul.f32 %v710, %v749
    %v786 = vmul.f32 %v711, %v753
    %v787 = vmul.f32 %v712, %v757
    %v788 = vmul.f32 %v713, %v761
    %v789 = vmul.f32 %v714, %v765
    %v790 = vmul.f32 %v715, %v737
    %v791 = vmul.f32 %v716, %v741
    %v792 = vmul.f32 %v717, %v745
    %v793 = vmul.f32 %v718, %v749
    %v794 = vmul.f32 %v719, %v753
    %v795 = vmul.f32 %v720, %v757
    %v796 = vmul.f32 %v721, %v761
    %v797 = vmul.f32 %v722, %v765
    %v798 = vmul.f32 %v723, %v737
    %v799 = vmul.f32 %v724, %v741
    %v800 = vmul.f32 %v725, %v745
    %v801 = vmul.f32 %v726, %v749
    %v802 = vmul.f32 %v727, %v753
    %v803 = vmul.f32 %v728, %v757
    %v804 = vmul.f32 %v729, %v761
    %v805 = vmul.f32 %v730, %v765
    %s806 = scalar_lea.vmem %s2, 2
    %v807 = vld [vmem:[%s806] ss:$4 sm:$0xff]
    %v809 = vlaneseq
    %v810 = vshrl.u32 %v809, 7
    %v811 = vsub.s32 0, %v810
    %v812 = vrot.slane %v807, %v811
    %v813 = vlaneseq
    %v814 = vshrl.u32 %v813, 7
    %v815 = vsub.s32 1, %v814
    %v816 = vrot.slane %v807, %v815
    %v817 = vlaneseq
    %v818 = vshrl.u32 %v817, 7
    %v819 = vsub.s32 2, %v818
    %v820 = vrot.slane %v807, %v819
    %v821 = vlaneseq
    %v822 = vshrl.u32 %v821, 7
    %v823 = vsub.s32 3, %v822
    %v824 = vrot.slane %v807, %v823
    %v825 = vlaneseq
    %v826 = vshrl.u32 %v825, 7
    %v827 = vsub.s32 4, %v826
    %v828 = vrot.slane %v807, %v827
    %v829 = vlaneseq
    %v830 = vshrl.u32 %v829, 7
    %v831 = vsub.s32 5, %v830
    %v832 = vrot.slane %v807, %v831
    %v833 = vlaneseq
    %v834 = vshrl.u32 %v833, 7
    %v835 = vsub.s32 6, %v834
    %v836 = vrot.slane %v807, %v835
    %v837 = vlaneseq
    %v838 = vshrl.u32 %v837, 7
    %v839 = vsub.s32 7, %v838
    %v840 = vrot.slane %v807, %v839
    %v849 = vadd.f32 %v774, %v812
    %v850 = vadd.f32 %v775, %v816
    %v851 = vadd.f32 %v776, %v820
    %v852 = vadd.f32 %v777, %v824
    %v853 = vadd.f32 %v778, %v828
    %v854 = vadd.f32 %v779, %v832
    %v855 = vadd.f32 %v780, %v836
    %v856 = vadd.f32 %v781, %v840
    %v857 = vadd.f32 %v782, %v812
    %v858 = vadd.f32 %v783, %v816
    %v859 = vadd.f32 %v784, %v820
    %v860 = vadd.f32 %v785, %v824
    %v861 = vadd.f32 %v786, %v828
    %v862 = vadd.f32 %v787, %v832
    %v863 = vadd.f32 %v788, %v836
    %v864 = vadd.f32 %v789, %v840
    %v865 = vadd.f32 %v790, %v812
    %v866 = vadd.f32 %v791, %v816
    %v867 = vadd.f32 %v792, %v820
    %v868 = vadd.f32 %v793, %v824
    %v869 = vadd.f32 %v794, %v828
    %v870 = vadd.f32 %v795, %v832
    %v871 = vadd.f32 %v796, %v836
    %v872 = vadd.f32 %v797, %v840
    %v873 = vadd.f32 %v798, %v812
    %v874 = vadd.f32 %v799, %v816
    %v875 = vadd.f32 %v800, %v820
    %v876 = vadd.f32 %v801, %v824
    %v877 = vadd.f32 %v802, %v828
    %v878 = vadd.f32 %v803, %v832
    %v879 = vadd.f32 %v804, %v836
    %v880 = vadd.f32 %v805, %v840
    %vm881 = vcmp.gt.f32.partialorder %v849, 0.0
    %vm882 = vcmp.gt.f32.partialorder %v850, 0.0
    %vm883 = vcmp.gt.f32.partialorder %v851, 0.0
    %vm884 = vcmp.gt.f32.partialorder %v852, 0.0
    %vm885 = vcmp.gt.f32.partialorder %v853, 0.0
    %vm886 = vcmp.gt.f32.partialorder %v854, 0.0
    %vm887 = vcmp.gt.f32.partialorder %v855, 0.0
    %vm888 = vcmp.gt.f32.partialorder %v856, 0.0
    %vm889 = vcmp.gt.f32.partialorder %v857, 0.0
    %vm890 = vcmp.gt.f32.partialorder %v858, 0.0
    %vm891 = vcmp.gt.f32.partialorder %v859, 0.0
    %vm892 = vcmp.gt.f32.partialorder %v860, 0.0
    %vm893 = vcmp.gt.f32.partialorder %v861, 0.0
    %vm894 = vcmp.gt.f32.partialorder %v862, 0.0
    %vm895 = vcmp.gt.f32.partialorder %v863, 0.0
    %vm896 = vcmp.gt.f32.partialorder %v864, 0.0
    %vm897 = vcmp.gt.f32.partialorder %v865, 0.0
    %vm898 = vcmp.gt.f32.partialorder %v866, 0.0
    %vm899 = vcmp.gt.f32.partialorder %v867, 0.0
    %vm900 = vcmp.gt.f32.partialorder %v868, 0.0
    %vm901 = vcmp.gt.f32.partialorder %v869, 0.0
    %vm902 = vcmp.gt.f32.partialorder %v870, 0.0
    %vm903 = vcmp.gt.f32.partialorder %v871, 0.0
    %vm904 = vcmp.gt.f32.partialorder %v872, 0.0
    %vm905 = vcmp.gt.f32.partialorder %v873, 0.0
    %vm906 = vcmp.gt.f32.partialorder %v874, 0.0
    %vm907 = vcmp.gt.f32.partialorder %v875, 0.0
    %vm908 = vcmp.gt.f32.partialorder %v876, 0.0
    %vm909 = vcmp.gt.f32.partialorder %v877, 0.0
    %vm910 = vcmp.gt.f32.partialorder %v878, 0.0
    %vm911 = vcmp.gt.f32.partialorder %v879, 0.0
    %vm912 = vcmp.gt.f32.partialorder %v880, 0.0
    %v913 = vmin.f32 %v849, 0.0
    %v914 = vmin.f32 %v850, 0.0
    %v915 = vmin.f32 %v851, 0.0
    %v916 = vmin.f32 %v852, 0.0
    %v917 = vmin.f32 %v853, 0.0
    %v918 = vmin.f32 %v854, 0.0
    %v919 = vmin.f32 %v855, 0.0
    %v920 = vmin.f32 %v856, 0.0
    %v921 = vmin.f32 %v857, 0.0
    %v922 = vmin.f32 %v858, 0.0
    %v923 = vmin.f32 %v859, 0.0
    %v924 = vmin.f32 %v860, 0.0
    %v925 = vmin.f32 %v861, 0.0
    %v926 = vmin.f32 %v862, 0.0
    %v927 = vmin.f32 %v863, 0.0
    %v928 = vmin.f32 %v864, 0.0
    %v929 = vmin.f32 %v865, 0.0
    %v930 = vmin.f32 %v866, 0.0
    %v931 = vmin.f32 %v867, 0.0
    %v932 = vmin.f32 %v868, 0.0
    %v933 = vmin.f32 %v869, 0.0
    %v934 = vmin.f32 %v870, 0.0
    %v935 = vmin.f32 %v871, 0.0
    %v936 = vmin.f32 %v872, 0.0
    %v937 = vmin.f32 %v873, 0.0
    %v938 = vmin.f32 %v874, 0.0
    %v939 = vmin.f32 %v875, 0.0
    %v940 = vmin.f32 %v876, 0.0
    %v941 = vmin.f32 %v877, 0.0
    %v942 = vmin.f32 %v878, 0.0
    %v943 = vmin.f32 %v879, 0.0
    %v944 = vmin.f32 %v880, 0.0
    %v945 = vmul.f32 %v913, 1.442695
    %v946 = vpow.pop %v945
    %v947 = vmul.f32 %v914, 1.442695
    %v948 = vpow.pop %v947
    %v949 = vmul.f32 %v915, 1.442695
    %v950 = vpow.pop %v949
    %v951 = vmul.f32 %v916, 1.442695
    %v952 = vpow.pop %v951
    %v953 = vmul.f32 %v917, 1.442695
    %v954 = vpow.pop %v953
    %v955 = vmul.f32 %v918, 1.442695
    %v956 = vpow.pop %v955
    %v957 = vmul.f32 %v919, 1.442695
    %v958 = vpow.pop %v957
    %v959 = vmul.f32 %v920, 1.442695
    %v960 = vpow.pop %v959
    %v961 = vmul.f32 %v921, 1.442695
    %v962 = vpow.pop %v961
    %v963 = vmul.f32 %v922, 1.442695
    %v964 = vpow.pop %v963
    %v965 = vmul.f32 %v923, 1.442695
    %v966 = vpow.pop %v965
    %v967 = vmul.f32 %v924, 1.442695
    %v968 = vpow.pop %v967
    %v969 = vmul.f32 %v925, 1.442695
    %v970 = vpow.pop %v969
    %v971 = vmul.f32 %v926, 1.442695
    %v972 = vpow.pop %v971
    %v973 = vmul.f32 %v927, 1.442695
    %v974 = vpow.pop %v973
    %v975 = vmul.f32 %v928, 1.442695
    %v976 = vpow.pop %v975
    %v977 = vmul.f32 %v929, 1.442695
    %v978 = vpow.pop %v977
    %v979 = vmul.f32 %v930, 1.442695
    %v980 = vpow.pop %v979
    %v981 = vmul.f32 %v931, 1.442695
    %v982 = vpow.pop %v981
    %v983 = vmul.f32 %v932, 1.442695
    %v984 = vpow.pop %v983
    %v985 = vmul.f32 %v933, 1.442695
    %v986 = vpow.pop %v985
    %v987 = vmul.f32 %v934, 1.442695
    %v988 = vpow.pop %v987
    %v989 = vmul.f32 %v935, 1.442695
    %v990 = vpow.pop %v989
    %v991 = vmul.f32 %v936, 1.442695
    %v992 = vpow.pop %v991
    %v993 = vmul.f32 %v937, 1.442695
    %v994 = vpow.pop %v993
    %v995 = vmul.f32 %v938, 1.442695
    %v996 = vpow.pop %v995
    %v997 = vmul.f32 %v939, 1.442695
    %v998 = vpow.pop %v997
    %v999 = vmul.f32 %v940, 1.442695
    %v1000 = vpow.pop %v999
    %v1001 = vmul.f32 %v941, 1.442695
    %v1002 = vpow.pop %v1001
    %v1003 = vmul.f32 %v942, 1.442695
    %v1004 = vpow.pop %v1003
    %v1005 = vmul.f32 %v943, 1.442695
    %v1006 = vpow.pop %v1005
    %v1007 = vmul.f32 %v944, 1.442695
    %v1008 = vpow.pop %v1007
    %v1009 = vsub.f32 %v946, 1.0
    %v1010 = vsub.f32 %v948, 1.0
    %v1011 = vsub.f32 %v950, 1.0
    %v1012 = vsub.f32 %v952, 1.0
    %v1013 = vsub.f32 %v954, 1.0
    %v1014 = vsub.f32 %v956, 1.0
    %v1015 = vsub.f32 %v958, 1.0
    %v1016 = vsub.f32 %v960, 1.0
    %v1017 = vsub.f32 %v962, 1.0
    %v1018 = vsub.f32 %v964, 1.0
    %v1019 = vsub.f32 %v966, 1.0
    %v1020 = vsub.f32 %v968, 1.0
    %v1021 = vsub.f32 %v970, 1.0
    %v1022 = vsub.f32 %v972, 1.0
    %v1023 = vsub.f32 %v974, 1.0
    %v1024 = vsub.f32 %v976, 1.0
    %v1025 = vsub.f32 %v978, 1.0
    %v1026 = vsub.f32 %v980, 1.0
    %v1027 = vsub.f32 %v982, 1.0
    %v1028 = vsub.f32 %v984, 1.0
    %v1029 = vsub.f32 %v986, 1.0
    %v1030 = vsub.f32 %v988, 1.0
    %v1031 = vsub.f32 %v990, 1.0
    %v1032 = vsub.f32 %v992, 1.0
    %v1033 = vsub.f32 %v994, 1.0
    %v1034 = vsub.f32 %v996, 1.0
    %v1035 = vsub.f32 %v998, 1.0
    %v1036 = vsub.f32 %v1000, 1.0
    %v1037 = vsub.f32 %v1002, 1.0
    %v1038 = vsub.f32 %v1004, 1.0
    %v1039 = vsub.f32 %v1006, 1.0
    %v1040 = vsub.f32 %v1008, 1.0
    %v1041 = vsel %vm881, %v849, %v1009
    %v1042 = vsel %vm882, %v850, %v1010
    %v1043 = vsel %vm883, %v851, %v1011
    %v1044 = vsel %vm884, %v852, %v1012
    %v1045 = vsel %vm885, %v853, %v1013
    %v1046 = vsel %vm886, %v854, %v1014
    %v1047 = vsel %vm887, %v855, %v1015
    %v1048 = vsel %vm888, %v856, %v1016
    %v1049 = vsel %vm889, %v857, %v1017
    %v1050 = vsel %vm890, %v858, %v1018
    %v1051 = vsel %vm891, %v859, %v1019
    %v1052 = vsel %vm892, %v860, %v1020
    %v1053 = vsel %vm893, %v861, %v1021
    %v1054 = vsel %vm894, %v862, %v1022
    %v1055 = vsel %vm895, %v863, %v1023
    %v1056 = vsel %vm896, %v864, %v1024
    %v1057 = vsel %vm897, %v865, %v1025
    %v1058 = vsel %vm898, %v866, %v1026
    %v1059 = vsel %vm899, %v867, %v1027
    %v1060 = vsel %vm900, %v868, %v1028
    %v1061 = vsel %vm901, %v869, %v1029
    %v1062 = vsel %vm902, %v870, %v1030
    %v1063 = vsel %vm903, %v871, %v1031
    %v1064 = vsel %vm904, %v872, %v1032
    %v1065 = vsel %vm905, %v873, %v1033
    %v1066 = vsel %vm906, %v874, %v1034
    %v1067 = vsel %vm907, %v875, %v1035
    %v1068 = vsel %vm908, %v876, %v1036
    %v1069 = vsel %vm909, %v877, %v1037
    %v1070 = vsel %vm910, %v878, %v1038
    %v1071 = vsel %vm911, %v879, %v1039
    %v1072 = vsel %vm912, %v880, %v1040
    %v1073 = vld [vmem:[%s3] sm:$0xff]
    %v1074 = vld [vmem:[%s3 + $0x8] sm:$0xff]
    %v1075 = vld [vmem:[%s3 + $0x10] sm:$0xff]
    %v1076 = vld [vmem:[%s3 + $0x18] sm:$0xff]
    %v1077 = vld [vmem:[%s3 + $0x20] sm:$0xff]
    %v1078 = vld [vmem:[%s3 + $0x28] sm:$0xff]
    %v1079 = vld [vmem:[%s3 + $0x30] sm:$0xff]
    %v1080 = vld [vmem:[%s3 + $0x38] sm:$0xff]
    %v1081 = vld [vmem:[%s3 + $0x40] sm:$0xff]
    %v1082 = vld [vmem:[%s3 + $0x48] sm:$0xff]
    %v1083 = vld [vmem:[%s3 + $0x50] sm:$0xff]
    %v1084 = vld [vmem:[%s3 + $0x58] sm:$0xff]
    %v1085 = vld [vmem:[%s3 + $0x60] sm:$0xff]
    %v1086 = vld [vmem:[%s3 + $0x68] sm:$0xff]
    %v1087 = vld [vmem:[%s3 + $0x70] sm:$0xff]
    %v1088 = vld [vmem:[%s3 + $0x78] sm:$0xff]
    %v1089 = vld [vmem:[%s3 + $0x80] sm:$0xff]
    %v1090 = vld [vmem:[%s3 + $0x88] sm:$0xff]
    %v1091 = vld [vmem:[%s3 + $0x90] sm:$0xff]
    %v1092 = vld [vmem:[%s3 + $0x98] sm:$0xff]
    %v1093 = vld [vmem:[%s3 + $0xa0] sm:$0xff]
    %v1094 = vld [vmem:[%s3 + $0xa8] sm:$0xff]
    %v1095 = vld [vmem:[%s3 + $0xb0] sm:$0xff]
    %v1096 = vld [vmem:[%s3 + $0xb8] sm:$0xff]
    %v1097 = vld [vmem:[%s3 + $0xc0] sm:$0xff]
    %v1098 = vld [vmem:[%s3 + $0xc8] sm:$0xff]
    %v1099 = vld [vmem:[%s3 + $0xd0] sm:$0xff]
    %v1100 = vld [vmem:[%s3 + $0xd8] sm:$0xff]
    %v1101 = vld [vmem:[%s3 + $0xe0] sm:$0xff]
    %v1102 = vld [vmem:[%s3 + $0xe8] sm:$0xff]
    %v1103 = vld [vmem:[%s3 + $0xf0] sm:$0xff]
    %v1104 = vld [vmem:[%s3 + $0xf8] sm:$0xff]
    %v1105 = vld [vmem:[%s3 + $0x100] sm:$0xff]
    %v1106 = vld [vmem:[%s3 + $0x108] sm:$0xff]
    %v1107 = vld [vmem:[%s3 + $0x110] sm:$0xff]
    %v1108 = vld [vmem:[%s3 + $0x118] sm:$0xff]
    %v1109 = vld [vmem:[%s3 + $0x120] sm:$0xff]
    %v1110 = vld [vmem:[%s3 + $0x128] sm:$0xff]
    %v1111 = vld [vmem:[%s3 + $0x130] sm:$0xff]
    %v1112 = vld [vmem:[%s3 + $0x138] sm:$0xff]
    %v1113 = vld [vmem:[%s3 + $0x140] sm:$0xff]
    %v1114 = vld [vmem:[%s3 + $0x148] sm:$0xff]
    %v1115 = vld [vmem:[%s3 + $0x150] sm:$0xff]
    %v1116 = vld [vmem:[%s3 + $0x158] sm:$0xff]
    %v1117 = vld [vmem:[%s3 + $0x160] sm:$0xff]
    %v1118 = vld [vmem:[%s3 + $0x168] sm:$0xff]
    %v1119 = vld [vmem:[%s3 + $0x170] sm:$0xff]
    %v1120 = vld [vmem:[%s3 + $0x178] sm:$0xff]
    %v1121 = vld [vmem:[%s3 + $0x180] sm:$0xff]
    %v1122 = vld [vmem:[%s3 + $0x188] sm:$0xff]
    %v1123 = vld [vmem:[%s3 + $0x190] sm:$0xff]
    %v1124 = vld [vmem:[%s3 + $0x198] sm:$0xff]
    %v1125 = vld [vmem:[%s3 + $0x1a0] sm:$0xff]
    %v1126 = vld [vmem:[%s3 + $0x1a8] sm:$0xff]
    %v1127 = vld [vmem:[%s3 + $0x1b0] sm:$0xff]
    %v1128 = vld [vmem:[%s3 + $0x1b8] sm:$0xff]
    %v1129 = vld [vmem:[%s3 + $0x1c0] sm:$0xff]
    %v1130 = vld [vmem:[%s3 + $0x1c8] sm:$0xff]
    %v1131 = vld [vmem:[%s3 + $0x1d0] sm:$0xff]
    %v1132 = vld [vmem:[%s3 + $0x1d8] sm:$0xff]
    %v1133 = vld [vmem:[%s3 + $0x1e0] sm:$0xff]
    %v1134 = vld [vmem:[%s3 + $0x1e8] sm:$0xff]
    %v1135 = vld [vmem:[%s3 + $0x1f0] sm:$0xff]
    %v1136 = vld [vmem:[%s3 + $0x1f8] sm:$0xff]
    %v1137 = vld [vmem:[%s3 + $0x200] sm:$0xff]
    %v1138 = vld [vmem:[%s3 + $0x208] sm:$0xff]
    %v1139 = vld [vmem:[%s3 + $0x210] sm:$0xff]
    %v1140 = vld [vmem:[%s3 + $0x218] sm:$0xff]
    %v1141 = vld [vmem:[%s3 + $0x220] sm:$0xff]
    %v1142 = vld [vmem:[%s3 + $0x228] sm:$0xff]
    %v1143 = vld [vmem:[%s3 + $0x230] sm:$0xff]
    %v1144 = vld [vmem:[%s3 + $0x238] sm:$0xff]
    %v1145 = vld [vmem:[%s3 + $0x240] sm:$0xff]
    %v1146 = vld [vmem:[%s3 + $0x248] sm:$0xff]
    %v1147 = vld [vmem:[%s3 + $0x250] sm:$0xff]
    %v1148 = vld [vmem:[%s3 + $0x258] sm:$0xff]
    %v1149 = vld [vmem:[%s3 + $0x260] sm:$0xff]
    %v1150 = vld [vmem:[%s3 + $0x268] sm:$0xff]
    %v1151 = vld [vmem:[%s3 + $0x270] sm:$0xff]
    %v1152 = vld [vmem:[%s3 + $0x278] sm:$0xff]
    %v1153 = vld [vmem:[%s3 + $0x280] sm:$0xff]
    %v1154 = vld [vmem:[%s3 + $0x288] sm:$0xff]
    %v1155 = vld [vmem:[%s3 + $0x290] sm:$0xff]
    %v1156 = vld [vmem:[%s3 + $0x298] sm:$0xff]
    %v1157 = vld [vmem:[%s3 + $0x2a0] sm:$0xff]
    %v1158 = vld [vmem:[%s3 + $0x2a8] sm:$0xff]
    %v1159 = vld [vmem:[%s3 + $0x2b0] sm:$0xff]
    %v1160 = vld [vmem:[%s3 + $0x2b8] sm:$0xff]
    %v1161 = vld [vmem:[%s3 + $0x2c0] sm:$0xff]
    %v1162 = vld [vmem:[%s3 + $0x2c8] sm:$0xff]
    %v1163 = vld [vmem:[%s3 + $0x2d0] sm:$0xff]
    %v1164 = vld [vmem:[%s3 + $0x2d8] sm:$0xff]
    %v1165 = vld [vmem:[%s3 + $0x2e0] sm:$0xff]
    %v1166 = vld [vmem:[%s3 + $0x2e8] sm:$0xff]
    %v1167 = vld [vmem:[%s3 + $0x2f0] sm:$0xff]
    %v1168 = vld [vmem:[%s3 + $0x2f8] sm:$0xff]
    %v1169 = vld [vmem:[%s3 + $0x300] sm:$0xff]
    %v1170 = vld [vmem:[%s3 + $0x308] sm:$0xff]
    %v1171 = vld [vmem:[%s3 + $0x310] sm:$0xff]
    %v1172 = vld [vmem:[%s3 + $0x318] sm:$0xff]
    %v1173 = vld [vmem:[%s3 + $0x320] sm:$0xff]
    %v1174 = vld [vmem:[%s3 + $0x328] sm:$0xff]
    %v1175 = vld [vmem:[%s3 + $0x330] sm:$0xff]
    %v1176 = vld [vmem:[%s3 + $0x338] sm:$0xff]
    %v1177 = vld [vmem:[%s3 + $0x340] sm:$0xff]
    %v1178 = vld [vmem:[%s3 + $0x348] sm:$0xff]
    %v1179 = vld [vmem:[%s3 + $0x350] sm:$0xff]
    %v1180 = vld [vmem:[%s3 + $0x358] sm:$0xff]
    %v1181 = vld [vmem:[%s3 + $0x360] sm:$0xff]
    %v1182 = vld [vmem:[%s3 + $0x368] sm:$0xff]
    %v1183 = vld [vmem:[%s3 + $0x370] sm:$0xff]
    %v1184 = vld [vmem:[%s3 + $0x378] sm:$0xff]
    %v1185 = vld [vmem:[%s3 + $0x380] sm:$0xff]
    %v1186 = vld [vmem:[%s3 + $0x388] sm:$0xff]
    %v1187 = vld [vmem:[%s3 + $0x390] sm:$0xff]
    %v1188 = vld [vmem:[%s3 + $0x398] sm:$0xff]
    %v1189 = vld [vmem:[%s3 + $0x3a0] sm:$0xff]
    %v1190 = vld [vmem:[%s3 + $0x3a8] sm:$0xff]
    %v1191 = vld [vmem:[%s3 + $0x3b0] sm:$0xff]
    %v1192 = vld [vmem:[%s3 + $0x3b8] sm:$0xff]
    %v1193 = vld [vmem:[%s3 + $0x3c0] sm:$0xff]
    %v1194 = vld [vmem:[%s3 + $0x3c8] sm:$0xff]
    %v1195 = vld [vmem:[%s3 + $0x3d0] sm:$0xff]
    %v1196 = vld [vmem:[%s3 + $0x3d8] sm:$0xff]
    %v1197 = vld [vmem:[%s3 + $0x3e0] sm:$0xff]
    %v1198 = vld [vmem:[%s3 + $0x3e8] sm:$0xff]
    %v1199 = vld [vmem:[%s3 + $0x3f0] sm:$0xff]
    %v1200 = vld [vmem:[%s3 + $0x3f8] sm:$0xff]
    %v1201 = vld [vmem:[%s3 + $0x400] sm:$0xff]
    %v1202 = vld [vmem:[%s3 + $0x408] sm:$0xff]
    %v1203 = vld [vmem:[%s3 + $0x410] sm:$0xff]
    %v1204 = vld [vmem:[%s3 + $0x418] sm:$0xff]
    %v1205 = vld [vmem:[%s3 + $0x420] sm:$0xff]
    %v1206 = vld [vmem:[%s3 + $0x428] sm:$0xff]
    %v1207 = vld [vmem:[%s3 + $0x430] sm:$0xff]
    %v1208 = vld [vmem:[%s3 + $0x438] sm:$0xff]
    %v1209 = vld [vmem:[%s3 + $0x440] sm:$0xff]
    %v1210 = vld [vmem:[%s3 + $0x448] sm:$0xff]
    %v1211 = vld [vmem:[%s3 + $0x450] sm:$0xff]
    %v1212 = vld [vmem:[%s3 + $0x458] sm:$0xff]
    %v1213 = vld [vmem:[%s3 + $0x460] sm:$0xff]
    %v1214 = vld [vmem:[%s3 + $0x468] sm:$0xff]
    %v1215 = vld [vmem:[%s3 + $0x470] sm:$0xff]
    %v1216 = vld [vmem:[%s3 + $0x478] sm:$0xff]
    %v1217 = vld [vmem:[%s3 + $0x480] sm:$0xff]
    %v1218 = vld [vmem:[%s3 + $0x488] sm:$0xff]
    %v1219 = vld [vmem:[%s3 + $0x490] sm:$0xff]
    %v1220 = vld [vmem:[%s3 + $0x498] sm:$0xff]
    %v1221 = vld [vmem:[%s3 + $0x4a0] sm:$0xff]
    %v1222 = vld [vmem:[%s3 + $0x4a8] sm:$0xff]
    %v1223 = vld [vmem:[%s3 + $0x4b0] sm:$0xff]
    %v1224 = vld [vmem:[%s3 + $0x4b8] sm:$0xff]
    %v1225 = vld [vmem:[%s3 + $0x4c0] sm:$0xff]
    %v1226 = vld [vmem:[%s3 + $0x4c8] sm:$0xff]
    %v1227 = vld [vmem:[%s3 + $0x4d0] sm:$0xff]
    %v1228 = vld [vmem:[%s3 + $0x4d8] sm:$0xff]
    %v1229 = vld [vmem:[%s3 + $0x4e0] sm:$0xff]
    %v1230 = vld [vmem:[%s3 + $0x4e8] sm:$0xff]
    %v1231 = vld [vmem:[%s3 + $0x4f0] sm:$0xff]
    %v1232 = vld [vmem:[%s3 + $0x4f8] sm:$0xff]
    %v1233 = vld [vmem:[%s3 + $0x500] sm:$0xff]
    %v1234 = vld [vmem:[%s3 + $0x508] sm:$0xff]
    %v1235 = vld [vmem:[%s3 + $0x510] sm:$0xff]
    %v1236 = vld [vmem:[%s3 + $0x518] sm:$0xff]
    %v1237 = vld [vmem:[%s3 + $0x520] sm:$0xff]
    %v1238 = vld [vmem:[%s3 + $0x528] sm:$0xff]
    %v1239 = vld [vmem:[%s3 + $0x530] sm:$0xff]
    %v1240 = vld [vmem:[%s3 + $0x538] sm:$0xff]
    %v1241 = vld [vmem:[%s3 + $0x540] sm:$0xff]
    %v1242 = vld [vmem:[%s3 + $0x548] sm:$0xff]
    %v1243 = vld [vmem:[%s3 + $0x550] sm:$0xff]
    %v1244 = vld [vmem:[%s3 + $0x558] sm:$0xff]
    %v1245 = vld [vmem:[%s3 + $0x560] sm:$0xff]
    %v1246 = vld [vmem:[%s3 + $0x568] sm:$0xff]
    %v1247 = vld [vmem:[%s3 + $0x570] sm:$0xff]
    %v1248 = vld [vmem:[%s3 + $0x578] sm:$0xff]
    %v1249 = vld [vmem:[%s3 + $0x580] sm:$0xff]
    %v1250 = vld [vmem:[%s3 + $0x588] sm:$0xff]
    %v1251 = vld [vmem:[%s3 + $0x590] sm:$0xff]
    %v1252 = vld [vmem:[%s3 + $0x598] sm:$0xff]
    %v1253 = vld [vmem:[%s3 + $0x5a0] sm:$0xff]
    %v1254 = vld [vmem:[%s3 + $0x5a8] sm:$0xff]
    %v1255 = vld [vmem:[%s3 + $0x5b0] sm:$0xff]
    %v1256 = vld [vmem:[%s3 + $0x5b8] sm:$0xff]
    %v1257 = vld [vmem:[%s3 + $0x5c0] sm:$0xff]
    %v1258 = vld [vmem:[%s3 + $0x5c8] sm:$0xff]
    %v1259 = vld [vmem:[%s3 + $0x5d0] sm:$0xff]
    %v1260 = vld [vmem:[%s3 + $0x5d8] sm:$0xff]
    %v1261 = vld [vmem:[%s3 + $0x5e0] sm:$0xff]
    %v1262 = vld [vmem:[%s3 + $0x5e8] sm:$0xff]
    %v1263 = vld [vmem:[%s3 + $0x5f0] sm:$0xff]
    %v1264 = vld [vmem:[%s3 + $0x5f8] sm:$0xff]
    %v1265 = vld [vmem:[%s3 + $0x600] sm:$0xff]
    %v1266 = vld [vmem:[%s3 + $0x608] sm:$0xff]
    %v1267 = vld [vmem:[%s3 + $0x610] sm:$0xff]
    %v1268 = vld [vmem:[%s3 + $0x618] sm:$0xff]
    %v1269 = vld [vmem:[%s3 + $0x620] sm:$0xff]
    %v1270 = vld [vmem:[%s3 + $0x628] sm:$0xff]
    %v1271 = vld [vmem:[%s3 + $0x630] sm:$0xff]
    %v1272 = vld [vmem:[%s3 + $0x638] sm:$0xff]
    %v1273 = vld [vmem:[%s3 + $0x640] sm:$0xff]
    %v1274 = vld [vmem:[%s3 + $0x648] sm:$0xff]
    %v1275 = vld [vmem:[%s3 + $0x650] sm:$0xff]
    %v1276 = vld [vmem:[%s3 + $0x658] sm:$0xff]
    %v1277 = vld [vmem:[%s3 + $0x660] sm:$0xff]
    %v1278 = vld [vmem:[%s3 + $0x668] sm:$0xff]
    %v1279 = vld [vmem:[%s3 + $0x670] sm:$0xff]
    %v1280 = vld [vmem:[%s3 + $0x678] sm:$0xff]
    %v1281 = vld [vmem:[%s3 + $0x680] sm:$0xff]
    %v1282 = vld [vmem:[%s3 + $0x688] sm:$0xff]
    %v1283 = vld [vmem:[%s3 + $0x690] sm:$0xff]
    %v1284 = vld [vmem:[%s3 + $0x698] sm:$0xff]
    %v1285 = vld [vmem:[%s3 + $0x6a0] sm:$0xff]
    %v1286 = vld [vmem:[%s3 + $0x6a8] sm:$0xff]
    %v1287 = vld [vmem:[%s3 + $0x6b0] sm:$0xff]
    %v1288 = vld [vmem:[%s3 + $0x6b8] sm:$0xff]
    %v1289 = vld [vmem:[%s3 + $0x6c0] sm:$0xff]
    %v1290 = vld [vmem:[%s3 + $0x6c8] sm:$0xff]
    %v1291 = vld [vmem:[%s3 + $0x6d0] sm:$0xff]
    %v1292 = vld [vmem:[%s3 + $0x6d8] sm:$0xff]
    %v1293 = vld [vmem:[%s3 + $0x6e0] sm:$0xff]
    %v1294 = vld [vmem:[%s3 + $0x6e8] sm:$0xff]
    %v1295 = vld [vmem:[%s3 + $0x6f0] sm:$0xff]
    %v1296 = vld [vmem:[%s3 + $0x6f8] sm:$0xff]
    %v1297 = vld [vmem:[%s3 + $0x700] sm:$0xff]
    %v1298 = vld [vmem:[%s3 + $0x708] sm:$0xff]
    %v1299 = vld [vmem:[%s3 + $0x710] sm:$0xff]
    %v1300 = vld [vmem:[%s3 + $0x718] sm:$0xff]
    %v1301 = vld [vmem:[%s3 + $0x720] sm:$0xff]
    %v1302 = vld [vmem:[%s3 + $0x728] sm:$0xff]
    %v1303 = vld [vmem:[%s3 + $0x730] sm:$0xff]
    %v1304 = vld [vmem:[%s3 + $0x738] sm:$0xff]
    %v1305 = vld [vmem:[%s3 + $0x740] sm:$0xff]
    %v1306 = vld [vmem:[%s3 + $0x748] sm:$0xff]
    %v1307 = vld [vmem:[%s3 + $0x750] sm:$0xff]
    %v1308 = vld [vmem:[%s3 + $0x758] sm:$0xff]
    %v1309 = vld [vmem:[%s3 + $0x760] sm:$0xff]
    %v1310 = vld [vmem:[%s3 + $0x768] sm:$0xff]
    %v1311 = vld [vmem:[%s3 + $0x770] sm:$0xff]
    %v1312 = vld [vmem:[%s3 + $0x778] sm:$0xff]
    %v1313 = vld [vmem:[%s3 + $0x780] sm:$0xff]
    %v1314 = vld [vmem:[%s3 + $0x788] sm:$0xff]
    %v1315 = vld [vmem:[%s3 + $0x790] sm:$0xff]
    %v1316 = vld [vmem:[%s3 + $0x798] sm:$0xff]
    %v1317 = vld [vmem:[%s3 + $0x7a0] sm:$0xff]
    %v1318 = vld [vmem:[%s3 + $0x7a8] sm:$0xff]
    %v1319 = vld [vmem:[%s3 + $0x7b0] sm:$0xff]
    %v1320 = vld [vmem:[%s3 + $0x7b8] sm:$0xff]
    %v1321 = vld [vmem:[%s3 + $0x7c0] sm:$0xff]
    %v1322 = vld [vmem:[%s3 + $0x7c8] sm:$0xff]
    %v1323 = vld [vmem:[%s3 + $0x7d0] sm:$0xff]
    %v1324 = vld [vmem:[%s3 + $0x7d8] sm:$0xff]
    %v1325 = vld [vmem:[%s3 + $0x7e0] sm:$0xff]
    %v1326 = vld [vmem:[%s3 + $0x7e8] sm:$0xff]
    %v1327 = vld [vmem:[%s3 + $0x7f0] sm:$0xff]
    %v1328 = vld [vmem:[%s3 + $0x7f8] sm:$0xff]
    %v1329 = vld [vmem:[%s3 + $0x800] sm:$0xff]
    %v1330 = vld [vmem:[%s3 + $0x808] sm:$0xff]
    %v1331 = vld [vmem:[%s3 + $0x810] sm:$0xff]
    %v1332 = vld [vmem:[%s3 + $0x818] sm:$0xff]
    %v1333 = vld [vmem:[%s3 + $0x820] sm:$0xff]
    %v1334 = vld [vmem:[%s3 + $0x828] sm:$0xff]
    %v1335 = vld [vmem:[%s3 + $0x830] sm:$0xff]
    %v1336 = vld [vmem:[%s3 + $0x838] sm:$0xff]
    %v1337 = vld [vmem:[%s3 + $0x840] sm:$0xff]
    %v1338 = vld [vmem:[%s3 + $0x848] sm:$0xff]
    %v1339 = vld [vmem:[%s3 + $0x850] sm:$0xff]
    %v1340 = vld [vmem:[%s3 + $0x858] sm:$0xff]
    %v1341 = vld [vmem:[%s3 + $0x860] sm:$0xff]
    %v1342 = vld [vmem:[%s3 + $0x868] sm:$0xff]
    %v1343 = vld [vmem:[%s3 + $0x870] sm:$0xff]
    %v1344 = vld [vmem:[%s3 + $0x878] sm:$0xff]
    %v1345 = vld [vmem:[%s3 + $0x880] sm:$0xff]
    %v1346 = vld [vmem:[%s3 + $0x888] sm:$0xff]
    %v1347 = vld [vmem:[%s3 + $0x890] sm:$0xff]
    %v1348 = vld [vmem:[%s3 + $0x898] sm:$0xff]
    %v1349 = vld [vmem:[%s3 + $0x8a0] sm:$0xff]
    %v1350 = vld [vmem:[%s3 + $0x8a8] sm:$0xff]
    %v1351 = vld [vmem:[%s3 + $0x8b0] sm:$0xff]
    %v1352 = vld [vmem:[%s3 + $0x8b8] sm:$0xff]
    %v1353 = vld [vmem:[%s3 + $0x8c0] sm:$0xff]
    %v1354 = vld [vmem:[%s3 + $0x8c8] sm:$0xff]
    %v1355 = vld [vmem:[%s3 + $0x8d0] sm:$0xff]
    %v1356 = vld [vmem:[%s3 + $0x8d8] sm:$0xff]
    %v1357 = vld [vmem:[%s3 + $0x8e0] sm:$0xff]
    %v1358 = vld [vmem:[%s3 + $0x8e8] sm:$0xff]
    %v1359 = vld [vmem:[%s3 + $0x8f0] sm:$0xff]
    %v1360 = vld [vmem:[%s3 + $0x8f8] sm:$0xff]
    %v1361 = vld [vmem:[%s3 + $0x900] sm:$0xff]
    %v1362 = vld [vmem:[%s3 + $0x908] sm:$0xff]
    %v1363 = vld [vmem:[%s3 + $0x910] sm:$0xff]
    %v1364 = vld [vmem:[%s3 + $0x918] sm:$0xff]
    %v1365 = vld [vmem:[%s3 + $0x920] sm:$0xff]
    %v1366 = vld [vmem:[%s3 + $0x928] sm:$0xff]
    %v1367 = vld [vmem:[%s3 + $0x930] sm:$0xff]
    %v1368 = vld [vmem:[%s3 + $0x938] sm:$0xff]
    %v1369 = vld [vmem:[%s3 + $0x940] sm:$0xff]
    %v1370 = vld [vmem:[%s3 + $0x948] sm:$0xff]
    %v1371 = vld [vmem:[%s3 + $0x950] sm:$0xff]
    %v1372 = vld [vmem:[%s3 + $0x958] sm:$0xff]
    %v1373 = vld [vmem:[%s3 + $0x960] sm:$0xff]
    %v1374 = vld [vmem:[%s3 + $0x968] sm:$0xff]
    %v1375 = vld [vmem:[%s3 + $0x970] sm:$0xff]
    %v1376 = vld [vmem:[%s3 + $0x978] sm:$0xff]
    %v1377 = vld [vmem:[%s3 + $0x980] sm:$0xff]
    %v1378 = vld [vmem:[%s3 + $0x988] sm:$0xff]
    %v1379 = vld [vmem:[%s3 + $0x990] sm:$0xff]
    %v1380 = vld [vmem:[%s3 + $0x998] sm:$0xff]
    %v1381 = vld [vmem:[%s3 + $0x9a0] sm:$0xff]
    %v1382 = vld [vmem:[%s3 + $0x9a8] sm:$0xff]
    %v1383 = vld [vmem:[%s3 + $0x9b0] sm:$0xff]
    %v1384 = vld [vmem:[%s3 + $0x9b8] sm:$0xff]
    %v1385 = vld [vmem:[%s3 + $0x9c0] sm:$0xff]
    %v1386 = vld [vmem:[%s3 + $0x9c8] sm:$0xff]
    %v1387 = vld [vmem:[%s3 + $0x9d0] sm:$0xff]
    %v1388 = vld [vmem:[%s3 + $0x9d8] sm:$0xff]
    %v1389 = vld [vmem:[%s3 + $0x9e0] sm:$0xff]
    %v1390 = vld [vmem:[%s3 + $0x9e8] sm:$0xff]
    %v1391 = vld [vmem:[%s3 + $0x9f0] sm:$0xff]
    %v1392 = vld [vmem:[%s3 + $0x9f8] sm:$0xff]
    %v1393 = vld [vmem:[%s3 + $0xa00] sm:$0xff]
    %v1394 = vld [vmem:[%s3 + $0xa08] sm:$0xff]
    %v1395 = vld [vmem:[%s3 + $0xa10] sm:$0xff]
    %v1396 = vld [vmem:[%s3 + $0xa18] sm:$0xff]
    %v1397 = vld [vmem:[%s3 + $0xa20] sm:$0xff]
    %v1398 = vld [vmem:[%s3 + $0xa28] sm:$0xff]
    %v1399 = vld [vmem:[%s3 + $0xa30] sm:$0xff]
    %v1400 = vld [vmem:[%s3 + $0xa38] sm:$0xff]
    %v1401 = vld [vmem:[%s3 + $0xa40] sm:$0xff]
    %v1402 = vld [vmem:[%s3 + $0xa48] sm:$0xff]
    %v1403 = vld [vmem:[%s3 + $0xa50] sm:$0xff]
    %v1404 = vld [vmem:[%s3 + $0xa58] sm:$0xff]
    %v1405 = vld [vmem:[%s3 + $0xa60] sm:$0xff]
    %v1406 = vld [vmem:[%s3 + $0xa68] sm:$0xff]
    %v1407 = vld [vmem:[%s3 + $0xa70] sm:$0xff]
    %v1408 = vld [vmem:[%s3 + $0xa78] sm:$0xff]
    %v1409 = vld [vmem:[%s3 + $0xa80] sm:$0xff]
    %v1410 = vld [vmem:[%s3 + $0xa88] sm:$0xff]
    %v1411 = vld [vmem:[%s3 + $0xa90] sm:$0xff]
    %v1412 = vld [vmem:[%s3 + $0xa98] sm:$0xff]
    %v1413 = vld [vmem:[%s3 + $0xaa0] sm:$0xff]
    %v1414 = vld [vmem:[%s3 + $0xaa8] sm:$0xff]
    %v1415 = vld [vmem:[%s3 + $0xab0] sm:$0xff]
    %v1416 = vld [vmem:[%s3 + $0xab8] sm:$0xff]
    %v1417 = vld [vmem:[%s3 + $0xac0] sm:$0xff]
    %v1418 = vld [vmem:[%s3 + $0xac8] sm:$0xff]
    %v1419 = vld [vmem:[%s3 + $0xad0] sm:$0xff]
    %v1420 = vld [vmem:[%s3 + $0xad8] sm:$0xff]
    %v1421 = vld [vmem:[%s3 + $0xae0] sm:$0xff]
    %v1422 = vld [vmem:[%s3 + $0xae8] sm:$0xff]
    %v1423 = vld [vmem:[%s3 + $0xaf0] sm:$0xff]
    %v1424 = vld [vmem:[%s3 + $0xaf8] sm:$0xff]
    %v1425 = vld [vmem:[%s3 + $0xb00] sm:$0xff]
    %v1426 = vld [vmem:[%s3 + $0xb08] sm:$0xff]
    %v1427 = vld [vmem:[%s3 + $0xb10] sm:$0xff]
    %v1428 = vld [vmem:[%s3 + $0xb18] sm:$0xff]
    %v1429 = vld [vmem:[%s3 + $0xb20] sm:$0xff]
    %v1430 = vld [vmem:[%s3 + $0xb28] sm:$0xff]
    %v1431 = vld [vmem:[%s3 + $0xb30] sm:$0xff]
    %v1432 = vld [vmem:[%s3 + $0xb38] sm:$0xff]
    %v1433 = vld [vmem:[%s3 + $0xb40] sm:$0xff]
    %v1434 = vld [vmem:[%s3 + $0xb48] sm:$0xff]
    %v1435 = vld [vmem:[%s3 + $0xb50] sm:$0xff]
    %v1436 = vld [vmem:[%s3 + $0xb58] sm:$0xff]
    %v1437 = vld [vmem:[%s3 + $0xb60] sm:$0xff]
    %v1438 = vld [vmem:[%s3 + $0xb68] sm:$0xff]
    %v1439 = vld [vmem:[%s3 + $0xb70] sm:$0xff]
    %v1440 = vld [vmem:[%s3 + $0xb78] sm:$0xff]
    %v1441 = vld [vmem:[%s3 + $0xb80] sm:$0xff]
    %v1442 = vld [vmem:[%s3 + $0xb88] sm:$0xff]
    %v1443 = vld [vmem:[%s3 + $0xb90] sm:$0xff]
    %v1444 = vld [vmem:[%s3 + $0xb98] sm:$0xff]
    %v1445 = vld [vmem:[%s3 + $0xba0] sm:$0xff]
    %v1446 = vld [vmem:[%s3 + $0xba8] sm:$0xff]
    %v1447 = vld [vmem:[%s3 + $0xbb0] sm:$0xff]
    %v1448 = vld [vmem:[%s3 + $0xbb8] sm:$0xff]
    %v1449 = vld [vmem:[%s3 + $0xbc0] sm:$0xff]
    %v1450 = vld [vmem:[%s3 + $0xbc8] sm:$0xff]
    %v1451 = vld [vmem:[%s3 + $0xbd0] sm:$0xff]
    %v1452 = vld [vmem:[%s3 + $0xbd8] sm:$0xff]
    %v1453 = vld [vmem:[%s3 + $0xbe0] sm:$0xff]
    %v1454 = vld [vmem:[%s3 + $0xbe8] sm:$0xff]
    %v1455 = vld [vmem:[%s3 + $0xbf0] sm:$0xff]
    %v1456 = vld [vmem:[%s3 + $0xbf8] sm:$0xff]
    %v1457 = vld [vmem:[%s3 + $0xc00] sm:$0xff]
    %v1458 = vld [vmem:[%s3 + $0xc08] sm:$0xff]
    %v1459 = vld [vmem:[%s3 + $0xc10] sm:$0xff]
    %v1460 = vld [vmem:[%s3 + $0xc18] sm:$0xff]
    %v1461 = vld [vmem:[%s3 + $0xc20] sm:$0xff]
    %v1462 = vld [vmem:[%s3 + $0xc28] sm:$0xff]
    %v1463 = vld [vmem:[%s3 + $0xc30] sm:$0xff]
    %v1464 = vld [vmem:[%s3 + $0xc38] sm:$0xff]
    %v1465 = vld [vmem:[%s3 + $0xc40] sm:$0xff]
    %v1466 = vld [vmem:[%s3 + $0xc48] sm:$0xff]
    %v1467 = vld [vmem:[%s3 + $0xc50] sm:$0xff]
    %v1468 = vld [vmem:[%s3 + $0xc58] sm:$0xff]
    %v1469 = vld [vmem:[%s3 + $0xc60] sm:$0xff]
    %v1470 = vld [vmem:[%s3 + $0xc68] sm:$0xff]
    %v1471 = vld [vmem:[%s3 + $0xc70] sm:$0xff]
    %v1472 = vld [vmem:[%s3 + $0xc78] sm:$0xff]
    %v1473 = vld [vmem:[%s3 + $0xc80] sm:$0xff]
    %v1474 = vld [vmem:[%s3 + $0xc88] sm:$0xff]
    %v1475 = vld [vmem:[%s3 + $0xc90] sm:$0xff]
    %v1476 = vld [vmem:[%s3 + $0xc98] sm:$0xff]
    %v1477 = vld [vmem:[%s3 + $0xca0] sm:$0xff]
    %v1478 = vld [vmem:[%s3 + $0xca8] sm:$0xff]
    %v1479 = vld [vmem:[%s3 + $0xcb0] sm:$0xff]
    %v1480 = vld [vmem:[%s3 + $0xcb8] sm:$0xff]
    %v1481 = vld [vmem:[%s3 + $0xcc0] sm:$0xff]
    %v1482 = vld [vmem:[%s3 + $0xcc8] sm:$0xff]
    %v1483 = vld [vmem:[%s3 + $0xcd0] sm:$0xff]
    %v1484 = vld [vmem:[%s3 + $0xcd8] sm:$0xff]
    %v1485 = vld [vmem:[%s3 + $0xce0] sm:$0xff]
    %v1486 = vld [vmem:[%s3 + $0xce8] sm:$0xff]
    %v1487 = vld [vmem:[%s3 + $0xcf0] sm:$0xff]
    %v1488 = vld [vmem:[%s3 + $0xcf8] sm:$0xff]
    %v1489 = vld [vmem:[%s3 + $0xd00] sm:$0xff]
    %v1490 = vld [vmem:[%s3 + $0xd08] sm:$0xff]
    %v1491 = vld [vmem:[%s3 + $0xd10] sm:$0xff]
    %v1492 = vld [vmem:[%s3 + $0xd18] sm:$0xff]
    %v1493 = vld [vmem:[%s3 + $0xd20] sm:$0xff]
    %v1494 = vld [vmem:[%s3 + $0xd28] sm:$0xff]
    %v1495 = vld [vmem:[%s3 + $0xd30] sm:$0xff]
    %v1496 = vld [vmem:[%s3 + $0xd38] sm:$0xff]
    %v1497 = vld [vmem:[%s3 + $0xd40] sm:$0xff]
    %v1498 = vld [vmem:[%s3 + $0xd48] sm:$0xff]
    %v1499 = vld [vmem:[%s3 + $0xd50] sm:$0xff]
    %v1500 = vld [vmem:[%s3 + $0xd58] sm:$0xff]
    %v1501 = vld [vmem:[%s3 + $0xd60] sm:$0xff]
    %v1502 = vld [vmem:[%s3 + $0xd68] sm:$0xff]
    %v1503 = vld [vmem:[%s3 + $0xd70] sm:$0xff]
    %v1504 = vld [vmem:[%s3 + $0xd78] sm:$0xff]
    %v1505 = vld [vmem:[%s3 + $0xd80] sm:$0xff]
    %v1506 = vld [vmem:[%s3 + $0xd88] sm:$0xff]
    %v1507 = vld [vmem:[%s3 + $0xd90] sm:$0xff]
    %v1508 = vld [vmem:[%s3 + $0xd98] sm:$0xff]
    %v1509 = vld [vmem:[%s3 + $0xda0] sm:$0xff]
    %v1510 = vld [vmem:[%s3 + $0xda8] sm:$0xff]
    %v1511 = vld [vmem:[%s3 + $0xdb0] sm:$0xff]
    %v1512 = vld [vmem:[%s3 + $0xdb8] sm:$0xff]
    %v1513 = vld [vmem:[%s3 + $0xdc0] sm:$0xff]
    %v1514 = vld [vmem:[%s3 + $0xdc8] sm:$0xff]
    %v1515 = vld [vmem:[%s3 + $0xdd0] sm:$0xff]
    %v1516 = vld [vmem:[%s3 + $0xdd8] sm:$0xff]
    %v1517 = vld [vmem:[%s3 + $0xde0] sm:$0xff]
    %v1518 = vld [vmem:[%s3 + $0xde8] sm:$0xff]
    %v1519 = vld [vmem:[%s3 + $0xdf0] sm:$0xff]
    %v1520 = vld [vmem:[%s3 + $0xdf8] sm:$0xff]
    %v1521 = vld [vmem:[%s3 + $0xe00] sm:$0xff]
    %v1522 = vld [vmem:[%s3 + $0xe08] sm:$0xff]
    %v1523 = vld [vmem:[%s3 + $0xe10] sm:$0xff]
    %v1524 = vld [vmem:[%s3 + $0xe18] sm:$0xff]
    %v1525 = vld [vmem:[%s3 + $0xe20] sm:$0xff]
    %v1526 = vld [vmem:[%s3 + $0xe28] sm:$0xff]
    %v1527 = vld [vmem:[%s3 + $0xe30] sm:$0xff]
    %v1528 = vld [vmem:[%s3 + $0xe38] sm:$0xff]
    %v1529 = vld [vmem:[%s3 + $0xe40] sm:$0xff]
    %v1530 = vld [vmem:[%s3 + $0xe48] sm:$0xff]
    %v1531 = vld [vmem:[%s3 + $0xe50] sm:$0xff]
    %v1532 = vld [vmem:[%s3 + $0xe58] sm:$0xff]
    %v1533 = vld [vmem:[%s3 + $0xe60] sm:$0xff]
    %v1534 = vld [vmem:[%s3 + $0xe68] sm:$0xff]
    %v1535 = vld [vmem:[%s3 + $0xe70] sm:$0xff]
    %v1536 = vld [vmem:[%s3 + $0xe78] sm:$0xff]
    %v1537 = vld [vmem:[%s3 + $0xe80] sm:$0xff]
    %v1538 = vld [vmem:[%s3 + $0xe88] sm:$0xff]
    %v1539 = vld [vmem:[%s3 + $0xe90] sm:$0xff]
    %v1540 = vld [vmem:[%s3 + $0xe98] sm:$0xff]
    %v1541 = vld [vmem:[%s3 + $0xea0] sm:$0xff]
    %v1542 = vld [vmem:[%s3 + $0xea8] sm:$0xff]
    %v1543 = vld [vmem:[%s3 + $0xeb0] sm:$0xff]
    %v1544 = vld [vmem:[%s3 + $0xeb8] sm:$0xff]
    %v1545 = vld [vmem:[%s3 + $0xec0] sm:$0xff]
    %v1546 = vld [vmem:[%s3 + $0xec8] sm:$0xff]
    %v1547 = vld [vmem:[%s3 + $0xed0] sm:$0xff]
    %v1548 = vld [vmem:[%s3 + $0xed8] sm:$0xff]
    %v1549 = vld [vmem:[%s3 + $0xee0] sm:$0xff]
    %v1550 = vld [vmem:[%s3 + $0xee8] sm:$0xff]
    %v1551 = vld [vmem:[%s3 + $0xef0] sm:$0xff]
    %v1552 = vld [vmem:[%s3 + $0xef8] sm:$0xff]
    %v1553 = vld [vmem:[%s3 + $0xf00] sm:$0xff]
    %v1554 = vld [vmem:[%s3 + $0xf08] sm:$0xff]
    %v1555 = vld [vmem:[%s3 + $0xf10] sm:$0xff]
    %v1556 = vld [vmem:[%s3 + $0xf18] sm:$0xff]
    %v1557 = vld [vmem:[%s3 + $0xf20] sm:$0xff]
    %v1558 = vld [vmem:[%s3 + $0xf28] sm:$0xff]
    %v1559 = vld [vmem:[%s3 + $0xf30] sm:$0xff]
    %v1560 = vld [vmem:[%s3 + $0xf38] sm:$0xff]
    %v1561 = vld [vmem:[%s3 + $0xf40] sm:$0xff]
    %v1562 = vld [vmem:[%s3 + $0xf48] sm:$0xff]
    %v1563 = vld [vmem:[%s3 + $0xf50] sm:$0xff]
    %v1564 = vld [vmem:[%s3 + $0xf58] sm:$0xff]
    %v1565 = vld [vmem:[%s3 + $0xf60] sm:$0xff]
    %v1566 = vld [vmem:[%s3 + $0xf68] sm:$0xff]
    %v1567 = vld [vmem:[%s3 + $0xf70] sm:$0xff]
    %v1568 = vld [vmem:[%s3 + $0xf78] sm:$0xff]
    %v1569 = vld [vmem:[%s3 + $0xf80] sm:$0xff]
    %v1570 = vld [vmem:[%s3 + $0xf88] sm:$0xff]
    %v1571 = vld [vmem:[%s3 + $0xf90] sm:$0xff]
    %v1572 = vld [vmem:[%s3 + $0xf98] sm:$0xff]
    %v1573 = vld [vmem:[%s3 + $0xfa0] sm:$0xff]
    %v1574 = vld [vmem:[%s3 + $0xfa8] sm:$0xff]
    %v1575 = vld [vmem:[%s3 + $0xfb0] sm:$0xff]
    %v1576 = vld [vmem:[%s3 + $0xfb8] sm:$0xff]
    %v1577 = vld [vmem:[%s3 + $0xfc0] sm:$0xff]
    %v1578 = vld [vmem:[%s3 + $0xfc8] sm:$0xff]
    %v1579 = vld [vmem:[%s3 + $0xfd0] sm:$0xff]
    %v1580 = vld [vmem:[%s3 + $0xfd8] sm:$0xff]
    %v1581 = vld [vmem:[%s3 + $0xfe0] sm:$0xff]
    %v1582 = vld [vmem:[%s3 + $0xfe8] sm:$0xff]
    %v1583 = vld [vmem:[%s3 + $0xff0] sm:$0xff]
    %v1584 = vld [vmem:[%s3 + $0xff8] sm:$0xff]
    %v1585 = vld [vmem:[%s3 + $0x1000] sm:$0xff]
    %v1586 = vld [vmem:[%s3 + $0x1008] sm:$0xff]
    %v1587 = vld [vmem:[%s3 + $0x1010] sm:$0xff]
    %v1588 = vld [vmem:[%s3 + $0x1018] sm:$0xff]
    %v1589 = vld [vmem:[%s3 + $0x1020] sm:$0xff]
    %v1590 = vld [vmem:[%s3 + $0x1028] sm:$0xff]
    %v1591 = vld [vmem:[%s3 + $0x1030] sm:$0xff]
    %v1592 = vld [vmem:[%s3 + $0x1038] sm:$0xff]
    %v1593 = vld [vmem:[%s3 + $0x1040] sm:$0xff]
    %v1594 = vld [vmem:[%s3 + $0x1048] sm:$0xff]
    %v1595 = vld [vmem:[%s3 + $0x1050] sm:$0xff]
    %v1596 = vld [vmem:[%s3 + $0x1058] sm:$0xff]
    %v1597 = vld [vmem:[%s3 + $0x1060] sm:$0xff]
    %v1598 = vld [vmem:[%s3 + $0x1068] sm:$0xff]
    %v1599 = vld [vmem:[%s3 + $0x1070] sm:$0xff]
    %v1600 = vld [vmem:[%s3 + $0x1078] sm:$0xff]
    %v1601 = vld [vmem:[%s3 + $0x1080] sm:$0xff]
    %v1602 = vld [vmem:[%s3 + $0x1088] sm:$0xff]
    %v1603 = vld [vmem:[%s3 + $0x1090] sm:$0xff]
    %v1604 = vld [vmem:[%s3 + $0x1098] sm:$0xff]
    %v1605 = vld [vmem:[%s3 + $0x10a0] sm:$0xff]
    %v1606 = vld [vmem:[%s3 + $0x10a8] sm:$0xff]
    %v1607 = vld [vmem:[%s3 + $0x10b0] sm:$0xff]
    %v1608 = vld [vmem:[%s3 + $0x10b8] sm:$0xff]
    %v1609 = vld [vmem:[%s3 + $0x10c0] sm:$0xff]
    %v1610 = vld [vmem:[%s3 + $0x10c8] sm:$0xff]
    %v1611 = vld [vmem:[%s3 + $0x10d0] sm:$0xff]
    %v1612 = vld [vmem:[%s3 + $0x10d8] sm:$0xff]
    %v1613 = vld [vmem:[%s3 + $0x10e0] sm:$0xff]
    %v1614 = vld [vmem:[%s3 + $0x10e8] sm:$0xff]
    %v1615 = vld [vmem:[%s3 + $0x10f0] sm:$0xff]
    %v1616 = vld [vmem:[%s3 + $0x10f8] sm:$0xff]
    %v1617 = vld [vmem:[%s3 + $0x1100] sm:$0xff]
    %v1618 = vld [vmem:[%s3 + $0x1108] sm:$0xff]
    %v1619 = vld [vmem:[%s3 + $0x1110] sm:$0xff]
    %v1620 = vld [vmem:[%s3 + $0x1118] sm:$0xff]
    %v1621 = vld [vmem:[%s3 + $0x1120] sm:$0xff]
    %v1622 = vld [vmem:[%s3 + $0x1128] sm:$0xff]
    %v1623 = vld [vmem:[%s3 + $0x1130] sm:$0xff]
    %v1624 = vld [vmem:[%s3 + $0x1138] sm:$0xff]
    %v1625 = vld [vmem:[%s3 + $0x1140] sm:$0xff]
    %v1626 = vld [vmem:[%s3 + $0x1148] sm:$0xff]
    %v1627 = vld [vmem:[%s3 + $0x1150] sm:$0xff]
    %v1628 = vld [vmem:[%s3 + $0x1158] sm:$0xff]
    %v1629 = vld [vmem:[%s3 + $0x1160] sm:$0xff]
    %v1630 = vld [vmem:[%s3 + $0x1168] sm:$0xff]
    %v1631 = vld [vmem:[%s3 + $0x1170] sm:$0xff]
    %v1632 = vld [vmem:[%s3 + $0x1178] sm:$0xff]
    %v1633 = vld [vmem:[%s3 + $0x1180] sm:$0xff]
    %v1634 = vld [vmem:[%s3 + $0x1188] sm:$0xff]
    %v1635 = vld [vmem:[%s3 + $0x1190] sm:$0xff]
    %v1636 = vld [vmem:[%s3 + $0x1198] sm:$0xff]
    %v1637 = vld [vmem:[%s3 + $0x11a0] sm:$0xff]
    %v1638 = vld [vmem:[%s3 + $0x11a8] sm:$0xff]
    %v1639 = vld [vmem:[%s3 + $0x11b0] sm:$0xff]
    %v1640 = vld [vmem:[%s3 + $0x11b8] sm:$0xff]
    %v1641 = vld [vmem:[%s3 + $0x11c0] sm:$0xff]
    %v1642 = vld [vmem:[%s3 + $0x11c8] sm:$0xff]
    %v1643 = vld [vmem:[%s3 + $0x11d0] sm:$0xff]
    %v1644 = vld [vmem:[%s3 + $0x11d8] sm:$0xff]
    %v1645 = vld [vmem:[%s3 + $0x11e0] sm:$0xff]
    %v1646 = vld [vmem:[%s3 + $0x11e8] sm:$0xff]
    %v1647 = vld [vmem:[%s3 + $0x11f0] sm:$0xff]
    %v1648 = vld [vmem:[%s3 + $0x11f8] sm:$0xff]
    %v1649 = vld [vmem:[%s3 + $0x1200] sm:$0xff]
    %v1650 = vld [vmem:[%s3 + $0x1208] sm:$0xff]
    %v1651 = vld [vmem:[%s3 + $0x1210] sm:$0xff]
    %v1652 = vld [vmem:[%s3 + $0x1218] sm:$0xff]
    %v1653 = vld [vmem:[%s3 + $0x1220] sm:$0xff]
    %v1654 = vld [vmem:[%s3 + $0x1228] sm:$0xff]
    %v1655 = vld [vmem:[%s3 + $0x1230] sm:$0xff]
    %v1656 = vld [vmem:[%s3 + $0x1238] sm:$0xff]
    %v1657 = vld [vmem:[%s3 + $0x1240] sm:$0xff]
    %v1658 = vld [vmem:[%s3 + $0x1248] sm:$0xff]
    %v1659 = vld [vmem:[%s3 + $0x1250] sm:$0xff]
    %v1660 = vld [vmem:[%s3 + $0x1258] sm:$0xff]
    %v1661 = vld [vmem:[%s3 + $0x1260] sm:$0xff]
    %v1662 = vld [vmem:[%s3 + $0x1268] sm:$0xff]
    %v1663 = vld [vmem:[%s3 + $0x1270] sm:$0xff]
    %v1664 = vld [vmem:[%s3 + $0x1278] sm:$0xff]
    %v1665 = vld [vmem:[%s3 + $0x1280] sm:$0xff]
    %v1666 = vld [vmem:[%s3 + $0x1288] sm:$0xff]
    %v1667 = vld [vmem:[%s3 + $0x1290] sm:$0xff]
    %v1668 = vld [vmem:[%s3 + $0x1298] sm:$0xff]
    %v1669 = vld [vmem:[%s3 + $0x12a0] sm:$0xff]
    %v1670 = vld [vmem:[%s3 + $0x12a8] sm:$0xff]
    %v1671 = vld [vmem:[%s3 + $0x12b0] sm:$0xff]
    %v1672 = vld [vmem:[%s3 + $0x12b8] sm:$0xff]
    %v1673 = vld [vmem:[%s3 + $0x12c0] sm:$0xff]
    %v1674 = vld [vmem:[%s3 + $0x12c8] sm:$0xff]
    %v1675 = vld [vmem:[%s3 + $0x12d0] sm:$0xff]
    %v1676 = vld [vmem:[%s3 + $0x12d8] sm:$0xff]
    %v1677 = vld [vmem:[%s3 + $0x12e0] sm:$0xff]
    %v1678 = vld [vmem:[%s3 + $0x12e8] sm:$0xff]
    %v1679 = vld [vmem:[%s3 + $0x12f0] sm:$0xff]
    %v1680 = vld [vmem:[%s3 + $0x12f8] sm:$0xff]
    %v1681 = vld [vmem:[%s3 + $0x1300] sm:$0xff]
    %v1682 = vld [vmem:[%s3 + $0x1308] sm:$0xff]
    %v1683 = vld [vmem:[%s3 + $0x1310] sm:$0xff]
    %v1684 = vld [vmem:[%s3 + $0x1318] sm:$0xff]
    %v1685 = vld [vmem:[%s3 + $0x1320] sm:$0xff]
    %v1686 = vld [vmem:[%s3 + $0x1328] sm:$0xff]
    %v1687 = vld [vmem:[%s3 + $0x1330] sm:$0xff]
    %v1688 = vld [vmem:[%s3 + $0x1338] sm:$0xff]
    %v1689 = vld [vmem:[%s3 + $0x1340] sm:$0xff]
    %v1690 = vld [vmem:[%s3 + $0x1348] sm:$0xff]
    %v1691 = vld [vmem:[%s3 + $0x1350] sm:$0xff]
    %v1692 = vld [vmem:[%s3 + $0x1358] sm:$0xff]
    %v1693 = vld [vmem:[%s3 + $0x1360] sm:$0xff]
    %v1694 = vld [vmem:[%s3 + $0x1368] sm:$0xff]
    %v1695 = vld [vmem:[%s3 + $0x1370] sm:$0xff]
    %v1696 = vld [vmem:[%s3 + $0x1378] sm:$0xff]
    %v1697 = vld [vmem:[%s3 + $0x1380] sm:$0xff]
    %v1698 = vld [vmem:[%s3 + $0x1388] sm:$0xff]
    %v1699 = vld [vmem:[%s3 + $0x1390] sm:$0xff]
    %v1700 = vld [vmem:[%s3 + $0x1398] sm:$0xff]
    %v1701 = vld [vmem:[%s3 + $0x13a0] sm:$0xff]
    %v1702 = vld [vmem:[%s3 + $0x13a8] sm:$0xff]
    %v1703 = vld [vmem:[%s3 + $0x13b0] sm:$0xff]
    %v1704 = vld [vmem:[%s3 + $0x13b8] sm:$0xff]
    %v1705 = vld [vmem:[%s3 + $0x13c0] sm:$0xff]
    %v1706 = vld [vmem:[%s3 + $0x13c8] sm:$0xff]
    %v1707 = vld [vmem:[%s3 + $0x13d0] sm:$0xff]
    %v1708 = vld [vmem:[%s3 + $0x13d8] sm:$0xff]
    %v1709 = vld [vmem:[%s3 + $0x13e0] sm:$0xff]
    %v1710 = vld [vmem:[%s3 + $0x13e8] sm:$0xff]
    %v1711 = vld [vmem:[%s3 + $0x13f0] sm:$0xff]
    %v1712 = vld [vmem:[%s3 + $0x13f8] sm:$0xff]
    %v1713 = vld [vmem:[%s3 + $0x1400] sm:$0xff]
    %v1714 = vld [vmem:[%s3 + $0x1408] sm:$0xff]
    %v1715 = vld [vmem:[%s3 + $0x1410] sm:$0xff]
    %v1716 = vld [vmem:[%s3 + $0x1418] sm:$0xff]
    %v1717 = vld [vmem:[%s3 + $0x1420] sm:$0xff]
    %v1718 = vld [vmem:[%s3 + $0x1428] sm:$0xff]
    %v1719 = vld [vmem:[%s3 + $0x1430] sm:$0xff]
    %v1720 = vld [vmem:[%s3 + $0x1438] sm:$0xff]
    %v1721 = vld [vmem:[%s3 + $0x1440] sm:$0xff]
    %v1722 = vld [vmem:[%s3 + $0x1448] sm:$0xff]
    %v1723 = vld [vmem:[%s3 + $0x1450] sm:$0xff]
    %v1724 = vld [vmem:[%s3 + $0x1458] sm:$0xff]
    %v1725 = vld [vmem:[%s3 + $0x1460] sm:$0xff]
    %v1726 = vld [vmem:[%s3 + $0x1468] sm:$0xff]
    %v1727 = vld [vmem:[%s3 + $0x1470] sm:$0xff]
    %v1728 = vld [vmem:[%s3 + $0x1478] sm:$0xff]
    %v1729 = vld [vmem:[%s3 + $0x1480] sm:$0xff]
    %v1730 = vld [vmem:[%s3 + $0x1488] sm:$0xff]
    %v1731 = vld [vmem:[%s3 + $0x1490] sm:$0xff]
    %v1732 = vld [vmem:[%s3 + $0x1498] sm:$0xff]
    %v1733 = vld [vmem:[%s3 + $0x14a0] sm:$0xff]
    %v1734 = vld [vmem:[%s3 + $0x14a8] sm:$0xff]
    %v1735 = vld [vmem:[%s3 + $0x14b0] sm:$0xff]
    %v1736 = vld [vmem:[%s3 + $0x14b8] sm:$0xff]
    %v1737 = vld [vmem:[%s3 + $0x14c0] sm:$0xff]
    %v1738 = vld [vmem:[%s3 + $0x14c8] sm:$0xff]
    %v1739 = vld [vmem:[%s3 + $0x14d0] sm:$0xff]
    %v1740 = vld [vmem:[%s3 + $0x14d8] sm:$0xff]
    %v1741 = vld [vmem:[%s3 + $0x14e0] sm:$0xff]
    %v1742 = vld [vmem:[%s3 + $0x14e8] sm:$0xff]
    %v1743 = vld [vmem:[%s3 + $0x14f0] sm:$0xff]
    %v1744 = vld [vmem:[%s3 + $0x14f8] sm:$0xff]
    %v1745 = vld [vmem:[%s3 + $0x1500] sm:$0xff]
    %v1746 = vld [vmem:[%s3 + $0x1508] sm:$0xff]
    %v1747 = vld [vmem:[%s3 + $0x1510] sm:$0xff]
    %v1748 = vld [vmem:[%s3 + $0x1518] sm:$0xff]
    %v1749 = vld [vmem:[%s3 + $0x1520] sm:$0xff]
    %v1750 = vld [vmem:[%s3 + $0x1528] sm:$0xff]
    %v1751 = vld [vmem:[%s3 + $0x1530] sm:$0xff]
    %v1752 = vld [vmem:[%s3 + $0x1538] sm:$0xff]
    %v1753 = vld [vmem:[%s3 + $0x1540] sm:$0xff]
    %v1754 = vld [vmem:[%s3 + $0x1548] sm:$0xff]
    %v1755 = vld [vmem:[%s3 + $0x1550] sm:$0xff]
    %v1756 = vld [vmem:[%s3 + $0x1558] sm:$0xff]
    %v1757 = vld [vmem:[%s3 + $0x1560] sm:$0xff]
    %v1758 = vld [vmem:[%s3 + $0x1568] sm:$0xff]
    %v1759 = vld [vmem:[%s3 + $0x1570] sm:$0xff]
    %v1760 = vld [vmem:[%s3 + $0x1578] sm:$0xff]
    %v1761 = vld [vmem:[%s3 + $0x1580] sm:$0xff]
    %v1762 = vld [vmem:[%s3 + $0x1588] sm:$0xff]
    %v1763 = vld [vmem:[%s3 + $0x1590] sm:$0xff]
    %v1764 = vld [vmem:[%s3 + $0x1598] sm:$0xff]
    %v1765 = vld [vmem:[%s3 + $0x15a0] sm:$0xff]
    %v1766 = vld [vmem:[%s3 + $0x15a8] sm:$0xff]
    %v1767 = vld [vmem:[%s3 + $0x15b0] sm:$0xff]
    %v1768 = vld [vmem:[%s3 + $0x15b8] sm:$0xff]
    %v1769 = vld [vmem:[%s3 + $0x15c0] sm:$0xff]
    %v1770 = vld [vmem:[%s3 + $0x15c8] sm:$0xff]
    %v1771 = vld [vmem:[%s3 + $0x15d0] sm:$0xff]
    %v1772 = vld [vmem:[%s3 + $0x15d8] sm:$0xff]
    %v1773 = vld [vmem:[%s3 + $0x15e0] sm:$0xff]
    %v1774 = vld [vmem:[%s3 + $0x15e8] sm:$0xff]
    %v1775 = vld [vmem:[%s3 + $0x15f0] sm:$0xff]
    %v1776 = vld [vmem:[%s3 + $0x15f8] sm:$0xff]
    %v1777 = vld [vmem:[%s3 + $0x1600] sm:$0xff]
    %v1778 = vld [vmem:[%s3 + $0x1608] sm:$0xff]
    %v1779 = vld [vmem:[%s3 + $0x1610] sm:$0xff]
    %v1780 = vld [vmem:[%s3 + $0x1618] sm:$0xff]
    %v1781 = vld [vmem:[%s3 + $0x1620] sm:$0xff]
    %v1782 = vld [vmem:[%s3 + $0x1628] sm:$0xff]
    %v1783 = vld [vmem:[%s3 + $0x1630] sm:$0xff]
    %v1784 = vld [vmem:[%s3 + $0x1638] sm:$0xff]
    %v1785 = vld [vmem:[%s3 + $0x1640] sm:$0xff]
    %v1786 = vld [vmem:[%s3 + $0x1648] sm:$0xff]
    %v1787 = vld [vmem:[%s3 + $0x1650] sm:$0xff]
    %v1788 = vld [vmem:[%s3 + $0x1658] sm:$0xff]
    %v1789 = vld [vmem:[%s3 + $0x1660] sm:$0xff]
    %v1790 = vld [vmem:[%s3 + $0x1668] sm:$0xff]
    %v1791 = vld [vmem:[%s3 + $0x1670] sm:$0xff]
    %v1792 = vld [vmem:[%s3 + $0x1678] sm:$0xff]
    %v1793 = vld [vmem:[%s3 + $0x1680] sm:$0xff]
    %v1794 = vld [vmem:[%s3 + $0x1688] sm:$0xff]
    %v1795 = vld [vmem:[%s3 + $0x1690] sm:$0xff]
    %v1796 = vld [vmem:[%s3 + $0x1698] sm:$0xff]
    %v1797 = vld [vmem:[%s3 + $0x16a0] sm:$0xff]
    %v1798 = vld [vmem:[%s3 + $0x16a8] sm:$0xff]
    %v1799 = vld [vmem:[%s3 + $0x16b0] sm:$0xff]
    %v1800 = vld [vmem:[%s3 + $0x16b8] sm:$0xff]
    %v1801 = vld [vmem:[%s3 + $0x16c0] sm:$0xff]
    %v1802 = vld [vmem:[%s3 + $0x16c8] sm:$0xff]
    %v1803 = vld [vmem:[%s3 + $0x16d0] sm:$0xff]
    %v1804 = vld [vmem:[%s3 + $0x16d8] sm:$0xff]
    %v1805 = vld [vmem:[%s3 + $0x16e0] sm:$0xff]
    %v1806 = vld [vmem:[%s3 + $0x16e8] sm:$0xff]
    %v1807 = vld [vmem:[%s3 + $0x16f0] sm:$0xff]
    %v1808 = vld [vmem:[%s3 + $0x16f8] sm:$0xff]
    %v1809 = vld [vmem:[%s3 + $0x1700] sm:$0xff]
    %v1810 = vld [vmem:[%s3 + $0x1708] sm:$0xff]
    %v1811 = vld [vmem:[%s3 + $0x1710] sm:$0xff]
    %v1812 = vld [vmem:[%s3 + $0x1718] sm:$0xff]
    %v1813 = vld [vmem:[%s3 + $0x1720] sm:$0xff]
    %v1814 = vld [vmem:[%s3 + $0x1728] sm:$0xff]
    %v1815 = vld [vmem:[%s3 + $0x1730] sm:$0xff]
    %v1816 = vld [vmem:[%s3 + $0x1738] sm:$0xff]
    %v1817 = vld [vmem:[%s3 + $0x1740] sm:$0xff]
    %v1818 = vld [vmem:[%s3 + $0x1748] sm:$0xff]
    %v1819 = vld [vmem:[%s3 + $0x1750] sm:$0xff]
    %v1820 = vld [vmem:[%s3 + $0x1758] sm:$0xff]
    %v1821 = vld [vmem:[%s3 + $0x1760] sm:$0xff]
    %v1822 = vld [vmem:[%s3 + $0x1768] sm:$0xff]
    %v1823 = vld [vmem:[%s3 + $0x1770] sm:$0xff]
    %v1824 = vld [vmem:[%s3 + $0x1778] sm:$0xff]
    %v1825 = vld [vmem:[%s3 + $0x1780] sm:$0xff]
    %v1826 = vld [vmem:[%s3 + $0x1788] sm:$0xff]
    %v1827 = vld [vmem:[%s3 + $0x1790] sm:$0xff]
    %v1828 = vld [vmem:[%s3 + $0x1798] sm:$0xff]
    %v1829 = vld [vmem:[%s3 + $0x17a0] sm:$0xff]
    %v1830 = vld [vmem:[%s3 + $0x17a8] sm:$0xff]
    %v1831 = vld [vmem:[%s3 + $0x17b0] sm:$0xff]
    %v1832 = vld [vmem:[%s3 + $0x17b8] sm:$0xff]
    %v1833 = vld [vmem:[%s3 + $0x17c0] sm:$0xff]
    %v1834 = vld [vmem:[%s3 + $0x17c8] sm:$0xff]
    %v1835 = vld [vmem:[%s3 + $0x17d0] sm:$0xff]
    %v1836 = vld [vmem:[%s3 + $0x17d8] sm:$0xff]
    %v1837 = vld [vmem:[%s3 + $0x17e0] sm:$0xff]
    %v1838 = vld [vmem:[%s3 + $0x17e8] sm:$0xff]
    %v1839 = vld [vmem:[%s3 + $0x17f0] sm:$0xff]
    %v1840 = vld [vmem:[%s3 + $0x17f8] sm:$0xff]
    %v1841 = vld [vmem:[%s3 + $0x1800] sm:$0xff]
    %v1842 = vld [vmem:[%s3 + $0x1808] sm:$0xff]
    %v1843 = vld [vmem:[%s3 + $0x1810] sm:$0xff]
    %v1844 = vld [vmem:[%s3 + $0x1818] sm:$0xff]
    %v1845 = vld [vmem:[%s3 + $0x1820] sm:$0xff]
    %v1846 = vld [vmem:[%s3 + $0x1828] sm:$0xff]
    %v1847 = vld [vmem:[%s3 + $0x1830] sm:$0xff]
    %v1848 = vld [vmem:[%s3 + $0x1838] sm:$0xff]
    %v1849 = vld [vmem:[%s3 + $0x1840] sm:$0xff]
    %v1850 = vld [vmem:[%s3 + $0x1848] sm:$0xff]
    %v1851 = vld [vmem:[%s3 + $0x1850] sm:$0xff]
    %v1852 = vld [vmem:[%s3 + $0x1858] sm:$0xff]
    %v1853 = vld [vmem:[%s3 + $0x1860] sm:$0xff]
    %v1854 = vld [vmem:[%s3 + $0x1868] sm:$0xff]
    %v1855 = vld [vmem:[%s3 + $0x1870] sm:$0xff]
    %v1856 = vld [vmem:[%s3 + $0x1878] sm:$0xff]
    %v1857 = vld [vmem:[%s3 + $0x1880] sm:$0xff]
    %v1858 = vld [vmem:[%s3 + $0x1888] sm:$0xff]
    %v1859 = vld [vmem:[%s3 + $0x1890] sm:$0xff]
    %v1860 = vld [vmem:[%s3 + $0x1898] sm:$0xff]
    %v1861 = vld [vmem:[%s3 + $0x18a0] sm:$0xff]
    %v1862 = vld [vmem:[%s3 + $0x18a8] sm:$0xff]
    %v1863 = vld [vmem:[%s3 + $0x18b0] sm:$0xff]
    %v1864 = vld [vmem:[%s3 + $0x18b8] sm:$0xff]
    %v1865 = vld [vmem:[%s3 + $0x18c0] sm:$0xff]
    %v1866 = vld [vmem:[%s3 + $0x18c8] sm:$0xff]
    %v1867 = vld [vmem:[%s3 + $0x18d0] sm:$0xff]
    %v1868 = vld [vmem:[%s3 + $0x18d8] sm:$0xff]
    %v1869 = vld [vmem:[%s3 + $0x18e0] sm:$0xff]
    %v1870 = vld [vmem:[%s3 + $0x18e8] sm:$0xff]
    %v1871 = vld [vmem:[%s3 + $0x18f0] sm:$0xff]
    %v1872 = vld [vmem:[%s3 + $0x18f8] sm:$0xff]
    %v1873 = vld [vmem:[%s3 + $0x1900] sm:$0xff]
    %v1874 = vld [vmem:[%s3 + $0x1908] sm:$0xff]
    %v1875 = vld [vmem:[%s3 + $0x1910] sm:$0xff]
    %v1876 = vld [vmem:[%s3 + $0x1918] sm:$0xff]
    %v1877 = vld [vmem:[%s3 + $0x1920] sm:$0xff]
    %v1878 = vld [vmem:[%s3 + $0x1928] sm:$0xff]
    %v1879 = vld [vmem:[%s3 + $0x1930] sm:$0xff]
    %v1880 = vld [vmem:[%s3 + $0x1938] sm:$0xff]
    %v1881 = vld [vmem:[%s3 + $0x1940] sm:$0xff]
    %v1882 = vld [vmem:[%s3 + $0x1948] sm:$0xff]
    %v1883 = vld [vmem:[%s3 + $0x1950] sm:$0xff]
    %v1884 = vld [vmem:[%s3 + $0x1958] sm:$0xff]
    %v1885 = vld [vmem:[%s3 + $0x1960] sm:$0xff]
    %v1886 = vld [vmem:[%s3 + $0x1968] sm:$0xff]
    %v1887 = vld [vmem:[%s3 + $0x1970] sm:$0xff]
    %v1888 = vld [vmem:[%s3 + $0x1978] sm:$0xff]
    %v1889 = vld [vmem:[%s3 + $0x1980] sm:$0xff]
    %v1890 = vld [vmem:[%s3 + $0x1988] sm:$0xff]
    %v1891 = vld [vmem:[%s3 + $0x1990] sm:$0xff]
    %v1892 = vld [vmem:[%s3 + $0x1998] sm:$0xff]
    %v1893 = vld [vmem:[%s3 + $0x19a0] sm:$0xff]
    %v1894 = vld [vmem:[%s3 + $0x19a8] sm:$0xff]
    %v1895 = vld [vmem:[%s3 + $0x19b0] sm:$0xff]
    %v1896 = vld [vmem:[%s3 + $0x19b8] sm:$0xff]
    %v1897 = vld [vmem:[%s3 + $0x19c0] sm:$0xff]
    %v1898 = vld [vmem:[%s3 + $0x19c8] sm:$0xff]
    %v1899 = vld [vmem:[%s3 + $0x19d0] sm:$0xff]
    %v1900 = vld [vmem:[%s3 + $0x19d8] sm:$0xff]
    %v1901 = vld [vmem:[%s3 + $0x19e0] sm:$0xff]
    %v1902 = vld [vmem:[%s3 + $0x19e8] sm:$0xff]
    %v1903 = vld [vmem:[%s3 + $0x19f0] sm:$0xff]
    %v1904 = vld [vmem:[%s3 + $0x19f8] sm:$0xff]
    %v1905 = vld [vmem:[%s3 + $0x1a00] sm:$0xff]
    %v1906 = vld [vmem:[%s3 + $0x1a08] sm:$0xff]
    %v1907 = vld [vmem:[%s3 + $0x1a10] sm:$0xff]
    %v1908 = vld [vmem:[%s3 + $0x1a18] sm:$0xff]
    %v1909 = vld [vmem:[%s3 + $0x1a20] sm:$0xff]
    %v1910 = vld [vmem:[%s3 + $0x1a28] sm:$0xff]
    %v1911 = vld [vmem:[%s3 + $0x1a30] sm:$0xff]
    %v1912 = vld [vmem:[%s3 + $0x1a38] sm:$0xff]
    %v1913 = vld [vmem:[%s3 + $0x1a40] sm:$0xff]
    %v1914 = vld [vmem:[%s3 + $0x1a48] sm:$0xff]
    %v1915 = vld [vmem:[%s3 + $0x1a50] sm:$0xff]
    %v1916 = vld [vmem:[%s3 + $0x1a58] sm:$0xff]
    %v1917 = vld [vmem:[%s3 + $0x1a60] sm:$0xff]
    %v1918 = vld [vmem:[%s3 + $0x1a68] sm:$0xff]
    %v1919 = vld [vmem:[%s3 + $0x1a70] sm:$0xff]
    %v1920 = vld [vmem:[%s3 + $0x1a78] sm:$0xff]
    %v1921 = vld [vmem:[%s3 + $0x1a80] sm:$0xff]
    %v1922 = vld [vmem:[%s3 + $0x1a88] sm:$0xff]
    %v1923 = vld [vmem:[%s3 + $0x1a90] sm:$0xff]
    %v1924 = vld [vmem:[%s3 + $0x1a98] sm:$0xff]
    %v1925 = vld [vmem:[%s3 + $0x1aa0] sm:$0xff]
    %v1926 = vld [vmem:[%s3 + $0x1aa8] sm:$0xff]
    %v1927 = vld [vmem:[%s3 + $0x1ab0] sm:$0xff]
    %v1928 = vld [vmem:[%s3 + $0x1ab8] sm:$0xff]
    %v1929 = vld [vmem:[%s3 + $0x1ac0] sm:$0xff]
    %v1930 = vld [vmem:[%s3 + $0x1ac8] sm:$0xff]
    %v1931 = vld [vmem:[%s3 + $0x1ad0] sm:$0xff]
    %v1932 = vld [vmem:[%s3 + $0x1ad8] sm:$0xff]
    %v1933 = vld [vmem:[%s3 + $0x1ae0] sm:$0xff]
    %v1934 = vld [vmem:[%s3 + $0x1ae8] sm:$0xff]
    %v1935 = vld [vmem:[%s3 + $0x1af0] sm:$0xff]
    %v1936 = vld [vmem:[%s3 + $0x1af8] sm:$0xff]
    %v1937 = vld [vmem:[%s3 + $0x1b00] sm:$0xff]
    %v1938 = vld [vmem:[%s3 + $0x1b08] sm:$0xff]
    %v1939 = vld [vmem:[%s3 + $0x1b10] sm:$0xff]
    %v1940 = vld [vmem:[%s3 + $0x1b18] sm:$0xff]
    %v1941 = vld [vmem:[%s3 + $0x1b20] sm:$0xff]
    %v1942 = vld [vmem:[%s3 + $0x1b28] sm:$0xff]
    %v1943 = vld [vmem:[%s3 + $0x1b30] sm:$0xff]
    %v1944 = vld [vmem:[%s3 + $0x1b38] sm:$0xff]
    %v1945 = vld [vmem:[%s3 + $0x1b40] sm:$0xff]
    %v1946 = vld [vmem:[%s3 + $0x1b48] sm:$0xff]
    %v1947 = vld [vmem:[%s3 + $0x1b50] sm:$0xff]
    %v1948 = vld [vmem:[%s3 + $0x1b58] sm:$0xff]
    %v1949 = vld [vmem:[%s3 + $0x1b60] sm:$0xff]
    %v1950 = vld [vmem:[%s3 + $0x1b68] sm:$0xff]
    %v1951 = vld [vmem:[%s3 + $0x1b70] sm:$0xff]
    %v1952 = vld [vmem:[%s3 + $0x1b78] sm:$0xff]
    %v1953 = vld [vmem:[%s3 + $0x1b80] sm:$0xff]
    %v1954 = vld [vmem:[%s3 + $0x1b88] sm:$0xff]
    %v1955 = vld [vmem:[%s3 + $0x1b90] sm:$0xff]
    %v1956 = vld [vmem:[%s3 + $0x1b98] sm:$0xff]
    %v1957 = vld [vmem:[%s3 + $0x1ba0] sm:$0xff]
    %v1958 = vld [vmem:[%s3 + $0x1ba8] sm:$0xff]
    %v1959 = vld [vmem:[%s3 + $0x1bb0] sm:$0xff]
    %v1960 = vld [vmem:[%s3 + $0x1bb8] sm:$0xff]
    %v1961 = vld [vmem:[%s3 + $0x1bc0] sm:$0xff]
    %v1962 = vld [vmem:[%s3 + $0x1bc8] sm:$0xff]
    %v1963 = vld [vmem:[%s3 + $0x1bd0] sm:$0xff]
    %v1964 = vld [vmem:[%s3 + $0x1bd8] sm:$0xff]
    %v1965 = vld [vmem:[%s3 + $0x1be0] sm:$0xff]
    %v1966 = vld [vmem:[%s3 + $0x1be8] sm:$0xff]
    %v1967 = vld [vmem:[%s3 + $0x1bf0] sm:$0xff]
    %v1968 = vld [vmem:[%s3 + $0x1bf8] sm:$0xff]
    %v1969 = vld [vmem:[%s3 + $0x1c00] sm:$0xff]
    %v1970 = vld [vmem:[%s3 + $0x1c08] sm:$0xff]
    %v1971 = vld [vmem:[%s3 + $0x1c10] sm:$0xff]
    %v1972 = vld [vmem:[%s3 + $0x1c18] sm:$0xff]
    %v1973 = vld [vmem:[%s3 + $0x1c20] sm:$0xff]
    %v1974 = vld [vmem:[%s3 + $0x1c28] sm:$0xff]
    %v1975 = vld [vmem:[%s3 + $0x1c30] sm:$0xff]
    %v1976 = vld [vmem:[%s3 + $0x1c38] sm:$0xff]
    %v1977 = vld [vmem:[%s3 + $0x1c40] sm:$0xff]
    %v1978 = vld [vmem:[%s3 + $0x1c48] sm:$0xff]
    %v1979 = vld [vmem:[%s3 + $0x1c50] sm:$0xff]
    %v1980 = vld [vmem:[%s3 + $0x1c58] sm:$0xff]
    %v1981 = vld [vmem:[%s3 + $0x1c60] sm:$0xff]
    %v1982 = vld [vmem:[%s3 + $0x1c68] sm:$0xff]
    %v1983 = vld [vmem:[%s3 + $0x1c70] sm:$0xff]
    %v1984 = vld [vmem:[%s3 + $0x1c78] sm:$0xff]
    %v1985 = vld [vmem:[%s3 + $0x1c80] sm:$0xff]
    %v1986 = vld [vmem:[%s3 + $0x1c88] sm:$0xff]
    %v1987 = vld [vmem:[%s3 + $0x1c90] sm:$0xff]
    %v1988 = vld [vmem:[%s3 + $0x1c98] sm:$0xff]
    %v1989 = vld [vmem:[%s3 + $0x1ca0] sm:$0xff]
    %v1990 = vld [vmem:[%s3 + $0x1ca8] sm:$0xff]
    %v1991 = vld [vmem:[%s3 + $0x1cb0] sm:$0xff]
    %v1992 = vld [vmem:[%s3 + $0x1cb8] sm:$0xff]
    %v1993 = vld [vmem:[%s3 + $0x1cc0] sm:$0xff]
    %v1994 = vld [vmem:[%s3 + $0x1cc8] sm:$0xff]
    %v1995 = vld [vmem:[%s3 + $0x1cd0] sm:$0xff]
    %v1996 = vld [vmem:[%s3 + $0x1cd8] sm:$0xff]
    %v1997 = vld [vmem:[%s3 + $0x1ce0] sm:$0xff]
    %v1998 = vld [vmem:[%s3 + $0x1ce8] sm:$0xff]
    %v1999 = vld [vmem:[%s3 + $0x1cf0] sm:$0xff]
    %v2000 = vld [vmem:[%s3 + $0x1cf8] sm:$0xff]
    %v2001 = vld [vmem:[%s3 + $0x1d00] sm:$0xff]
    %v2002 = vld [vmem:[%s3 + $0x1d08] sm:$0xff]
    %v2003 = vld [vmem:[%s3 + $0x1d10] sm:$0xff]
    %v2004 = vld [vmem:[%s3 + $0x1d18] sm:$0xff]
    %v2005 = vld [vmem:[%s3 + $0x1d20] sm:$0xff]
    %v2006 = vld [vmem:[%s3 + $0x1d28] sm:$0xff]
    %v2007 = vld [vmem:[%s3 + $0x1d30] sm:$0xff]
    %v2008 = vld [vmem:[%s3 + $0x1d38] sm:$0xff]
    %v2009 = vld [vmem:[%s3 + $0x1d40] sm:$0xff]
    %v2010 = vld [vmem:[%s3 + $0x1d48] sm:$0xff]
    %v2011 = vld [vmem:[%s3 + $0x1d50] sm:$0xff]
    %v2012 = vld [vmem:[%s3 + $0x1d58] sm:$0xff]
    %v2013 = vld [vmem:[%s3 + $0x1d60] sm:$0xff]
    %v2014 = vld [vmem:[%s3 + $0x1d68] sm:$0xff]
    %v2015 = vld [vmem:[%s3 + $0x1d70] sm:$0xff]
    %v2016 = vld [vmem:[%s3 + $0x1d78] sm:$0xff]
    %v2017 = vld [vmem:[%s3 + $0x1d80] sm:$0xff]
    %v2018 = vld [vmem:[%s3 + $0x1d88] sm:$0xff]
    %v2019 = vld [vmem:[%s3 + $0x1d90] sm:$0xff]
    %v2020 = vld [vmem:[%s3 + $0x1d98] sm:$0xff]
    %v2021 = vld [vmem:[%s3 + $0x1da0] sm:$0xff]
    %v2022 = vld [vmem:[%s3 + $0x1da8] sm:$0xff]
    %v2023 = vld [vmem:[%s3 + $0x1db0] sm:$0xff]
    %v2024 = vld [vmem:[%s3 + $0x1db8] sm:$0xff]
    %v2025 = vld [vmem:[%s3 + $0x1dc0] sm:$0xff]
    %v2026 = vld [vmem:[%s3 + $0x1dc8] sm:$0xff]
    %v2027 = vld [vmem:[%s3 + $0x1dd0] sm:$0xff]
    %v2028 = vld [vmem:[%s3 + $0x1dd8] sm:$0xff]
    %v2029 = vld [vmem:[%s3 + $0x1de0] sm:$0xff]
    %v2030 = vld [vmem:[%s3 + $0x1de8] sm:$0xff]
    %v2031 = vld [vmem:[%s3 + $0x1df0] sm:$0xff]
    %v2032 = vld [vmem:[%s3 + $0x1df8] sm:$0xff]
    %v2033 = vld [vmem:[%s3 + $0x1e00] sm:$0xff]
    %v2034 = vld [vmem:[%s3 + $0x1e08] sm:$0xff]
    %v2035 = vld [vmem:[%s3 + $0x1e10] sm:$0xff]
    %v2036 = vld [vmem:[%s3 + $0x1e18] sm:$0xff]
    %v2037 = vld [vmem:[%s3 + $0x1e20] sm:$0xff]
    %v2038 = vld [vmem:[%s3 + $0x1e28] sm:$0xff]
    %v2039 = vld [vmem:[%s3 + $0x1e30] sm:$0xff]
    %v2040 = vld [vmem:[%s3 + $0x1e38] sm:$0xff]
    %v2041 = vld [vmem:[%s3 + $0x1e40] sm:$0xff]
    %v2042 = vld [vmem:[%s3 + $0x1e48] sm:$0xff]
    %v2043 = vld [vmem:[%s3 + $0x1e50] sm:$0xff]
    %v2044 = vld [vmem:[%s3 + $0x1e58] sm:$0xff]
    %v2045 = vld [vmem:[%s3 + $0x1e60] sm:$0xff]
    %v2046 = vld [vmem:[%s3 + $0x1e68] sm:$0xff]
    %v2047 = vld [vmem:[%s3 + $0x1e70] sm:$0xff]
    %v2048 = vld [vmem:[%s3 + $0x1e78] sm:$0xff]
    %v2049 = vld [vmem:[%s3 + $0x1e80] sm:$0xff]
    %v2050 = vld [vmem:[%s3 + $0x1e88] sm:$0xff]
    %v2051 = vld [vmem:[%s3 + $0x1e90] sm:$0xff]
    %v2052 = vld [vmem:[%s3 + $0x1e98] sm:$0xff]
    %v2053 = vld [vmem:[%s3 + $0x1ea0] sm:$0xff]
    %v2054 = vld [vmem:[%s3 + $0x1ea8] sm:$0xff]
    %v2055 = vld [vmem:[%s3 + $0x1eb0] sm:$0xff]
    %v2056 = vld [vmem:[%s3 + $0x1eb8] sm:$0xff]
    %v2057 = vld [vmem:[%s3 + $0x1ec0] sm:$0xff]
    %v2058 = vld [vmem:[%s3 + $0x1ec8] sm:$0xff]
    %v2059 = vld [vmem:[%s3 + $0x1ed0] sm:$0xff]
    %v2060 = vld [vmem:[%s3 + $0x1ed8] sm:$0xff]
    %v2061 = vld [vmem:[%s3 + $0x1ee0] sm:$0xff]
    %v2062 = vld [vmem:[%s3 + $0x1ee8] sm:$0xff]
    %v2063 = vld [vmem:[%s3 + $0x1ef0] sm:$0xff]
    %v2064 = vld [vmem:[%s3 + $0x1ef8] sm:$0xff]
    %v2065 = vld [vmem:[%s3 + $0x1f00] sm:$0xff]
    %v2066 = vld [vmem:[%s3 + $0x1f08] sm:$0xff]
    %v2067 = vld [vmem:[%s3 + $0x1f10] sm:$0xff]
    %v2068 = vld [vmem:[%s3 + $0x1f18] sm:$0xff]
    %v2069 = vld [vmem:[%s3 + $0x1f20] sm:$0xff]
    %v2070 = vld [vmem:[%s3 + $0x1f28] sm:$0xff]
    %v2071 = vld [vmem:[%s3 + $0x1f30] sm:$0xff]
    %v2072 = vld [vmem:[%s3 + $0x1f38] sm:$0xff]
    %v2073 = vld [vmem:[%s3 + $0x1f40] sm:$0xff]
    %v2074 = vld [vmem:[%s3 + $0x1f48] sm:$0xff]
    %v2075 = vld [vmem:[%s3 + $0x1f50] sm:$0xff]
    %v2076 = vld [vmem:[%s3 + $0x1f58] sm:$0xff]
    %v2077 = vld [vmem:[%s3 + $0x1f60] sm:$0xff]
    %v2078 = vld [vmem:[%s3 + $0x1f68] sm:$0xff]
    %v2079 = vld [vmem:[%s3 + $0x1f70] sm:$0xff]
    %v2080 = vld [vmem:[%s3 + $0x1f78] sm:$0xff]
    %v2081 = vld [vmem:[%s3 + $0x1f80] sm:$0xff]
    %v2082 = vld [vmem:[%s3 + $0x1f88] sm:$0xff]
    %v2083 = vld [vmem:[%s3 + $0x1f90] sm:$0xff]
    %v2084 = vld [vmem:[%s3 + $0x1f98] sm:$0xff]
    %v2085 = vld [vmem:[%s3 + $0x1fa0] sm:$0xff]
    %v2086 = vld [vmem:[%s3 + $0x1fa8] sm:$0xff]
    %v2087 = vld [vmem:[%s3 + $0x1fb0] sm:$0xff]
    %v2088 = vld [vmem:[%s3 + $0x1fb8] sm:$0xff]
    %v2089 = vld [vmem:[%s3 + $0x1fc0] sm:$0xff]
    %v2090 = vld [vmem:[%s3 + $0x1fc8] sm:$0xff]
    %v2091 = vld [vmem:[%s3 + $0x1fd0] sm:$0xff]
    %v2092 = vld [vmem:[%s3 + $0x1fd8] sm:$0xff]
    %v2093 = vld [vmem:[%s3 + $0x1fe0] sm:$0xff]
    %v2094 = vld [vmem:[%s3 + $0x1fe8] sm:$0xff]
    %v2095 = vld [vmem:[%s3 + $0x1ff0] sm:$0xff]
    %v2096 = vld [vmem:[%s3 + $0x1ff8] sm:$0xff]
    %v2097 = vld [vmem:[%s3 + $0x2000] sm:$0xff]
    %v2098 = vld [vmem:[%s3 + $0x2008] sm:$0xff]
    %v2099 = vld [vmem:[%s3 + $0x2010] sm:$0xff]
    %v2100 = vld [vmem:[%s3 + $0x2018] sm:$0xff]
    %v2101 = vld [vmem:[%s3 + $0x2020] sm:$0xff]
    %v2102 = vld [vmem:[%s3 + $0x2028] sm:$0xff]
    %v2103 = vld [vmem:[%s3 + $0x2030] sm:$0xff]
    %v2104 = vld [vmem:[%s3 + $0x2038] sm:$0xff]
    %v2105 = vld [vmem:[%s3 + $0x2040] sm:$0xff]
    %v2106 = vld [vmem:[%s3 + $0x2048] sm:$0xff]
    %v2107 = vld [vmem:[%s3 + $0x2050] sm:$0xff]
    %v2108 = vld [vmem:[%s3 + $0x2058] sm:$0xff]
    %v2109 = vld [vmem:[%s3 + $0x2060] sm:$0xff]
    %v2110 = vld [vmem:[%s3 + $0x2068] sm:$0xff]
    %v2111 = vld [vmem:[%s3 + $0x2070] sm:$0xff]
    %v2112 = vld [vmem:[%s3 + $0x2078] sm:$0xff]
    %v2113 = vld [vmem:[%s3 + $0x2080] sm:$0xff]
    %v2114 = vld [vmem:[%s3 + $0x2088] sm:$0xff]
    %v2115 = vld [vmem:[%s3 + $0x2090] sm:$0xff]
    %v2116 = vld [vmem:[%s3 + $0x2098] sm:$0xff]
    %v2117 = vld [vmem:[%s3 + $0x20a0] sm:$0xff]
    %v2118 = vld [vmem:[%s3 + $0x20a8] sm:$0xff]
    %v2119 = vld [vmem:[%s3 + $0x20b0] sm:$0xff]
    %v2120 = vld [vmem:[%s3 + $0x20b8] sm:$0xff]
    %v2121 = vld [vmem:[%s3 + $0x20c0] sm:$0xff]
    %v2122 = vld [vmem:[%s3 + $0x20c8] sm:$0xff]
    %v2123 = vld [vmem:[%s3 + $0x20d0] sm:$0xff]
    %v2124 = vld [vmem:[%s3 + $0x20d8] sm:$0xff]
    %v2125 = vld [vmem:[%s3 + $0x20e0] sm:$0xff]
    %v2126 = vld [vmem:[%s3 + $0x20e8] sm:$0xff]
    %v2127 = vld [vmem:[%s3 + $0x20f0] sm:$0xff]
    %v2128 = vld [vmem:[%s3 + $0x20f8] sm:$0xff]
    %v2129 = vld [vmem:[%s3 + $0x2100] sm:$0xff]
    %v2130 = vld [vmem:[%s3 + $0x2108] sm:$0xff]
    %v2131 = vld [vmem:[%s3 + $0x2110] sm:$0xff]
    %v2132 = vld [vmem:[%s3 + $0x2118] sm:$0xff]
    %v2133 = vld [vmem:[%s3 + $0x2120] sm:$0xff]
    %v2134 = vld [vmem:[%s3 + $0x2128] sm:$0xff]
    %v2135 = vld [vmem:[%s3 + $0x2130] sm:$0xff]
    %v2136 = vld [vmem:[%s3 + $0x2138] sm:$0xff]
    %v2137 = vld [vmem:[%s3 + $0x2140] sm:$0xff]
    %v2138 = vld [vmem:[%s3 + $0x2148] sm:$0xff]
    %v2139 = vld [vmem:[%s3 + $0x2150] sm:$0xff]
    %v2140 = vld [vmem:[%s3 + $0x2158] sm:$0xff]
    %v2141 = vld [vmem:[%s3 + $0x2160] sm:$0xff]
    %v2142 = vld [vmem:[%s3 + $0x2168] sm:$0xff]
    %v2143 = vld [vmem:[%s3 + $0x2170] sm:$0xff]
    %v2144 = vld [vmem:[%s3 + $0x2178] sm:$0xff]
    %v2145 = vld [vmem:[%s3 + $0x2180] sm:$0xff]
    %v2146 = vld [vmem:[%s3 + $0x2188] sm:$0xff]
    %v2147 = vld [vmem:[%s3 + $0x2190] sm:$0xff]
    %v2148 = vld [vmem:[%s3 + $0x2198] sm:$0xff]
    %v2149 = vld [vmem:[%s3 + $0x21a0] sm:$0xff]
    %v2150 = vld [vmem:[%s3 + $0x21a8] sm:$0xff]
    %v2151 = vld [vmem:[%s3 + $0x21b0] sm:$0xff]
    %v2152 = vld [vmem:[%s3 + $0x21b8] sm:$0xff]
    %v2153 = vld [vmem:[%s3 + $0x21c0] sm:$0xff]
    %v2154 = vld [vmem:[%s3 + $0x21c8] sm:$0xff]
    %v2155 = vld [vmem:[%s3 + $0x21d0] sm:$0xff]
    %v2156 = vld [vmem:[%s3 + $0x21d8] sm:$0xff]
    %v2157 = vld [vmem:[%s3 + $0x21e0] sm:$0xff]
    %v2158 = vld [vmem:[%s3 + $0x21e8] sm:$0xff]
    %v2159 = vld [vmem:[%s3 + $0x21f0] sm:$0xff]
    %v2160 = vld [vmem:[%s3 + $0x21f8] sm:$0xff]
    %v2161 = vld [vmem:[%s3 + $0x2200] sm:$0xff]
    %v2162 = vld [vmem:[%s3 + $0x2208] sm:$0xff]
    %v2163 = vld [vmem:[%s3 + $0x2210] sm:$0xff]
    %v2164 = vld [vmem:[%s3 + $0x2218] sm:$0xff]
    %v2165 = vld [vmem:[%s3 + $0x2220] sm:$0xff]
    %v2166 = vld [vmem:[%s3 + $0x2228] sm:$0xff]
    %v2167 = vld [vmem:[%s3 + $0x2230] sm:$0xff]
    %v2168 = vld [vmem:[%s3 + $0x2238] sm:$0xff]
    %v2169 = vld [vmem:[%s3 + $0x2240] sm:$0xff]
    %v2170 = vld [vmem:[%s3 + $0x2248] sm:$0xff]
    %v2171 = vld [vmem:[%s3 + $0x2250] sm:$0xff]
    %v2172 = vld [vmem:[%s3 + $0x2258] sm:$0xff]
    %v2173 = vld [vmem:[%s3 + $0x2260] sm:$0xff]
    %v2174 = vld [vmem:[%s3 + $0x2268] sm:$0xff]
    %v2175 = vld [vmem:[%s3 + $0x2270] sm:$0xff]
    %v2176 = vld [vmem:[%s3 + $0x2278] sm:$0xff]
    %v2177 = vld [vmem:[%s3 + $0x2280] sm:$0xff]
    %v2178 = vld [vmem:[%s3 + $0x2288] sm:$0xff]
    %v2179 = vld [vmem:[%s3 + $0x2290] sm:$0xff]
    %v2180 = vld [vmem:[%s3 + $0x2298] sm:$0xff]
    %v2181 = vld [vmem:[%s3 + $0x22a0] sm:$0xff]
    %v2182 = vld [vmem:[%s3 + $0x22a8] sm:$0xff]
    %v2183 = vld [vmem:[%s3 + $0x22b0] sm:$0xff]
    %v2184 = vld [vmem:[%s3 + $0x22b8] sm:$0xff]
    %v2185 = vld [vmem:[%s3 + $0x22c0] sm:$0xff]
    %v2186 = vld [vmem:[%s3 + $0x22c8] sm:$0xff]
    %v2187 = vld [vmem:[%s3 + $0x22d0] sm:$0xff]
    %v2188 = vld [vmem:[%s3 + $0x22d8] sm:$0xff]
    %v2189 = vld [vmem:[%s3 + $0x22e0] sm:$0xff]
    %v2190 = vld [vmem:[%s3 + $0x22e8] sm:$0xff]
    %v2191 = vld [vmem:[%s3 + $0x22f0] sm:$0xff]
    %v2192 = vld [vmem:[%s3 + $0x22f8] sm:$0xff]
    %v2193 = vld [vmem:[%s3 + $0x2300] sm:$0xff]
    %v2194 = vld [vmem:[%s3 + $0x2308] sm:$0xff]
    %v2195 = vld [vmem:[%s3 + $0x2310] sm:$0xff]
    %v2196 = vld [vmem:[%s3 + $0x2318] sm:$0xff]
    %v2197 = vld [vmem:[%s3 + $0x2320] sm:$0xff]
    %v2198 = vld [vmem:[%s3 + $0x2328] sm:$0xff]
    %v2199 = vld [vmem:[%s3 + $0x2330] sm:$0xff]
    %v2200 = vld [vmem:[%s3 + $0x2338] sm:$0xff]
    %v2201 = vld [vmem:[%s3 + $0x2340] sm:$0xff]
    %v2202 = vld [vmem:[%s3 + $0x2348] sm:$0xff]
    %v2203 = vld [vmem:[%s3 + $0x2350] sm:$0xff]
    %v2204 = vld [vmem:[%s3 + $0x2358] sm:$0xff]
    %v2205 = vld [vmem:[%s3 + $0x2360] sm:$0xff]
    %v2206 = vld [vmem:[%s3 + $0x2368] sm:$0xff]
    %v2207 = vld [vmem:[%s3 + $0x2370] sm:$0xff]
    %v2208 = vld [vmem:[%s3 + $0x2378] sm:$0xff]
    %v2209 = vld [vmem:[%s3 + $0x2380] sm:$0xff]
    %v2210 = vld [vmem:[%s3 + $0x2388] sm:$0xff]
    %v2211 = vld [vmem:[%s3 + $0x2390] sm:$0xff]
    %v2212 = vld [vmem:[%s3 + $0x2398] sm:$0xff]
    %v2213 = vld [vmem:[%s3 + $0x23a0] sm:$0xff]
    %v2214 = vld [vmem:[%s3 + $0x23a8] sm:$0xff]
    %v2215 = vld [vmem:[%s3 + $0x23b0] sm:$0xff]
    %v2216 = vld [vmem:[%s3 + $0x23b8] sm:$0xff]
    %v2217 = vld [vmem:[%s3 + $0x23c0] sm:$0xff]
    %v2218 = vld [vmem:[%s3 + $0x23c8] sm:$0xff]
    %v2219 = vld [vmem:[%s3 + $0x23d0] sm:$0xff]
    %v2220 = vld [vmem:[%s3 + $0x23d8] sm:$0xff]
    %v2221 = vld [vmem:[%s3 + $0x23e0] sm:$0xff]
    %v2222 = vld [vmem:[%s3 + $0x23e8] sm:$0xff]
    %v2223 = vld [vmem:[%s3 + $0x23f0] sm:$0xff]
    %v2224 = vld [vmem:[%s3 + $0x23f8] sm:$0xff]
    %s2225 = scalar_lea.vmem %s2, 3
    %v2226 = vld [vmem:[%s2225] ss:$4 sm:$0xff]
    %s2227 = scalar_lea.vmem %s2, 35
    %v2228 = vld [vmem:[%s2227] ss:$4 sm:$0x1]
    %v2231 = vlaneseq
    %v2232 = vshrl.u32 %v2231, 7
    %v2233 = vsub.s32 0, %v2232
    %v2234 = vrot.slane %v2226, %v2233
    %v2235 = vlaneseq
    %v2236 = vshrl.u32 %v2235, 7
    %v2237 = vsub.s32 1, %v2236
    %v2238 = vrot.slane %v2226, %v2237
    %v2239 = vlaneseq
    %v2240 = vshrl.u32 %v2239, 7
    %v2241 = vsub.s32 2, %v2240
    %v2242 = vrot.slane %v2226, %v2241
    %v2243 = vlaneseq
    %v2244 = vshrl.u32 %v2243, 7
    %v2245 = vsub.s32 3, %v2244
    %v2246 = vrot.slane %v2226, %v2245
    %v2247 = vlaneseq
    %v2248 = vshrl.u32 %v2247, 7
    %v2249 = vsub.s32 4, %v2248
    %v2250 = vrot.slane %v2226, %v2249
    %v2251 = vlaneseq
    %v2252 = vshrl.u32 %v2251, 7
    %v2253 = vsub.s32 5, %v2252
    %v2254 = vrot.slane %v2226, %v2253
    %v2255 = vlaneseq
    %v2256 = vshrl.u32 %v2255, 7
    %v2257 = vsub.s32 6, %v2256
    %v2258 = vrot.slane %v2226, %v2257
    %v2259 = vlaneseq
    %v2260 = vshrl.u32 %v2259, 7
    %v2261 = vsub.s32 7, %v2260
    %v2262 = vrot.slane %v2226, %v2261
    %v2263 = vlaneseq
    %v2264 = vshrl.u32 %v2263, 7
    %v2265 = vsub.s32 0, %v2264
    %v2266 = vrot.slane %v2228, %v2265
    %2276 = vmatprep.subr.mxu0 %v1074
    %2277 = vmatpush1.msra.mxu0 %v1073
    %2278 = vmatprep.subr.mxu0 %v1083
    %2279 = vmatpush1.msra.mxu0 %v1082
    %2280 = vmatprep.subr.mxu0 %v1092
    %2281 = vmatpush1.msra.mxu0 %v1091
    %2282 = vmatprep.subr.mxu0 %v1101
    %2283 = vmatpush1.msra.mxu0 %v1100
    %2284 = vmatprep.subr.mxu0 %v1110
    %2285 = vmatpush1.msra.mxu0 %v1109
    %2286 = vmatprep.subr.mxu0 %v1119
    %2287 = vmatpush1.msra.mxu0 %v1118
    %2288 = vmatprep.subr.mxu0 %v1128
    %2289 = vmatpush1.msra.mxu0 %v1127
    %2290 = vmatprep.subr.mxu0 %v1137
    %2291 = vmatpush1.msra.mxu0 %v1136
    %2292 = vmatprep.subr.mxu0 %v1146
    %2293 = vmatpush1.msra.mxu0 %v1145
    %2294 = vmatprep.subr.mxu0 %v1155
    %2295 = vmatpush1.msra.mxu0 %v1154
    %2296 = vmatprep.subr.mxu0 %v1164
    %2297 = vmatpush1.msra.mxu0 %v1163
    %2298 = vmatprep.subr.mxu0 %v1173
    %2299 = vmatpush1.msra.mxu0 %v1172
    %2300 = vmatprep.subr.mxu0 %v1182
    %2301 = vmatpush1.msra.mxu0 %v1181
    %2302 = vmatprep.subr.mxu0 %v1191
    %2303 = vmatpush1.msra.mxu0 %v1190
    %2304 = vmatprep.subr.mxu0 %v1200
    %2305 = vmatpush1.msra.mxu0 %v1199
    %2306 = vmatprep.subr.mxu0 %v1209
    %2307 = vmatpush1.msra.mxu0 %v1208
    %2308 = vmatprep.subr.mxu0 %v1218
    %2309 = vmatpush1.msra.mxu0 %v1217
    %2310 = vmatprep.subr.mxu0 %v1227
    %2311 = vmatpush1.msra.mxu0 %v1226
    %2312 = vmatprep.subr.mxu0 %v1236
    %2313 = vmatpush1.msra.mxu0 %v1235
    %2314 = vmatprep.subr.mxu0 %v1245
    %2315 = vmatpush1.msra.mxu0 %v1244
    %2316 = vmatprep.subr.mxu0 %v1254
    %2317 = vmatpush1.msra.mxu0 %v1253
    %2318 = vmatprep.subr.mxu0 %v1263
    %2319 = vmatpush1.msra.mxu0 %v1262
    %2320 = vmatprep.subr.mxu0 %v1272
    %2321 = vmatpush1.msra.mxu0 %v1271
    %2322 = vmatprep.subr.mxu0 %v1281
    %2323 = vmatpush1.msra.mxu0 %v1280
    %2324 = vmatprep.subr.mxu0 %v1290
    %2325 = vmatpush1.msra.mxu0 %v1289
    %2326 = vmatprep.subr.mxu0 %v1299
    %2327 = vmatpush1.msra.mxu0 %v1298
    %2328 = vmatprep.subr.mxu0 %v1308
    %2329 = vmatpush1.msra.mxu0 %v1307
    %2330 = vmatprep.subr.mxu0 %v1317
    %2331 = vmatpush1.msra.mxu0 %v1316
    %2332 = vmatprep.subr.mxu0 %v1326
    %2333 = vmatpush1.msra.mxu0 %v1325
    %2334 = vmatprep.subr.mxu0 %v1335
    %2335 = vmatpush1.msra.mxu0 %v1334
    %2336 = vmatprep.subr.mxu0 %v1344
    %2337 = vmatpush1.msra.mxu0 %v1343
    %2338 = vmatprep.subr.mxu0 %v1353
    %2339 = vmatpush1.msra.mxu0 %v1352
    %2340 = vmatprep.mubr.f32.mxu0 %v1042
    %2341 = vmatmul.mubr.f32.gmra.mrb[0].mxu0 %v1041
    %v2342 = vpop.f32.mrb[0].mxu0
    %v2343 = vadd.f32 %v2234, %v2342
    %v2344 = vpop.f32.mrb[0].mxu0
    %v2345 = vadd.f32 %v2238, %v2344
    %2346 = vmatprep.mubr.f32.mxu0 %v1050
    %2347 = vmatmul.mubr.f32.gmra.mrb[0].mxu0 %v1049
    %v2348 = vpop.f32.mrb[0].mxu0
    %v2349 = vadd.f32 %v2234, %v2348
    %v2350 = vpop.f32.mrb[0].mxu0
    %v2351 = vadd.f32 %v2238, %v2350
    %2352 = vmatprep.mubr.f32.mxu0 %v1058
    %2353 = vmatmul.mubr.f32.gmra.mrb[0].mxu0 %v1057
    %v2354 = vpop.f32.mrb[0].mxu0
    %v2355 = vadd.f32 %v2234, %v2354
    %v2356 = vpop.f32.mrb[0].mxu0
    %v2357 = vadd.f32 %v2238, %v2356
    %2358 = vmatprep.mubr.f32.mxu0 %v1066
    %2359 = vmatmul.mubr.f32.gmra.mrb[0].mxu0 %v1065
    %v2360 = vpop.f32.mrb[0].mxu0
    %v2361 = vadd.f32 %v2234, %v2360
    %v2362 = vpop.f32.mrb[0].mxu0
    %v2363 = vadd.f32 %v2238, %v2362
    %2364 = vdwg.mxu0
    %2365 = vmatprep.subr.mxu0 %v1362
    %2366 = vmatpush1.msra.mxu0 %v1361
    %2367 = vmatprep.subr.mxu0 %v1371
    %2368 = vmatpush1.msra.mxu0 %v1370
    %2369 = vmatprep.subr.mxu0 %v1380
    %2370 = vmatpush1.msra.mxu0 %v1379
    %2371 = vmatprep.subr.mxu0 %v1389
    %2372 = vmatpush1.msra.mxu0 %v1388
    %2373 = vmatprep.subr.mxu0 %v1398
    %2374 = vmatpush1.msra.mxu0 %v1397
    %2375 = vmatprep.subr.mxu0 %v1407
    %2376 = vmatpush1.msra.mxu0 %v1406
    %2377 = vmatprep.subr.mxu0 %v1416
    %2378 = vmatpush1.msra.mxu0 %v1415
    %2379 = vmatprep.subr.mxu0 %v1425
    %2380 = vmatpush1.msra.mxu0 %v1424
    %2381 = vmatprep.subr.mxu0 %v1434
    %2382 = vmatpush1.msra.mxu0 %v1433
    %2383 = vmatprep.subr.mxu0 %v1443
    %2384 = vmatpush1.msra.mxu0 %v1442
    %2385 = vmatprep.subr.mxu0 %v1452
    %2386 = vmatpush1.msra.mxu0 %v1451
    %2387 = vmatprep.subr.mxu0 %v1461
    %2388 = vmatpush1.msra.mxu0 %v1460
    %2389 = vmatprep.subr.mxu0 %v1470
    %2390 = vmatpush1.msra.mxu0 %v1469
    %2391 = vmatprep.subr.mxu0 %v1479
    %2392 = vmatpush1.msra.mxu0 %v1478
    %2393 = vmatprep.subr.mxu0 %v1488
    %2394 = vmatpush1.msra.mxu0 %v1487
    %2395 = vmatprep.subr.mxu0 %v1497
    %2396 = vmatpush1.msra.mxu0 %v1496
    %2397 = vmatprep.subr.mxu0 %v1506
    %2398 = vmatpush1.msra.mxu0 %v1505
    %2399 = vmatprep.subr.mxu0 %v1515
    %2400 = vmatpush1.msra.mxu0 %v1514
    %2401 = vmatprep.subr.mxu0 %v1524
    %2402 = vmatpush1.msra.mxu0 %v1523
    %2403 = vmatprep.subr.mxu0 %v1533
    %2404 = vmatpush1.msra.mxu0 %v1532
    %2405 = vmatprep.subr.mxu0 %v1542
    %2406 = vmatpush1.msra.mxu0 %v1541
    %2407 = vmatprep.subr.mxu0 %v1551
    %2408 = vmatpush1.msra.mxu0 %v1550
    %2409 = vmatprep.subr.mxu0 %v1560
    %2410 = vmatpush1.msra.mxu0 %v1559
    %2411 = vmatprep.subr.mxu0 %v1569
    %2412 = vmatpush1.msra.mxu0 %v1568
    %2413 = vmatprep.subr.mxu0 %v1578
    %2414 = vmatpush1.msra.mxu0 %v1577
    %2415 = vmatprep.subr.mxu0 %v1587
    %2416 = vmatpush1.msra.mxu0 %v1586
    %2417 = vmatprep.subr.mxu0 %v1596
    %2418 = vmatpush1.msra.mxu0 %v1595
    %2419 = vmatprep.subr.mxu0 %v1605
    %2420 = vmatpush1.msra.mxu0 %v1604
    %2421 = vmatprep.subr.mxu0 %v1614
    %2422 = vmatpush1.msra.mxu0 %v1613
    %2423 = vmatprep.subr.mxu0 %v1623
    %2424 = vmatpush1.msra.mxu0 %v1622
    %2425 = vmatprep.subr.mxu0 %v1632
    %2426 = vmatpush1.msra.mxu0 %v1631
    %2427 = vmatprep.subr.mxu0 %v1641
    %2428 = vmatpush1.msra.mxu0 %v1640
    %2429 = vmatprep.mubr.f32.mxu0 %v1044
    %2430 = vmatmul.mubr.f32.gmra.mrb[0].mxu0 %v1043
    %v2431 = vpop.f32.mrb[0].mxu0
    %v2432 = vadd.f32 %v2343, %v2431
    %v2433 = vpop.f32.mrb[0].mxu0
    %v2434 = vadd.f32 %v2345, %v2433
    %2435 = vmatprep.mubr.f32.mxu0 %v1052
    %2436 = vmatmul.mubr.f32.gmra.mrb[0].mxu0 %v1051
    %v2437 = vpop.f32.mrb[0].mxu0
    %v2438 = vadd.f32 %v2349, %v2437
    %v2439 = vpop.f32.mrb[0].mxu0
    %v2440 = vadd.f32 %v2351, %v2439
    %2441 = vmatprep.mubr.f32.mxu0 %v1060
    %2442 = vmatmul.mubr.f32.gmra.mrb[0].mxu0 %v1059
    %v2443 = vpop.f32.mrb[0].mxu0
    %v2444 = vadd.f32 %v2355, %v2443
    %v2445 = vpop.f32.mrb[0].mxu0
    %v2446 = vadd.f32 %v2357, %v2445
    %2447 = vmatprep.mubr.f32.mxu0 %v1068
    %2448 = vmatmul.mubr.f32.gmra.mrb[0].mxu0 %v1067
    %v2449 = vpop.f32.mrb[0].mxu0
    %v2450 = vadd.f32 %v2361, %v2449
    %v2451 = vpop.f32.mrb[0].mxu0
    %v2452 = vadd.f32 %v2363, %v2451
    %2453 = vdwg.mxu0
    %2454 = vmatprep.subr.mxu0 %v1650
    %2455 = vmatpush1.msra.mxu0 %v1649
    %2456 = vmatprep.subr.mxu0 %v1659
    %2457 = vmatpush1.msra.mxu0 %v1658
    %2458 = vmatprep.subr.mxu0 %v1668
    %2459 = vmatpush1.msra.mxu0 %v1667
    %2460 = vmatprep.subr.mxu0 %v1677
    %2461 = vmatpush1.msra.mxu0 %v1676
    %2462 = vmatprep.subr.mxu0 %v1686
    %2463 = vmatpush1.msra.mxu0 %v1685
    %2464 = vmatprep.subr.mxu0 %v1695
    %2465 = vmatpush1.msra.mxu0 %v1694
    %2466 = vmatprep.subr.mxu0 %v1704
    %2467 = vmatpush1.msra.mxu0 %v1703
    %2468 = vmatprep.subr.mxu0 %v1713
    %2469 = vmatpush1.msra.mxu0 %v1712
    %2470 = vmatprep.subr.mxu0 %v1722
    %2471 = vmatpush1.msra.mxu0 %v1721
    %2472 = vmatprep.subr.mxu0 %v1731
    %2473 = vmatpush1.msra.mxu0 %v1730
    %2474 = vmatprep.subr.mxu0 %v1740
    %2475 = vmatpush1.msra.mxu0 %v1739
    %2476 = vmatprep.subr.mxu0 %v1749
    %2477 = vmatpush1.msra.mxu0 %v1748
    %2478 = vmatprep.subr.mxu0 %v1758
    %2479 = vmatpush1.msra.mxu0 %v1757
    %2480 = vmatprep.subr.mxu0 %v1767
    %2481 = vmatpush1.msra.mxu0 %v1766
    %2482 = vmatprep.subr.mxu0 %v1776
    %2483 = vmatpush1.msra.mxu0 %v1775
    %2484 = vmatprep.subr.mxu0 %v1785
    %2485 = vmatpush1.msra.mxu0 %v1784
    %2486 = vmatprep.subr.mxu0 %v1794
    %2487 = vmatpush1.msra.mxu0 %v1793
    %2488 = vmatprep.subr.mxu0 %v1803
    %2489 = vmatpush1.msra.mxu0 %v1802
    %2490 = vmatprep.subr.mxu0 %v1812
    %2491 = vmatpush1.msra.mxu0 %v1811
    %2492 = vmatprep.subr.mxu0 %v1821
    %2493 = vmatpush1.msra.mxu0 %v1820
    %2494 = vmatprep.subr.mxu0 %v1830
    %2495 = vmatpush1.msra.mxu0 %v1829
    %2496 = vmatprep.subr.mxu0 %v1839
    %2497 = vmatpush1.msra.mxu0 %v1838
    %2498 = vmatprep.subr.mxu0 %v1848
    %2499 = vmatpush1.msra.mxu0 %v1847
    %2500 = vmatprep.subr.mxu0 %v1857
    %2501 = vmatpush1.msra.mxu0 %v1856
    %2502 = vmatprep.subr.mxu0 %v1866
    %2503 = vmatpush1.msra.mxu0 %v1865
    %2504 = vmatprep.subr.mxu0 %v1875
    %2505 = vmatpush1.msra.mxu0 %v1874
    %2506 = vmatprep.subr.mxu0 %v1884
    %2507 = vmatpush1.msra.mxu0 %v1883
    %2508 = vmatprep.subr.mxu0 %v1893
    %2509 = vmatpush1.msra.mxu0 %v1892
    %2510 = vmatprep.subr.mxu0 %v1902
    %2511 = vmatpush1.msra.mxu0 %v1901
    %2512 = vmatprep.subr.mxu0 %v1911
    %2513 = vmatpush1.msra.mxu0 %v1910
    %2514 = vmatprep.subr.mxu0 %v1920
    %2515 = vmatpush1.msra.mxu0 %v1919
    %2516 = vmatprep.subr.mxu0 %v1929
    %2517 = vmatpush1.msra.mxu0 %v1928
    %2518 = vmatprep.mubr.f32.mxu0 %v1046
    %2519 = vmatmul.mubr.f32.gmra.mrb[0].mxu0 %v1045
    %v2520 = vpop.f32.mrb[0].mxu0
    %v2521 = vadd.f32 %v2432, %v2520
    %v2522 = vpop.f32.mrb[0].mxu0
    %v2523 = vadd.f32 %v2434, %v2522
    %2524 = vmatprep.mubr.f32.mxu0 %v1054
    %2525 = vmatmul.mubr.f32.gmra.mrb[0].mxu0 %v1053
    %v2526 = vpop.f32.mrb[0].mxu0
    %v2527 = vadd.f32 %v2438, %v2526
    %v2528 = vpop.f32.mrb[0].mxu0
    %v2529 = vadd.f32 %v2440, %v2528
    %2530 = vmatprep.mubr.f32.mxu0 %v1062
    %2531 = vmatmul.mubr.f32.gmra.mrb[0].mxu0 %v1061
    %v2532 = vpop.f32.mrb[0].mxu0
    %v2533 = vadd.f32 %v2444, %v2532
    %v2534 = vpop.f32.mrb[0].mxu0
    %v2535 = vadd.f32 %v2446, %v2534
    %2536 = vmatprep.mubr.f32.mxu0 %v1070
    %2537 = vmatmul.mubr.f32.gmra.mrb[0].mxu0 %v1069
    %v2538 = vpop.f32.mrb[0].mxu0
    %v2539 = vadd.f32 %v2450, %v2538
    %v2540 = vpop.f32.mrb[0].mxu0
    %v2541 = vadd.f32 %v2452, %v2540
    %2542 = vdwg.mxu0
    %2543 = vmatprep.subr.mxu0 %v1938
    %2544 = vmatpush1.msra.mxu0 %v1937
    %2545 = vmatprep.subr.mxu0 %v1947
    %2546 = vmatpush1.msra.mxu0 %v1946
    %2547 = vmatprep.subr.mxu0 %v1956
    %2548 = vmatpush1.msra.mxu0 %v1955
    %2549 = vmatprep.subr.mxu0 %v1965
    %2550 = vmatpush1.msra.mxu0 %v1964
    %2551 = vmatprep.subr.mxu0 %v1974
    %2552 = vmatpush1.msra.mxu0 %v1973
    %2553 = vmatprep.subr.mxu0 %v1983
    %2554 = vmatpush1.msra.mxu0 %v1982
    %2555 = vmatprep.subr.mxu0 %v1992
    %2556 = vmatpush1.msra.mxu0 %v1991
    %2557 = vmatprep.subr.mxu0 %v2001
    %2558 = vmatpush1.msra.mxu0 %v2000
    %2559 = vmatprep.subr.mxu0 %v2010
    %2560 = vmatpush1.msra.mxu0 %v2009
    %2561 = vmatprep.subr.mxu0 %v2019
    %2562 = vmatpush1.msra.mxu0 %v2018
    %2563 = vmatprep.subr.mxu0 %v2028
    %2564 = vmatpush1.msra.mxu0 %v2027
    %2565 = vmatprep.subr.mxu0 %v2037
    %2566 = vmatpush1.msra.mxu0 %v2036
    %2567 = vmatprep.subr.mxu0 %v2046
    %2568 = vmatpush1.msra.mxu0 %v2045
    %2569 = vmatprep.subr.mxu0 %v2055
    %2570 = vmatpush1.msra.mxu0 %v2054
    %2571 = vmatprep.subr.mxu0 %v2064
    %2572 = vmatpush1.msra.mxu0 %v2063
    %2573 = vmatprep.subr.mxu0 %v2073
    %2574 = vmatpush1.msra.mxu0 %v2072
    %2575 = vmatprep.subr.mxu0 %v2082
    %2576 = vmatpush1.msra.mxu0 %v2081
    %2577 = vmatprep.subr.mxu0 %v2091
    %2578 = vmatpush1.msra.mxu0 %v2090
    %2579 = vmatprep.subr.mxu0 %v2100
    %2580 = vmatpush1.msra.mxu0 %v2099
    %2581 = vmatprep.subr.mxu0 %v2109
    %2582 = vmatpush1.msra.mxu0 %v2108
    %2583 = vmatprep.subr.mxu0 %v2118
    %2584 = vmatpush1.msra.mxu0 %v2117
    %2585 = vmatprep.subr.mxu0 %v2127
    %2586 = vmatpush1.msra.mxu0 %v2126
    %2587 = vmatprep.subr.mxu0 %v2136
    %2588 = vmatpush1.msra.mxu0 %v2135
    %2589 = vmatprep.subr.mxu0 %v2145
    %2590 = vmatpush1.msra.mxu0 %v2144
    %2591 = vmatprep.subr.mxu0 %v2154
    %2592 = vmatpush1.msra.mxu0 %v2153
    %2593 = vmatprep.subr.mxu0 %v2163
    %2594 = vmatpush1.msra.mxu0 %v2162
    %2595 = vmatprep.subr.mxu0 %v2172
    %2596 = vmatpush1.msra.mxu0 %v2171
    %2597 = vmatprep.subr.mxu0 %v2181
    %2598 = vmatpush1.msra.mxu0 %v2180
    %2599 = vmatprep.subr.mxu0 %v2190
    %2600 = vmatpush1.msra.mxu0 %v2189
    %2601 = vmatprep.subr.mxu0 %v2199
    %2602 = vmatpush1.msra.mxu0 %v2198
    %2603 = vmatprep.subr.mxu0 %v2208
    %2604 = vmatpush1.msra.mxu0 %v2207
    %2605 = vmatprep.subr.mxu0 %v2217
    %2606 = vmatpush1.msra.mxu0 %v2216
    %2607 = vmatprep.mubr.f32.mxu0 %v1048
    %2608 = vmatmul.mubr.f32.gmra.mrb[0].mxu0 %v1047
    %v2609 = vpop.f32.mrb[0].mxu0
    %v2610 = vadd.f32 %v2521, %v2609
    %v2611 = vpop.f32.mrb[0].mxu0
    %v2612 = vadd.f32 %v2523, %v2611
    %2613 = vmatprep.mubr.f32.mxu0 %v1056
    %2614 = vmatmul.mubr.f32.gmra.mrb[0].mxu0 %v1055
    %v2615 = vpop.f32.mrb[0].mxu0
    %v2616 = vadd.f32 %v2527, %v2615
    %v2617 = vpop.f32.mrb[0].mxu0
    %v2618 = vadd.f32 %v2529, %v2617
    %2619 = vmatprep.mubr.f32.mxu0 %v1064
    %2620 = vmatmul.mubr.f32.gmra.mrb[0].mxu0 %v1063
    %v2621 = vpop.f32.mrb[0].mxu0
    %v2622 = vadd.f32 %v2533, %v2621
    %v2623 = vpop.f32.mrb[0].mxu0
    %v2624 = vadd.f32 %v2535, %v2623
    %2625 = vmatprep.mubr.f32.mxu0 %v1072
    %2626 = vmatmul.mubr.f32.gmra.mrb[0].mxu0 %v1071
    %v2627 = vpop.f32.mrb[0].mxu0
    %v2628 = vadd.f32 %v2539, %v2627
    %v2629 = vpop.f32.mrb[0].mxu0
    %v2630 = vadd.f32 %v2541, %v2629
    %2631 = vdwg.mxu0
    %2632 = vmatprep.subr.mxu0 %v1076
    %2633 = vmatpush1.msra.mxu0 %v1075
    %2634 = vmatprep.subr.mxu0 %v1085
    %2635 = vmatpush1.msra.mxu0 %v1084
    %2636 = vmatprep.subr.mxu0 %v1094
    %2637 = vmatpush1.msra.mxu0 %v1093
    %2638 = vmatprep.subr.mxu0 %v1103
    %2639 = vmatpush1.msra.mxu0 %v1102
    %2640 = vmatprep.subr.mxu0 %v1112
    %2641 = vmatpush1.msra.mxu0 %v1111
    %2642 = vmatprep.subr.mxu0 %v1121
    %2643 = vmatpush1.msra.mxu0 %v1120
    %2644 = vmatprep.subr.mxu0 %v1130
    %2645 = vmatpush1.msra.mxu0 %v1129
    %2646 = vmatprep.subr.mxu0 %v1139
    %2647 = vmatpush1.msra.mxu0 %v1138
    %2648 = vmatprep.subr.mxu0 %v1148
    %2649 = vmatpush1.msra.mxu0 %v1147
    %2650 = vmatprep.subr.mxu0 %v1157
    %2651 = vmatpush1.msra.mxu0 %v1156
    %2652 = vmatprep.subr.mxu0 %v1166
    %2653 = vmatpush1.msra.mxu0 %v1165
    %2654 = vmatprep.subr.mxu0 %v1175
    %2655 = vmatpush1.msra.mxu0 %v1174
    %2656 = vmatprep.subr.mxu0 %v1184
    %2657 = vmatpush1.msra.mxu0 %v1183
    %2658 = vmatprep.subr.mxu0 %v1193
    %2659 = vmatpush1.msra.mxu0 %v1192
    %2660 = vmatprep.subr.mxu0 %v1202
    %2661 = vmatpush1.msra.mxu0 %v1201
    %2662 = vmatprep.subr.mxu0 %v1211
    %2663 = vmatpush1.msra.mxu0 %v1210
    %2664 = vmatprep.subr.mxu0 %v1220
    %2665 = vmatpush1.msra.mxu0 %v1219
    %2666 = vmatprep.subr.mxu0 %v1229
    %2667 = vmatpush1.msra.mxu0 %v1228
    %2668 = vmatprep.subr.mxu0 %v1238
    %2669 = vmatpush1.msra.mxu0 %v1237
    %2670 = vmatprep.subr.mxu0 %v1247
    %2671 = vmatpush1.msra.mxu0 %v1246
    %2672 = vmatprep.subr.mxu0 %v1256
    %2673 = vmatpush1.msra.mxu0 %v1255
    %2674 = vmatprep.subr.mxu0 %v1265
    %2675 = vmatpush1.msra.mxu0 %v1264
    %2676 = vmatprep.subr.mxu0 %v1274
    %2677 = vmatpush1.msra.mxu0 %v1273
    %2678 = vmatprep.subr.mxu0 %v1283
    %2679 = vmatpush1.msra.mxu0 %v1282
    %2680 = vmatprep.subr.mxu0 %v1292
    %2681 = vmatpush1.msra.mxu0 %v1291
    %2682 = vmatprep.subr.mxu0 %v1301
    %2683 = vmatpush1.msra.mxu0 %v1300
    %2684 = vmatprep.subr.mxu0 %v1310
    %2685 = vmatpush1.msra.mxu0 %v1309
    %2686 = vmatprep.subr.mxu0 %v1319
    %2687 = vmatpush1.msra.mxu0 %v1318
    %2688 = vmatprep.subr.mxu0 %v1328
    %2689 = vmatpush1.msra.mxu0 %v1327
    %2690 = vmatprep.subr.mxu0 %v1337
    %2691 = vmatpush1.msra.mxu0 %v1336
    %2692 = vmatprep.subr.mxu0 %v1346
    %2693 = vmatpush1.msra.mxu0 %v1345
    %2694 = vmatprep.subr.mxu0 %v1355
    %2695 = vmatpush1.msra.mxu0 %v1354
    %2696 = vmatprep.mubr.f32.mxu0 %v1042
    %2697 = vmatmul.mubr.f32.gmra.mrb[0].mxu0 %v1041
    %v2698 = vpop.f32.mrb[0].mxu0
    %v2699 = vadd.f32 %v2242, %v2698
    %v2700 = vpop.f32.mrb[0].mxu0
    %v2701 = vadd.f32 %v2246, %v2700
    %2702 = vmatprep.mubr.f32.mxu0 %v1050
    %2703 = vmatmul.mubr.f32.gmra.mrb[0].mxu0 %v1049
    %v2704 = vpop.f32.mrb[0].mxu0
    %v2705 = vadd.f32 %v2242, %v2704
    %v2706 = vpop.f32.mrb[0].mxu0
    %v2707 = vadd.f32 %v2246, %v2706
    %2708 = vmatprep.mubr.f32.mxu0 %v1058
    %2709 = vmatmul.mubr.f32.gmra.mrb[0].mxu0 %v1057
    %v2710 = vpop.f32.mrb[0].mxu0
    %v2711 = vadd.f32 %v2242, %v2710
    %v2712 = vpop.f32.mrb[0].mxu0
    %v2713 = vadd.f32 %v2246, %v2712
    %2714 = vmatprep.mubr.f32.mxu0 %v1066
    %2715 = vmatmul.mubr.f32.gmra.mrb[0].mxu0 %v1065
    %v2716 = vpop.f32.mrb[0].mxu0
    %v2717 = vadd.f32 %v2242, %v2716
    %v2718 = vpop.f32.mrb[0].mxu0
    %v2719 = vadd.f32 %v2246, %v2718
    %2720 = vdwg.mxu0
    %2721 = vmatprep.subr.mxu0 %v1364
    %2722 = vmatpush1.msra.mxu0 %v1363
    %2723 = vmatprep.subr.mxu0 %v1373
    %2724 = vmatpush1.msra.mxu0 %v1372
    %2725 = vmatprep.subr.mxu0 %v1382
    %2726 = vmatpush1.msra.mxu0 %v1381
    %2727 = vmatprep.subr.mxu0 %v1391
    %2728 = vmatpush1.msra.mxu0 %v1390
    %2729 = vmatprep.subr.mxu0 %v1400
    %2730 = vmatpush1.msra.mxu0 %v1399
    %2731 = vmatprep.subr.mxu0 %v1409
    %2732 = vmatpush1.msra.mxu0 %v1408
    %2733 = vmatprep.subr.mxu0 %v1418
    %2734 = vmatpush1.msra.mxu0 %v1417
    %2735 = vmatprep.subr.mxu0 %v1427
    %2736 = vmatpush1.msra.mxu0 %v1426
    %2737 = vmatprep.subr.mxu0 %v1436
    %2738 = vmatpush1.msra.mxu0 %v1435
    %2739 = vmatprep.subr.mxu0 %v1445
    %2740 = vmatpush1.msra.mxu0 %v1444
    %2741 = vmatprep.subr.mxu0 %v1454
    %2742 = vmatpush1.msra.mxu0 %v1453
    %2743 = vmatprep.subr.mxu0 %v1463
    %2744 = vmatpush1.msra.mxu0 %v1462
    %2745 = vmatprep.subr.mxu0 %v1472
    %2746 = vmatpush1.msra.mxu0 %v1471
    %2747 = vmatprep.subr.mxu0 %v1481
    %2748 = vmatpush1.msra.mxu0 %v1480
    %2749 = vmatprep.subr.mxu0 %v1490
    %2750 = vmatpush1.msra.mxu0 %v1489
    %2751 = vmatprep.subr.mxu0 %v1499
    %2752 = vmatpush1.msra.mxu0 %v1498
    %2753 = vmatprep.subr.mxu0 %v1508
    %2754 = vmatpush1.msra.mxu0 %v1507
    %2755 = vmatprep.subr.mxu0 %v1517
    %2756 = vmatpush1.msra.mxu0 %v1516
    %2757 = vmatprep.subr.mxu0 %v1526
    %2758 = vmatpush1.msra.mxu0 %v1525
    %2759 = vmatprep.subr.mxu0 %v1535
    %2760 = vmatpush1.msra.mxu0 %v1534
    %2761 = vmatprep.subr.mxu0 %v1544
    %2762 = vmatpush1.msra.mxu0 %v1543
    %2763 = vmatprep.subr.mxu0 %v1553
    %2764 = vmatpush1.msra.mxu0 %v1552
    %2765 = vmatprep.subr.mxu0 %v1562
    %2766 = vmatpush1.msra.mxu0 %v1561
    %2767 = vmatprep.subr.mxu0 %v1571
    %2768 = vmatpush1.msra.mxu0 %v1570
    %2769 = vmatprep.subr.mxu0 %v1580
    %2770 = vmatpush1.msra.mxu0 %v1579
    %2771 = vmatprep.subr.mxu0 %v1589
    %2772 = vmatpush1.msra.mxu0 %v1588
    %2773 = vmatprep.subr.mxu0 %v1598
    %2774 = vmatpush1.msra.mxu0 %v1597
    %2775 = vmatprep.subr.mxu0 %v1607
    %2776 = vmatpush1.msra.mxu0 %v1606
    %2777 = vmatprep.subr.mxu0 %v1616
    %2778 = vmatpush1.msra.mxu0 %v1615
    %2779 = vmatprep.subr.mxu0 %v1625
    %2780 = vmatpush1.msra.mxu0 %v1624
    %2781 = vmatprep.subr.mxu0 %v1634
    %2782 = vmatpush1.msra.mxu0 %v1633
    %2783 = vmatprep.subr.mxu0 %v1643
    %2784 = vmatpush1.msra.mxu0 %v1642
    %2785 = vmatprep.mubr.f32.mxu0 %v1044
    %2786 = vmatmul.mubr.f32.gmra.mrb[0].mxu0 %v1043
    %v2787 = vpop.f32.mrb[0].mxu0
    %v2788 = vadd.f32 %v2699, %v2787
    %v2789 = vpop.f32.mrb[0].mxu0
    %v2790 = vadd.f32 %v2701, %v2789
    %2791 = vmatprep.mubr.f32.mxu0 %v1052
    %2792 = vmatmul.mubr.f32.gmra.mrb[0].mxu0 %v1051
    %v2793 = vpop.f32.mrb[0].mxu0
    %v2794 = vadd.f32 %v2705, %v2793
    %v2795 = vpop.f32.mrb[0].mxu0
    %v2796 = vadd.f32 %v2707, %v2795
    %2797 = vmatprep.mubr.f32.mxu0 %v1060
    %2798 = vmatmul.mubr.f32.gmra.mrb[0].mxu0 %v1059
    %v2799 = vpop.f32.mrb[0].mxu0
    %v2800 = vadd.f32 %v2711, %v2799
    %v2801 = vpop.f32.mrb[0].mxu0
    %v2802 = vadd.f32 %v2713, %v2801
    %2803 = vmatprep.mubr.f32.mxu0 %v1068
    %2804 = vmatmul.mubr.f32.gmra.mrb[0].mxu0 %v1067
    %v2805 = vpop.f32.mrb[0].mxu0
    %v2806 = vadd.f32 %v2717, %v2805
    %v2807 = vpop.f32.mrb[0].mxu0
    %v2808 = vadd.f32 %v2719, %v2807
    %2809 = vdwg.mxu0
    %2810 = vmatprep.subr.mxu0 %v1652
    %2811 = vmatpush1.msra.mxu0 %v1651
    %2812 = vmatprep.subr.mxu0 %v1661
    %2813 = vmatpush1.msra.mxu0 %v1660
    %2814 = vmatprep.subr.mxu0 %v1670
    %2815 = vmatpush1.msra.mxu0 %v1669
    %2816 = vmatprep.subr.mxu0 %v1679
    %2817 = vmatpush1.msra.mxu0 %v1678
    %2818 = vmatprep.subr.mxu0 %v1688
    %2819 = vmatpush1.msra.mxu0 %v1687
    %2820 = vmatprep.subr.mxu0 %v1697
    %2821 = vmatpush1.msra.mxu0 %v1696
    %2822 = vmatprep.subr.mxu0 %v1706
    %2823 = vmatpush1.msra.mxu0 %v1705
    %2824 = vmatprep.subr.mxu0 %v1715
    %2825 = vmatpush1.msra.mxu0 %v1714
    %2826 = vmatprep.subr.mxu0 %v1724
    %2827 = vmatpush1.msra.mxu0 %v1723
    %2828 = vmatprep.subr.mxu0 %v1733
    %2829 = vmatpush1.msra.mxu0 %v1732
    %2830 = vmatprep.subr.mxu0 %v1742
    %2831 = vmatpush1.msra.mxu0 %v1741
    %2832 = vmatprep.subr.mxu0 %v1751
    %2833 = vmatpush1.msra.mxu0 %v1750
    %2834 = vmatprep.subr.mxu0 %v1760
    %2835 = vmatpush1.msra.mxu0 %v1759
    %2836 = vmatprep.subr.mxu0 %v1769
    %2837 = vmatpush1.msra.mxu0 %v1768
    %2838 = vmatprep.subr.mxu0 %v1778
    %2839 = vmatpush1.msra.mxu0 %v1777
    %2840 = vmatprep.subr.mxu0 %v1787
    %2841 = vmatpush1.msra.mxu0 %v1786
    %2842 = vmatprep.subr.mxu0 %v1796
    %2843 = vmatpush1.msra.mxu0 %v1795
    %2844 = vmatprep.subr.mxu0 %v1805
    %2845 = vmatpush1.msra.mxu0 %v1804
    %2846 = vmatprep.subr.mxu0 %v1814
    %2847 = vmatpush1.msra.mxu0 %v1813
    %2848 = vmatprep.subr.mxu0 %v1823
    %2849 = vmatpush1.msra.mxu0 %v1822
    %2850 = vmatprep.subr.mxu0 %v1832
    %2851 = vmatpush1.msra.mxu0 %v1831
    %2852 = vmatprep.subr.mxu0 %v1841
    %2853 = vmatpush1.msra.mxu0 %v1840
    %2854 = vmatprep.subr.mxu0 %v1850
    %2855 = vmatpush1.msra.mxu0 %v1849
    %2856 = vmatprep.subr.mxu0 %v1859
    %2857 = vmatpush1.msra.mxu0 %v1858
    %2858 = vmatprep.subr.mxu0 %v1868
    %2859 = vmatpush1.msra.mxu0 %v1867
    %2860 = vmatprep.subr.mxu0 %v1877
    %2861 = vmatpush1.msra.mxu0 %v1876
    %2862 = vmatprep.subr.mxu0 %v1886
    %2863 = vmatpush1.msra.mxu0 %v1885
    %2864 = vmatprep.subr.mxu0 %v1895
    %2865 = vmatpush1.msra.mxu0 %v1894
    %2866 = vmatprep.subr.mxu0 %v1904
    %2867 = vmatpush1.msra.mxu0 %v1903
    %2868 = vmatprep.subr.mxu0 %v1913
    %2869 = vmatpush1.msra.mxu0 %v1912
    %2870 = vmatprep.subr.mxu0 %v1922
    %2871 = vmatpush1.msra.mxu0 %v1921
    %2872 = vmatprep.subr.mxu0 %v1931
    %2873 = vmatpush1.msra.mxu0 %v1930
    %2874 = vmatprep.mubr.f32.mxu0 %v1046
    %2875 = vmatmul.mubr.f32.gmra.mrb[0].mxu0 %v1045
    %v2876 = vpop.f32.mrb[0].mxu0
    %v2877 = vadd.f32 %v2788, %v2876
    %v2878 = vpop.f32.mrb[0].mxu0
    %v2879 = vadd.f32 %v2790, %v2878
    %2880 = vmatprep.mubr.f32.mxu0 %v1054
    %2881 = vmatmul.mubr.f32.gmra.mrb[0].mxu0 %v1053
    %v2882 = vpop.f32.mrb[0].mxu0
    %v2883 = vadd.f32 %v2794, %v2882
    %v2884 = vpop.f32.mrb[0].mxu0
    %v2885 = vadd.f32 %v2796, %v2884
    %2886 = vmatprep.mubr.f32.mxu0 %v1062
    %2887 = vmatmul.mubr.f32.gmra.mrb[0].mxu0 %v1061
    %v2888 = vpop.f32.mrb[0].mxu0
    %v2889 = vadd.f32 %v2800, %v2888
    %v2890 = vpop.f32.mrb[0].mxu0
    %v2891 = vadd.f32 %v2802, %v2890
    %2892 = vmatprep.mubr.f32.mxu0 %v1070
    %2893 = vmatmul.mubr.f32.gmra.mrb[0].mxu0 %v1069
    %v2894 = vpop.f32.mrb[0].mxu0
    %v2895 = vadd.f32 %v2806, %v2894
    %v2896 = vpop.f32.mrb[0].mxu0
    %v2897 = vadd.f32 %v2808, %v2896
    %2898 = vdwg.mxu0
    %2899 = vmatprep.subr.mxu0 %v1940
    %2900 = vmatpush1.msra.mxu0 %v1939
    %2901 = vmatprep.subr.mxu0 %v1949
    %2902 = vmatpush1.msra.mxu0 %v1948
    %2903 = vmatprep.subr.mxu0 %v1958
    %2904 = vmatpush1.msra.mxu0 %v1957
    %2905 = vmatprep.subr.mxu0 %v1967
    %2906 = vmatpush1.msra.mxu0 %v1966
    %2907 = vmatprep.subr.mxu0 %v1976
    %2908 = vmatpush1.msra.mxu0 %v1975
    %2909 = vmatprep.subr.mxu0 %v1985
    %2910 = vmatpush1.msra.mxu0 %v1984
    %2911 = vmatprep.subr.mxu0 %v1994
    %2912 = vmatpush1.msra.mxu0 %v1993
    %2913 = vmatprep.subr.mxu0 %v2003
    %2914 = vmatpush1.msra.mxu0 %v2002
    %2915 = vmatprep.subr.mxu0 %v2012
    %2916 = vmatpush1.msra.mxu0 %v2011
    %2917 = vmatprep.subr.mxu0 %v2021
    %2918 = vmatpush1.msra.mxu0 %v2020
    %2919 = vmatprep.subr.mxu0 %v2030
    %2920 = vmatpush1.msra.mxu0 %v2029
    %2921 = vmatprep.subr.mxu0 %v2039
    %2922 = vmatpush1.msra.mxu0 %v2038
    %2923 = vmatprep.subr.mxu0 %v2048
    %2924 = vmatpush1.msra.mxu0 %v2047
    %2925 = vmatprep.subr.mxu0 %v2057
    %2926 = vmatpush1.msra.mxu0 %v2056
    %2927 = vmatprep.subr.mxu0 %v2066
    %2928 = vmatpush1.msra.mxu0 %v2065
    %2929 = vmatprep.subr.mxu0 %v2075
    %2930 = vmatpush1.msra.mxu0 %v2074
    %2931 = vmatprep.subr.mxu0 %v2084
    %2932 = vmatpush1.msra.mxu0 %v2083
    %2933 = vmatprep.subr.mxu0 %v2093
    %2934 = vmatpush1.msra.mxu0 %v2092
    %2935 = vmatprep.subr.mxu0 %v2102
    %2936 = vmatpush1.msra.mxu0 %v2101
    %2937 = vmatprep.subr.mxu0 %v2111
    %2938 = vmatpush1.msra.mxu0 %v2110
    %2939 = vmatprep.subr.mxu0 %v2120
    %2940 = vmatpush1.msra.mxu0 %v2119
    %2941 = vmatprep.subr.mxu0 %v2129
    %2942 = vmatpush1.msra.mxu0 %v2128
    %2943 = vmatprep.subr.mxu0 %v2138
    %2944 = vmatpush1.msra.mxu0 %v2137
    %2945 = vmatprep.subr.mxu0 %v2147
    %2946 = vmatpush1.msra.mxu0 %v2146
    %2947 = vmatprep.subr.mxu0 %v2156
    %2948 = vmatpush1.msra.mxu0 %v2155
    %2949 = vmatprep.subr.mxu0 %v2165
    %2950 = vmatpush1.msra.mxu0 %v2164
    %2951 = vmatprep.subr.mxu0 %v2174
    %2952 = vmatpush1.msra.mxu0 %v2173
    %2953 = vmatprep.subr.mxu0 %v2183
    %2954 = vmatpush1.msra.mxu0 %v2182
    %2955 = vmatprep.subr.mxu0 %v2192
    %2956 = vmatpush1.msra.mxu0 %v2191
    %2957 = vmatprep.subr.mxu0 %v2201
    %2958 = vmatpush1.msra.mxu0 %v2200
    %2959 = vmatprep.subr.mxu0 %v2210
    %2960 = vmatpush1.msra.mxu0 %v2209
    %2961 = vmatprep.subr.mxu0 %v2219
    %2962 = vmatpush1.msra.mxu0 %v2218
    %2963 = vmatprep.mubr.f32.mxu0 %v1048
    %2964 = vmatmul.mubr.f32.gmra.mrb[0].mxu0 %v1047
    %v2965 = vpop.f32.mrb[0].mxu0
    %v2966 = vadd.f32 %v2877, %v2965
    %v2967 = vpop.f32.mrb[0].mxu0
    %v2968 = vadd.f32 %v2879, %v2967
    %2969 = vmatprep.mubr.f32.mxu0 %v1056
    %2970 = vmatmul.mubr.f32.gmra.mrb[0].mxu0 %v1055
    %v2971 = vpop.f32.mrb[0].mxu0
    %v2972 = vadd.f32 %v2883, %v2971
    %v2973 = vpop.f32.mrb[0].mxu0
    %v2974 = vadd.f32 %v2885, %v2973
    %2975 = vmatprep.mubr.f32.mxu0 %v1064
    %2976 = vmatmul.mubr.f32.gmra.mrb[0].mxu0 %v1063
    %v2977 = vpop.f32.mrb[0].mxu0
    %v2978 = vadd.f32 %v2889, %v2977
    %v2979 = vpop.f32.mrb[0].mxu0
    %v2980 = vadd.f32 %v2891, %v2979
    %2981 = vmatprep.mubr.f32.mxu0 %v1072
    %2982 = vmatmul.mubr.f32.gmra.mrb[0].mxu0 %v1071
    %v2983 = vpop.f32.mrb[0].mxu0
    %v2984 = vadd.f32 %v2895, %v2983
    %v2985 = vpop.f32.mrb[0].mxu0
    %v2986 = vadd.f32 %v2897, %v2985
    %2987 = vdwg.mxu0
    %2988 = vmatprep.subr.mxu0 %v1078
    %2989 = vmatpush1.msra.mxu0 %v1077
    %2990 = vmatprep.subr.mxu0 %v1087
    %2991 = vmatpush1.msra.mxu0 %v1086
    %2992 = vmatprep.subr.mxu0 %v1096
    %2993 = vmatpush1.msra.mxu0 %v1095
    %2994 = vmatprep.subr.mxu0 %v1105
    %2995 = vmatpush1.msra.mxu0 %v1104
    %2996 = vmatprep.subr.mxu0 %v1114
    %2997 = vmatpush1.msra.mxu0 %v1113
    %2998 = vmatprep.subr.mxu0 %v1123
    %2999 = vmatpush1.msra.mxu0 %v1122
    %3000 = vmatprep.subr.mxu0 %v1132
    %3001 = vmatpush1.msra.mxu0 %v1131
    %3002 = vmatprep.subr.mxu0 %v1141
    %3003 = vmatpush1.msra.mxu0 %v1140
    %3004 = vmatprep.subr.mxu0 %v1150
    %3005 = vmatpush1.msra.mxu0 %v1149
    %3006 = vmatprep.subr.mxu0 %v1159
    %3007 = vmatpush1.msra.mxu0 %v1158
    %3008 = vmatprep.subr.mxu0 %v1168
    %3009 = vmatpush1.msra.mxu0 %v1167
    %3010 = vmatprep.subr.mxu0 %v1177
    %3011 = vmatpush1.msra.mxu0 %v1176
    %3012 = vmatprep.subr.mxu0 %v1186
    %3013 = vmatpush1.msra.mxu0 %v1185
    %3014 = vmatprep.subr.mxu0 %v1195
    %3015 = vmatpush1.msra.mxu0 %v1194
    %3016 = vmatprep.subr.mxu0 %v1204
    %3017 = vmatpush1.msra.mxu0 %v1203
    %3018 = vmatprep.subr.mxu0 %v1213
    %3019 = vmatpush1.msra.mxu0 %v1212
    %3020 = vmatprep.subr.mxu0 %v1222
    %3021 = vmatpush1.msra.mxu0 %v1221
    %3022 = vmatprep.subr.mxu0 %v1231
    %3023 = vmatpush1.msra.mxu0 %v1230
    %3024 = vmatprep.subr.mxu0 %v1240
    %3025 = vmatpush1.msra.mxu0 %v1239
    %3026 = vmatprep.subr.mxu0 %v1249
    %3027 = vmatpush1.msra.mxu0 %v1248
    %3028 = vmatprep.subr.mxu0 %v1258
    %3029 = vmatpush1.msra.mxu0 %v1257
    %3030 = vmatprep.subr.mxu0 %v1267
    %3031 = vmatpush1.msra.mxu0 %v1266
    %3032 = vmatprep.subr.mxu0 %v1276
    %3033 = vmatpush1.msra.mxu0 %v1275
    %3034 = vmatprep.subr.mxu0 %v1285
    %3035 = vmatpush1.msra.mxu0 %v1284
    %3036 = vmatprep.subr.mxu0 %v1294
    %3037 = vmatpush1.msra.mxu0 %v1293
    %3038 = vmatprep.subr.mxu0 %v1303
    %3039 = vmatpush1.msra.mxu0 %v1302
    %3040 = vmatprep.subr.mxu0 %v1312
    %3041 = vmatpush1.msra.mxu0 %v1311
    %3042 = vmatprep.subr.mxu0 %v1321
    %3043 = vmatpush1.msra.mxu0 %v1320
    %3044 = vmatprep.subr.mxu0 %v1330
    %3045 = vmatpush1.msra.mxu0 %v1329
    %3046 = vmatprep.subr.mxu0 %v1339
    %3047 = vmatpush1.msra.mxu0 %v1338
    %3048 = vmatprep.subr.mxu0 %v1348
    %3049 = vmatpush1.msra.mxu0 %v1347
    %3050 = vmatprep.subr.mxu0 %v1357
    %3051 = vmatpush1.msra.mxu0 %v1356
    %3052 = vmatprep.mubr.f32.mxu0 %v1042
    %3053 = vmatmul.mubr.f32.gmra.mrb[0].mxu0 %v1041
    %v3054 = vpop.f32.mrb[0].mxu0
    %v3055 = vadd.f32 %v2250, %v3054
    %v3056 = vpop.f32.mrb[0].mxu0
    %v3057 = vadd.f32 %v2254, %v3056
    %3058 = vmatprep.mubr.f32.mxu0 %v1050
    %3059 = vmatmul.mubr.f32.gmra.mrb[0].mxu0 %v1049
    %v3060 = vpop.f32.mrb[0].mxu0
    %v3061 = vadd.f32 %v2250, %v3060
    %v3062 = vpop.f32.mrb[0].mxu0
    %v3063 = vadd.f32 %v2254, %v3062
    %3064 = vmatprep.mubr.f32.mxu0 %v1058
    %3065 = vmatmul.mubr.f32.gmra.mrb[0].mxu0 %v1057
    %v3066 = vpop.f32.mrb[0].mxu0
    %v3067 = vadd.f32 %v2250, %v3066
    %v3068 = vpop.f32.mrb[0].mxu0
    %v3069 = vadd.f32 %v2254, %v3068
    %3070 = vmatprep.mubr.f32.mxu0 %v1066
    %3071 = vmatmul.mubr.f32.gmra.mrb[0].mxu0 %v1065
    %v3072 = vpop.f32.mrb[0].mxu0
    %v3073 = vadd.f32 %v2250, %v3072
    %v3074 = vpop.f32.mrb[0].mxu0
    %v3075 = vadd.f32 %v2254, %v3074
    %3076 = vdwg.mxu0
    %3077 = vmatprep.subr.mxu0 %v1366
    %3078 = vmatpush1.msra.mxu0 %v1365
    %3079 = vmatprep.subr.mxu0 %v1375
    %3080 = vmatpush1.msra.mxu0 %v1374
    %3081 = vmatprep.subr.mxu0 %v1384
    %3082 = vmatpush1.msra.mxu0 %v1383
    %3083 = vmatprep.subr.mxu0 %v1393
    %3084 = vmatpush1.msra.mxu0 %v1392
    %3085 = vmatprep.subr.mxu0 %v1402
    %3086 = vmatpush1.msra.mxu0 %v1401
    %3087 = vmatprep.subr.mxu0 %v1411
    %3088 = vmatpush1.msra.mxu0 %v1410
    %3089 = vmatprep.subr.mxu0 %v1420
    %3090 = vmatpush1.msra.mxu0 %v1419
    %3091 = vmatprep.subr.mxu0 %v1429
    %3092 = vmatpush1.msra.mxu0 %v1428
    %3093 = vmatprep.subr.mxu0 %v1438
    %3094 = vmatpush1.msra.mxu0 %v1437
    %3095 = vmatprep.subr.mxu0 %v1447
    %3096 = vmatpush1.msra.mxu0 %v1446
    %3097 = vmatprep.subr.mxu0 %v1456
    %3098 = vmatpush1.msra.mxu0 %v1455
    %3099 = vmatprep.subr.mxu0 %v1465
    %3100 = vmatpush1.msra.mxu0 %v1464
    %3101 = vmatprep.subr.mxu0 %v1474
    %3102 = vmatpush1.msra.mxu0 %v1473
    %3103 = vmatprep.subr.mxu0 %v1483
    %3104 = vmatpush1.msra.mxu0 %v1482
    %3105 = vmatprep.subr.mxu0 %v1492
    %3106 = vmatpush1.msra.mxu0 %v1491
    %3107 = vmatprep.subr.mxu0 %v1501
    %3108 = vmatpush1.msra.mxu0 %v1500
    %3109 = vmatprep.subr.mxu0 %v1510
    %3110 = vmatpush1.msra.mxu0 %v1509
    %3111 = vmatprep.subr.mxu0 %v1519
    %3112 = vmatpush1.msra.mxu0 %v1518
    %3113 = vmatprep.subr.mxu0 %v1528
    %3114 = vmatpush1.msra.mxu0 %v1527
    %3115 = vmatprep.subr.mxu0 %v1537
    %3116 = vmatpush1.msra.mxu0 %v1536
    %3117 = vmatprep.subr.mxu0 %v1546
    %3118 = vmatpush1.msra.mxu0 %v1545
    %3119 = vmatprep.subr.mxu0 %v1555
    %3120 = vmatpush1.msra.mxu0 %v1554
    %3121 = vmatprep.subr.mxu0 %v1564
    %3122 = vmatpush1.msra.mxu0 %v1563
    %3123 = vmatprep.subr.mxu0 %v1573
    %3124 = vmatpush1.msra.mxu0 %v1572
    %3125 = vmatprep.subr.mxu0 %v1582
    %3126 = vmatpush1.msra.mxu0 %v1581
    %3127 = vmatprep.subr.mxu0 %v1591
    %3128 = vmatpush1.msra.mxu0 %v1590
    %3129 = vmatprep.subr.mxu0 %v1600
    %3130 = vmatpush1.msra.mxu0 %v1599
    %3131 = vmatprep.subr.mxu0 %v1609
    %3132 = vmatpush1.msra.mxu0 %v1608
    %3133 = vmatprep.subr.mxu0 %v1618
    %3134 = vmatpush1.msra.mxu0 %v1617
    %3135 = vmatprep.subr.mxu0 %v1627
    %3136 = vmatpush1.msra.mxu0 %v1626
    %3137 = vmatprep.subr.mxu0 %v1636
    %3138 = vmatpush1.msra.mxu0 %v1635
    %3139 = vmatprep.subr.mxu0 %v1645
    %3140 = vmatpush1.msra.mxu0 %v1644
    %3141 = vmatprep.mubr.f32.mxu0 %v1044
    %3142 = vmatmul.mubr.f32.gmra.mrb[0].mxu0 %v1043
    %v3143 = vpop.f32.mrb[0].mxu0
    %v3144 = vadd.f32 %v3055, %v3143
    %v3145 = vpop.f32.mrb[0].mxu0
    %v3146 = vadd.f32 %v3057, %v3145
    %3147 = vmatprep.mubr.f32.mxu0 %v1052
    %3148 = vmatmul.mubr.f32.gmra.mrb[0].mxu0 %v1051
    %v3149 = vpop.f32.mrb[0].mxu0
    %v3150 = vadd.f32 %v3061, %v3149
    %v3151 = vpop.f32.mrb[0].mxu0
    %v3152 = vadd.f32 %v3063, %v3151
    %3153 = vmatprep.mubr.f32.mxu0 %v1060
    %3154 = vmatmul.mubr.f32.gmra.mrb[0].mxu0 %v1059
    %v3155 = vpop.f32.mrb[0].mxu0
    %v3156 = vadd.f32 %v3067, %v3155
    %v3157 = vpop.f32.mrb[0].mxu0
    %v3158 = vadd.f32 %v3069, %v3157
    %3159 = vmatprep.mubr.f32.mxu0 %v1068
    %3160 = vmatmul.mubr.f32.gmra.mrb[0].mxu0 %v1067
    %v3161 = vpop.f32.mrb[0].mxu0
    %v3162 = vadd.f32 %v3073, %v3161
    %v3163 = vpop.f32.mrb[0].mxu0
    %v3164 = vadd.f32 %v3075, %v3163
    %3165 = vdwg.mxu0
    %3166 = vmatprep.subr.mxu0 %v1654
    %3167 = vmatpush1.msra.mxu0 %v1653
    %3168 = vmatprep.subr.mxu0 %v1663
    %3169 = vmatpush1.msra.mxu0 %v1662
    %3170 = vmatprep.subr.mxu0 %v1672
    %3171 = vmatpush1.msra.mxu0 %v1671
    %3172 = vmatprep.subr.mxu0 %v1681
    %3173 = vmatpush1.msra.mxu0 %v1680
    %3174 = vmatprep.subr.mxu0 %v1690
    %3175 = vmatpush1.msra.mxu0 %v1689
    %3176 = vmatprep.subr.mxu0 %v1699
    %3177 = vmatpush1.msra.mxu0 %v1698
    %3178 = vmatprep.subr.mxu0 %v1708
    %3179 = vmatpush1.msra.mxu0 %v1707
    %3180 = vmatprep.subr.mxu0 %v1717
    %3181 = vmatpush1.msra.mxu0 %v1716
    %3182 = vmatprep.subr.mxu0 %v1726
    %3183 = vmatpush1.msra.mxu0 %v1725
    %3184 = vmatprep.subr.mxu0 %v1735
    %3185 = vmatpush1.msra.mxu0 %v1734
    %3186 = vmatprep.subr.mxu0 %v1744
    %3187 = vmatpush1.msra.mxu0 %v1743
    %3188 = vmatprep.subr.mxu0 %v1753
    %3189 = vmatpush1.msra.mxu0 %v1752
    %3190 = vmatprep.subr.mxu0 %v1762
    %3191 = vmatpush1.msra.mxu0 %v1761
    %3192 = vmatprep.subr.mxu0 %v1771
    %3193 = vmatpush1.msra.mxu0 %v1770
    %3194 = vmatprep.subr.mxu0 %v1780
    %3195 = vmatpush1.msra.mxu0 %v1779
    %3196 = vmatprep.subr.mxu0 %v1789
    %3197 = vmatpush1.msra.mxu0 %v1788
    %3198 = vmatprep.subr.mxu0 %v1798
    %3199 = vmatpush1.msra.mxu0 %v1797
    %3200 = vmatprep.subr.mxu0 %v1807
    %3201 = vmatpush1.msra.mxu0 %v1806
    %3202 = vmatprep.subr.mxu0 %v1816
    %3203 = vmatpush1.msra.mxu0 %v1815
    %3204 = vmatprep.subr.mxu0 %v1825
    %3205 = vmatpush1.msra.mxu0 %v1824
    %3206 = vmatprep.subr.mxu0 %v1834
    %3207 = vmatpush1.msra.mxu0 %v1833
    %3208 = vmatprep.subr.mxu0 %v1843
    %3209 = vmatpush1.msra.mxu0 %v1842
    %3210 = vmatprep.subr.mxu0 %v1852
    %3211 = vmatpush1.msra.mxu0 %v1851
    %3212 = vmatprep.subr.mxu0 %v1861
    %3213 = vmatpush1.msra.mxu0 %v1860
    %3214 = vmatprep.subr.mxu0 %v1870
    %3215 = vmatpush1.msra.mxu0 %v1869
    %3216 = vmatprep.subr.mxu0 %v1879
    %3217 = vmatpush1.msra.mxu0 %v1878
    %3218 = vmatprep.subr.mxu0 %v1888
    %3219 = vmatpush1.msra.mxu0 %v1887
    %3220 = vmatprep.subr.mxu0 %v1897
    %3221 = vmatpush1.msra.mxu0 %v1896
    %3222 = vmatprep.subr.mxu0 %v1906
    %3223 = vmatpush1.msra.mxu0 %v1905
    %3224 = vmatprep.subr.mxu0 %v1915
    %3225 = vmatpush1.msra.mxu0 %v1914
    %3226 = vmatprep.subr.mxu0 %v1924
    %3227 = vmatpush1.msra.mxu0 %v1923
    %3228 = vmatprep.subr.mxu0 %v1933
    %3229 = vmatpush1.msra.mxu0 %v1932
    %3230 = vmatprep.mubr.f32.mxu0 %v1046
    %3231 = vmatmul.mubr.f32.gmra.mrb[0].mxu0 %v1045
    %v3232 = vpop.f32.mrb[0].mxu0
    %v3233 = vadd.f32 %v3144, %v3232
    %v3234 = vpop.f32.mrb[0].mxu0
    %v3235 = vadd.f32 %v3146, %v3234
    %3236 = vmatprep.mubr.f32.mxu0 %v1054
    %3237 = vmatmul.mubr.f32.gmra.mrb[0].mxu0 %v1053
    %v3238 = vpop.f32.mrb[0].mxu0
    %v3239 = vadd.f32 %v3150, %v3238
    %v3240 = vpop.f32.mrb[0].mxu0
    %v3241 = vadd.f32 %v3152, %v3240
    %3242 = vmatprep.mubr.f32.mxu0 %v1062
    %3243 = vmatmul.mubr.f32.gmra.mrb[0].mxu0 %v1061
    %v3244 = vpop.f32.mrb[0].mxu0
    %v3245 = vadd.f32 %v3156, %v3244
    %v3246 = vpop.f32.mrb[0].mxu0
    %v3247 = vadd.f32 %v3158, %v3246
    %3248 = vmatprep.mubr.f32.mxu0 %v1070
    %3249 = vmatmul.mubr.f32.gmra.mrb[0].mxu0 %v1069
    %v3250 = vpop.f32.mrb[0].mxu0
    %v3251 = vadd.f32 %v3162, %v3250
    %v3252 = vpop.f32.mrb[0].mxu0
    %v3253 = vadd.f32 %v3164, %v3252
    %3254 = vdwg.mxu0
    %3255 = vmatprep.subr.mxu0 %v1942
    %3256 = vmatpush1.msra.mxu0 %v1941
    %3257 = vmatprep.subr.mxu0 %v1951
    %3258 = vmatpush1.msra.mxu0 %v1950
    %3259 = vmatprep.subr.mxu0 %v1960
    %3260 = vmatpush1.msra.mxu0 %v1959
    %3261 = vmatprep.subr.mxu0 %v1969
    %3262 = vmatpush1.msra.mxu0 %v1968
    %3263 = vmatprep.subr.mxu0 %v1978
    %3264 = vmatpush1.msra.mxu0 %v1977
    %3265 = vmatprep.subr.mxu0 %v1987
    %3266 = vmatpush1.msra.mxu0 %v1986
    %3267 = vmatprep.subr.mxu0 %v1996
    %3268 = vmatpush1.msra.mxu0 %v1995
    %3269 = vmatprep.subr.mxu0 %v2005
    %3270 = vmatpush1.msra.mxu0 %v2004
    %3271 = vmatprep.subr.mxu0 %v2014
    %3272 = vmatpush1.msra.mxu0 %v2013
    %3273 = vmatprep.subr.mxu0 %v2023
    %3274 = vmatpush1.msra.mxu0 %v2022
    %3275 = vmatprep.subr.mxu0 %v2032
    %3276 = vmatpush1.msra.mxu0 %v2031
    %3277 = vmatprep.subr.mxu0 %v2041
    %3278 = vmatpush1.msra.mxu0 %v2040
    %3279 = vmatprep.subr.mxu0 %v2050
    %3280 = vmatpush1.msra.mxu0 %v2049
    %3281 = vmatprep.subr.mxu0 %v2059
    %3282 = vmatpush1.msra.mxu0 %v2058
    %3283 = vmatprep.subr.mxu0 %v2068
    %3284 = vmatpush1.msra.mxu0 %v2067
    %3285 = vmatprep.subr.mxu0 %v2077
    %3286 = vmatpush1.msra.mxu0 %v2076
    %3287 = vmatprep.subr.mxu0 %v2086
    %3288 = vmatpush1.msra.mxu0 %v2085
    %3289 = vmatprep.subr.mxu0 %v2095
    %3290 = vmatpush1.msra.mxu0 %v2094
    %3291 = vmatprep.subr.mxu0 %v2104
    %3292 = vmatpush1.msra.mxu0 %v2103
    %3293 = vmatprep.subr.mxu0 %v2113
    %3294 = vmatpush1.msra.mxu0 %v2112
    %3295 = vmatprep.subr.mxu0 %v2122
    %3296 = vmatpush1.msra.mxu0 %v2121
    %3297 = vmatprep.subr.mxu0 %v2131
    %3298 = vmatpush1.msra.mxu0 %v2130
    %3299 = vmatprep.subr.mxu0 %v2140
    %3300 = vmatpush1.msra.mxu0 %v2139
    %3301 = vmatprep.subr.mxu0 %v2149
    %3302 = vmatpush1.msra.mxu0 %v2148
    %3303 = vmatprep.subr.mxu0 %v2158
    %3304 = vmatpush1.msra.mxu0 %v2157
    %3305 = vmatprep.subr.mxu0 %v2167
    %3306 = vmatpush1.msra.mxu0 %v2166
    %3307 = vmatprep.subr.mxu0 %v2176
    %3308 = vmatpush1.msra.mxu0 %v2175
    %3309 = vmatprep.subr.mxu0 %v2185
    %3310 = vmatpush1.msra.mxu0 %v2184
    %3311 = vmatprep.subr.mxu0 %v2194
    %3312 = vmatpush1.msra.mxu0 %v2193
    %3313 = vmatprep.subr.mxu0 %v2203
    %3314 = vmatpush1.msra.mxu0 %v2202
    %3315 = vmatprep.subr.mxu0 %v2212
    %3316 = vmatpush1.msra.mxu0 %v2211
    %3317 = vmatprep.subr.mxu0 %v2221
    %3318 = vmatpush1.msra.mxu0 %v2220
    %3319 = vmatprep.mubr.f32.mxu0 %v1048
    %3320 = vmatmul.mubr.f32.gmra.mrb[0].mxu0 %v1047
    %v3321 = vpop.f32.mrb[0].mxu0
    %v3322 = vadd.f32 %v3233, %v3321
    %v3323 = vpop.f32.mrb[0].mxu0
    %v3324 = vadd.f32 %v3235, %v3323
    %3325 = vmatprep.mubr.f32.mxu0 %v1056
    %3326 = vmatmul.mubr.f32.gmra.mrb[0].mxu0 %v1055
    %v3327 = vpop.f32.mrb[0].mxu0
    %v3328 = vadd.f32 %v3239, %v3327
    %v3329 = vpop.f32.mrb[0].mxu0
    %v3330 = vadd.f32 %v3241, %v3329
    %3331 = vmatprep.mubr.f32.mxu0 %v1064
    %3332 = vmatmul.mubr.f32.gmra.mrb[0].mxu0 %v1063
    %v3333 = vpop.f32.mrb[0].mxu0
    %v3334 = vadd.f32 %v3245, %v3333
    %v3335 = vpop.f32.mrb[0].mxu0
    %v3336 = vadd.f32 %v3247, %v3335
    %3337 = vmatprep.mubr.f32.mxu0 %v1072
    %3338 = vmatmul.mubr.f32.gmra.mrb[0].mxu0 %v1071
    %v3339 = vpop.f32.mrb[0].mxu0
    %v3340 = vadd.f32 %v3251, %v3339
    %v3341 = vpop.f32.mrb[0].mxu0
    %v3342 = vadd.f32 %v3253, %v3341
    %3343 = vdwg.mxu0
    %3344 = vmatprep.subr.mxu0 %v1080
    %3345 = vmatpush1.msra.mxu0 %v1079
    %3346 = vmatprep.subr.mxu0 %v1089
    %3347 = vmatpush1.msra.mxu0 %v1088
    %3348 = vmatprep.subr.mxu0 %v1098
    %3349 = vmatpush1.msra.mxu0 %v1097
    %3350 = vmatprep.subr.mxu0 %v1107
    %3351 = vmatpush1.msra.mxu0 %v1106
    %3352 = vmatprep.subr.mxu0 %v1116
    %3353 = vmatpush1.msra.mxu0 %v1115
    %3354 = vmatprep.subr.mxu0 %v1125
    %3355 = vmatpush1.msra.mxu0 %v1124
    %3356 = vmatprep.subr.mxu0 %v1134
    %3357 = vmatpush1.msra.mxu0 %v1133
    %3358 = vmatprep.subr.mxu0 %v1143
    %3359 = vmatpush1.msra.mxu0 %v1142
    %3360 = vmatprep.subr.mxu0 %v1152
    %3361 = vmatpush1.msra.mxu0 %v1151
    %3362 = vmatprep.subr.mxu0 %v1161
    %3363 = vmatpush1.msra.mxu0 %v1160
    %3364 = vmatprep.subr.mxu0 %v1170
    %3365 = vmatpush1.msra.mxu0 %v1169
    %3366 = vmatprep.subr.mxu0 %v1179
    %3367 = vmatpush1.msra.mxu0 %v1178
    %3368 = vmatprep.subr.mxu0 %v1188
    %3369 = vmatpush1.msra.mxu0 %v1187
    %3370 = vmatprep.subr.mxu0 %v1197
    %3371 = vmatpush1.msra.mxu0 %v1196
    %3372 = vmatprep.subr.mxu0 %v1206
    %3373 = vmatpush1.msra.mxu0 %v1205
    %3374 = vmatprep.subr.mxu0 %v1215
    %3375 = vmatpush1.msra.mxu0 %v1214
    %3376 = vmatprep.subr.mxu0 %v1224
    %3377 = vmatpush1.msra.mxu0 %v1223
    %3378 = vmatprep.subr.mxu0 %v1233
    %3379 = vmatpush1.msra.mxu0 %v1232
    %3380 = vmatprep.subr.mxu0 %v1242
    %3381 = vmatpush1.msra.mxu0 %v1241
    %3382 = vmatprep.subr.mxu0 %v1251
    %3383 = vmatpush1.msra.mxu0 %v1250
    %3384 = vmatprep.subr.mxu0 %v1260
    %3385 = vmatpush1.msra.mxu0 %v1259
    %3386 = vmatprep.subr.mxu0 %v1269
    %3387 = vmatpush1.msra.mxu0 %v1268
    %3388 = vmatprep.subr.mxu0 %v1278
    %3389 = vmatpush1.msra.mxu0 %v1277
    %3390 = vmatprep.subr.mxu0 %v1287
    %3391 = vmatpush1.msra.mxu0 %v1286
    %3392 = vmatprep.subr.mxu0 %v1296
    %3393 = vmatpush1.msra.mxu0 %v1295
    %3394 = vmatprep.subr.mxu0 %v1305
    %3395 = vmatpush1.msra.mxu0 %v1304
    %3396 = vmatprep.subr.mxu0 %v1314
    %3397 = vmatpush1.msra.mxu0 %v1313
    %3398 = vmatprep.subr.mxu0 %v1323
    %3399 = vmatpush1.msra.mxu0 %v1322
    %3400 = vmatprep.subr.mxu0 %v1332
    %3401 = vmatpush1.msra.mxu0 %v1331
    %3402 = vmatprep.subr.mxu0 %v1341
    %3403 = vmatpush1.msra.mxu0 %v1340
    %3404 = vmatprep.subr.mxu0 %v1350
    %3405 = vmatpush1.msra.mxu0 %v1349
    %3406 = vmatprep.subr.mxu0 %v1359
    %3407 = vmatpush1.msra.mxu0 %v1358
    %3408 = vmatprep.mubr.f32.mxu0 %v1042
    %3409 = vmatmul.mubr.f32.gmra.mrb[0].mxu0 %v1041
    %v3410 = vpop.f32.mrb[0].mxu0
    %v3411 = vadd.f32 %v2258, %v3410
    %v3412 = vpop.f32.mrb[0].mxu0
    %v3413 = vadd.f32 %v2262, %v3412
    %3414 = vmatprep.mubr.f32.mxu0 %v1050
    %3415 = vmatmul.mubr.f32.gmra.mrb[0].mxu0 %v1049
    %v3416 = vpop.f32.mrb[0].mxu0
    %v3417 = vadd.f32 %v2258, %v3416
    %v3418 = vpop.f32.mrb[0].mxu0
    %v3419 = vadd.f32 %v2262, %v3418
    %3420 = vmatprep.mubr.f32.mxu0 %v1058
    %3421 = vmatmul.mubr.f32.gmra.mrb[0].mxu0 %v1057
    %v3422 = vpop.f32.mrb[0].mxu0
    %v3423 = vadd.f32 %v2258, %v3422
    %v3424 = vpop.f32.mrb[0].mxu0
    %v3425 = vadd.f32 %v2262, %v3424
    %3426 = vmatprep.mubr.f32.mxu0 %v1066
    %3427 = vmatmul.mubr.f32.gmra.mrb[0].mxu0 %v1065
    %v3428 = vpop.f32.mrb[0].mxu0
    %v3429 = vadd.f32 %v2258, %v3428
    %v3430 = vpop.f32.mrb[0].mxu0
    %v3431 = vadd.f32 %v2262, %v3430
    %3432 = vdwg.mxu0
    %3433 = vmatprep.subr.mxu0 %v1368
    %3434 = vmatpush1.msra.mxu0 %v1367
    %3435 = vmatprep.subr.mxu0 %v1377
    %3436 = vmatpush1.msra.mxu0 %v1376
    %3437 = vmatprep.subr.mxu0 %v1386
    %3438 = vmatpush1.msra.mxu0 %v1385
    %3439 = vmatprep.subr.mxu0 %v1395
    %3440 = vmatpush1.msra.mxu0 %v1394
    %3441 = vmatprep.subr.mxu0 %v1404
    %3442 = vmatpush1.msra.mxu0 %v1403
    %3443 = vmatprep.subr.mxu0 %v1413
    %3444 = vmatpush1.msra.mxu0 %v1412
    %3445 = vmatprep.subr.mxu0 %v1422
    %3446 = vmatpush1.msra.mxu0 %v1421
    %3447 = vmatprep.subr.mxu0 %v1431
    %3448 = vmatpush1.msra.mxu0 %v1430
    %3449 = vmatprep.subr.mxu0 %v1440
    %3450 = vmatpush1.msra.mxu0 %v1439
    %3451 = vmatprep.subr.mxu0 %v1449
    %3452 = vmatpush1.msra.mxu0 %v1448
    %3453 = vmatprep.subr.mxu0 %v1458
    %3454 = vmatpush1.msra.mxu0 %v1457
    %3455 = vmatprep.subr.mxu0 %v1467
    %3456 = vmatpush1.msra.mxu0 %v1466
    %3457 = vmatprep.subr.mxu0 %v1476
    %3458 = vmatpush1.msra.mxu0 %v1475
    %3459 = vmatprep.subr.mxu0 %v1485
    %3460 = vmatpush1.msra.mxu0 %v1484
    %3461 = vmatprep.subr.mxu0 %v1494
    %3462 = vmatpush1.msra.mxu0 %v1493
    %3463 = vmatprep.subr.mxu0 %v1503
    %3464 = vmatpush1.msra.mxu0 %v1502
    %3465 = vmatprep.subr.mxu0 %v1512
    %3466 = vmatpush1.msra.mxu0 %v1511
    %3467 = vmatprep.subr.mxu0 %v1521
    %3468 = vmatpush1.msra.mxu0 %v1520
    %3469 = vmatprep.subr.mxu0 %v1530
    %3470 = vmatpush1.msra.mxu0 %v1529
    %3471 = vmatprep.subr.mxu0 %v1539
    %3472 = vmatpush1.msra.mxu0 %v1538
    %3473 = vmatprep.subr.mxu0 %v1548
    %3474 = vmatpush1.msra.mxu0 %v1547
    %3475 = vmatprep.subr.mxu0 %v1557
    %3476 = vmatpush1.msra.mxu0 %v1556
    %3477 = vmatprep.subr.mxu0 %v1566
    %3478 = vmatpush1.msra.mxu0 %v1565
    %3479 = vmatprep.subr.mxu0 %v1575
    %3480 = vmatpush1.msra.mxu0 %v1574
    %3481 = vmatprep.subr.mxu0 %v1584
    %3482 = vmatpush1.msra.mxu0 %v1583
    %3483 = vmatprep.subr.mxu0 %v1593
    %3484 = vmatpush1.msra.mxu0 %v1592
    %3485 = vmatprep.subr.mxu0 %v1602
    %3486 = vmatpush1.msra.mxu0 %v1601
    %3487 = vmatprep.subr.mxu0 %v1611
    %3488 = vmatpush1.msra.mxu0 %v1610
    %3489 = vmatprep.subr.mxu0 %v1620
    %3490 = vmatpush1.msra.mxu0 %v1619
    %3491 = vmatprep.subr.mxu0 %v1629
    %3492 = vmatpush1.msra.mxu0 %v1628
    %3493 = vmatprep.subr.mxu0 %v1638
    %3494 = vmatpush1.msra.mxu0 %v1637
    %3495 = vmatprep.subr.mxu0 %v1647
    %3496 = vmatpush1.msra.mxu0 %v1646
    %3497 = vmatprep.mubr.f32.mxu0 %v1044
    %3498 = vmatmul.mubr.f32.gmra.mrb[0].mxu0 %v1043
    %v3499 = vpop.f32.mrb[0].mxu0
    %v3500 = vadd.f32 %v3411, %v3499
    %v3501 = vpop.f32.mrb[0].mxu0
    %v3502 = vadd.f32 %v3413, %v3501
    %3503 = vmatprep.mubr.f32.mxu0 %v1052
    %3504 = vmatmul.mubr.f32.gmra.mrb[0].mxu0 %v1051
    %v3505 = vpop.f32.mrb[0].mxu0
    %v3506 = vadd.f32 %v3417, %v3505
    %v3507 = vpop.f32.mrb[0].mxu0
    %v3508 = vadd.f32 %v3419, %v3507
    %3509 = vmatprep.mubr.f32.mxu0 %v1060
    %3510 = vmatmul.mubr.f32.gmra.mrb[0].mxu0 %v1059
    %v3511 = vpop.f32.mrb[0].mxu0
    %v3512 = vadd.f32 %v3423, %v3511
    %v3513 = vpop.f32.mrb[0].mxu0
    %v3514 = vadd.f32 %v3425, %v3513
    %3515 = vmatprep.mubr.f32.mxu0 %v1068
    %3516 = vmatmul.mubr.f32.gmra.mrb[0].mxu0 %v1067
    %v3517 = vpop.f32.mrb[0].mxu0
    %v3518 = vadd.f32 %v3429, %v3517
    %v3519 = vpop.f32.mrb[0].mxu0
    %v3520 = vadd.f32 %v3431, %v3519
    %3521 = vdwg.mxu0
    %3522 = vmatprep.subr.mxu0 %v1656
    %3523 = vmatpush1.msra.mxu0 %v1655
    %3524 = vmatprep.subr.mxu0 %v1665
    %3525 = vmatpush1.msra.mxu0 %v1664
    %3526 = vmatprep.subr.mxu0 %v1674
    %3527 = vmatpush1.msra.mxu0 %v1673
    %3528 = vmatprep.subr.mxu0 %v1683
    %3529 = vmatpush1.msra.mxu0 %v1682
    %3530 = vmatprep.subr.mxu0 %v1692
    %3531 = vmatpush1.msra.mxu0 %v1691
    %3532 = vmatprep.subr.mxu0 %v1701
    %3533 = vmatpush1.msra.mxu0 %v1700
    %3534 = vmatprep.subr.mxu0 %v1710
    %3535 = vmatpush1.msra.mxu0 %v1709
    %3536 = vmatprep.subr.mxu0 %v1719
    %3537 = vmatpush1.msra.mxu0 %v1718
    %3538 = vmatprep.subr.mxu0 %v1728
    %3539 = vmatpush1.msra.mxu0 %v1727
    %3540 = vmatprep.subr.mxu0 %v1737
    %3541 = vmatpush1.msra.mxu0 %v1736
    %3542 = vmatprep.subr.mxu0 %v1746
    %3543 = vmatpush1.msra.mxu0 %v1745
    %3544 = vmatprep.subr.mxu0 %v1755
    %3545 = vmatpush1.msra.mxu0 %v1754
    %3546 = vmatprep.subr.mxu0 %v1764
    %3547 = vmatpush1.msra.mxu0 %v1763
    %3548 = vmatprep.subr.mxu0 %v1773
    %3549 = vmatpush1.msra.mxu0 %v1772
    %3550 = vmatprep.subr.mxu0 %v1782
    %3551 = vmatpush1.msra.mxu0 %v1781
    %3552 = vmatprep.subr.mxu0 %v1791
    %3553 = vmatpush1.msra.mxu0 %v1790
    %3554 = vmatprep.subr.mxu0 %v1800
    %3555 = vmatpush1.msra.mxu0 %v1799
    %3556 = vmatprep.subr.mxu0 %v1809
    %3557 = vmatpush1.msra.mxu0 %v1808
    %3558 = vmatprep.subr.mxu0 %v1818
    %3559 = vmatpush1.msra.mxu0 %v1817
    %3560 = vmatprep.subr.mxu0 %v1827
    %3561 = vmatpush1.msra.mxu0 %v1826
    %3562 = vmatprep.subr.mxu0 %v1836
    %3563 = vmatpush1.msra.mxu0 %v1835
    %3564 = vmatprep.subr.mxu0 %v1845
    %3565 = vmatpush1.msra.mxu0 %v1844
    %3566 = vmatprep.subr.mxu0 %v1854
    %3567 = vmatpush1.msra.mxu0 %v1853
    %3568 = vmatprep.subr.mxu0 %v1863
    %3569 = vmatpush1.msra.mxu0 %v1862
    %3570 = vmatprep.subr.mxu0 %v1872
    %3571 = vmatpush1.msra.mxu0 %v1871
    %3572 = vmatprep.subr.mxu0 %v1881
    %3573 = vmatpush1.msra.mxu0 %v1880
    %3574 = vmatprep.subr.mxu0 %v1890
    %3575 = vmatpush1.msra.mxu0 %v1889
    %3576 = vmatprep.subr.mxu0 %v1899
    %3577 = vmatpush1.msra.mxu0 %v1898
    %3578 = vmatprep.subr.mxu0 %v1908
    %3579 = vmatpush1.msra.mxu0 %v1907
    %3580 = vmatprep.subr.mxu0 %v1917
    %3581 = vmatpush1.msra.mxu0 %v1916
    %3582 = vmatprep.subr.mxu0 %v1926
    %3583 = vmatpush1.msra.mxu0 %v1925
    %3584 = vmatprep.subr.mxu0 %v1935
    %3585 = vmatpush1.msra.mxu0 %v1934
    %3586 = vmatprep.mubr.f32.mxu0 %v1046
    %3587 = vmatmul.mubr.f32.gmra.mrb[0].mxu0 %v1045
    %v3588 = vpop.f32.mrb[0].mxu0
    %v3589 = vadd.f32 %v3500, %v3588
    %v3590 = vpop.f32.mrb[0].mxu0
    %v3591 = vadd.f32 %v3502, %v3590
    %3592 = vmatprep.mubr.f32.mxu0 %v1054
    %3593 = vmatmul.mubr.f32.gmra.mrb[0].mxu0 %v1053
    %v3594 = vpop.f32.mrb[0].mxu0
    %v3595 = vadd.f32 %v3506, %v3594
    %v3596 = vpop.f32.mrb[0].mxu0
    %v3597 = vadd.f32 %v3508, %v3596
    %3598 = vmatprep.mubr.f32.mxu0 %v1062
    %3599 = vmatmul.mubr.f32.gmra.mrb[0].mxu0 %v1061
    %v3600 = vpop.f32.mrb[0].mxu0
    %v3601 = vadd.f32 %v3512, %v3600
    %v3602 = vpop.f32.mrb[0].mxu0
    %v3603 = vadd.f32 %v3514, %v3602
    %3604 = vmatprep.mubr.f32.mxu0 %v1070
    %3605 = vmatmul.mubr.f32.gmra.mrb[0].mxu0 %v1069
    %v3606 = vpop.f32.mrb[0].mxu0
    %v3607 = vadd.f32 %v3518, %v3606
    %v3608 = vpop.f32.mrb[0].mxu0
    %v3609 = vadd.f32 %v3520, %v3608
    %3610 = vdwg.mxu0
    %3611 = vmatprep.subr.mxu0 %v1944
    %3612 = vmatpush1.msra.mxu0 %v1943
    %3613 = vmatprep.subr.mxu0 %v1953
    %3614 = vmatpush1.msra.mxu0 %v1952
    %3615 = vmatprep.subr.mxu0 %v1962
    %3616 = vmatpush1.msra.mxu0 %v1961
    %3617 = vmatprep.subr.mxu0 %v1971
    %3618 = vmatpush1.msra.mxu0 %v1970
    %3619 = vmatprep.subr.mxu0 %v1980
    %3620 = vmatpush1.msra.mxu0 %v1979
    %3621 = vmatprep.subr.mxu0 %v1989
    %3622 = vmatpush1.msra.mxu0 %v1988
    %3623 = vmatprep.subr.mxu0 %v1998
    %3624 = vmatpush1.msra.mxu0 %v1997
    %3625 = vmatprep.subr.mxu0 %v2007
    %3626 = vmatpush1.msra.mxu0 %v2006
    %3627 = vmatprep.subr.mxu0 %v2016
    %3628 = vmatpush1.msra.mxu0 %v2015
    %3629 = vmatprep.subr.mxu0 %v2025
    %3630 = vmatpush1.msra.mxu0 %v2024
    %3631 = vmatprep.subr.mxu0 %v2034
    %3632 = vmatpush1.msra.mxu0 %v2033
    %3633 = vmatprep.subr.mxu0 %v2043
    %3634 = vmatpush1.msra.mxu0 %v2042
    %3635 = vmatprep.subr.mxu0 %v2052
    %3636 = vmatpush1.msra.mxu0 %v2051
    %3637 = vmatprep.subr.mxu0 %v2061
    %3638 = vmatpush1.msra.mxu0 %v2060
    %3639 = vmatprep.subr.mxu0 %v2070
    %3640 = vmatpush1.msra.mxu0 %v2069
    %3641 = vmatprep.subr.mxu0 %v2079
    %3642 = vmatpush1.msra.mxu0 %v2078
    %3643 = vmatprep.subr.mxu0 %v2088
    %3644 = vmatpush1.msra.mxu0 %v2087
    %3645 = vmatprep.subr.mxu0 %v2097
    %3646 = vmatpush1.msra.mxu0 %v2096
    %3647 = vmatprep.subr.mxu0 %v2106
    %3648 = vmatpush1.msra.mxu0 %v2105
    %3649 = vmatprep.subr.mxu0 %v2115
    %3650 = vmatpush1.msra.mxu0 %v2114
    %3651 = vmatprep.subr.mxu0 %v2124
    %3652 = vmatpush1.msra.mxu0 %v2123
    %3653 = vmatprep.subr.mxu0 %v2133
    %3654 = vmatpush1.msra.mxu0 %v2132
    %3655 = vmatprep.subr.mxu0 %v2142
    %3656 = vmatpush1.msra.mxu0 %v2141
    %3657 = vmatprep.subr.mxu0 %v2151
    %3658 = vmatpush1.msra.mxu0 %v2150
    %3659 = vmatprep.subr.mxu0 %v2160
    %3660 = vmatpush1.msra.mxu0 %v2159
    %3661 = vmatprep.subr.mxu0 %v2169
    %3662 = vmatpush1.msra.mxu0 %v2168
    %3663 = vmatprep.subr.mxu0 %v2178
    %3664 = vmatpush1.msra.mxu0 %v2177
    %3665 = vmatprep.subr.mxu0 %v2187
    %3666 = vmatpush1.msra.mxu0 %v2186
    %3667 = vmatprep.subr.mxu0 %v2196
    %3668 = vmatpush1.msra.mxu0 %v2195
    %3669 = vmatprep.subr.mxu0 %v2205
    %3670 = vmatpush1.msra.mxu0 %v2204
    %3671 = vmatprep.subr.mxu0 %v2214
    %3672 = vmatpush1.msra.mxu0 %v2213
    %3673 = vmatprep.subr.mxu0 %v2223
    %3674 = vmatpush1.msra.mxu0 %v2222
    %3675 = vmatprep.mubr.f32.mxu0 %v1048
    %3676 = vmatmul.mubr.f32.gmra.mrb[0].mxu0 %v1047
    %v3677 = vpop.f32.mrb[0].mxu0
    %v3678 = vadd.f32 %v3589, %v3677
    %v3679 = vpop.f32.mrb[0].mxu0
    %v3680 = vadd.f32 %v3591, %v3679
    %3681 = vmatprep.mubr.f32.mxu0 %v1056
    %3682 = vmatmul.mubr.f32.gmra.mrb[0].mxu0 %v1055
    %v3683 = vpop.f32.mrb[0].mxu0
    %v3684 = vadd.f32 %v3595, %v3683
    %v3685 = vpop.f32.mrb[0].mxu0
    %v3686 = vadd.f32 %v3597, %v3685
    %3687 = vmatprep.mubr.f32.mxu0 %v1064
    %3688 = vmatmul.mubr.f32.gmra.mrb[0].mxu0 %v1063
    %v3689 = vpop.f32.mrb[0].mxu0
    %v3690 = vadd.f32 %v3601, %v3689
    %v3691 = vpop.f32.mrb[0].mxu0
    %v3692 = vadd.f32 %v3603, %v3691
    %3693 = vmatprep.mubr.f32.mxu0 %v1072
    %3694 = vmatmul.mubr.f32.gmra.mrb[0].mxu0 %v1071
    %v3695 = vpop.f32.mrb[0].mxu0
    %v3696 = vadd.f32 %v3607, %v3695
    %v3697 = vpop.f32.mrb[0].mxu0
    %v3698 = vadd.f32 %v3609, %v3697
    %3699 = vdwg.mxu0
    %3700 = vmatprep.subr.mxu0 0.0
    %3701 = vmatpush1.msra.mxu0 %v1081
    %3702 = vmatprep.subr.mxu0 0.0
    %3703 = vmatpush1.msra.mxu0 %v1090
    %3704 = vmatprep.subr.mxu0 0.0
    %3705 = vmatpush1.msra.mxu0 %v1099
    %3706 = vmatprep.subr.mxu0 0.0
    %3707 = vmatpush1.msra.mxu0 %v1108
    %3708 = vmatprep.subr.mxu0 0.0
    %3709 = vmatpush1.msra.mxu0 %v1117
    %3710 = vmatprep.subr.mxu0 0.0
    %3711 = vmatpush1.msra.mxu0 %v1126
    %3712 = vmatprep.subr.mxu0 0.0
    %3713 = vmatpush1.msra.mxu0 %v1135
    %3714 = vmatprep.subr.mxu0 0.0
    %3715 = vmatpush1.msra.mxu0 %v1144
    %3716 = vmatprep.subr.mxu0 0.0
    %3717 = vmatpush1.msra.mxu0 %v1153
    %3718 = vmatprep.subr.mxu0 0.0
    %3719 = vmatpush1.msra.mxu0 %v1162
    %3720 = vmatprep.subr.mxu0 0.0
    %3721 = vmatpush1.msra.mxu0 %v1171
    %3722 = vmatprep.subr.mxu0 0.0
    %3723 = vmatpush1.msra.mxu0 %v1180
    %3724 = vmatprep.subr.mxu0 0.0
    %3725 = vmatpush1.msra.mxu0 %v1189
    %3726 = vmatprep.subr.mxu0 0.0
    %3727 = vmatpush1.msra.mxu0 %v1198
    %3728 = vmatprep.subr.mxu0 0.0
    %3729 = vmatpush1.msra.mxu0 %v1207
    %3730 = vmatprep.subr.mxu0 0.0
    %3731 = vmatpush1.msra.mxu0 %v1216
    %3732 = vmatprep.subr.mxu0 0.0
    %3733 = vmatpush1.msra.mxu0 %v1225
    %3734 = vmatprep.subr.mxu0 0.0
    %3735 = vmatpush1.msra.mxu0 %v1234
    %3736 = vmatprep.subr.mxu0 0.0
    %3737 = vmatpush1.msra.mxu0 %v1243
    %3738 = vmatprep.subr.mxu0 0.0
    %3739 = vmatpush1.msra.mxu0 %v1252
    %3740 = vmatprep.subr.mxu0 0.0
    %3741 = vmatpush1.msra.mxu0 %v1261
    %3742 = vmatprep.subr.mxu0 0.0
    %3743 = vmatpush1.msra.mxu0 %v1270
    %3744 = vmatprep.subr.mxu0 0.0
    %3745 = vmatpush1.msra.mxu0 %v1279
    %3746 = vmatprep.subr.mxu0 0.0
    %3747 = vmatpush1.msra.mxu0 %v1288
    %3748 = vmatprep.subr.mxu0 0.0
    %3749 = vmatpush1.msra.mxu0 %v1297
    %3750 = vmatprep.subr.mxu0 0.0
    %3751 = vmatpush1.msra.mxu0 %v1306
    %3752 = vmatprep.subr.mxu0 0.0
    %3753 = vmatpush1.msra.mxu0 %v1315
    %3754 = vmatprep.subr.mxu0 0.0
    %3755 = vmatpush1.msra.mxu0 %v1324
    %3756 = vmatprep.subr.mxu0 0.0
    %3757 = vmatpush1.msra.mxu0 %v1333
    %3758 = vmatprep.subr.mxu0 0.0
    %3759 = vmatpush1.msra.mxu0 %v1342
    %3760 = vmatprep.subr.mxu0 0.0
    %3761 = vmatpush1.msra.mxu0 %v1351
    %3762 = vmatprep.subr.mxu0 0.0
    %3763 = vmatpush1.msra.mxu0 %v1360
    %3764 = vmatprep.mubr.f32.mxu0 %v1042
    %3765 = vmatmul.mubr.f32.gmra.mrb[0].mxu0 %v1041
    %v3766 = vpop.f32.mrb[0].mxu0
    %v3767 = vadd.f32 %v2266, %v3766
    %v3768 = vpop.f32.mrb[0].mxu0
    %3769 = vmatprep.mubr.f32.mxu0 %v1050
    %3770 = vmatmul.mubr.f32.gmra.mrb[0].mxu0 %v1049
    %v3771 = vpop.f32.mrb[0].mxu0
    %v3772 = vadd.f32 %v2266, %v3771
    %v3773 = vpop.f32.mrb[0].mxu0
    %3774 = vmatprep.mubr.f32.mxu0 %v1058
    %3775 = vmatmul.mubr.f32.gmra.mrb[0].mxu0 %v1057
    %v3776 = vpop.f32.mrb[0].mxu0
    %v3777 = vadd.f32 %v2266, %v3776
    %v3778 = vpop.f32.mrb[0].mxu0
    %3779 = vmatprep.mubr.f32.mxu0 %v1066
    %3780 = vmatmul.mubr.f32.gmra.mrb[0].mxu0 %v1065
    %v3781 = vpop.f32.mrb[0].mxu0
    %v3782 = vadd.f32 %v2266, %v3781
    %v3783 = vpop.f32.mrb[0].mxu0
    %3784 = vdwg.mxu0
    %3785 = vmatprep.subr.mxu0 0.0
    %3786 = vmatpush1.msra.mxu0 %v1369
    %3787 = vmatprep.subr.mxu0 0.0
    %3788 = vmatpush1.msra.mxu0 %v1378
    %3789 = vmatprep.subr.mxu0 0.0
    %3790 = vmatpush1.msra.mxu0 %v1387
    %3791 = vmatprep.subr.mxu0 0.0
    %3792 = vmatpush1.msra.mxu0 %v1396
    %3793 = vmatprep.subr.mxu0 0.0
    %3794 = vmatpush1.msra.mxu0 %v1405
    %3795 = vmatprep.subr.mxu0 0.0
    %3796 = vmatpush1.msra.mxu0 %v1414
    %3797 = vmatprep.subr.mxu0 0.0
    %3798 = vmatpush1.msra.mxu0 %v1423
    %3799 = vmatprep.subr.mxu0 0.0
    %3800 = vmatpush1.msra.mxu0 %v1432
    %3801 = vmatprep.subr.mxu0 0.0
    %3802 = vmatpush1.msra.mxu0 %v1441
    %3803 = vmatprep.subr.mxu0 0.0
    %3804 = vmatpush1.msra.mxu0 %v1450
    %3805 = vmatprep.subr.mxu0 0.0
    %3806 = vmatpush1.msra.mxu0 %v1459
    %3807 = vmatprep.subr.mxu0 0.0
    %3808 = vmatpush1.msra.mxu0 %v1468
    %3809 = vmatprep.subr.mxu0 0.0
    %3810 = vmatpush1.msra.mxu0 %v1477
    %3811 = vmatprep.subr.mxu0 0.0
    %3812 = vmatpush1.msra.mxu0 %v1486
    %3813 = vmatprep.subr.mxu0 0.0
    %3814 = vmatpush1.msra.mxu0 %v1495
    %3815 = vmatprep.subr.mxu0 0.0
    %3816 = vmatpush1.msra.mxu0 %v1504
    %3817 = vmatprep.subr.mxu0 0.0
    %3818 = vmatpush1.msra.mxu0 %v1513
    %3819 = vmatprep.subr.mxu0 0.0
    %3820 = vmatpush1.msra.mxu0 %v1522
    %3821 = vmatprep.subr.mxu0 0.0
    %3822 = vmatpush1.msra.mxu0 %v1531
    %3823 = vmatprep.subr.mxu0 0.0
    %3824 = vmatpush1.msra.mxu0 %v1540
    %3825 = vmatprep.subr.mxu0 0.0
    %3826 = vmatpush1.msra.mxu0 %v1549
    %3827 = vmatprep.subr.mxu0 0.0
    %3828 = vmatpush1.msra.mxu0 %v1558
    %3829 = vmatprep.subr.mxu0 0.0
    %3830 = vmatpush1.msra.mxu0 %v1567
    %3831 = vmatprep.subr.mxu0 0.0
    %3832 = vmatpush1.msra.mxu0 %v1576
    %3833 = vmatprep.subr.mxu0 0.0
    %3834 = vmatpush1.msra.mxu0 %v1585
    %3835 = vmatprep.subr.mxu0 0.0
    %3836 = vmatpush1.msra.mxu0 %v1594
    %3837 = vmatprep.subr.mxu0 0.0
    %3838 = vmatpush1.msra.mxu0 %v1603
    %3839 = vmatprep.subr.mxu0 0.0
    %3840 = vmatpush1.msra.mxu0 %v1612
    %3841 = vmatprep.subr.mxu0 0.0
    %3842 = vmatpush1.msra.mxu0 %v1621
    %3843 = vmatprep.subr.mxu0 0.0
    %3844 = vmatpush1.msra.mxu0 %v1630
    %3845 = vmatprep.subr.mxu0 0.0
    %3846 = vmatpush1.msra.mxu0 %v1639
    %3847 = vmatprep.subr.mxu0 0.0
    %3848 = vmatpush1.msra.mxu0 %v1648
    %3849 = vmatprep.mubr.f32.mxu0 %v1044
    %3850 = vmatmul.mubr.f32.gmra.mrb[0].mxu0 %v1043
    %v3851 = vpop.f32.mrb[0].mxu0
    %v3852 = vadd.f32 %v3767, %v3851
    %v3853 = vpop.f32.mrb[0].mxu0
    %3854 = vmatprep.mubr.f32.mxu0 %v1052
    %3855 = vmatmul.mubr.f32.gmra.mrb[0].mxu0 %v1051
    %v3856 = vpop.f32.mrb[0].mxu0
    %v3857 = vadd.f32 %v3772, %v3856
    %v3858 = vpop.f32.mrb[0].mxu0
    %3859 = vmatprep.mubr.f32.mxu0 %v1060
    %3860 = vmatmul.mubr.f32.gmra.mrb[0].mxu0 %v1059
    %v3861 = vpop.f32.mrb[0].mxu0
    %v3862 = vadd.f32 %v3777, %v3861
    %v3863 = vpop.f32.mrb[0].mxu0
    %3864 = vmatprep.mubr.f32.mxu0 %v1068
    %3865 = vmatmul.mubr.f32.gmra.mrb[0].mxu0 %v1067
    %v3866 = vpop.f32.mrb[0].mxu0
    %v3867 = vadd.f32 %v3782, %v3866
    %v3868 = vpop.f32.mrb[0].mxu0
    %3869 = vdwg.mxu0
    %3870 = vmatprep.subr.mxu0 0.0
    %3871 = vmatpush1.msra.mxu0 %v1657
    %3872 = vmatprep.subr.mxu0 0.0
    %3873 = vmatpush1.msra.mxu0 %v1666
    %3874 = vmatprep.subr.mxu0 0.0
    %3875 = vmatpush1.msra.mxu0 %v1675
    %3876 = vmatprep.subr.mxu0 0.0
    %3877 = vmatpush1.msra.mxu0 %v1684
    %3878 = vmatprep.subr.mxu0 0.0
    %3879 = vmatpush1.msra.mxu0 %v1693
    %3880 = vmatprep.subr.mxu0 0.0
    %3881 = vmatpush1.msra.mxu0 %v1702
    %3882 = vmatprep.subr.mxu0 0.0
    %3883 = vmatpush1.msra.mxu0 %v1711
    %3884 = vmatprep.subr.mxu0 0.0
    %3885 = vmatpush1.msra.mxu0 %v1720
    %3886 = vmatprep.subr.mxu0 0.0
    %3887 = vmatpush1.msra.mxu0 %v1729
    %3888 = vmatprep.subr.mxu0 0.0
    %3889 = vmatpush1.msra.mxu0 %v1738
    %3890 = vmatprep.subr.mxu0 0.0
    %3891 = vmatpush1.msra.mxu0 %v1747
    %3892 = vmatprep.subr.mxu0 0.0
    %3893 = vmatpush1.msra.mxu0 %v1756
    %3894 = vmatprep.subr.mxu0 0.0
    %3895 = vmatpush1.msra.mxu0 %v1765
    %3896 = vmatprep.subr.mxu0 0.0
    %3897 = vmatpush1.msra.mxu0 %v1774
    %3898 = vmatprep.subr.mxu0 0.0
    %3899 = vmatpush1.msra.mxu0 %v1783
    %3900 = vmatprep.subr.mxu0 0.0
    %3901 = vmatpush1.msra.mxu0 %v1792
    %3902 = vmatprep.subr.mxu0 0.0
    %3903 = vmatpush1.msra.mxu0 %v1801
    %3904 = vmatprep.subr.mxu0 0.0
    %3905 = vmatpush1.msra.mxu0 %v1810
    %3906 = vmatprep.subr.mxu0 0.0
    %3907 = vmatpush1.msra.mxu0 %v1819
    %3908 = vmatprep.subr.mxu0 0.0
    %3909 = vmatpush1.msra.mxu0 %v1828
    %3910 = vmatprep.subr.mxu0 0.0
    %3911 = vmatpush1.msra.mxu0 %v1837
    %3912 = vmatprep.subr.mxu0 0.0
    %3913 = vmatpush1.msra.mxu0 %v1846
    %3914 = vmatprep.subr.mxu0 0.0
    %3915 = vmatpush1.msra.mxu0 %v1855
    %3916 = vmatprep.subr.mxu0 0.0
    %3917 = vmatpush1.msra.mxu0 %v1864
    %3918 = vmatprep.subr.mxu0 0.0
    %3919 = vmatpush1.msra.mxu0 %v1873
    %3920 = vmatprep.subr.mxu0 0.0
    %3921 = vmatpush1.msra.mxu0 %v1882
    %3922 = vmatprep.subr.mxu0 0.0
    %3923 = vmatpush1.msra.mxu0 %v1891
    %3924 = vmatprep.subr.mxu0 0.0
    %3925 = vmatpush1.msra.mxu0 %v1900
    %3926 = vmatprep.subr.mxu0 0.0
    %3927 = vmatpush1.msra.mxu0 %v1909
    %3928 = vmatprep.subr.mxu0 0.0
    %3929 = vmatpush1.msra.mxu0 %v1918
    %3930 = vmatprep.subr.mxu0 0.0
    %3931 = vmatpush1.msra.mxu0 %v1927
    %3932 = vmatprep.subr.mxu0 0.0
    %3933 = vmatpush1.msra.mxu0 %v1936
    %3934 = vmatprep.mubr.f32.mxu0 %v1046
    %3935 = vmatmul.mubr.f32.gmra.mrb[0].mxu0 %v1045
    %v3936 = vpop.f32.mrb[0].mxu0
    %v3937 = vadd.f32 %v3852, %v3936
    %v3938 = vpop.f32.mrb[0].mxu0
    %3939 = vmatprep.mubr.f32.mxu0 %v1054
    %3940 = vmatmul.mubr.f32.gmra.mrb[0].mxu0 %v1053
    %v3941 = vpop.f32.mrb[0].mxu0
    %v3942 = vadd.f32 %v3857, %v3941
    %v3943 = vpop.f32.mrb[0].mxu0
    %3944 = vmatprep.mubr.f32.mxu0 %v1062
    %3945 = vmatmul.mubr.f32.gmra.mrb[0].mxu0 %v1061
    %v3946 = vpop.f32.mrb[0].mxu0
    %v3947 = vadd.f32 %v3862, %v3946
    %v3948 = vpop.f32.mrb[0].mxu0
    %3949 = vmatprep.mubr.f32.mxu0 %v1070
    %3950 = vmatmul.mubr.f32.gmra.mrb[0].mxu0 %v1069
    %v3951 = vpop.f32.mrb[0].mxu0
    %v3952 = vadd.f32 %v3867, %v3951
    %v3953 = vpop.f32.mrb[0].mxu0
    %3954 = vdwg.mxu0
    %3955 = vmatprep.subr.mxu0 0.0
    %3956 = vmatpush1.msra.mxu0 %v1945
    %3957 = vmatprep.subr.mxu0 0.0
    %3958 = vmatpush1.msra.mxu0 %v1954
    %3959 = vmatprep.subr.mxu0 0.0
    %3960 = vmatpush1.msra.mxu0 %v1963
    %3961 = vmatprep.subr.mxu0 0.0
    %3962 = vmatpush1.msra.mxu0 %v1972
    %3963 = vmatprep.subr.mxu0 0.0
    %3964 = vmatpush1.msra.mxu0 %v1981
    %3965 = vmatprep.subr.mxu0 0.0
    %3966 = vmatpush1.msra.mxu0 %v1990
    %3967 = vmatprep.subr.mxu0 0.0
    %3968 = vmatpush1.msra.mxu0 %v1999
    %3969 = vmatprep.subr.mxu0 0.0
    %3970 = vmatpush1.msra.mxu0 %v2008
    %3971 = vmatprep.subr.mxu0 0.0
    %3972 = vmatpush1.msra.mxu0 %v2017
    %3973 = vmatprep.subr.mxu0 0.0
    %3974 = vmatpush1.msra.mxu0 %v2026
    %3975 = vmatprep.subr.mxu0 0.0
    %3976 = vmatpush1.msra.mxu0 %v2035
    %3977 = vmatprep.subr.mxu0 0.0
    %3978 = vmatpush1.msra.mxu0 %v2044
    %3979 = vmatprep.subr.mxu0 0.0
    %3980 = vmatpush1.msra.mxu0 %v2053
    %3981 = vmatprep.subr.mxu0 0.0
    %3982 = vmatpush1.msra.mxu0 %v2062
    %3983 = vmatprep.subr.mxu0 0.0
    %3984 = vmatpush1.msra.mxu0 %v2071
    %3985 = vmatprep.subr.mxu0 0.0
    %3986 = vmatpush1.msra.mxu0 %v2080
    %3987 = vmatprep.subr.mxu0 0.0
    %3988 = vmatpush1.msra.mxu0 %v2089
    %3989 = vmatprep.subr.mxu0 0.0
    %3990 = vmatpush1.msra.mxu0 %v2098
    %3991 = vmatprep.subr.mxu0 0.0
    %3992 = vmatpush1.msra.mxu0 %v2107
    %3993 = vmatprep.subr.mxu0 0.0
    %3994 = vmatpush1.msra.mxu0 %v2116
    %3995 = vmatprep.subr.mxu0 0.0
    %3996 = vmatpush1.msra.mxu0 %v2125
    %3997 = vmatprep.subr.mxu0 0.0
    %3998 = vmatpush1.msra.mxu0 %v2134
    %3999 = vmatprep.subr.mxu0 0.0
    %4000 = vmatpush1.msra.mxu0 %v2143
    %4001 = vmatprep.subr.mxu0 0.0
    %4002 = vmatpush1.msra.mxu0 %v2152
    %4003 = vmatprep.subr.mxu0 0.0
    %4004 = vmatpush1.msra.mxu0 %v2161
    %4005 = vmatprep.subr.mxu0 0.0
    %4006 = vmatpush1.msra.mxu0 %v2170
    %4007 = vmatprep.subr.mxu0 0.0
    %4008 = vmatpush1.msra.mxu0 %v2179
    %4009 = vmatprep.subr.mxu0 0.0
    %4010 = vmatpush1.msra.mxu0 %v2188
    %4011 = vmatprep.subr.mxu0 0.0
    %4012 = vmatpush1.msra.mxu0 %v2197
    %4013 = vmatprep.subr.mxu0 0.0
    %4014 = vmatpush1.msra.mxu0 %v2206
    %4015 = vmatprep.subr.mxu0 0.0
    %4016 = vmatpush1.msra.mxu0 %v2215
    %4017 = vmatprep.subr.mxu0 0.0
    %4018 = vmatpush1.msra.mxu0 %v2224
    %4019 = vmatprep.mubr.f32.mxu0 %v1048
    %4020 = vmatmul.mubr.f32.gmra.mrb[0].mxu0 %v1047
    %v4021 = vpop.f32.mrb[0].mxu0
    %v4022 = vadd.f32 %v3937, %v4021
    %v4023 = vpop.f32.mrb[0].mxu0
    %4024 = vmatprep.mubr.f32.mxu0 %v1056
    %4025 = vmatmul.mubr.f32.gmra.mrb[0].mxu0 %v1055
    %v4026 = vpop.f32.mrb[0].mxu0
    %v4027 = vadd.f32 %v3942, %v4026
    %v4028 = vpop.f32.mrb[0].mxu0
    %4029 = vmatprep.mubr.f32.mxu0 %v1064
    %4030 = vmatmul.mubr.f32.gmra.mrb[0].mxu0 %v1063
    %v4031 = vpop.f32.mrb[0].mxu0
    %v4032 = vadd.f32 %v3947, %v4031
    %v4033 = vpop.f32.mrb[0].mxu0
    %4034 = vmatprep.mubr.f32.mxu0 %v1072
    %4035 = vmatmul.mubr.f32.gmra.mrb[0].mxu0 %v1071
    %v4036 = vpop.f32.mrb[0].mxu0
    %v4037 = vadd.f32 %v3952, %v4036
    %v4038 = vpop.f32.mrb[0].mxu0
    %4039 = vdwg.mxu0
    %vm4040 = vcmp.gt.f32.partialorder %v2610, 0.0
    %vm4041 = vcmp.gt.f32.partialorder %v2612, 0.0
    %vm4042 = vcmp.gt.f32.partialorder %v2966, 0.0
    %vm4043 = vcmp.gt.f32.partialorder %v2968, 0.0
    %vm4044 = vcmp.gt.f32.partialorder %v3322, 0.0
    %vm4045 = vcmp.gt.f32.partialorder %v3324, 0.0
    %vm4046 = vcmp.gt.f32.partialorder %v3678, 0.0
    %vm4047 = vcmp.gt.f32.partialorder %v3680, 0.0
    %vm4048 = vcmp.gt.f32.partialorder %v4022, 0.0
    %vm4049 = vcmp.gt.f32.partialorder %v2616, 0.0
    %vm4050 = vcmp.gt.f32.partialorder %v2618, 0.0
    %vm4051 = vcmp.gt.f32.partialorder %v2972, 0.0
    %vm4052 = vcmp.gt.f32.partialorder %v2974, 0.0
    %vm4053 = vcmp.gt.f32.partialorder %v3328, 0.0
    %vm4054 = vcmp.gt.f32.partialorder %v3330, 0.0
    %vm4055 = vcmp.gt.f32.partialorder %v3684, 0.0
    %vm4056 = vcmp.gt.f32.partialorder %v3686, 0.0
    %vm4057 = vcmp.gt.f32.partialorder %v4027, 0.0
    %vm4058 = vcmp.gt.f32.partialorder %v2622, 0.0
    %vm4059 = vcmp.gt.f32.partialorder %v2624, 0.0
    %vm4060 = vcmp.gt.f32.partialorder %v2978, 0.0
    %vm4061 = vcmp.gt.f32.partialorder %v2980, 0.0
    %vm4062 = vcmp.gt.f32.partialorder %v3334, 0.0
    %vm4063 = vcmp.gt.f32.partialorder %v3336, 0.0
    %vm4064 = vcmp.gt.f32.partialorder %v3690, 0.0
    %vm4065 = vcmp.gt.f32.partialorder %v3692, 0.0
    %vm4066 = vcmp.gt.f32.partialorder %v4032, 0.0
    %vm4067 = vcmp.gt.f32.partialorder %v2628, 0.0
    %vm4068 = vcmp.gt.f32.partialorder %v2630, 0.0
    %vm4069 = vcmp.gt.f32.partialorder %v2984, 0.0
    %vm4070 = vcmp.gt.f32.partialorder %v2986, 0.0
    %vm4071 = vcmp.gt.f32.partialorder %v3340, 0.0
    %vm4072 = vcmp.gt.f32.partialorder %v3342, 0.0
    %vm4073 = vcmp.gt.f32.partialorder %v3696, 0.0
    %vm4074 = vcmp.gt.f32.partialorder %v3698, 0.0
    %vm4075 = vcmp.gt.f32.partialorder %v4037, 0.0
    %v4076 = vmin.f32 %v2610, 0.0
    %v4077 = vmin.f32 %v2612, 0.0
    %v4078 = vmin.f32 %v2966, 0.0
    %v4079 = vmin.f32 %v2968, 0.0
    %v4080 = vmin.f32 %v3322, 0.0
    %v4081 = vmin.f32 %v3324, 0.0
    %v4082 = vmin.f32 %v3678, 0.0
    %v4083 = vmin.f32 %v3680, 0.0
    %v4084 = vmin.f32 %v4022, 0.0
    %v4085 = vmin.f32 %v2616, 0.0
    %v4086 = vmin.f32 %v2618, 0.0
    %v4087 = vmin.f32 %v2972, 0.0
    %v4088 = vmin.f32 %v2974, 0.0
    %v4089 = vmin.f32 %v3328, 0.0
    %v4090 = vmin.f32 %v3330, 0.0
    %v4091 = vmin.f32 %v3684, 0.0
    %v4092 = vmin.f32 %v3686, 0.0
    %v4093 = vmin.f32 %v4027, 0.0
    %v4094 = vmin.f32 %v2622, 0.0
    %v4095 = vmin.f32 %v2624, 0.0
    %v4096 = vmin.f32 %v2978, 0.0
    %v4097 = vmin.f32 %v2980, 0.0
    %v4098 = vmin.f32 %v3334, 0.0
    %v4099 = vmin.f32 %v3336, 0.0
    %v4100 = vmin.f32 %v3690, 0.0
    %v4101 = vmin.f32 %v3692, 0.0
    %v4102 = vmin.f32 %v4032, 0.0
    %v4103 = vmin.f32 %v2628, 0.0
    %v4104 = vmin.f32 %v2630, 0.0
    %v4105 = vmin.f32 %v2984, 0.0
    %v4106 = vmin.f32 %v2986, 0.0
    %v4107 = vmin.f32 %v3340, 0.0
    %v4108 = vmin.f32 %v3342, 0.0
    %v4109 = vmin.f32 %v3696, 0.0
    %v4110 = vmin.f32 %v3698, 0.0
    %v4111 = vmin.f32 %v4037, 0.0
    %v4112 = vmul.f32 %v4076, 1.442695
    %v4113 = vpow.pop %v4112
    %v4114 = vmul.f32 %v4077, 1.442695
    %v4115 = vpow.pop %v4114
    %v4116 = vmul.f32 %v4078, 1.442695
    %v4117 = vpow.pop %v4116
    %v4118 = vmul.f32 %v4079, 1.442695
    %v4119 = vpow.pop %v4118
    %v4120 = vmul.f32 %v4080, 1.442695
    %v4121 = vpow.pop %v4120
    %v4122 = vmul.f32 %v4081, 1.442695
    %v4123 = vpow.pop %v4122
    %v4124 = vmul.f32 %v4082, 1.442695
    %v4125 = vpow.pop %v4124
    %v4126 = vmul.f32 %v4083, 1.442695
    %v4127 = vpow.pop %v4126
    %v4128 = vmul.f32 %v4084, 1.442695
    %v4129 = vpow.pop %v4128
    %v4130 = vmul.f32 %v4085, 1.442695
    %v4131 = vpow.pop %v4130
    %v4132 = vmul.f32 %v4086, 1.442695
    %v4133 = vpow.pop %v4132
    %v4134 = vmul.f32 %v4087, 1.442695
    %v4135 = vpow.pop %v4134
    %v4136 = vmul.f32 %v4088, 1.442695
    %v4137 = vpow.pop %v4136
    %v4138 = vmul.f32 %v4089, 1.442695
    %v4139 = vpow.pop %v4138
    %v4140 = vmul.f32 %v4090, 1.442695
    %v4141 = vpow.pop %v4140
    %v4142 = vmul.f32 %v4091, 1.442695
    %v4143 = vpow.pop %v4142
    %v4144 = vmul.f32 %v4092, 1.442695
    %v4145 = vpow.pop %v4144
    %v4146 = vmul.f32 %v4093, 1.442695
    %v4147 = vpow.pop %v4146
    %v4148 = vmul.f32 %v4094, 1.442695
    %v4149 = vpow.pop %v4148
    %v4150 = vmul.f32 %v4095, 1.442695
    %v4151 = vpow.pop %v4150
    %v4152 = vmul.f32 %v4096, 1.442695
    %v4153 = vpow.pop %v4152
    %v4154 = vmul.f32 %v4097, 1.442695
    %v4155 = vpow.pop %v4154
    %v4156 = vmul.f32 %v4098, 1.442695
    %v4157 = vpow.pop %v4156
    %v4158 = vmul.f32 %v4099, 1.442695
    %v4159 = vpow.pop %v4158
    %v4160 = vmul.f32 %v4100, 1.442695
    %v4161 = vpow.pop %v4160
    %v4162 = vmul.f32 %v4101, 1.442695
    %v4163 = vpow.pop %v4162
    %v4164 = vmul.f32 %v4102, 1.442695
    %v4165 = vpow.pop %v4164
    %v4166 = vmul.f32 %v4103, 1.442695
    %v4167 = vpow.pop %v4166
    %v4168 = vmul.f32 %v4104, 1.442695
    %v4169 = vpow.pop %v4168
    %v4170 = vmul.f32 %v4105, 1.442695
    %v4171 = vpow.pop %v4170
    %v4172 = vmul.f32 %v4106, 1.442695
    %v4173 = vpow.pop %v4172
    %v4174 = vmul.f32 %v4107, 1.442695
    %v4175 = vpow.pop %v4174
    %v4176 = vmul.f32 %v4108, 1.442695
    %v4177 = vpow.pop %v4176
    %v4178 = vmul.f32 %v4109, 1.442695
    %v4179 = vpow.pop %v4178
    %v4180 = vmul.f32 %v4110, 1.442695
    %v4181 = vpow.pop %v4180
    %v4182 = vmul.f32 %v4111, 1.442695
    %v4183 = vpow.pop %v4182
    %v4184 = vsub.f32 %v4113, 1.0
    %v4185 = vsub.f32 %v4115, 1.0
    %v4186 = vsub.f32 %v4117, 1.0
    %v4187 = vsub.f32 %v4119, 1.0
    %v4188 = vsub.f32 %v4121, 1.0
    %v4189 = vsub.f32 %v4123, 1.0
    %v4190 = vsub.f32 %v4125, 1.0
    %v4191 = vsub.f32 %v4127, 1.0
    %v4192 = vsub.f32 %v4129, 1.0
    %v4193 = vsub.f32 %v4131, 1.0
    %v4194 = vsub.f32 %v4133, 1.0
    %v4195 = vsub.f32 %v4135, 1.0
    %v4196 = vsub.f32 %v4137, 1.0
    %v4197 = vsub.f32 %v4139, 1.0
    %v4198 = vsub.f32 %v4141, 1.0
    %v4199 = vsub.f32 %v4143, 1.0
    %v4200 = vsub.f32 %v4145, 1.0
    %v4201 = vsub.f32 %v4147, 1.0
    %v4202 = vsub.f32 %v4149, 1.0
    %v4203 = vsub.f32 %v4151, 1.0
    %v4204 = vsub.f32 %v4153, 1.0
    %v4205 = vsub.f32 %v4155, 1.0
    %v4206 = vsub.f32 %v4157, 1.0
    %v4207 = vsub.f32 %v4159, 1.0
    %v4208 = vsub.f32 %v4161, 1.0
    %v4209 = vsub.f32 %v4163, 1.0
    %v4210 = vsub.f32 %v4165, 1.0
    %v4211 = vsub.f32 %v4167, 1.0
    %v4212 = vsub.f32 %v4169, 1.0
    %v4213 = vsub.f32 %v4171, 1.0
    %v4214 = vsub.f32 %v4173, 1.0
    %v4215 = vsub.f32 %v4175, 1.0
    %v4216 = vsub.f32 %v4177, 1.0
    %v4217 = vsub.f32 %v4179, 1.0
    %v4218 = vsub.f32 %v4181, 1.0
    %v4219 = vsub.f32 %v4183, 1.0
    %v4220 = vsel %vm4040, %v2610, %v4184
    %v4221 = vsel %vm4041, %v2612, %v4185
    %v4222 = vsel %vm4042, %v2966, %v4186
    %v4223 = vsel %vm4043, %v2968, %v4187
    %v4224 = vsel %vm4044, %v3322, %v4188
    %v4225 = vsel %vm4045, %v3324, %v4189
    %v4226 = vsel %vm4046, %v3678, %v4190
    %v4227 = vsel %vm4047, %v3680, %v4191
    %v4228 = vsel %vm4048, %v4022, %v4192
    %v4229 = vsel %vm4049, %v2616, %v4193
    %v4230 = vsel %vm4050, %v2618, %v4194
    %v4231 = vsel %vm4051, %v2972, %v4195
    %v4232 = vsel %vm4052, %v2974, %v4196
    %v4233 = vsel %vm4053, %v3328, %v4197
    %v4234 = vsel %vm4054, %v3330, %v4198
    %v4235 = vsel %vm4055, %v3684, %v4199
    %v4236 = vsel %vm4056, %v3686, %v4200
    %v4237 = vsel %vm4057, %v4027, %v4201
    %v4238 = vsel %vm4058, %v2622, %v4202
    %v4239 = vsel %vm4059, %v2624, %v4203
    %v4240 = vsel %vm4060, %v2978, %v4204
    %v4241 = vsel %vm4061, %v2980, %v4205
    %v4242 = vsel %vm4062, %v3334, %v4206
    %v4243 = vsel %vm4063, %v3336, %v4207
    %v4244 = vsel %vm4064, %v3690, %v4208
    %v4245 = vsel %vm4065, %v3692, %v4209
    %v4246 = vsel %vm4066, %v4032, %v4210
    %v4247 = vsel %vm4067, %v2628, %v4211
    %v4248 = vsel %vm4068, %v2630, %v4212
    %v4249 = vsel %vm4069, %v2984, %v4213
    %v4250 = vsel %vm4070, %v2986, %v4214
    %v4251 = vsel %vm4071, %v3340, %v4215
    %v4252 = vsel %vm4072, %v3342, %v4216
    %v4253 = vsel %vm4073, %v3696, %v4217
    %v4254 = vsel %vm4074, %v3698, %v4218
    %v4255 = vsel %vm4075, %v4037, %v4219
    %v4256 = vld [vmem:[%s4] sm:$0xff]
    %v4257 = vld [vmem:[%s4 + $0x8] sm:$0xff]
    %v4258 = vld [vmem:[%s4 + $0x10] sm:$0xff]
    %v4259 = vld [vmem:[%s4 + $0x18] sm:$0xff]
    %v4260 = vld [vmem:[%s4 + $0x20] sm:$0xff]
    %v4261 = vld [vmem:[%s4 + $0x28] sm:$0xff]
    %v4262 = vld [vmem:[%s4 + $0x30] sm:$0xff]
    %v4263 = vld [vmem:[%s4 + $0x38] sm:$0xff]
    %v4264 = vld [vmem:[%s4 + $0x40] sm:$0xff]
    %v4265 = vld [vmem:[%s4 + $0x48] sm:$0xff]
    %v4266 = vld [vmem:[%s4 + $0x50] sm:$0xff]
    %v4267 = vld [vmem:[%s4 + $0x58] sm:$0xff]
    %v4268 = vld [vmem:[%s4 + $0x60] sm:$0xff]
    %v4269 = vld [vmem:[%s4 + $0x68] sm:$0xff]
    %v4270 = vld [vmem:[%s4 + $0x70] sm:$0xff]
    %v4271 = vld [vmem:[%s4 + $0x78] sm:$0xff]
    %v4272 = vld [vmem:[%s4 + $0x80] sm:$0xff]
    %v4273 = vld [vmem:[%s4 + $0x88] sm:$0xff]
    %v4274 = vld [vmem:[%s4 + $0x90] sm:$0xff]
    %v4275 = vld [vmem:[%s4 + $0x98] sm:$0xff]
    %v4276 = vld [vmem:[%s4 + $0xa0] sm:$0xff]
    %v4277 = vld [vmem:[%s4 + $0xa8] sm:$0xff]
    %v4278 = vld [vmem:[%s4 + $0xb0] sm:$0xff]
    %v4279 = vld [vmem:[%s4 + $0xb8] sm:$0xff]
    %v4280 = vld [vmem:[%s4 + $0xc0] sm:$0xff]
    %v4281 = vld [vmem:[%s4 + $0xc8] sm:$0xff]
    %v4282 = vld [vmem:[%s4 + $0xd0] sm:$0xff]
    %v4283 = vld [vmem:[%s4 + $0xd8] sm:$0xff]
    %v4284 = vld [vmem:[%s4 + $0xe0] sm:$0xff]
    %v4285 = vld [vmem:[%s4 + $0xe8] sm:$0xff]
    %v4286 = vld [vmem:[%s4 + $0xf0] sm:$0xff]
    %v4287 = vld [vmem:[%s4 + $0xf8] sm:$0xff]
    %v4288 = vld [vmem:[%s4 + $0x100] sm:$0xff]
    %v4289 = vld [vmem:[%s4 + $0x108] sm:$0xff]
    %v4290 = vld [vmem:[%s4 + $0x110] sm:$0xff]
    %v4291 = vld [vmem:[%s4 + $0x118] sm:$0xff]
    %v4292 = vld [vmem:[%s4 + $0x120] sm:$0xff]
    %v4293 = vld [vmem:[%s4 + $0x128] sm:$0xff]
    %v4294 = vld [vmem:[%s4 + $0x130] sm:$0xff]
    %v4295 = vld [vmem:[%s4 + $0x138] sm:$0xff]
    %v4296 = vld [vmem:[%s4 + $0x140] sm:$0xff]
    %v4297 = vld [vmem:[%s4 + $0x148] sm:$0xff]
    %v4298 = vld [vmem:[%s4 + $0x150] sm:$0xff]
    %v4299 = vld [vmem:[%s4 + $0x158] sm:$0xff]
    %v4300 = vld [vmem:[%s4 + $0x160] sm:$0xff]
    %v4301 = vld [vmem:[%s4 + $0x168] sm:$0xff]
    %v4302 = vld [vmem:[%s4 + $0x170] sm:$0xff]
    %v4303 = vld [vmem:[%s4 + $0x178] sm:$0xff]
    %v4304 = vld [vmem:[%s4 + $0x180] sm:$0xff]
    %v4305 = vld [vmem:[%s4 + $0x188] sm:$0xff]
    %v4306 = vld [vmem:[%s4 + $0x190] sm:$0xff]
    %v4307 = vld [vmem:[%s4 + $0x198] sm:$0xff]
    %v4308 = vld [vmem:[%s4 + $0x1a0] sm:$0xff]
    %v4309 = vld [vmem:[%s4 + $0x1a8] sm:$0xff]
    %v4310 = vld [vmem:[%s4 + $0x1b0] sm:$0xff]
    %v4311 = vld [vmem:[%s4 + $0x1b8] sm:$0xff]
    %v4312 = vld [vmem:[%s4 + $0x1c0] sm:$0xff]
    %v4313 = vld [vmem:[%s4 + $0x1c8] sm:$0xff]
    %v4314 = vld [vmem:[%s4 + $0x1d0] sm:$0xff]
    %v4315 = vld [vmem:[%s4 + $0x1d8] sm:$0xff]
    %v4316 = vld [vmem:[%s4 + $0x1e0] sm:$0xff]
    %v4317 = vld [vmem:[%s4 + $0x1e8] sm:$0xff]
    %v4318 = vld [vmem:[%s4 + $0x1f0] sm:$0xff]
    %v4319 = vld [vmem:[%s4 + $0x1f8] sm:$0xff]
    %v4320 = vld [vmem:[%s4 + $0x200] sm:$0xff]
    %v4321 = vld [vmem:[%s4 + $0x208] sm:$0xff]
    %v4322 = vld [vmem:[%s4 + $0x210] sm:$0xff]
    %v4323 = vld [vmem:[%s4 + $0x218] sm:$0xff]
    %v4324 = vld [vmem:[%s4 + $0x220] sm:$0xff]
    %v4325 = vld [vmem:[%s4 + $0x228] sm:$0xff]
    %v4326 = vld [vmem:[%s4 + $0x230] sm:$0xff]
    %v4327 = vld [vmem:[%s4 + $0x238] sm:$0xff]
    %v4328 = vld [vmem:[%s4 + $0x240] sm:$0xff]
    %v4329 = vld [vmem:[%s4 + $0x248] sm:$0xff]
    %v4330 = vld [vmem:[%s4 + $0x250] sm:$0xff]
    %v4331 = vld [vmem:[%s4 + $0x258] sm:$0xff]
    %v4332 = vld [vmem:[%s4 + $0x260] sm:$0xff]
    %v4333 = vld [vmem:[%s4 + $0x268] sm:$0xff]
    %v4334 = vld [vmem:[%s4 + $0x270] sm:$0xff]
    %v4335 = vld [vmem:[%s4 + $0x278] sm:$0xff]
    %v4336 = vld [vmem:[%s4 + $0x280] sm:$0xff]
    %v4337 = vld [vmem:[%s4 + $0x288] sm:$0xff]
    %v4338 = vld [vmem:[%s4 + $0x290] sm:$0xff]
    %v4339 = vld [vmem:[%s4 + $0x298] sm:$0xff]
    %v4340 = vld [vmem:[%s4 + $0x2a0] sm:$0xff]
    %v4341 = vld [vmem:[%s4 + $0x2a8] sm:$0xff]
    %v4342 = vld [vmem:[%s4 + $0x2b0] sm:$0xff]
    %v4343 = vld [vmem:[%s4 + $0x2b8] sm:$0xff]
    %v4344 = vld [vmem:[%s4 + $0x2c0] sm:$0xff]
    %v4345 = vld [vmem:[%s4 + $0x2c8] sm:$0xff]
    %v4346 = vld [vmem:[%s4 + $0x2d0] sm:$0xff]
    %v4347 = vld [vmem:[%s4 + $0x2d8] sm:$0xff]
    %v4348 = vld [vmem:[%s4 + $0x2e0] sm:$0xff]
    %v4349 = vld [vmem:[%s4 + $0x2e8] sm:$0xff]
    %v4350 = vld [vmem:[%s4 + $0x2f0] sm:$0xff]
    %v4351 = vld [vmem:[%s4 + $0x2f8] sm:$0xff]
    %v4352 = vld [vmem:[%s4 + $0x300] sm:$0xff]
    %v4353 = vld [vmem:[%s4 + $0x308] sm:$0xff]
    %v4354 = vld [vmem:[%s4 + $0x310] sm:$0xff]
    %v4355 = vld [vmem:[%s4 + $0x318] sm:$0xff]
    %v4356 = vld [vmem:[%s4 + $0x320] sm:$0xff]
    %v4357 = vld [vmem:[%s4 + $0x328] sm:$0xff]
    %v4358 = vld [vmem:[%s4 + $0x330] sm:$0xff]
    %v4359 = vld [vmem:[%s4 + $0x338] sm:$0xff]
    %v4360 = vld [vmem:[%s4 + $0x340] sm:$0xff]
    %v4361 = vld [vmem:[%s4 + $0x348] sm:$0xff]
    %v4362 = vld [vmem:[%s4 + $0x350] sm:$0xff]
    %v4363 = vld [vmem:[%s4 + $0x358] sm:$0xff]
    %v4364 = vld [vmem:[%s4 + $0x360] sm:$0xff]
    %v4365 = vld [vmem:[%s4 + $0x368] sm:$0xff]
    %v4366 = vld [vmem:[%s4 + $0x370] sm:$0xff]
    %v4367 = vld [vmem:[%s4 + $0x378] sm:$0xff]
    %v4368 = vld [vmem:[%s4 + $0x380] sm:$0xff]
    %v4369 = vld [vmem:[%s4 + $0x388] sm:$0xff]
    %v4370 = vld [vmem:[%s4 + $0x390] sm:$0xff]
    %v4371 = vld [vmem:[%s4 + $0x398] sm:$0xff]
    %v4372 = vld [vmem:[%s4 + $0x3a0] sm:$0xff]
    %v4373 = vld [vmem:[%s4 + $0x3a8] sm:$0xff]
    %v4374 = vld [vmem:[%s4 + $0x3b0] sm:$0xff]
    %v4375 = vld [vmem:[%s4 + $0x3b8] sm:$0xff]
    %v4376 = vld [vmem:[%s4 + $0x3c0] sm:$0xff]
    %v4377 = vld [vmem:[%s4 + $0x3c8] sm:$0xff]
    %v4378 = vld [vmem:[%s4 + $0x3d0] sm:$0xff]
    %v4379 = vld [vmem:[%s4 + $0x3d8] sm:$0xff]
    %v4380 = vld [vmem:[%s4 + $0x3e0] sm:$0xff]
    %v4381 = vld [vmem:[%s4 + $0x3e8] sm:$0xff]
    %v4382 = vld [vmem:[%s4 + $0x3f0] sm:$0xff]
    %v4383 = vld [vmem:[%s4 + $0x3f8] sm:$0xff]
    %v4384 = vld [vmem:[%s4 + $0x400] sm:$0xff]
    %v4385 = vld [vmem:[%s4 + $0x408] sm:$0xff]
    %v4386 = vld [vmem:[%s4 + $0x410] sm:$0xff]
    %v4387 = vld [vmem:[%s4 + $0x418] sm:$0xff]
    %v4388 = vld [vmem:[%s4 + $0x420] sm:$0xff]
    %v4389 = vld [vmem:[%s4 + $0x428] sm:$0xff]
    %v4390 = vld [vmem:[%s4 + $0x430] sm:$0xff]
    %v4391 = vld [vmem:[%s4 + $0x438] sm:$0xff]
    %v4392 = vld [vmem:[%s4 + $0x440] sm:$0xff]
    %v4393 = vld [vmem:[%s4 + $0x448] sm:$0xff]
    %v4394 = vld [vmem:[%s4 + $0x450] sm:$0xff]
    %v4395 = vld [vmem:[%s4 + $0x458] sm:$0xff]
    %v4396 = vld [vmem:[%s4 + $0x460] sm:$0xff]
    %v4397 = vld [vmem:[%s4 + $0x468] sm:$0xff]
    %v4398 = vld [vmem:[%s4 + $0x470] sm:$0xff]
    %v4399 = vld [vmem:[%s4 + $0x478] sm:$0xff]
    %v4400 = vld [vmem:[%s4 + $0x480] sm:$0xff]
    %v4401 = vld [vmem:[%s4 + $0x488] sm:$0xff]
    %v4402 = vld [vmem:[%s4 + $0x490] sm:$0xff]
    %v4403 = vld [vmem:[%s4 + $0x498] sm:$0xff]
    %v4404 = vld [vmem:[%s4 + $0x4a0] sm:$0xff]
    %v4405 = vld [vmem:[%s4 + $0x4a8] sm:$0xff]
    %v4406 = vld [vmem:[%s4 + $0x4b0] sm:$0xff]
    %v4407 = vld [vmem:[%s4 + $0x4b8] sm:$0xff]
    %v4408 = vld [vmem:[%s4 + $0x4c0] sm:$0xff]
    %v4409 = vld [vmem:[%s4 + $0x4c8] sm:$0xff]
    %v4410 = vld [vmem:[%s4 + $0x4d0] sm:$0xff]
    %v4411 = vld [vmem:[%s4 + $0x4d8] sm:$0xff]
    %v4412 = vld [vmem:[%s4 + $0x4e0] sm:$0xff]
    %v4413 = vld [vmem:[%s4 + $0x4e8] sm:$0xff]
    %v4414 = vld [vmem:[%s4 + $0x4f0] sm:$0xff]
    %v4415 = vld [vmem:[%s4 + $0x4f8] sm:$0xff]
    %v4416 = vld [vmem:[%s4 + $0x500] sm:$0xff]
    %v4417 = vld [vmem:[%s4 + $0x508] sm:$0xff]
    %v4418 = vld [vmem:[%s4 + $0x510] sm:$0xff]
    %v4419 = vld [vmem:[%s4 + $0x518] sm:$0xff]
    %v4420 = vld [vmem:[%s4 + $0x520] sm:$0xff]
    %v4421 = vld [vmem:[%s4 + $0x528] sm:$0xff]
    %v4422 = vld [vmem:[%s4 + $0x530] sm:$0xff]
    %v4423 = vld [vmem:[%s4 + $0x538] sm:$0xff]
    %v4424 = vld [vmem:[%s4 + $0x540] sm:$0xff]
    %v4425 = vld [vmem:[%s4 + $0x548] sm:$0xff]
    %v4426 = vld [vmem:[%s4 + $0x550] sm:$0xff]
    %v4427 = vld [vmem:[%s4 + $0x558] sm:$0xff]
    %v4428 = vld [vmem:[%s4 + $0x560] sm:$0xff]
    %v4429 = vld [vmem:[%s4 + $0x568] sm:$0xff]
    %v4430 = vld [vmem:[%s4 + $0x570] sm:$0xff]
    %v4431 = vld [vmem:[%s4 + $0x578] sm:$0xff]
    %v4432 = vld [vmem:[%s4 + $0x580] sm:$0xff]
    %v4433 = vld [vmem:[%s4 + $0x588] sm:$0xff]
    %v4434 = vld [vmem:[%s4 + $0x590] sm:$0xff]
    %v4435 = vld [vmem:[%s4 + $0x598] sm:$0xff]
    %v4436 = vld [vmem:[%s4 + $0x5a0] sm:$0xff]
    %v4437 = vld [vmem:[%s4 + $0x5a8] sm:$0xff]
    %v4438 = vld [vmem:[%s4 + $0x5b0] sm:$0xff]
    %v4439 = vld [vmem:[%s4 + $0x5b8] sm:$0xff]
    %v4440 = vld [vmem:[%s4 + $0x5c0] sm:$0xff]
    %v4441 = vld [vmem:[%s4 + $0x5c8] sm:$0xff]
    %v4442 = vld [vmem:[%s4 + $0x5d0] sm:$0xff]
    %v4443 = vld [vmem:[%s4 + $0x5d8] sm:$0xff]
    %v4444 = vld [vmem:[%s4 + $0x5e0] sm:$0xff]
    %v4445 = vld [vmem:[%s4 + $0x5e8] sm:$0xff]
    %v4446 = vld [vmem:[%s4 + $0x5f0] sm:$0xff]
    %v4447 = vld [vmem:[%s4 + $0x5f8] sm:$0xff]
    %v4448 = vld [vmem:[%s4 + $0x600] sm:$0xff]
    %v4449 = vld [vmem:[%s4 + $0x608] sm:$0xff]
    %v4450 = vld [vmem:[%s4 + $0x610] sm:$0xff]
    %v4451 = vld [vmem:[%s4 + $0x618] sm:$0xff]
    %v4452 = vld [vmem:[%s4 + $0x620] sm:$0xff]
    %v4453 = vld [vmem:[%s4 + $0x628] sm:$0xff]
    %v4454 = vld [vmem:[%s4 + $0x630] sm:$0xff]
    %v4455 = vld [vmem:[%s4 + $0x638] sm:$0xff]
    %v4456 = vld [vmem:[%s4 + $0x640] sm:$0xff]
    %v4457 = vld [vmem:[%s4 + $0x648] sm:$0xff]
    %v4458 = vld [vmem:[%s4 + $0x650] sm:$0xff]
    %v4459 = vld [vmem:[%s4 + $0x658] sm:$0xff]
    %v4460 = vld [vmem:[%s4 + $0x660] sm:$0xff]
    %v4461 = vld [vmem:[%s4 + $0x668] sm:$0xff]
    %v4462 = vld [vmem:[%s4 + $0x670] sm:$0xff]
    %v4463 = vld [vmem:[%s4 + $0x678] sm:$0xff]
    %v4464 = vld [vmem:[%s4 + $0x680] sm:$0xff]
    %v4465 = vld [vmem:[%s4 + $0x688] sm:$0xff]
    %v4466 = vld [vmem:[%s4 + $0x690] sm:$0xff]
    %v4467 = vld [vmem:[%s4 + $0x698] sm:$0xff]
    %v4468 = vld [vmem:[%s4 + $0x6a0] sm:$0xff]
    %v4469 = vld [vmem:[%s4 + $0x6a8] sm:$0xff]
    %v4470 = vld [vmem:[%s4 + $0x6b0] sm:$0xff]
    %v4471 = vld [vmem:[%s4 + $0x6b8] sm:$0xff]
    %v4472 = vld [vmem:[%s4 + $0x6c0] sm:$0xff]
    %v4473 = vld [vmem:[%s4 + $0x6c8] sm:$0xff]
    %v4474 = vld [vmem:[%s4 + $0x6d0] sm:$0xff]
    %v4475 = vld [vmem:[%s4 + $0x6d8] sm:$0xff]
    %v4476 = vld [vmem:[%s4 + $0x6e0] sm:$0xff]
    %v4477 = vld [vmem:[%s4 + $0x6e8] sm:$0xff]
    %v4478 = vld [vmem:[%s4 + $0x6f0] sm:$0xff]
    %v4479 = vld [vmem:[%s4 + $0x6f8] sm:$0xff]
    %v4480 = vld [vmem:[%s4 + $0x700] sm:$0xff]
    %v4481 = vld [vmem:[%s4 + $0x708] sm:$0xff]
    %v4482 = vld [vmem:[%s4 + $0x710] sm:$0xff]
    %v4483 = vld [vmem:[%s4 + $0x718] sm:$0xff]
    %v4484 = vld [vmem:[%s4 + $0x720] sm:$0xff]
    %v4485 = vld [vmem:[%s4 + $0x728] sm:$0xff]
    %v4486 = vld [vmem:[%s4 + $0x730] sm:$0xff]
    %v4487 = vld [vmem:[%s4 + $0x738] sm:$0xff]
    %v4488 = vld [vmem:[%s4 + $0x740] sm:$0xff]
    %v4489 = vld [vmem:[%s4 + $0x748] sm:$0xff]
    %v4490 = vld [vmem:[%s4 + $0x750] sm:$0xff]
    %v4491 = vld [vmem:[%s4 + $0x758] sm:$0xff]
    %v4492 = vld [vmem:[%s4 + $0x760] sm:$0xff]
    %v4493 = vld [vmem:[%s4 + $0x768] sm:$0xff]
    %v4494 = vld [vmem:[%s4 + $0x770] sm:$0xff]
    %v4495 = vld [vmem:[%s4 + $0x778] sm:$0xff]
    %v4496 = vld [vmem:[%s4 + $0x780] sm:$0xff]
    %v4497 = vld [vmem:[%s4 + $0x788] sm:$0xff]
    %v4498 = vld [vmem:[%s4 + $0x790] sm:$0xff]
    %v4499 = vld [vmem:[%s4 + $0x798] sm:$0xff]
    %v4500 = vld [vmem:[%s4 + $0x7a0] sm:$0xff]
    %v4501 = vld [vmem:[%s4 + $0x7a8] sm:$0xff]
    %v4502 = vld [vmem:[%s4 + $0x7b0] sm:$0xff]
    %v4503 = vld [vmem:[%s4 + $0x7b8] sm:$0xff]
    %v4504 = vld [vmem:[%s4 + $0x7c0] sm:$0xff]
    %v4505 = vld [vmem:[%s4 + $0x7c8] sm:$0xff]
    %v4506 = vld [vmem:[%s4 + $0x7d0] sm:$0xff]
    %v4507 = vld [vmem:[%s4 + $0x7d8] sm:$0xff]
    %v4508 = vld [vmem:[%s4 + $0x7e0] sm:$0xff]
    %v4509 = vld [vmem:[%s4 + $0x7e8] sm:$0xff]
    %v4510 = vld [vmem:[%s4 + $0x7f0] sm:$0xff]
    %v4511 = vld [vmem:[%s4 + $0x7f8] sm:$0xff]
    %v4512 = vld [vmem:[%s4 + $0x800] sm:$0xff]
    %v4513 = vld [vmem:[%s4 + $0x808] sm:$0xff]
    %v4514 = vld [vmem:[%s4 + $0x810] sm:$0xff]
    %v4515 = vld [vmem:[%s4 + $0x818] sm:$0xff]
    %vm4516 = vcmask 130048
    %v4518 = vsel %vm4516, %v4228, 0
    %v4521 = vsel %vm4516, %v4237, 0
    %v4524 = vsel %vm4516, %v4246, 0
    %v4527 = vsel %vm4516, %v4255, 0
    %4529 = vmatprep.subr.mxu0 %v4257
    %4530 = vmatpush1.msra.mxu0 %v4256
    %4531 = vmatprep.subr.mxu0 %v4259
    %4532 = vmatpush1.msra.mxu0 %v4258
    %4533 = vmatprep.subr.mxu0 %v4261
    %4534 = vmatpush1.msra.mxu0 %v4260
    %4535 = vmatprep.subr.mxu0 %v4263
    %4536 = vmatpush1.msra.mxu0 %v4262
    %4537 = vmatprep.subr.mxu0 %v4265
    %4538 = vmatpush1.msra.mxu0 %v4264
    %4539 = vmatprep.subr.mxu0 %v4267
    %4540 = vmatpush1.msra.mxu0 %v4266
    %4541 = vmatprep.subr.mxu0 %v4269
    %4542 = vmatpush1.msra.mxu0 %v4268
    %4543 = vmatprep.subr.mxu0 %v4271
    %4544 = vmatpush1.msra.mxu0 %v4270
    %4545 = vmatprep.subr.mxu0 %v4273
    %4546 = vmatpush1.msra.mxu0 %v4272
    %4547 = vmatprep.subr.mxu0 %v4275
    %4548 = vmatpush1.msra.mxu0 %v4274
    %4549 = vmatprep.subr.mxu0 %v4277
    %4550 = vmatpush1.msra.mxu0 %v4276
    %4551 = vmatprep.subr.mxu0 %v4279
    %4552 = vmatpush1.msra.mxu0 %v4278
    %4553 = vmatprep.subr.mxu0 %v4281
    %4554 = vmatpush1.msra.mxu0 %v4280
    %4555 = vmatprep.subr.mxu0 %v4283
    %4556 = vmatpush1.msra.mxu0 %v4282
    %4557 = vmatprep.subr.mxu0 %v4285
    %4558 = vmatpush1.msra.mxu0 %v4284
    %4559 = vmatprep.subr.mxu0 %v4287
    %4560 = vmatpush1.msra.mxu0 %v4286
    %4561 = vmatprep.subr.mxu0 %v4289
    %4562 = vmatpush1.msra.mxu0 %v4288
    %4563 = vmatprep.subr.mxu0 %v4291
    %4564 = vmatpush1.msra.mxu0 %v4290
    %4565 = vmatprep.subr.mxu0 %v4293
    %4566 = vmatpush1.msra.mxu0 %v4292
    %4567 = vmatprep.subr.mxu0 %v4295
    %4568 = vmatpush1.msra.mxu0 %v4294
    %4569 = vmatprep.subr.mxu0 %v4297
    %4570 = vmatpush1.msra.mxu0 %v4296
    %4571 = vmatprep.subr.mxu0 %v4299
    %4572 = vmatpush1.msra.mxu0 %v4298
    %4573 = vmatprep.subr.mxu0 %v4301
    %4574 = vmatpush1.msra.mxu0 %v4300
    %4575 = vmatprep.subr.mxu0 %v4303
    %4576 = vmatpush1.msra.mxu0 %v4302
    %4577 = vmatprep.subr.mxu0 %v4305
    %4578 = vmatpush1.msra.mxu0 %v4304
    %4579 = vmatprep.subr.mxu0 %v4307
    %4580 = vmatpush1.msra.mxu0 %v4306
    %4581 = vmatprep.subr.mxu0 %v4309
    %4582 = vmatpush1.msra.mxu0 %v4308
    %4583 = vmatprep.subr.mxu0 %v4311
    %4584 = vmatpush1.msra.mxu0 %v4310
    %4585 = vmatprep.subr.mxu0 %v4313
    %4586 = vmatpush1.msra.mxu0 %v4312
    %4587 = vmatprep.subr.mxu0 %v4315
    %4588 = vmatpush1.msra.mxu0 %v4314
    %4589 = vmatprep.subr.mxu0 %v4317
    %4590 = vmatpush1.msra.mxu0 %v4316
    %4591 = vmatprep.subr.mxu0 %v4319
    %4592 = vmatpush1.msra.mxu0 %v4318
    %4593 = vmatprep.mubr.f32.mxu0 %v4221
    %4594 = vmatmul.mubr.f32.gmra.mrb[0].mxu0 %v4220
    %v4595 = vpop.f32.mrb[0].mxu0
    %v4596 = vadd.f32 0.0, %v4595
    %v4597 = vpop.f32.mrb[0].mxu0
    %v4598 = vadd.f32 0.0, %v4597
    %4599 = vmatprep.mubr.f32.mxu0 %v4230
    %4600 = vmatmul.mubr.f32.gmra.mrb[0].mxu0 %v4229
    %v4601 = vpop.f32.mrb[0].mxu0
    %v4602 = vadd.f32 0.0, %v4601
    %v4603 = vpop.f32.mrb[0].mxu0
    %v4604 = vadd.f32 0.0, %v4603
    %4605 = vmatprep.mubr.f32.mxu0 %v4239
    %4606 = vmatmul.mubr.f32.gmra.mrb[0].mxu0 %v4238
    %v4607 = vpop.f32.mrb[0].mxu0
    %v4608 = vadd.f32 0.0, %v4607
    %v4609 = vpop.f32.mrb[0].mxu0
    %v4610 = vadd.f32 0.0, %v4609
    %4611 = vmatprep.mubr.f32.mxu0 %v4248
    %4612 = vmatmul.mubr.f32.gmra.mrb[0].mxu0 %v4247
    %v4613 = vpop.f32.mrb[0].mxu0
    %v4614 = vadd.f32 0.0, %v4613
    %v4615 = vpop.f32.mrb[0].mxu0
    %v4616 = vadd.f32 0.0, %v4615
    %4617 = vdwg.mxu0
    %4618 = vmatprep.subr.mxu0 %v4321
    %4619 = vmatpush1.msra.mxu0 %v4320
    %4620 = vmatprep.subr.mxu0 %v4323
    %4621 = vmatpush1.msra.mxu0 %v4322
    %4622 = vmatprep.subr.mxu0 %v4325
    %4623 = vmatpush1.msra.mxu0 %v4324
    %4624 = vmatprep.subr.mxu0 %v4327
    %4625 = vmatpush1.msra.mxu0 %v4326
    %4626 = vmatprep.subr.mxu0 %v4329
    %4627 = vmatpush1.msra.mxu0 %v4328
    %4628 = vmatprep.subr.mxu0 %v4331
    %4629 = vmatpush1.msra.mxu0 %v4330
    %4630 = vmatprep.subr.mxu0 %v4333
    %4631 = vmatpush1.msra.mxu0 %v4332
    %4632 = vmatprep.subr.mxu0 %v4335
    %4633 = vmatpush1.msra.mxu0 %v4334
    %4634 = vmatprep.subr.mxu0 %v4337
    %4635 = vmatpush1.msra.mxu0 %v4336
    %4636 = vmatprep.subr.mxu0 %v4339
    %4637 = vmatpush1.msra.mxu0 %v4338
    %4638 = vmatprep.subr.mxu0 %v4341
    %4639 = vmatpush1.msra.mxu0 %v4340
    %4640 = vmatprep.subr.mxu0 %v4343
    %4641 = vmatpush1.msra.mxu0 %v4342
    %4642 = vmatprep.subr.mxu0 %v4345
    %4643 = vmatpush1.msra.mxu0 %v4344
    %4644 = vmatprep.subr.mxu0 %v4347
    %4645 = vmatpush1.msra.mxu0 %v4346
    %4646 = vmatprep.subr.mxu0 %v4349
    %4647 = vmatpush1.msra.mxu0 %v4348
    %4648 = vmatprep.subr.mxu0 %v4351
    %4649 = vmatpush1.msra.mxu0 %v4350
    %4650 = vmatprep.subr.mxu0 %v4353
    %4651 = vmatpush1.msra.mxu0 %v4352
    %4652 = vmatprep.subr.mxu0 %v4355
    %4653 = vmatpush1.msra.mxu0 %v4354
    %4654 = vmatprep.subr.mxu0 %v4357
    %4655 = vmatpush1.msra.mxu0 %v4356
    %4656 = vmatprep.subr.mxu0 %v4359
    %4657 = vmatpush1.msra.mxu0 %v4358
    %4658 = vmatprep.subr.mxu0 %v4361
    %4659 = vmatpush1.msra.mxu0 %v4360
    %4660 = vmatprep.subr.mxu0 %v4363
    %4661 = vmatpush1.msra.mxu0 %v4362
    %4662 = vmatprep.subr.mxu0 %v4365
    %4663 = vmatpush1.msra.mxu0 %v4364
    %4664 = vmatprep.subr.mxu0 %v4367
    %4665 = vmatpush1.msra.mxu0 %v4366
    %4666 = vmatprep.subr.mxu0 %v4369
    %4667 = vmatpush1.msra.mxu0 %v4368
    %4668 = vmatprep.subr.mxu0 %v4371
    %4669 = vmatpush1.msra.mxu0 %v4370
    %4670 = vmatprep.subr.mxu0 %v4373
    %4671 = vmatpush1.msra.mxu0 %v4372
    %4672 = vmatprep.subr.mxu0 %v4375
    %4673 = vmatpush1.msra.mxu0 %v4374
    %4674 = vmatprep.subr.mxu0 %v4377
    %4675 = vmatpush1.msra.mxu0 %v4376
    %4676 = vmatprep.subr.mxu0 %v4379
    %4677 = vmatpush1.msra.mxu0 %v4378
    %4678 = vmatprep.subr.mxu0 %v4381
    %4679 = vmatpush1.msra.mxu0 %v4380
    %4680 = vmatprep.subr.mxu0 %v4383
    %4681 = vmatpush1.msra.mxu0 %v4382
    %4682 = vmatprep.mubr.f32.mxu0 %v4223
    %4683 = vmatmul.mubr.f32.gmra.mrb[0].mxu0 %v4222
    %v4684 = vpop.f32.mrb[0].mxu0
    %v4685 = vadd.f32 %v4596, %v4684
    %v4686 = vpop.f32.mrb[0].mxu0
    %v4687 = vadd.f32 %v4598, %v4686
    %4688 = vmatprep.mubr.f32.mxu0 %v4232
    %4689 = vmatmul.mubr.f32.gmra.mrb[0].mxu0 %v4231
    %v4690 = vpop.f32.mrb[0].mxu0
    %v4691 = vadd.f32 %v4602, %v4690
    %v4692 = vpop.f32.mrb[0].mxu0
    %v4693 = vadd.f32 %v4604, %v4692
    %4694 = vmatprep.mubr.f32.mxu0 %v4241
    %4695 = vmatmul.mubr.f32.gmra.mrb[0].mxu0 %v4240
    %v4696 = vpop.f32.mrb[0].mxu0
    %v4697 = vadd.f32 %v4608, %v4696
    %v4698 = vpop.f32.mrb[0].mxu0
    %v4699 = vadd.f32 %v4610, %v4698
    %4700 = vmatprep.mubr.f32.mxu0 %v4250
    %4701 = vmatmul.mubr.f32.gmra.mrb[0].mxu0 %v4249
    %v4702 = vpop.f32.mrb[0].mxu0
    %v4703 = vadd.f32 %v4614, %v4702
    %v4704 = vpop.f32.mrb[0].mxu0
    %v4705 = vadd.f32 %v4616, %v4704
    %4706 = vdwg.mxu0
    %4707 = vmatprep.subr.mxu0 %v4385
    %4708 = vmatpush1.msra.mxu0 %v4384
    %4709 = vmatprep.subr.mxu0 %v4387
    %4710 = vmatpush1.msra.mxu0 %v4386
    %4711 = vmatprep.subr.mxu0 %v4389
    %4712 = vmatpush1.msra.mxu0 %v4388
    %4713 = vmatprep.subr.mxu0 %v4391
    %4714 = vmatpush1.msra.mxu0 %v4390
    %4715 = vmatprep.subr.mxu0 %v4393
    %4716 = vmatpush1.msra.mxu0 %v4392
    %4717 = vmatprep.subr.mxu0 %v4395
    %4718 = vmatpush1.msra.mxu0 %v4394
    %4719 = vmatprep.subr.mxu0 %v4397
    %4720 = vmatpush1.msra.mxu0 %v4396
    %4721 = vmatprep.subr.mxu0 %v4399
    %4722 = vmatpush1.msra.mxu0 %v4398
    %4723 = vmatprep.subr.mxu0 %v4401
    %4724 = vmatpush1.msra.mxu0 %v4400
    %4725 = vmatprep.subr.mxu0 %v4403
    %4726 = vmatpush1.msra.mxu0 %v4402
    %4727 = vmatprep.subr.mxu0 %v4405
    %4728 = vmatpush1.msra.mxu0 %v4404
    %4729 = vmatprep.subr.mxu0 %v4407
    %4730 = vmatpush1.msra.mxu0 %v4406
    %4731 = vmatprep.subr.mxu0 %v4409
    %4732 = vmatpush1.msra.mxu0 %v4408
    %4733 = vmatprep.subr.mxu0 %v4411
    %4734 = vmatpush1.msra.mxu0 %v4410
    %4735 = vmatprep.subr.mxu0 %v4413
    %4736 = vmatpush1.msra.mxu0 %v4412
    %4737 = vmatprep.subr.mxu0 %v4415
    %4738 = vmatpush1.msra.mxu0 %v4414
    %4739 = vmatprep.subr.mxu0 %v4417
    %4740 = vmatpush1.msra.mxu0 %v4416
    %4741 = vmatprep.subr.mxu0 %v4419
    %4742 = vmatpush1.msra.mxu0 %v4418
    %4743 = vmatprep.subr.mxu0 %v4421
    %4744 = vmatpush1.msra.mxu0 %v4420
    %4745 = vmatprep.subr.mxu0 %v4423
    %4746 = vmatpush1.msra.mxu0 %v4422
    %4747 = vmatprep.subr.mxu0 %v4425
    %4748 = vmatpush1.msra.mxu0 %v4424
    %4749 = vmatprep.subr.mxu0 %v4427
    %4750 = vmatpush1.msra.mxu0 %v4426
    %4751 = vmatprep.subr.mxu0 %v4429
    %4752 = vmatpush1.msra.mxu0 %v4428
    %4753 = vmatprep.subr.mxu0 %v4431
    %4754 = vmatpush1.msra.mxu0 %v4430
    %4755 = vmatprep.subr.mxu0 %v4433
    %4756 = vmatpush1.msra.mxu0 %v4432
    %4757 = vmatprep.subr.mxu0 %v4435
    %4758 = vmatpush1.msra.mxu0 %v4434
    %4759 = vmatprep.subr.mxu0 %v4437
    %4760 = vmatpush1.msra.mxu0 %v4436
    %4761 = vmatprep.subr.mxu0 %v4439
    %4762 = vmatpush1.msra.mxu0 %v4438
    %4763 = vmatprep.subr.mxu0 %v4441
    %4764 = vmatpush1.msra.mxu0 %v4440
    %4765 = vmatprep.subr.mxu0 %v4443
    %4766 = vmatpush1.msra.mxu0 %v4442
    %4767 = vmatprep.subr.mxu0 %v4445
    %4768 = vmatpush1.msra.mxu0 %v4444
    %4769 = vmatprep.subr.mxu0 %v4447
    %4770 = vmatpush1.msra.mxu0 %v4446
    %4771 = vmatprep.mubr.f32.mxu0 %v4225
    %4772 = vmatmul.mubr.f32.gmra.mrb[0].mxu0 %v4224
    %v4773 = vpop.f32.mrb[0].mxu0
    %v4774 = vadd.f32 %v4685, %v4773
    %v4775 = vpop.f32.mrb[0].mxu0
    %v4776 = vadd.f32 %v4687, %v4775
    %4777 = vmatprep.mubr.f32.mxu0 %v4234
    %4778 = vmatmul.mubr.f32.gmra.mrb[0].mxu0 %v4233
    %v4779 = vpop.f32.mrb[0].mxu0
    %v4780 = vadd.f32 %v4691, %v4779
    %v4781 = vpop.f32.mrb[0].mxu0
    %v4782 = vadd.f32 %v4693, %v4781
    %4783 = vmatprep.mubr.f32.mxu0 %v4243
    %4784 = vmatmul.mubr.f32.gmra.mrb[0].mxu0 %v4242
    %v4785 = vpop.f32.mrb[0].mxu0
    %v4786 = vadd.f32 %v4697, %v4785
    %v4787 = vpop.f32.mrb[0].mxu0
    %v4788 = vadd.f32 %v4699, %v4787
    %4789 = vmatprep.mubr.f32.mxu0 %v4252
    %4790 = vmatmul.mubr.f32.gmra.mrb[0].mxu0 %v4251
    %v4791 = vpop.f32.mrb[0].mxu0
    %v4792 = vadd.f32 %v4703, %v4791
    %v4793 = vpop.f32.mrb[0].mxu0
    %v4794 = vadd.f32 %v4705, %v4793
    %4795 = vdwg.mxu0
    %4796 = vmatprep.subr.mxu0 %v4449
    %4797 = vmatpush1.msra.mxu0 %v4448
    %4798 = vmatprep.subr.mxu0 %v4451
    %4799 = vmatpush1.msra.mxu0 %v4450
    %4800 = vmatprep.subr.mxu0 %v4453
    %4801 = vmatpush1.msra.mxu0 %v4452
    %4802 = vmatprep.subr.mxu0 %v4455
    %4803 = vmatpush1.msra.mxu0 %v4454
    %4804 = vmatprep.subr.mxu0 %v4457
    %4805 = vmatpush1.msra.mxu0 %v4456
    %4806 = vmatprep.subr.mxu0 %v4459
    %4807 = vmatpush1.msra.mxu0 %v4458
    %4808 = vmatprep.subr.mxu0 %v4461
    %4809 = vmatpush1.msra.mxu0 %v4460
    %4810 = vmatprep.subr.mxu0 %v4463
    %4811 = vmatpush1.msra.mxu0 %v4462
    %4812 = vmatprep.subr.mxu0 %v4465
    %4813 = vmatpush1.msra.mxu0 %v4464
    %4814 = vmatprep.subr.mxu0 %v4467
    %4815 = vmatpush1.msra.mxu0 %v4466
    %4816 = vmatprep.subr.mxu0 %v4469
    %4817 = vmatpush1.msra.mxu0 %v4468
    %4818 = vmatprep.subr.mxu0 %v4471
    %4819 = vmatpush1.msra.mxu0 %v4470
    %4820 = vmatprep.subr.mxu0 %v4473
    %4821 = vmatpush1.msra.mxu0 %v4472
    %4822 = vmatprep.subr.mxu0 %v4475
    %4823 = vmatpush1.msra.mxu0 %v4474
    %4824 = vmatprep.subr.mxu0 %v4477
    %4825 = vmatpush1.msra.mxu0 %v4476
    %4826 = vmatprep.subr.mxu0 %v4479
    %4827 = vmatpush1.msra.mxu0 %v4478
    %4828 = vmatprep.subr.mxu0 %v4481
    %4829 = vmatpush1.msra.mxu0 %v4480
    %4830 = vmatprep.subr.mxu0 %v4483
    %4831 = vmatpush1.msra.mxu0 %v4482
    %4832 = vmatprep.subr.mxu0 %v4485
    %4833 = vmatpush1.msra.mxu0 %v4484
    %4834 = vmatprep.subr.mxu0 %v4487
    %4835 = vmatpush1.msra.mxu0 %v4486
    %4836 = vmatprep.subr.mxu0 %v4489
    %4837 = vmatpush1.msra.mxu0 %v4488
    %4838 = vmatprep.subr.mxu0 %v4491
    %4839 = vmatpush1.msra.mxu0 %v4490
    %4840 = vmatprep.subr.mxu0 %v4493
    %4841 = vmatpush1.msra.mxu0 %v4492
    %4842 = vmatprep.subr.mxu0 %v4495
    %4843 = vmatpush1.msra.mxu0 %v4494
    %4844 = vmatprep.subr.mxu0 %v4497
    %4845 = vmatpush1.msra.mxu0 %v4496
    %4846 = vmatprep.subr.mxu0 %v4499
    %4847 = vmatpush1.msra.mxu0 %v4498
    %4848 = vmatprep.subr.mxu0 %v4501
    %4849 = vmatpush1.msra.mxu0 %v4500
    %4850 = vmatprep.subr.mxu0 %v4503
    %4851 = vmatpush1.msra.mxu0 %v4502
    %4852 = vmatprep.subr.mxu0 %v4505
    %4853 = vmatpush1.msra.mxu0 %v4504
    %4854 = vmatprep.subr.mxu0 %v4507
    %4855 = vmatpush1.msra.mxu0 %v4506
    %4856 = vmatprep.subr.mxu0 %v4509
    %4857 = vmatpush1.msra.mxu0 %v4508
    %4858 = vmatprep.subr.mxu0 %v4511
    %4859 = vmatpush1.msra.mxu0 %v4510
    %4860 = vmatprep.mubr.f32.mxu0 %v4227
    %4861 = vmatmul.mubr.f32.gmra.mrb[0].mxu0 %v4226
    %v4862 = vpop.f32.mrb[0].mxu0
    %v4863 = vadd.f32 %v4774, %v4862
    %v4864 = vpop.f32.mrb[0].mxu0
    %v4865 = vadd.f32 %v4776, %v4864
    %4866 = vmatprep.mubr.f32.mxu0 %v4236
    %4867 = vmatmul.mubr.f32.gmra.mrb[0].mxu0 %v4235
    %v4868 = vpop.f32.mrb[0].mxu0
    %v4869 = vadd.f32 %v4780, %v4868
    %v4870 = vpop.f32.mrb[0].mxu0
    %v4871 = vadd.f32 %v4782, %v4870
    %4872 = vmatprep.mubr.f32.mxu0 %v4245
    %4873 = vmatmul.mubr.f32.gmra.mrb[0].mxu0 %v4244
    %v4874 = vpop.f32.mrb[0].mxu0
    %v4875 = vadd.f32 %v4786, %v4874
    %v4876 = vpop.f32.mrb[0].mxu0
    %v4877 = vadd.f32 %v4788, %v4876
    %4878 = vmatprep.mubr.f32.mxu0 %v4254
    %4879 = vmatmul.mubr.f32.gmra.mrb[0].mxu0 %v4253
    %v4880 = vpop.f32.mrb[0].mxu0
    %v4881 = vadd.f32 %v4792, %v4880
    %v4882 = vpop.f32.mrb[0].mxu0
    %v4883 = vadd.f32 %v4794, %v4882
    %4884 = vdwg.mxu0
    %4885 = vmatprep.subr.mxu0 %v4513
    %4886 = vmatpush1.msra.mxu0 %v4512
    %4887 = vmatprep.subr.mxu0 %v4515
    %4888 = vmatpush1.msra.mxu0 %v4514
    %4889 = vmatprep.subr.mxu0 0.0
    %4890 = vmatpush1.msra.mxu0 0.0
    %4891 = vmatprep.subr.mxu0 0.0
    %4892 = vmatpush1.msra.mxu0 0.0
    %4893 = vmatprep.subr.mxu0 0.0
    %4894 = vmatpush1.msra.mxu0 0.0
    %4895 = vmatprep.subr.mxu0 0.0
    %4896 = vmatpush1.msra.mxu0 0.0
    %4897 = vmatprep.subr.mxu0 0.0
    %4898 = vmatpush1.msra.mxu0 0.0
    %4899 = vmatprep.subr.mxu0 0.0
    %4900 = vmatpush1.msra.mxu0 0.0
    %4901 = vmatprep.subr.mxu0 0.0
    %4902 = vmatpush1.msra.mxu0 0.0
    %4903 = vmatprep.subr.mxu0 0.0
    %4904 = vmatpush1.msra.mxu0 0.0
    %4905 = vmatprep.subr.mxu0 0.0
    %4906 = vmatpush1.msra.mxu0 0.0
    %4907 = vmatprep.subr.mxu0 0.0
    %4908 = vmatpush1.msra.mxu0 0.0
    %4909 = vmatprep.subr.mxu0 0.0
    %4910 = vmatpush1.msra.mxu0 0.0
    %4911 = vmatprep.subr.mxu0 0.0
    %4912 = vmatpush1.msra.mxu0 0.0
    %4913 = vmatprep.subr.mxu0 0.0
    %4914 = vmatpush1.msra.mxu0 0.0
    %4915 = vmatprep.subr.mxu0 0.0
    %4916 = vmatpush1.msra.mxu0 0.0
    %4917 = vmatprep.subr.mxu0 0.0
    %4918 = vmatpush1.msra.mxu0 0.0
    %4919 = vmatprep.subr.mxu0 0.0
    %4920 = vmatpush1.msra.mxu0 0.0
    %4921 = vmatprep.subr.mxu0 0.0
    %4922 = vmatpush1.msra.mxu0 0.0
    %4923 = vmatprep.subr.mxu0 0.0
    %4924 = vmatpush1.msra.mxu0 0.0
    %4925 = vmatprep.subr.mxu0 0.0
    %4926 = vmatpush1.msra.mxu0 0.0
    %4927 = vmatprep.subr.mxu0 0.0
    %4928 = vmatpush1.msra.mxu0 0.0
    %4929 = vmatprep.subr.mxu0 0.0
    %4930 = vmatpush1.msra.mxu0 0.0
    %4931 = vmatprep.subr.mxu0 0.0
    %4932 = vmatpush1.msra.mxu0 0.0
    %4933 = vmatprep.subr.mxu0 0.0
    %4934 = vmatpush1.msra.mxu0 0.0
    %4935 = vmatprep.subr.mxu0 0.0
    %4936 = vmatpush1.msra.mxu0 0.0
    %4937 = vmatprep.subr.mxu0 0.0
    %4938 = vmatpush1.msra.mxu0 0.0
    %4939 = vmatprep.subr.mxu0 0.0
    %4940 = vmatpush1.msra.mxu0 0.0
    %4941 = vmatprep.subr.mxu0 0.0
    %4942 = vmatpush1.msra.mxu0 0.0
    %4943 = vmatprep.subr.mxu0 0.0
    %4944 = vmatpush1.msra.mxu0 0.0
    %4945 = vmatprep.subr.mxu0 0.0
    %4946 = vmatpush1.msra.mxu0 0.0
    %4947 = vmatprep.subr.mxu0 0.0
    %4948 = vmatpush1.msra.mxu0 0.0
    %4949 = vmatprep.mubr.f32.mxu0 0.0
    %4950 = vmatmul.mubr.f32.gmra.mrb[0].mxu0 %v4518
    %v4951 = vpop.f32.mrb[0].mxu0
    %v4952 = vadd.f32 %v4863, %v4951
    %v4953 = vpop.f32.mrb[0].mxu0
    %v4954 = vadd.f32 %v4865, %v4953
    %4955 = vmatprep.mubr.f32.mxu0 0.0
    %4956 = vmatmul.mubr.f32.gmra.mrb[0].mxu0 %v4521
    %v4957 = vpop.f32.mrb[0].mxu0
    %v4958 = vadd.f32 %v4869, %v4957
    %v4959 = vpop.f32.mrb[0].mxu0
    %v4960 = vadd.f32 %v4871, %v4959
    %4961 = vmatprep.mubr.f32.mxu0 0.0
    %4962 = vmatmul.mubr.f32.gmra.mrb[0].mxu0 %v4524
    %v4963 = vpop.f32.mrb[0].mxu0
    %v4964 = vadd.f32 %v4875, %v4963
    %v4965 = vpop.f32.mrb[0].mxu0
    %v4966 = vadd.f32 %v4877, %v4965
    %4967 = vmatprep.mubr.f32.mxu0 0.0
    %4968 = vmatmul.mubr.f32.gmra.mrb[0].mxu0 %v4527
    %v4969 = vpop.f32.mrb[0].mxu0
    %v4970 = vadd.f32 %v4881, %v4969
    %v4971 = vpop.f32.mrb[0].mxu0
    %v4972 = vadd.f32 %v4883, %v4971
    %4973 = vdwg.mxu0
    %v4974 = vld [vmem:[%s7 + $0x3] sm:$0x1]
    %v4975 = vlaneseq
    %v4976 = vshrl.u32 %v4975, 7
    %v4977 = vsub.s32 0, %v4976
    %v4978 = vrot.slane %v4974, %v4977
    %v4979 = vadd.f32 %v4954, %v4978
    %v4980 = vadd.f32 %v4960, %v4978
    %v4981 = vadd.f32 %v4966, %v4978
    %v4982 = vadd.f32 %v4972, %v4978
    %v4983 = vld [vmem:[%s8] sm:$0xff]
    %v4984 = vld [vmem:[%s8 + $0x8] sm:$0xff]
    %v4985 = vld [vmem:[%s8 + $0x10] sm:$0xff]
    %v4986 = vld [vmem:[%s8 + $0x18] sm:$0xff]
    %v4987 = vld [vmem:[%s5] sm:$0xff]
    %v4988 = vld [vmem:[%s5 + $0x8] sm:$0xff]
    %v4989 = vld [vmem:[%s5 + $0x10] sm:$0xff]
    %v4990 = vld [vmem:[%s5 + $0x18] sm:$0xff]
    %v4991 = vld [vmem:[%s5 + $0x20] sm:$0xff]
    %v4992 = vld [vmem:[%s5 + $0x28] sm:$0xff]
    %v4993 = vld [vmem:[%s5 + $0x30] sm:$0xff]
    %v4994 = vld [vmem:[%s5 + $0x38] sm:$0xff]
    %v4995 = vld [vmem:[%s5 + $0x40] sm:$0xff]
    %v4996 = vld [vmem:[%s5 + $0x48] sm:$0xff]
    %v4997 = vld [vmem:[%s5 + $0x50] sm:$0xff]
    %v4998 = vld [vmem:[%s5 + $0x58] sm:$0xff]
    %v4999 = vld [vmem:[%s5 + $0x60] sm:$0xff]
    %v5000 = vld [vmem:[%s5 + $0x68] sm:$0xff]
    %v5001 = vld [vmem:[%s5 + $0x70] sm:$0xff]
    %v5002 = vld [vmem:[%s5 + $0x78] sm:$0xff]
    %5003 = vmatprep.subr.mxu0 0.0
    %5004 = vmatpush1.msra.mxu0 %v4987
    %5005 = vmatprep.subr.mxu0 0.0
    %5006 = vmatpush1.msra.mxu0 %v4988
    %5007 = vmatprep.subr.mxu0 0.0
    %5008 = vmatpush1.msra.mxu0 %v4989
    %5009 = vmatprep.subr.mxu0 0.0
    %5010 = vmatpush1.msra.mxu0 %v4990
    %5011 = vmatprep.subr.mxu0 0.0
    %5012 = vmatpush1.msra.mxu0 %v4991
    %5013 = vmatprep.subr.mxu0 0.0
    %5014 = vmatpush1.msra.mxu0 %v4992
    %5015 = vmatprep.subr.mxu0 0.0
    %5016 = vmatpush1.msra.mxu0 %v4993
    %5017 = vmatprep.subr.mxu0 0.0
    %5018 = vmatpush1.msra.mxu0 %v4994
    %5019 = vmatprep.subr.mxu0 0.0
    %5020 = vmatpush1.msra.mxu0 %v4995
    %5021 = vmatprep.subr.mxu0 0.0
    %5022 = vmatpush1.msra.mxu0 %v4996
    %5023 = vmatprep.subr.mxu0 0.0
    %5024 = vmatpush1.msra.mxu0 %v4997
    %5025 = vmatprep.subr.mxu0 0.0
    %5026 = vmatpush1.msra.mxu0 %v4998
    %5027 = vmatprep.subr.mxu0 0.0
    %5028 = vmatpush1.msra.mxu0 %v4999
    %5029 = vmatprep.subr.mxu0 0.0
    %5030 = vmatpush1.msra.mxu0 %v5000
    %5031 = vmatprep.subr.mxu0 0.0
    %5032 = vmatpush1.msra.mxu0 %v5001
    %5033 = vmatprep.subr.mxu0 0.0
    %5034 = vmatpush1.msra.mxu0 %v5002
    %5035 = vmatprep.subr.mxu0 0.0
    %5036 = vmatpush1.msra.mxu0 0.0
    %5037 = vmatprep.subr.mxu0 0.0
    %5038 = vmatpush1.msra.mxu0 0.0
    %5039 = vmatprep.subr.mxu0 0.0
    %5040 = vmatpush1.msra.mxu0 0.0
    %5041 = vmatprep.subr.mxu0 0.0
    %5042 = vmatpush1.msra.mxu0 0.0
    %5043 = vmatprep.subr.mxu0 0.0
    %5044 = vmatpush1.msra.mxu0 0.0
    %5045 = vmatprep.subr.mxu0 0.0
    %5046 = vmatpush1.msra.mxu0 0.0
    %5047 = vmatprep.subr.mxu0 0.0
    %5048 = vmatpush1.msra.mxu0 0.0
    %5049 = vmatprep.subr.mxu0 0.0
    %5050 = vmatpush1.msra.mxu0 0.0
    %5051 = vmatprep.subr.mxu0 0.0
    %5052 = vmatpush1.msra.mxu0 0.0
    %5053 = vmatprep.subr.mxu0 0.0
    %5054 = vmatpush1.msra.mxu0 0.0
    %5055 = vmatprep.subr.mxu0 0.0
    %5056 = vmatpush1.msra.mxu0 0.0
    %5057 = vmatprep.subr.mxu0 0.0
    %5058 = vmatpush1.msra.mxu0 0.0
    %5059 = vmatprep.subr.mxu0 0.0
    %5060 = vmatpush1.msra.mxu0 0.0
    %5061 = vmatprep.subr.mxu0 0.0
    %5062 = vmatpush1.msra.mxu0 0.0
    %5063 = vmatprep.subr.mxu0 0.0
    %5064 = vmatpush1.msra.mxu0 0.0
    %5065 = vmatprep.subr.mxu0 0.0
    %5066 = vmatpush1.msra.mxu0 0.0
    %5067 = vmatprep.mubr.f32.mxu0 0.0
    %5068 = vmatmul.mubr.f32.gmra.mrb[0].mxu0 %v4952
    %v5069 = vpop.f32.mrb[0].mxu0
    %v5070 = vadd.f32 0.0, %v5069
    %v5071 = vpop.f32.mrb[0].mxu0
    %5072 = vmatprep.mubr.f32.mxu0 0.0
    %5073 = vmatmul.mubr.f32.gmra.mrb[0].mxu0 %v4958
    %v5074 = vpop.f32.mrb[0].mxu0
    %v5075 = vadd.f32 0.0, %v5074
    %v5076 = vpop.f32.mrb[0].mxu0
    %5077 = vmatprep.mubr.f32.mxu0 0.0
    %5078 = vmatmul.mubr.f32.gmra.mrb[0].mxu0 %v4964
    %v5079 = vpop.f32.mrb[0].mxu0
    %v5080 = vadd.f32 0.0, %v5079
    %v5081 = vpop.f32.mrb[0].mxu0
    %5082 = vmatprep.mubr.f32.mxu0 0.0
    %5083 = vmatmul.mubr.f32.gmra.mrb[0].mxu0 %v4970
    %v5084 = vpop.f32.mrb[0].mxu0
    %v5085 = vadd.f32 0.0, %v5084
    %v5086 = vpop.f32.mrb[0].mxu0
    %5087 = vdwg.mxu0
    %5088 = vxpose.xlu0.b32.start [1/16] %v5070, 128
    %5089 = vxpose.xlu0.b32.cont [2/16] %v5075, 128
    %5090 = vxpose.xlu0.b32.cont [3/16] %v5080, 128
    %5091 = vxpose.xlu0.b32.cont [4/16] %v5085, 128
    %5092 = vxpose.xlu0.b32.cont [5/16] 0.0, 128
    %5093 = vxpose.xlu0.b32.cont [6/16] 0.0, 128
    %5094 = vxpose.xlu0.b32.cont [7/16] 0.0, 128
    %5095 = vxpose.xlu0.b32.cont [8/16] 0.0, 128
    %5096 = vxpose.xlu0.b32.cont [9/16] 0.0, 128
    %5097 = vxpose.xlu0.b32.cont [10/16] 0.0, 128
    %5098 = vxpose.xlu0.b32.cont [11/16] 0.0, 128
    %5099 = vxpose.xlu0.b32.cont [12/16] 0.0, 128
    %5100 = vxpose.xlu0.b32.cont [13/16] 0.0, 128
    %5101 = vxpose.xlu0.b32.cont [14/16] 0.0, 128
    %5102 = vxpose.xlu0.b32.cont [15/16] 0.0, 128
    %5103 = vxpose.xlu0.b32.end [16/16] 0.0, 128
    %v5104 = vpop.trf.xlu0
    %v5105 = vpop.trf.xlu0
    %v5106 = vpop.trf.xlu0
    %v5107 = vpop.trf.xlu0
    %v5108 = vpop.trf.xlu0
    %v5109 = vpop.trf.xlu0
    %v5110 = vpop.trf.xlu0
    %v5111 = vpop.trf.xlu0
    %v5112 = vpop.trf.xlu0
    %v5113 = vpop.trf.xlu0
    %v5114 = vpop.trf.xlu0
    %v5115 = vpop.trf.xlu0
    %v5116 = vpop.trf.xlu0
    %v5117 = vpop.trf.xlu0
    %v5118 = vpop.trf.xlu0
    %v5119 = vpop.trf.xlu0
    %5121 = vset.pattern.permute.xlu0 4
    %5122 = vperm.xlu0 %5121, %v5070
    %v5123 = vpop.permute.xlu0 %5122
    %5126 = vset.pattern.permute.xlu0 4
    %5127 = vperm.xlu0 %5126, %v5075
    %v5128 = vpop.permute.xlu0 %5127
    %5131 = vset.pattern.permute.xlu0 4
    %5132 = vperm.xlu0 %5131, %v5080
    %v5133 = vpop.permute.xlu0 %5132
    %5136 = vset.pattern.permute.xlu0 4
    %5137 = vperm.xlu0 %5136, %v5085
    %v5138 = vpop.permute.xlu0 %5137
    %v5140 = vlaneseq
    %v5141 = vshrl.u32 %v5140, 7
    %v5142 = vsub.s32 0, %v5141
    %v5143 = vrot.slane %v5104, %v5142
    %v5144 = vadd.f32 %v5123, %v5143
    %v5145 = vadd.f32 %v5128, %v5143
    %v5146 = vadd.f32 %v5133, %v5143
    %v5147 = vadd.f32 %v5138, %v5143
    %vm5148 = vcmp.gt.f32.partialorder %v5144, 0.0
    %vm5149 = vcmp.gt.f32.partialorder %v5145, 0.0
    %vm5150 = vcmp.gt.f32.partialorder %v5146, 0.0
    %vm5151 = vcmp.gt.f32.partialorder %v5147, 0.0
    %v5152 = vmul.f32 %v5144, 0.2
    %v5153 = vmul.f32 %v5145, 0.2
    %v5154 = vmul.f32 %v5146, 0.2
    %v5155 = vmul.f32 %v5147, 0.2
    %v5156 = vsel %vm5148, %v5144, %v5152
    %v5157 = vsel %vm5149, %v5145, %v5153
    %v5158 = vsel %vm5150, %v5146, %v5154
    %v5159 = vsel %vm5151, %v5147, %v5155
    %vm5160 = vcmp.gt.f32.partialorder %v4983, 0.0
    %vm5161 = vcmp.gt.f32.partialorder %v4984, 0.0
    %vm5162 = vcmp.gt.f32.partialorder %v4985, 0.0
    %vm5163 = vcmp.gt.f32.partialorder %v4986, 0.0
    %v5164 = vsel %vm5160, %v5156, -1e+30
    %v5165 = vsel %vm5161, %v5157, -1e+30
    %v5166 = vsel %vm5162, %v5158, -1e+30
    %v5167 = vsel %vm5163, %v5159, -1e+30
    %vm5168 = vcmask 261120
    %v5169 = vsel %vm5168, %v5164, -inf
    %5170 = vmax.xlane.f32.xlu0 %v5169
    %v5171 = vpop.xlane.xlu0 %5170
    %v5172 = vsel %vm5168, %v5165, -inf
    %5173 = vmax.xlane.f32.xlu0 %v5172
    %v5174 = vpop.xlane.xlu0 %5173
    %v5175 = vsel %vm5168, %v5166, -inf
    %5176 = vmax.xlane.f32.xlu0 %v5175
    %v5177 = vpop.xlane.xlu0 %5176
    %v5178 = vsel %vm5168, %v5167, -inf
    %5179 = vmax.xlane.f32.xlu0 %v5178
    %v5180 = vpop.xlane.xlu0 %5179
    %v5181 = vsub.f32 %v5164, %v5171
    %v5182 = vsub.f32 %v5165, %v5174
    %v5183 = vsub.f32 %v5166, %v5177
    %v5184 = vsub.f32 %v5167, %v5180
    %v5185 = vmul.f32 %v5181, 1.442695
    %v5186 = vpow.pop %v5185
    %v5187 = vmul.f32 %v5182, 1.442695
    %v5188 = vpow.pop %v5187
    %v5189 = vmul.f32 %v5183, 1.442695
    %v5190 = vpow.pop %v5189
    %v5191 = vmul.f32 %v5184, 1.442695
    %v5192 = vpow.pop %v5191
    %v5193 = vsel %vm5168, %v5186, 0.0
    %5194 = vadd.xlane.f32.xlu0 %v5193
    %v5195 = vpop.xlane.xlu0 %5194
    %v5196 = vsel %vm5168, %v5188, 0.0
    %5197 = vadd.xlane.f32.xlu0 %v5196
    %v5198 = vpop.xlane.xlu0 %5197
    %v5199 = vsel %vm5168, %v5190, 0.0
    %5200 = vadd.xlane.f32.xlu0 %v5199
    %v5201 = vpop.xlane.xlu0 %5200
    %v5202 = vsel %vm5168, %v5192, 0.0
    %5203 = vadd.xlane.f32.xlu0 %v5202
    %v5204 = vpop.xlane.xlu0 %5203
    %v5205 = vrcp.pop %v5195
    %v5206 = vmul.f32 %v5186, %v5205
    %v5207 = vrcp.pop %v5198
    %v5208 = vmul.f32 %v5188, %v5207
    %v5209 = vrcp.pop %v5201
    %v5210 = vmul.f32 %v5190, %v5209
    %v5211 = vrcp.pop %v5204
    %v5212 = vmul.f32 %v5192, %v5211
    %5213 = vset.pattern.permute.xlu0 5
    %5214 = vperm.xlu0 %5213, %v5070
    %v5215 = vpop.permute.xlu0 %5214
    %5217 = vset.pattern.permute.xlu0 5
    %5218 = vperm.xlu0 %5217, %v5075
    %v5219 = vpop.permute.xlu0 %5218
    %5221 = vset.pattern.permute.xlu0 5
    %5222 = vperm.xlu0 %5221, %v5080
    %v5223 = vpop.permute.xlu0 %5222
    %5225 = vset.pattern.permute.xlu0 5
    %5226 = vperm.xlu0 %5225, %v5085
    %v5227 = vpop.permute.xlu0 %5226
    %v5229 = vlaneseq
    %v5230 = vshrl.u32 %v5229, 7
    %v5231 = vsub.s32 1, %v5230
    %v5232 = vrot.slane %v5104, %v5231
    %v5233 = vadd.f32 %v5215, %v5232
    %v5234 = vadd.f32 %v5219, %v5232
    %v5235 = vadd.f32 %v5223, %v5232
    %v5236 = vadd.f32 %v5227, %v5232
    %vm5237 = vcmp.gt.f32.partialorder %v5233, 0.0
    %vm5238 = vcmp.gt.f32.partialorder %v5234, 0.0
    %vm5239 = vcmp.gt.f32.partialorder %v5235, 0.0
    %vm5240 = vcmp.gt.f32.partialorder %v5236, 0.0
    %v5241 = vmul.f32 %v5233, 0.2
    %v5242 = vmul.f32 %v5234, 0.2
    %v5243 = vmul.f32 %v5235, 0.2
    %v5244 = vmul.f32 %v5236, 0.2
    %v5245 = vsel %vm5237, %v5233, %v5241
    %v5246 = vsel %vm5238, %v5234, %v5242
    %v5247 = vsel %vm5239, %v5235, %v5243
    %v5248 = vsel %vm5240, %v5236, %v5244
    %v5249 = vsel %vm5160, %v5245, -1e+30
    %v5250 = vsel %vm5161, %v5246, -1e+30
    %v5251 = vsel %vm5162, %v5247, -1e+30
    %v5252 = vsel %vm5163, %v5248, -1e+30
    %v5253 = vsel %vm5168, %v5249, -inf
    %5254 = vmax.xlane.f32.xlu0 %v5253
    %v5255 = vpop.xlane.xlu0 %5254
    %v5256 = vsel %vm5168, %v5250, -inf
    %5257 = vmax.xlane.f32.xlu0 %v5256
    %v5258 = vpop.xlane.xlu0 %5257
    %v5259 = vsel %vm5168, %v5251, -inf
    %5260 = vmax.xlane.f32.xlu0 %v5259
    %v5261 = vpop.xlane.xlu0 %5260
    %v5262 = vsel %vm5168, %v5252, -inf
    %5263 = vmax.xlane.f32.xlu0 %v5262
    %v5264 = vpop.xlane.xlu0 %5263
    %v5265 = vsub.f32 %v5249, %v5255
    %v5266 = vsub.f32 %v5250, %v5258
    %v5267 = vsub.f32 %v5251, %v5261
    %v5268 = vsub.f32 %v5252, %v5264
    %v5269 = vmul.f32 %v5265, 1.442695
    %v5270 = vpow.pop %v5269
    %v5271 = vmul.f32 %v5266, 1.442695
    %v5272 = vpow.pop %v5271
    %v5273 = vmul.f32 %v5267, 1.442695
    %v5274 = vpow.pop %v5273
    %v5275 = vmul.f32 %v5268, 1.442695
    %v5276 = vpow.pop %v5275
    %v5277 = vsel %vm5168, %v5270, 0.0
    %5278 = vadd.xlane.f32.xlu0 %v5277
    %v5279 = vpop.xlane.xlu0 %5278
    %v5280 = vsel %vm5168, %v5272, 0.0
    %5281 = vadd.xlane.f32.xlu0 %v5280
    %v5282 = vpop.xlane.xlu0 %5281
    %v5283 = vsel %vm5168, %v5274, 0.0
    %5284 = vadd.xlane.f32.xlu0 %v5283
    %v5285 = vpop.xlane.xlu0 %5284
    %v5286 = vsel %vm5168, %v5276, 0.0
    %5287 = vadd.xlane.f32.xlu0 %v5286
    %v5288 = vpop.xlane.xlu0 %5287
    %v5289 = vrcp.pop %v5279
    %v5290 = vmul.f32 %v5270, %v5289
    %v5291 = vrcp.pop %v5282
    %v5292 = vmul.f32 %v5272, %v5291
    %v5293 = vrcp.pop %v5285
    %v5294 = vmul.f32 %v5274, %v5293
    %v5295 = vrcp.pop %v5288
    %v5296 = vmul.f32 %v5276, %v5295
    %5301 = vrot.lane.b32.xlu0 %v4952, 96
    %v5302 = vpop.permute.xlu0 %5301
    %5303 = vrot.lane.b32.xlu0 %v4958, 96
    %v5304 = vpop.permute.xlu0 %5303
    %5305 = vrot.lane.b32.xlu0 %v4964, 96
    %v5306 = vpop.permute.xlu0 %5305
    %5307 = vrot.lane.b32.xlu0 %v4970, 96
    %v5308 = vpop.permute.xlu0 %5307
    %v5314 = vsel %vm5168, %v5290, 0
    %v5317 = vsel %vm5168, %v5292, 0
    %v5320 = vsel %vm5168, %v5294, 0
    %v5323 = vsel %vm5168, %v5296, 0
    %5325 = vmatprep.subr.mxu0 0.0
    %5326 = vmatpush1.msra.mxu0 %v5302
    %5327 = vmatprep.subr.mxu0 0.0
    %5328 = vmatpush1.msra.mxu0 %v5304
    %5329 = vmatprep.subr.mxu0 0.0
    %5330 = vmatpush1.msra.mxu0 %v5306
    %5331 = vmatprep.subr.mxu0 0.0
    %5332 = vmatpush1.msra.mxu0 %v5308
    %5333 = vmatprep.subr.mxu0 0.0
    %5334 = vmatpush1.msra.mxu0 0.0
    %5335 = vmatprep.subr.mxu0 0.0
    %5336 = vmatpush1.msra.mxu0 0.0
    %5337 = vmatprep.subr.mxu0 0.0
    %5338 = vmatpush1.msra.mxu0 0.0
    %5339 = vmatprep.subr.mxu0 0.0
    %5340 = vmatpush1.msra.mxu0 0.0
    %5341 = vmatprep.subr.mxu0 0.0
    %5342 = vmatpush1.msra.mxu0 0.0
    %5343 = vmatprep.subr.mxu0 0.0
    %5344 = vmatpush1.msra.mxu0 0.0
    %5345 = vmatprep.subr.mxu0 0.0
    %5346 = vmatpush1.msra.mxu0 0.0
    %5347 = vmatprep.subr.mxu0 0.0
    %5348 = vmatpush1.msra.mxu0 0.0
    %5349 = vmatprep.subr.mxu0 0.0
    %5350 = vmatpush1.msra.mxu0 0.0
    %5351 = vmatprep.subr.mxu0 0.0
    %5352 = vmatpush1.msra.mxu0 0.0
    %5353 = vmatprep.subr.mxu0 0.0
    %5354 = vmatpush1.msra.mxu0 0.0
    %5355 = vmatprep.subr.mxu0 0.0
    %5356 = vmatpush1.msra.mxu0 0.0
    %5357 = vmatprep.subr.mxu0 0.0
    %5358 = vmatpush1.msra.mxu0 0.0
    %5359 = vmatprep.subr.mxu0 0.0
    %5360 = vmatpush1.msra.mxu0 0.0
    %5361 = vmatprep.subr.mxu0 0.0
    %5362 = vmatpush1.msra.mxu0 0.0
    %5363 = vmatprep.subr.mxu0 0.0
    %5364 = vmatpush1.msra.mxu0 0.0
    %5365 = vmatprep.subr.mxu0 0.0
    %5366 = vmatpush1.msra.mxu0 0.0
    %5367 = vmatprep.subr.mxu0 0.0
    %5368 = vmatpush1.msra.mxu0 0.0
    %5369 = vmatprep.subr.mxu0 0.0
    %5370 = vmatpush1.msra.mxu0 0.0
    %5371 = vmatprep.subr.mxu0 0.0
    %5372 = vmatpush1.msra.mxu0 0.0
    %5373 = vmatprep.subr.mxu0 0.0
    %5374 = vmatpush1.msra.mxu0 0.0
    %5375 = vmatprep.subr.mxu0 0.0
    %5376 = vmatpush1.msra.mxu0 0.0
    %5377 = vmatprep.subr.mxu0 0.0
    %5378 = vmatpush1.msra.mxu0 0.0
    %5379 = vmatprep.subr.mxu0 0.0
    %5380 = vmatpush1.msra.mxu0 0.0
    %5381 = vmatprep.subr.mxu0 0.0
    %5382 = vmatpush1.msra.mxu0 0.0
    %5383 = vmatprep.subr.mxu0 0.0
    %5384 = vmatpush1.msra.mxu0 0.0
    %5385 = vmatprep.subr.mxu0 0.0
    %5386 = vmatpush1.msra.mxu0 0.0
    %5387 = vmatprep.subr.mxu0 0.0
    %5388 = vmatpush1.msra.mxu0 0.0
    %5389 = vmatprep.mubr.f32.mxu0 0.0
    %5390 = vmatmul.mubr.f32.gmra.mrb[0].mxu0 %v5314
    %v5391 = vpop.f32.mrb[0].mxu0
    %v5392 = vadd.f32 0.0, %v5391
    %v5393 = vpop.f32.mrb[0].mxu0
    %5394 = vmatprep.mubr.f32.mxu0 0.0
    %5395 = vmatmul.mubr.f32.gmra.mrb[0].mxu0 %v5317
    %v5396 = vpop.f32.mrb[0].mxu0
    %v5397 = vadd.f32 0.0, %v5396
    %v5398 = vpop.f32.mrb[0].mxu0
    %5399 = vmatprep.mubr.f32.mxu0 0.0
    %5400 = vmatmul.mubr.f32.gmra.mrb[0].mxu0 %v5320
    %v5401 = vpop.f32.mrb[0].mxu0
    %v5402 = vadd.f32 0.0, %v5401
    %v5403 = vpop.f32.mrb[0].mxu0
    %5404 = vmatprep.mubr.f32.mxu0 0.0
    %5405 = vmatmul.mubr.f32.gmra.mrb[0].mxu0 %v5323
    %v5406 = vpop.f32.mrb[0].mxu0
    %v5407 = vadd.f32 0.0, %v5406
    %v5408 = vpop.f32.mrb[0].mxu0
    %5409 = vdwg.mxu0
    %v5411 = vsel %vm5168, %v5206, 0
    %v5414 = vsel %vm5168, %v5208, 0
    %v5417 = vsel %vm5168, %v5210, 0
    %v5420 = vsel %vm5168, %v5212, 0
    %5422 = vmatprep.subr.mxu0 0.0
    %5423 = vmatpush1.msra.mxu0 %v4952
    %5424 = vmatprep.subr.mxu0 0.0
    %5425 = vmatpush1.msra.mxu0 %v4958
    %5426 = vmatprep.subr.mxu0 0.0
    %5427 = vmatpush1.msra.mxu0 %v4964
    %5428 = vmatprep.subr.mxu0 0.0
    %5429 = vmatpush1.msra.mxu0 %v4970
    %5430 = vmatprep.subr.mxu0 0.0
    %5431 = vmatpush1.msra.mxu0 0.0
    %5432 = vmatprep.subr.mxu0 0.0
    %5433 = vmatpush1.msra.mxu0 0.0
    %5434 = vmatprep.subr.mxu0 0.0
    %5435 = vmatpush1.msra.mxu0 0.0
    %5436 = vmatprep.subr.mxu0 0.0
    %5437 = vmatpush1.msra.mxu0 0.0
    %5438 = vmatprep.subr.mxu0 0.0
    %5439 = vmatpush1.msra.mxu0 0.0
    %5440 = vmatprep.subr.mxu0 0.0
    %5441 = vmatpush1.msra.mxu0 0.0
    %5442 = vmatprep.subr.mxu0 0.0
    %5443 = vmatpush1.msra.mxu0 0.0
    %5444 = vmatprep.subr.mxu0 0.0
    %5445 = vmatpush1.msra.mxu0 0.0
    %5446 = vmatprep.subr.mxu0 0.0
    %5447 = vmatpush1.msra.mxu0 0.0
    %5448 = vmatprep.subr.mxu0 0.0
    %5449 = vmatpush1.msra.mxu0 0.0
    %5450 = vmatprep.subr.mxu0 0.0
    %5451 = vmatpush1.msra.mxu0 0.0
    %5452 = vmatprep.subr.mxu0 0.0
    %5453 = vmatpush1.msra.mxu0 0.0
    %5454 = vmatprep.subr.mxu0 0.0
    %5455 = vmatpush1.msra.mxu0 0.0
    %5456 = vmatprep.subr.mxu0 0.0
    %5457 = vmatpush1.msra.mxu0 0.0
    %5458 = vmatprep.subr.mxu0 0.0
    %5459 = vmatpush1.msra.mxu0 0.0
    %5460 = vmatprep.subr.mxu0 0.0
    %5461 = vmatpush1.msra.mxu0 0.0
    %5462 = vmatprep.subr.mxu0 0.0
    %5463 = vmatpush1.msra.mxu0 0.0
    %5464 = vmatprep.subr.mxu0 0.0
    %5465 = vmatpush1.msra.mxu0 0.0
    %5466 = vmatprep.subr.mxu0 0.0
    %5467 = vmatpush1.msra.mxu0 0.0
    %5468 = vmatprep.subr.mxu0 0.0
    %5469 = vmatpush1.msra.mxu0 0.0
    %5470 = vmatprep.subr.mxu0 0.0
    %5471 = vmatpush1.msra.mxu0 0.0
    %5472 = vmatprep.subr.mxu0 0.0
    %5473 = vmatpush1.msra.mxu0 0.0
    %5474 = vmatprep.subr.mxu0 0.0
    %5475 = vmatpush1.msra.mxu0 0.0
    %5476 = vmatprep.subr.mxu0 0.0
    %5477 = vmatpush1.msra.mxu0 0.0
    %5478 = vmatprep.subr.mxu0 0.0
    %5479 = vmatpush1.msra.mxu0 0.0
    %5480 = vmatprep.subr.mxu0 0.0
    %5481 = vmatpush1.msra.mxu0 0.0
    %5482 = vmatprep.subr.mxu0 0.0
    %5483 = vmatpush1.msra.mxu0 0.0
    %5484 = vmatprep.subr.mxu0 0.0
    %5485 = vmatpush1.msra.mxu0 0.0
    %5486 = vmatprep.mubr.f32.mxu0 0.0
    %5487 = vmatmul.mubr.f32.gmra.mrb[0].mxu0 %v5411
    %v5488 = vpop.f32.mrb[0].mxu0
    %v5489 = vadd.f32 %v5392, %v5488
    %v5490 = vpop.f32.mrb[0].mxu0
    %5491 = vmatprep.mubr.f32.mxu0 0.0
    %5492 = vmatmul.mubr.f32.gmra.mrb[0].mxu0 %v5414
    %v5493 = vpop.f32.mrb[0].mxu0
    %v5494 = vadd.f32 %v5397, %v5493
    %v5495 = vpop.f32.mrb[0].mxu0
    %5496 = vmatprep.mubr.f32.mxu0 0.0
    %5497 = vmatmul.mubr.f32.gmra.mrb[0].mxu0 %v5417
    %v5498 = vpop.f32.mrb[0].mxu0
    %v5499 = vadd.f32 %v5402, %v5498
    %v5500 = vpop.f32.mrb[0].mxu0
    %5501 = vmatprep.mubr.f32.mxu0 0.0
    %5502 = vmatmul.mubr.f32.gmra.mrb[0].mxu0 %v5420
    %v5503 = vpop.f32.mrb[0].mxu0
    %v5504 = vadd.f32 %v5407, %v5503
    %v5505 = vpop.f32.mrb[0].mxu0
    %5506 = vdwg.mxu0
    %5507 = vset.pattern.permute.xlu0 6
    %5508 = vperm.xlu0 %5507, %v5070
    %v5509 = vpop.permute.xlu0 %5508
    %5511 = vset.pattern.permute.xlu0 6
    %5512 = vperm.xlu0 %5511, %v5075
    %v5513 = vpop.permute.xlu0 %5512
    %5515 = vset.pattern.permute.xlu0 6
    %5516 = vperm.xlu0 %5515, %v5080
    %v5517 = vpop.permute.xlu0 %5516
    %5519 = vset.pattern.permute.xlu0 6
    %5520 = vperm.xlu0 %5519, %v5085
    %v5521 = vpop.permute.xlu0 %5520
    %v5523 = vlaneseq
    %v5524 = vshrl.u32 %v5523, 7
    %v5525 = vsub.s32 2, %v5524
    %v5526 = vrot.slane %v5104, %v5525
    %v5527 = vadd.f32 %v5509, %v5526
    %v5528 = vadd.f32 %v5513, %v5526
    %v5529 = vadd.f32 %v5517, %v5526
    %v5530 = vadd.f32 %v5521, %v5526
    %vm5531 = vcmp.gt.f32.partialorder %v5527, 0.0
    %vm5532 = vcmp.gt.f32.partialorder %v5528, 0.0
    %vm5533 = vcmp.gt.f32.partialorder %v5529, 0.0
    %vm5534 = vcmp.gt.f32.partialorder %v5530, 0.0
    %v5535 = vmul.f32 %v5527, 0.2
    %v5536 = vmul.f32 %v5528, 0.2
    %v5537 = vmul.f32 %v5529, 0.2
    %v5538 = vmul.f32 %v5530, 0.2
    %v5539 = vsel %vm5531, %v5527, %v5535
    %v5540 = vsel %vm5532, %v5528, %v5536
    %v5541 = vsel %vm5533, %v5529, %v5537
    %v5542 = vsel %vm5534, %v5530, %v5538
    %v5543 = vsel %vm5160, %v5539, -1e+30
    %v5544 = vsel %vm5161, %v5540, -1e+30
    %v5545 = vsel %vm5162, %v5541, -1e+30
    %v5546 = vsel %vm5163, %v5542, -1e+30
    %v5547 = vsel %vm5168, %v5543, -inf
    %5548 = vmax.xlane.f32.xlu0 %v5547
    %v5549 = vpop.xlane.xlu0 %5548
    %v5550 = vsel %vm5168, %v5544, -inf
    %5551 = vmax.xlane.f32.xlu0 %v5550
    %v5552 = vpop.xlane.xlu0 %5551
    %v5553 = vsel %vm5168, %v5545, -inf
    %5554 = vmax.xlane.f32.xlu0 %v5553
    %v5555 = vpop.xlane.xlu0 %5554
    %v5556 = vsel %vm5168, %v5546, -inf
    %5557 = vmax.xlane.f32.xlu0 %v5556
    %v5558 = vpop.xlane.xlu0 %5557
    %v5559 = vsub.f32 %v5543, %v5549
    %v5560 = vsub.f32 %v5544, %v5552
    %v5561 = vsub.f32 %v5545, %v5555
    %v5562 = vsub.f32 %v5546, %v5558
    %v5563 = vmul.f32 %v5559, 1.442695
    %v5564 = vpow.pop %v5563
    %v5565 = vmul.f32 %v5560, 1.442695
    %v5566 = vpow.pop %v5565
    %v5567 = vmul.f32 %v5561, 1.442695
    %v5568 = vpow.pop %v5567
    %v5569 = vmul.f32 %v5562, 1.442695
    %v5570 = vpow.pop %v5569
    %v5571 = vsel %vm5168, %v5564, 0.0
    %5572 = vadd.xlane.f32.xlu0 %v5571
    %v5573 = vpop.xlane.xlu0 %5572
    %v5574 = vsel %vm5168, %v5566, 0.0
    %5575 = vadd.xlane.f32.xlu0 %v5574
    %v5576 = vpop.xlane.xlu0 %5575
    %v5577 = vsel %vm5168, %v5568, 0.0
    %5578 = vadd.xlane.f32.xlu0 %v5577
    %v5579 = vpop.xlane.xlu0 %5578
    %v5580 = vsel %vm5168, %v5570, 0.0
    %5581 = vadd.xlane.f32.xlu0 %v5580
    %v5582 = vpop.xlane.xlu0 %5581
    %v5583 = vrcp.pop %v5573
    %v5584 = vmul.f32 %v5564, %v5583
    %v5585 = vrcp.pop %v5576
    %v5586 = vmul.f32 %v5566, %v5585
    %v5587 = vrcp.pop %v5579
    %v5588 = vmul.f32 %v5568, %v5587
    %v5589 = vrcp.pop %v5582
    %v5590 = vmul.f32 %v5570, %v5589
    %5591 = vrot.lane.b32.xlu0 %v4952, 64
    %v5592 = vpop.permute.xlu0 %5591
    %5593 = vrot.lane.b32.xlu0 %v4958, 64
    %v5594 = vpop.permute.xlu0 %5593
    %5595 = vrot.lane.b32.xlu0 %v4964, 64
    %v5596 = vpop.permute.xlu0 %5595
    %5597 = vrot.lane.b32.xlu0 %v4970, 64
    %v5598 = vpop.permute.xlu0 %5597
    %v5604 = vsel %vm5168, %v5584, 0
    %v5607 = vsel %vm5168, %v5586, 0
    %v5610 = vsel %vm5168, %v5588, 0
    %v5613 = vsel %vm5168, %v5590, 0
    %5615 = vmatprep.subr.mxu0 0.0
    %5616 = vmatpush1.msra.mxu0 %v5592
    %5617 = vmatprep.subr.mxu0 0.0
    %5618 = vmatpush1.msra.mxu0 %v5594
    %5619 = vmatprep.subr.mxu0 0.0
    %5620 = vmatpush1.msra.mxu0 %v5596
    %5621 = vmatprep.subr.mxu0 0.0
    %5622 = vmatpush1.msra.mxu0 %v5598
    %5623 = vmatprep.subr.mxu0 0.0
    %5624 = vmatpush1.msra.mxu0 0.0
    %5625 = vmatprep.subr.mxu0 0.0
    %5626 = vmatpush1.msra.mxu0 0.0
    %5627 = vmatprep.subr.mxu0 0.0
    %5628 = vmatpush1.msra.mxu0 0.0
    %5629 = vmatprep.subr.mxu0 0.0
    %5630 = vmatpush1.msra.mxu0 0.0
    %5631 = vmatprep.subr.mxu0 0.0
    %5632 = vmatpush1.msra.mxu0 0.0
    %5633 = vmatprep.subr.mxu0 0.0
    %5634 = vmatpush1.msra.mxu0 0.0
    %5635 = vmatprep.subr.mxu0 0.0
    %5636 = vmatpush1.msra.mxu0 0.0
    %5637 = vmatprep.subr.mxu0 0.0
    %5638 = vmatpush1.msra.mxu0 0.0
    %5639 = vmatprep.subr.mxu0 0.0
    %5640 = vmatpush1.msra.mxu0 0.0
    %5641 = vmatprep.subr.mxu0 0.0
    %5642 = vmatpush1.msra.mxu0 0.0
    %5643 = vmatprep.subr.mxu0 0.0
    %5644 = vmatpush1.msra.mxu0 0.0
    %5645 = vmatprep.subr.mxu0 0.0
    %5646 = vmatpush1.msra.mxu0 0.0
    %5647 = vmatprep.subr.mxu0 0.0
    %5648 = vmatpush1.msra.mxu0 0.0
    %5649 = vmatprep.subr.mxu0 0.0
    %5650 = vmatpush1.msra.mxu0 0.0
    %5651 = vmatprep.subr.mxu0 0.0
    %5652 = vmatpush1.msra.mxu0 0.0
    %5653 = vmatprep.subr.mxu0 0.0
    %5654 = vmatpush1.msra.mxu0 0.0
    %5655 = vmatprep.subr.mxu0 0.0
    %5656 = vmatpush1.msra.mxu0 0.0
    %5657 = vmatprep.subr.mxu0 0.0
    %5658 = vmatpush1.msra.mxu0 0.0
    %5659 = vmatprep.subr.mxu0 0.0
    %5660 = vmatpush1.msra.mxu0 0.0
    %5661 = vmatprep.subr.mxu0 0.0
    %5662 = vmatpush1.msra.mxu0 0.0
    %5663 = vmatprep.subr.mxu0 0.0
    %5664 = vmatpush1.msra.mxu0 0.0
    %5665 = vmatprep.subr.mxu0 0.0
    %5666 = vmatpush1.msra.mxu0 0.0
    %5667 = vmatprep.subr.mxu0 0.0
    %5668 = vmatpush1.msra.mxu0 0.0
    %5669 = vmatprep.subr.mxu0 0.0
    %5670 = vmatpush1.msra.mxu0 0.0
    %5671 = vmatprep.subr.mxu0 0.0
    %5672 = vmatpush1.msra.mxu0 0.0
    %5673 = vmatprep.subr.mxu0 0.0
    %5674 = vmatpush1.msra.mxu0 0.0
    %5675 = vmatprep.subr.mxu0 0.0
    %5676 = vmatpush1.msra.mxu0 0.0
    %5677 = vmatprep.subr.mxu0 0.0
    %5678 = vmatpush1.msra.mxu0 0.0
    %5679 = vmatprep.mubr.f32.mxu0 0.0
    %5680 = vmatmul.mubr.f32.gmra.mrb[0].mxu0 %v5604
    %v5681 = vpop.f32.mrb[0].mxu0
    %v5682 = vadd.f32 0.0, %v5681
    %v5683 = vpop.f32.mrb[0].mxu0
    %5684 = vmatprep.mubr.f32.mxu0 0.0
    %5685 = vmatmul.mubr.f32.gmra.mrb[0].mxu0 %v5607
    %v5686 = vpop.f32.mrb[0].mxu0
    %v5687 = vadd.f32 0.0, %v5686
    %v5688 = vpop.f32.mrb[0].mxu0
    %5689 = vmatprep.mubr.f32.mxu0 0.0
    %5690 = vmatmul.mubr.f32.gmra.mrb[0].mxu0 %v5610
    %v5691 = vpop.f32.mrb[0].mxu0
    %v5692 = vadd.f32 0.0, %v5691
    %v5693 = vpop.f32.mrb[0].mxu0
    %5694 = vmatprep.mubr.f32.mxu0 0.0
    %5695 = vmatmul.mubr.f32.gmra.mrb[0].mxu0 %v5613
    %v5696 = vpop.f32.mrb[0].mxu0
    %v5697 = vadd.f32 0.0, %v5696
    %v5698 = vpop.f32.mrb[0].mxu0
    %5699 = vdwg.mxu0
    %v5700 = vadd.f32 %v5489, %v5682
    %v5701 = vadd.f32 %v5494, %v5687
    %v5702 = vadd.f32 %v5499, %v5692
    %v5703 = vadd.f32 %v5504, %v5697
    %5704 = vset.pattern.permute.xlu0 7
    %5705 = vperm.xlu0 %5704, %v5070
    %v5706 = vpop.permute.xlu0 %5705
    %5708 = vset.pattern.permute.xlu0 7
    %5709 = vperm.xlu0 %5708, %v5075
    %v5710 = vpop.permute.xlu0 %5709
    %5712 = vset.pattern.permute.xlu0 7
    %5713 = vperm.xlu0 %5712, %v5080
    %v5714 = vpop.permute.xlu0 %5713
    %5716 = vset.pattern.permute.xlu0 7
    %5717 = vperm.xlu0 %5716, %v5085
    %v5718 = vpop.permute.xlu0 %5717
    %v5720 = vlaneseq
    %v5721 = vshrl.u32 %v5720, 7
    %v5722 = vsub.s32 3, %v5721
    %v5723 = vrot.slane %v5104, %v5722
    %v5724 = vadd.f32 %v5706, %v5723
    %v5725 = vadd.f32 %v5710, %v5723
    %v5726 = vadd.f32 %v5714, %v5723
    %v5727 = vadd.f32 %v5718, %v5723
    %vm5728 = vcmp.gt.f32.partialorder %v5724, 0.0
    %vm5729 = vcmp.gt.f32.partialorder %v5725, 0.0
    %vm5730 = vcmp.gt.f32.partialorder %v5726, 0.0
    %vm5731 = vcmp.gt.f32.partialorder %v5727, 0.0
    %v5732 = vmul.f32 %v5724, 0.2
    %v5733 = vmul.f32 %v5725, 0.2
    %v5734 = vmul.f32 %v5726, 0.2
    %v5735 = vmul.f32 %v5727, 0.2
    %v5736 = vsel %vm5728, %v5724, %v5732
    %v5737 = vsel %vm5729, %v5725, %v5733
    %v5738 = vsel %vm5730, %v5726, %v5734
    %v5739 = vsel %vm5731, %v5727, %v5735
    %v5740 = vsel %vm5160, %v5736, -1e+30
    %v5741 = vsel %vm5161, %v5737, -1e+30
    %v5742 = vsel %vm5162, %v5738, -1e+30
    %v5743 = vsel %vm5163, %v5739, -1e+30
    %v5744 = vsel %vm5168, %v5740, -inf
    %5745 = vmax.xlane.f32.xlu0 %v5744
    %v5746 = vpop.xlane.xlu0 %5745
    %v5747 = vsel %vm5168, %v5741, -inf
    %5748 = vmax.xlane.f32.xlu0 %v5747
    %v5749 = vpop.xlane.xlu0 %5748
    %v5750 = vsel %vm5168, %v5742, -inf
    %5751 = vmax.xlane.f32.xlu0 %v5750
    %v5752 = vpop.xlane.xlu0 %5751
    %v5753 = vsel %vm5168, %v5743, -inf
    %5754 = vmax.xlane.f32.xlu0 %v5753
    %v5755 = vpop.xlane.xlu0 %5754
    %v5756 = vsub.f32 %v5740, %v5746
    %v5757 = vsub.f32 %v5741, %v5749
    %v5758 = vsub.f32 %v5742, %v5752
    %v5759 = vsub.f32 %v5743, %v5755
    %v5760 = vmul.f32 %v5756, 1.442695
    %v5761 = vpow.pop %v5760
    %v5762 = vmul.f32 %v5757, 1.442695
    %v5763 = vpow.pop %v5762
    %v5764 = vmul.f32 %v5758, 1.442695
    %v5765 = vpow.pop %v5764
    %v5766 = vmul.f32 %v5759, 1.442695
    %v5767 = vpow.pop %v5766
    %v5768 = vsel %vm5168, %v5761, 0.0
    %5769 = vadd.xlane.f32.xlu0 %v5768
    %v5770 = vpop.xlane.xlu0 %5769
    %v5771 = vsel %vm5168, %v5763, 0.0
    %5772 = vadd.xlane.f32.xlu0 %v5771
    %v5773 = vpop.xlane.xlu0 %5772
    %v5774 = vsel %vm5168, %v5765, 0.0
    %5775 = vadd.xlane.f32.xlu0 %v5774
    %v5776 = vpop.xlane.xlu0 %5775
    %v5777 = vsel %vm5168, %v5767, 0.0
    %5778 = vadd.xlane.f32.xlu0 %v5777
    %v5779 = vpop.xlane.xlu0 %5778
    %v5780 = vrcp.pop %v5770
    %v5781 = vmul.f32 %v5761, %v5780
    %v5782 = vrcp.pop %v5773
    %v5783 = vmul.f32 %v5763, %v5782
    %v5784 = vrcp.pop %v5776
    %v5785 = vmul.f32 %v5765, %v5784
    %v5786 = vrcp.pop %v5779
    %v5787 = vmul.f32 %v5767, %v5786
    %5788 = vrot.lane.b32.xlu0 %v4952, 32
    %v5789 = vpop.permute.xlu0 %5788
    %5790 = vrot.lane.b32.xlu0 %v4958, 32
    %v5791 = vpop.permute.xlu0 %5790
    %5792 = vrot.lane.b32.xlu0 %v4964, 32
    %v5793 = vpop.permute.xlu0 %5792
    %5794 = vrot.lane.b32.xlu0 %v4970, 32
    %v5795 = vpop.permute.xlu0 %5794
    %v5801 = vsel %vm5168, %v5781, 0
    %v5804 = vsel %vm5168, %v5783, 0
    %v5807 = vsel %vm5168, %v5785, 0
    %v5810 = vsel %vm5168, %v5787, 0
    %5812 = vmatprep.subr.mxu0 0.0
    %5813 = vmatpush1.msra.mxu0 %v5789
    %5814 = vmatprep.subr.mxu0 0.0
    %5815 = vmatpush1.msra.mxu0 %v5791
    %5816 = vmatprep.subr.mxu0 0.0
    %5817 = vmatpush1.msra.mxu0 %v5793
    %5818 = vmatprep.subr.mxu0 0.0
    %5819 = vmatpush1.msra.mxu0 %v5795
    %5820 = vmatprep.subr.mxu0 0.0
    %5821 = vmatpush1.msra.mxu0 0.0
    %5822 = vmatprep.subr.mxu0 0.0
    %5823 = vmatpush1.msra.mxu0 0.0
    %5824 = vmatprep.subr.mxu0 0.0
    %5825 = vmatpush1.msra.mxu0 0.0
    %5826 = vmatprep.subr.mxu0 0.0
    %5827 = vmatpush1.msra.mxu0 0.0
    %5828 = vmatprep.subr.mxu0 0.0
    %5829 = vmatpush1.msra.mxu0 0.0
    %5830 = vmatprep.subr.mxu0 0.0
    %5831 = vmatpush1.msra.mxu0 0.0
    %5832 = vmatprep.subr.mxu0 0.0
    %5833 = vmatpush1.msra.mxu0 0.0
    %5834 = vmatprep.subr.mxu0 0.0
    %5835 = vmatpush1.msra.mxu0 0.0
    %5836 = vmatprep.subr.mxu0 0.0
    %5837 = vmatpush1.msra.mxu0 0.0
    %5838 = vmatprep.subr.mxu0 0.0
    %5839 = vmatpush1.msra.mxu0 0.0
    %5840 = vmatprep.subr.mxu0 0.0
    %5841 = vmatpush1.msra.mxu0 0.0
    %5842 = vmatprep.subr.mxu0 0.0
    %5843 = vmatpush1.msra.mxu0 0.0
    %5844 = vmatprep.subr.mxu0 0.0
    %5845 = vmatpush1.msra.mxu0 0.0
    %5846 = vmatprep.subr.mxu0 0.0
    %5847 = vmatpush1.msra.mxu0 0.0
    %5848 = vmatprep.subr.mxu0 0.0
    %5849 = vmatpush1.msra.mxu0 0.0
    %5850 = vmatprep.subr.mxu0 0.0
    %5851 = vmatpush1.msra.mxu0 0.0
    %5852 = vmatprep.subr.mxu0 0.0
    %5853 = vmatpush1.msra.mxu0 0.0
    %5854 = vmatprep.subr.mxu0 0.0
    %5855 = vmatpush1.msra.mxu0 0.0
    %5856 = vmatprep.subr.mxu0 0.0
    %5857 = vmatpush1.msra.mxu0 0.0
    %5858 = vmatprep.subr.mxu0 0.0
    %5859 = vmatpush1.msra.mxu0 0.0
    %5860 = vmatprep.subr.mxu0 0.0
    %5861 = vmatpush1.msra.mxu0 0.0
    %5862 = vmatprep.subr.mxu0 0.0
    %5863 = vmatpush1.msra.mxu0 0.0
    %5864 = vmatprep.subr.mxu0 0.0
    %5865 = vmatpush1.msra.mxu0 0.0
    %5866 = vmatprep.subr.mxu0 0.0
    %5867 = vmatpush1.msra.mxu0 0.0
    %5868 = vmatprep.subr.mxu0 0.0
    %5869 = vmatpush1.msra.mxu0 0.0
    %5870 = vmatprep.subr.mxu0 0.0
    %5871 = vmatpush1.msra.mxu0 0.0
    %5872 = vmatprep.subr.mxu0 0.0
    %5873 = vmatpush1.msra.mxu0 0.0
    %5874 = vmatprep.subr.mxu0 0.0
    %5875 = vmatpush1.msra.mxu0 0.0
    %5876 = vmatprep.mubr.f32.mxu0 0.0
    %5877 = vmatmul.mubr.f32.gmra.mrb[0].mxu0 %v5801
    %v5878 = vpop.f32.mrb[0].mxu0
    %v5879 = vadd.f32 0.0, %v5878
    %v5880 = vpop.f32.mrb[0].mxu0
    %5881 = vmatprep.mubr.f32.mxu0 0.0
    %5882 = vmatmul.mubr.f32.gmra.mrb[0].mxu0 %v5804
    %v5883 = vpop.f32.mrb[0].mxu0
    %v5884 = vadd.f32 0.0, %v5883
    %v5885 = vpop.f32.mrb[0].mxu0
    %5886 = vmatprep.mubr.f32.mxu0 0.0
    %5887 = vmatmul.mubr.f32.gmra.mrb[0].mxu0 %v5807
    %v5888 = vpop.f32.mrb[0].mxu0
    %v5889 = vadd.f32 0.0, %v5888
    %v5890 = vpop.f32.mrb[0].mxu0
    %5891 = vmatprep.mubr.f32.mxu0 0.0
    %5892 = vmatmul.mubr.f32.gmra.mrb[0].mxu0 %v5810
    %v5893 = vpop.f32.mrb[0].mxu0
    %v5894 = vadd.f32 0.0, %v5893
    %v5895 = vpop.f32.mrb[0].mxu0
    %5896 = vdwg.mxu0
    %v5897 = vadd.f32 %v5700, %v5879
    %v5898 = vadd.f32 %v5701, %v5884
    %v5899 = vadd.f32 %v5702, %v5889
    %v5900 = vadd.f32 %v5703, %v5894
    %v5901 = vmul.f32 %v5897, 0.25
    %v5902 = vmul.f32 %v5898, 0.25
    %v5903 = vmul.f32 %v5899, 0.25
    %v5904 = vmul.f32 %v5900, 0.25
    %v5905 = vld [vmem:[%s7] sm:$0x1]
    %v5906 = vlaneseq
    %v5907 = vshrl.u32 %v5906, 7
    %v5908 = vsub.s32 0, %v5907
    %v5909 = vrot.slane %v5905, %v5908
    %v5910 = vadd.f32 %v5901, %v5909
    %v5911 = vadd.f32 %v5902, %v5909
    %v5912 = vadd.f32 %v5903, %v5909
    %v5913 = vadd.f32 %v5904, %v5909
    %v5914 = vld [vmem:[%s7 + $0x1] sm:$0x1]
    %v5915 = vlaneseq
    %v5916 = vshrl.u32 %v5915, 7
    %v5917 = vsub.s32 0, %v5916
    %v5918 = vrot.slane %v5914, %v5917
    %v5919 = vmul.f32 %v5910, %v5918
    %v5920 = vmul.f32 %v5911, %v5918
    %v5921 = vmul.f32 %v5912, %v5918
    %v5922 = vmul.f32 %v5913, %v5918
    %v5923 = vld [vmem:[%s7 + $0x2] sm:$0x1]
    %v5924 = vlaneseq
    %v5925 = vshrl.u32 %v5924, 7
    %v5926 = vsub.s32 0, %v5925
    %v5927 = vrot.slane %v5923, %v5926
    %v5928 = vadd.f32 %v5919, %v5927
    %v5929 = vadd.f32 %v5920, %v5927
    %v5930 = vadd.f32 %v5921, %v5927
    %v5931 = vadd.f32 %v5922, %v5927
    %v5932 = vadd.f32 %v5928, %v4979
    %v5933 = vadd.f32 %v5929, %v4980
    %v5934 = vadd.f32 %v5930, %v4981
    %v5935 = vadd.f32 %v5931, %v4982
    %v5936 = vmul.f32 %v5932, 0.5
    %v5937 = vmul.f32 %v5933, 0.5
    %v5938 = vmul.f32 %v5934, 0.5
    %v5939 = vmul.f32 %v5935, 0.5
    %v5940 = vmul.f32 %v5932, 0.70710677
    %v5941 = vmul.f32 %v5933, 0.70710677
    %v5942 = vmul.f32 %v5934, 0.70710677
    %v5943 = vmul.f32 %v5935, 0.70710677
    %v5944 = verf.f32.pop %v5940
    %v5945 = verf.f32.pop %v5941
    %v5946 = verf.f32.pop %v5942
    %v5947 = verf.f32.pop %v5943
    %v5948 = vadd.f32 %v5944, 1.0
    %v5949 = vadd.f32 %v5945, 1.0
    %v5950 = vadd.f32 %v5946, 1.0
    %v5951 = vadd.f32 %v5947, 1.0
    %v5952 = vmul.f32 %v5936, %v5948
    %v5953 = vmul.f32 %v5937, %v5949
    %v5954 = vmul.f32 %v5938, %v5950
    %v5955 = vmul.f32 %v5939, %v5951
    %v5956 = vld [vmem:[%s6] sm:$0xff]
    %v5957 = vld [vmem:[%s6 + $0x10] sm:$0xff]
    %v5958 = vld [vmem:[%s6 + $0x20] sm:$0xff]
    %v5959 = vld [vmem:[%s6 + $0x30] sm:$0xff]
    %v5961 = vsel %vm5168, %v5952, 0
    %v5964 = vsel %vm5168, %v5953, 0
    %v5967 = vsel %vm5168, %v5954, 0
    %v5970 = vsel %vm5168, %v5955, 0
    %5972 = vmatprep.subr.mxu0 0.0
    %5973 = vmatpush1.msra.mxu0 %v5956
    %5974 = vmatprep.subr.mxu0 0.0
    %5975 = vmatpush1.msra.mxu0 %v5957
    %5976 = vmatprep.subr.mxu0 0.0
    %5977 = vmatpush1.msra.mxu0 %v5958
    %5978 = vmatprep.subr.mxu0 0.0
    %5979 = vmatpush1.msra.mxu0 %v5959
    %5980 = vmatprep.subr.mxu0 0.0
    %5981 = vmatpush1.msra.mxu0 0.0
    %5982 = vmatprep.subr.mxu0 0.0
    %5983 = vmatpush1.msra.mxu0 0.0
    %5984 = vmatprep.subr.mxu0 0.0
    %5985 = vmatpush1.msra.mxu0 0.0
    %5986 = vmatprep.subr.mxu0 0.0
    %5987 = vmatpush1.msra.mxu0 0.0
    %5988 = vmatprep.subr.mxu0 0.0
    %5989 = vmatpush1.msra.mxu0 0.0
    %5990 = vmatprep.subr.mxu0 0.0
    %5991 = vmatpush1.msra.mxu0 0.0
    %5992 = vmatprep.subr.mxu0 0.0
    %5993 = vmatpush1.msra.mxu0 0.0
    %5994 = vmatprep.subr.mxu0 0.0
    %5995 = vmatpush1.msra.mxu0 0.0
    %5996 = vmatprep.subr.mxu0 0.0
    %5997 = vmatpush1.msra.mxu0 0.0
    %5998 = vmatprep.subr.mxu0 0.0
    %5999 = vmatpush1.msra.mxu0 0.0
    %6000 = vmatprep.subr.mxu0 0.0
    %6001 = vmatpush1.msra.mxu0 0.0
    %6002 = vmatprep.subr.mxu0 0.0
    %6003 = vmatpush1.msra.mxu0 0.0
    %6004 = vmatprep.subr.mxu0 0.0
    %6005 = vmatpush1.msra.mxu0 0.0
    %6006 = vmatprep.subr.mxu0 0.0
    %6007 = vmatpush1.msra.mxu0 0.0
    %6008 = vmatprep.subr.mxu0 0.0
    %6009 = vmatpush1.msra.mxu0 0.0
    %6010 = vmatprep.subr.mxu0 0.0
    %6011 = vmatpush1.msra.mxu0 0.0
    %6012 = vmatprep.subr.mxu0 0.0
    %6013 = vmatpush1.msra.mxu0 0.0
    %6014 = vmatprep.subr.mxu0 0.0
    %6015 = vmatpush1.msra.mxu0 0.0
    %6016 = vmatprep.subr.mxu0 0.0
    %6017 = vmatpush1.msra.mxu0 0.0
    %6018 = vmatprep.subr.mxu0 0.0
    %6019 = vmatpush1.msra.mxu0 0.0
    %6020 = vmatprep.subr.mxu0 0.0
    %6021 = vmatpush1.msra.mxu0 0.0
    %6022 = vmatprep.subr.mxu0 0.0
    %6023 = vmatpush1.msra.mxu0 0.0
    %6024 = vmatprep.subr.mxu0 0.0
    %6025 = vmatpush1.msra.mxu0 0.0
    %6026 = vmatprep.subr.mxu0 0.0
    %6027 = vmatpush1.msra.mxu0 0.0
    %6028 = vmatprep.subr.mxu0 0.0
    %6029 = vmatpush1.msra.mxu0 0.0
    %6030 = vmatprep.subr.mxu0 0.0
    %6031 = vmatpush1.msra.mxu0 0.0
    %6032 = vmatprep.subr.mxu0 0.0
    %6033 = vmatpush1.msra.mxu0 0.0
    %6034 = vmatprep.subr.mxu0 0.0
    %6035 = vmatpush1.msra.mxu0 0.0
    %6036 = vmatprep.mubr.f32.mxu0 0.0
    %6037 = vmatmul.mubr.f32.gmra.mrb[0].mxu0 %v5961
    %v6038 = vpop.f32.mrb[0].mxu0
    %v6039 = vadd.f32 0.0, %v6038
    %v6040 = vpop.f32.mrb[0].mxu0
    %6041 = vmatprep.mubr.f32.mxu0 0.0
    %6042 = vmatmul.mubr.f32.gmra.mrb[0].mxu0 %v5964
    %v6043 = vpop.f32.mrb[0].mxu0
    %v6044 = vadd.f32 0.0, %v6043
    %v6045 = vpop.f32.mrb[0].mxu0
    %6046 = vmatprep.mubr.f32.mxu0 0.0
    %6047 = vmatmul.mubr.f32.gmra.mrb[0].mxu0 %v5967
    %v6048 = vpop.f32.mrb[0].mxu0
    %v6049 = vadd.f32 0.0, %v6048
    %v6050 = vpop.f32.mrb[0].mxu0
    %6051 = vmatprep.mubr.f32.mxu0 0.0
    %6052 = vmatmul.mubr.f32.gmra.mrb[0].mxu0 %v5970
    %v6053 = vpop.f32.mrb[0].mxu0
    %v6054 = vadd.f32 0.0, %v6053
    %v6055 = vpop.f32.mrb[0].mxu0
    %6056 = vdwg.mxu0
    %6073 = vrot.lane.b32.xlu0 %v4987, 120
    %v6074 = vpop.permute.xlu0 %6073
    %6075 = vrot.lane.b32.xlu0 %v4988, 120
    %v6076 = vpop.permute.xlu0 %6075
    %6077 = vrot.lane.b32.xlu0 %v4989, 120
    %v6078 = vpop.permute.xlu0 %6077
    %6079 = vrot.lane.b32.xlu0 %v4990, 120
    %v6080 = vpop.permute.xlu0 %6079
    %6081 = vrot.lane.b32.xlu0 %v4991, 120
    %v6082 = vpop.permute.xlu0 %6081
    %6083 = vrot.lane.b32.xlu0 %v4992, 120
    %v6084 = vpop.permute.xlu0 %6083
    %6085 = vrot.lane.b32.xlu0 %v4993, 120
    %v6086 = vpop.permute.xlu0 %6085
    %6087 = vrot.lane.b32.xlu0 %v4994, 120
    %v6088 = vpop.permute.xlu0 %6087
    %6089 = vrot.lane.b32.xlu0 %v4995, 120
    %v6090 = vpop.permute.xlu0 %6089
    %6091 = vrot.lane.b32.xlu0 %v4996, 120
    %v6092 = vpop.permute.xlu0 %6091
    %6093 = vrot.lane.b32.xlu0 %v4997, 120
    %v6094 = vpop.permute.xlu0 %6093
    %6095 = vrot.lane.b32.xlu0 %v4998, 120
    %v6096 = vpop.permute.xlu0 %6095
    %6097 = vrot.lane.b32.xlu0 %v4999, 120
    %v6098 = vpop.permute.xlu0 %6097
    %6099 = vrot.lane.b32.xlu0 %v5000, 120
    %v6100 = vpop.permute.xlu0 %6099
    %6101 = vrot.lane.b32.xlu0 %v5001, 120
    %v6102 = vpop.permute.xlu0 %6101
    %6103 = vrot.lane.b32.xlu0 %v5002, 120
    %v6104 = vpop.permute.xlu0 %6103
    %6121 = vmatprep.subr.mxu0 0.0
    %6122 = vmatpush1.msra.mxu0 %v6074
    %6123 = vmatprep.subr.mxu0 0.0
    %6124 = vmatpush1.msra.mxu0 %v6076
    %6125 = vmatprep.subr.mxu0 0.0
    %6126 = vmatpush1.msra.mxu0 %v6078
    %6127 = vmatprep.subr.mxu0 0.0
    %6128 = vmatpush1.msra.mxu0 %v6080
    %6129 = vmatprep.subr.mxu0 0.0
    %6130 = vmatpush1.msra.mxu0 %v6082
    %6131 = vmatprep.subr.mxu0 0.0
    %6132 = vmatpush1.msra.mxu0 %v6084
    %6133 = vmatprep.subr.mxu0 0.0
    %6134 = vmatpush1.msra.mxu0 %v6086
    %6135 = vmatprep.subr.mxu0 0.0
    %6136 = vmatpush1.msra.mxu0 %v6088
    %6137 = vmatprep.subr.mxu0 0.0
    %6138 = vmatpush1.msra.mxu0 %v6090
    %6139 = vmatprep.subr.mxu0 0.0
    %6140 = vmatpush1.msra.mxu0 %v6092
    %6141 = vmatprep.subr.mxu0 0.0
    %6142 = vmatpush1.msra.mxu0 %v6094
    %6143 = vmatprep.subr.mxu0 0.0
    %6144 = vmatpush1.msra.mxu0 %v6096
    %6145 = vmatprep.subr.mxu0 0.0
    %6146 = vmatpush1.msra.mxu0 %v6098
    %6147 = vmatprep.subr.mxu0 0.0
    %6148 = vmatpush1.msra.mxu0 %v6100
    %6149 = vmatprep.subr.mxu0 0.0
    %6150 = vmatpush1.msra.mxu0 %v6102
    %6151 = vmatprep.subr.mxu0 0.0
    %6152 = vmatpush1.msra.mxu0 %v6104
    %6153 = vmatprep.subr.mxu0 0.0
    %6154 = vmatpush1.msra.mxu0 0.0
    %6155 = vmatprep.subr.mxu0 0.0
    %6156 = vmatpush1.msra.mxu0 0.0
    %6157 = vmatprep.subr.mxu0 0.0
    %6158 = vmatpush1.msra.mxu0 0.0
    %6159 = vmatprep.subr.mxu0 0.0
    %6160 = vmatpush1.msra.mxu0 0.0
    %6161 = vmatprep.subr.mxu0 0.0
    %6162 = vmatpush1.msra.mxu0 0.0
    %6163 = vmatprep.subr.mxu0 0.0
    %6164 = vmatpush1.msra.mxu0 0.0
    %6165 = vmatprep.subr.mxu0 0.0
    %6166 = vmatpush1.msra.mxu0 0.0
    %6167 = vmatprep.subr.mxu0 0.0
    %6168 = vmatpush1.msra.mxu0 0.0
    %6169 = vmatprep.subr.mxu0 0.0
    %6170 = vmatpush1.msra.mxu0 0.0
    %6171 = vmatprep.subr.mxu0 0.0
    %6172 = vmatpush1.msra.mxu0 0.0
    %6173 = vmatprep.subr.mxu0 0.0
    %6174 = vmatpush1.msra.mxu0 0.0
    %6175 = vmatprep.subr.mxu0 0.0
    %6176 = vmatpush1.msra.mxu0 0.0
    %6177 = vmatprep.subr.mxu0 0.0
    %6178 = vmatpush1.msra.mxu0 0.0
    %6179 = vmatprep.subr.mxu0 0.0
    %6180 = vmatpush1.msra.mxu0 0.0
    %6181 = vmatprep.subr.mxu0 0.0
    %6182 = vmatpush1.msra.mxu0 0.0
    %6183 = vmatprep.subr.mxu0 0.0
    %6184 = vmatpush1.msra.mxu0 0.0
    %6185 = vmatprep.mubr.f32.mxu0 0.0
    %6186 = vmatmul.mubr.f32.gmra.mrb[0].mxu0 %v6039
    %v6187 = vpop.f32.mrb[0].mxu0
    %v6188 = vadd.f32 0.0, %v6187
    %v6189 = vpop.f32.mrb[0].mxu0
    %6190 = vmatprep.mubr.f32.mxu0 0.0
    %6191 = vmatmul.mubr.f32.gmra.mrb[0].mxu0 %v6044
    %v6192 = vpop.f32.mrb[0].mxu0
    %v6193 = vadd.f32 0.0, %v6192
    %v6194 = vpop.f32.mrb[0].mxu0
    %6195 = vmatprep.mubr.f32.mxu0 0.0
    %6196 = vmatmul.mubr.f32.gmra.mrb[0].mxu0 %v6049
    %v6197 = vpop.f32.mrb[0].mxu0
    %v6198 = vadd.f32 0.0, %v6197
    %v6199 = vpop.f32.mrb[0].mxu0
    %6200 = vmatprep.mubr.f32.mxu0 0.0
    %6201 = vmatmul.mubr.f32.gmra.mrb[0].mxu0 %v6054
    %v6202 = vpop.f32.mrb[0].mxu0
    %v6203 = vadd.f32 0.0, %v6202
    %v6204 = vpop.f32.mrb[0].mxu0
    %6205 = vdwg.mxu0
    %6206 = vxpose.xlu0.b32.start [1/16] %v6188, 128
    %6207 = vxpose.xlu0.b32.cont [2/16] %v6193, 128
    %6208 = vxpose.xlu0.b32.cont [3/16] %v6198, 128
    %6209 = vxpose.xlu0.b32.cont [4/16] %v6203, 128
    %6210 = vxpose.xlu0.b32.cont [5/16] 0.0, 128
    %6211 = vxpose.xlu0.b32.cont [6/16] 0.0, 128
    %6212 = vxpose.xlu0.b32.cont [7/16] 0.0, 128
    %6213 = vxpose.xlu0.b32.cont [8/16] 0.0, 128
    %6214 = vxpose.xlu0.b32.cont [9/16] 0.0, 128
    %6215 = vxpose.xlu0.b32.cont [10/16] 0.0, 128
    %6216 = vxpose.xlu0.b32.cont [11/16] 0.0, 128
    %6217 = vxpose.xlu0.b32.cont [12/16] 0.0, 128
    %6218 = vxpose.xlu0.b32.cont [13/16] 0.0, 128
    %6219 = vxpose.xlu0.b32.cont [14/16] 0.0, 128
    %6220 = vxpose.xlu0.b32.cont [15/16] 0.0, 128
    %6221 = vxpose.xlu0.b32.end [16/16] 0.0, 128
    %v6222 = vpop.trf.xlu0
    %v6223 = vpop.trf.xlu0
    %v6224 = vpop.trf.xlu0
    %v6225 = vpop.trf.xlu0
    %v6226 = vpop.trf.xlu0
    %v6227 = vpop.trf.xlu0
    %v6228 = vpop.trf.xlu0
    %v6229 = vpop.trf.xlu0
    %v6230 = vpop.trf.xlu0
    %v6231 = vpop.trf.xlu0
    %v6232 = vpop.trf.xlu0
    %v6233 = vpop.trf.xlu0
    %v6234 = vpop.trf.xlu0
    %v6235 = vpop.trf.xlu0
    %v6236 = vpop.trf.xlu0
    %v6237 = vpop.trf.xlu0
    %6239 = vset.pattern.permute.xlu0 4
    %6240 = vperm.xlu0 %6239, %v6188
    %v6241 = vpop.permute.xlu0 %6240
    %6244 = vset.pattern.permute.xlu0 4
    %6245 = vperm.xlu0 %6244, %v6193
    %v6246 = vpop.permute.xlu0 %6245
    %6249 = vset.pattern.permute.xlu0 4
    %6250 = vperm.xlu0 %6249, %v6198
    %v6251 = vpop.permute.xlu0 %6250
    %6254 = vset.pattern.permute.xlu0 4
    %6255 = vperm.xlu0 %6254, %v6203
    %v6256 = vpop.permute.xlu0 %6255
    %v6258 = vlaneseq
    %v6259 = vshrl.u32 %v6258, 7
    %v6260 = vsub.s32 0, %v6259
    %v6261 = vrot.slane %v6222, %v6260
    %v6262 = vadd.f32 %v6241, %v6261
    %v6263 = vadd.f32 %v6246, %v6261
    %v6264 = vadd.f32 %v6251, %v6261
    %v6265 = vadd.f32 %v6256, %v6261
    %vm6266 = vcmp.gt.f32.partialorder %v6262, 0.0
    %vm6267 = vcmp.gt.f32.partialorder %v6263, 0.0
    %vm6268 = vcmp.gt.f32.partialorder %v6264, 0.0
    %vm6269 = vcmp.gt.f32.partialorder %v6265, 0.0
    %v6270 = vmul.f32 %v6262, 0.2
    %v6271 = vmul.f32 %v6263, 0.2
    %v6272 = vmul.f32 %v6264, 0.2
    %v6273 = vmul.f32 %v6265, 0.2
    %v6274 = vsel %vm6266, %v6262, %v6270
    %v6275 = vsel %vm6267, %v6263, %v6271
    %v6276 = vsel %vm6268, %v6264, %v6272
    %v6277 = vsel %vm6269, %v6265, %v6273
    %v6278 = vsel %vm5160, %v6274, -1e+30
    %v6279 = vsel %vm5161, %v6275, -1e+30
    %v6280 = vsel %vm5162, %v6276, -1e+30
    %v6281 = vsel %vm5163, %v6277, -1e+30
    %v6282 = vsel %vm5168, %v6278, -inf
    %6283 = vmax.xlane.f32.xlu0 %v6282
    %v6284 = vpop.xlane.xlu0 %6283
    %v6285 = vsel %vm5168, %v6279, -inf
    %6286 = vmax.xlane.f32.xlu0 %v6285
    %v6287 = vpop.xlane.xlu0 %6286
    %v6288 = vsel %vm5168, %v6280, -inf
    %6289 = vmax.xlane.f32.xlu0 %v6288
    %v6290 = vpop.xlane.xlu0 %6289
    %v6291 = vsel %vm5168, %v6281, -inf
    %6292 = vmax.xlane.f32.xlu0 %v6291
    %v6293 = vpop.xlane.xlu0 %6292
    %v6294 = vsub.f32 %v6278, %v6284
    %v6295 = vsub.f32 %v6279, %v6287
    %v6296 = vsub.f32 %v6280, %v6290
    %v6297 = vsub.f32 %v6281, %v6293
    %v6298 = vmul.f32 %v6294, 1.442695
    %v6299 = vpow.pop %v6298
    %v6300 = vmul.f32 %v6295, 1.442695
    %v6301 = vpow.pop %v6300
    %v6302 = vmul.f32 %v6296, 1.442695
    %v6303 = vpow.pop %v6302
    %v6304 = vmul.f32 %v6297, 1.442695
    %v6305 = vpow.pop %v6304
    %v6306 = vsel %vm5168, %v6299, 0.0
    %6307 = vadd.xlane.f32.xlu0 %v6306
    %v6308 = vpop.xlane.xlu0 %6307
    %v6309 = vsel %vm5168, %v6301, 0.0
    %6310 = vadd.xlane.f32.xlu0 %v6309
    %v6311 = vpop.xlane.xlu0 %6310
    %v6312 = vsel %vm5168, %v6303, 0.0
    %6313 = vadd.xlane.f32.xlu0 %v6312
    %v6314 = vpop.xlane.xlu0 %6313
    %v6315 = vsel %vm5168, %v6305, 0.0
    %6316 = vadd.xlane.f32.xlu0 %v6315
    %v6317 = vpop.xlane.xlu0 %6316
    %v6318 = vrcp.pop %v6308
    %v6319 = vmul.f32 %v6299, %v6318
    %v6320 = vrcp.pop %v6311
    %v6321 = vmul.f32 %v6301, %v6320
    %v6322 = vrcp.pop %v6314
    %v6323 = vmul.f32 %v6303, %v6322
    %v6324 = vrcp.pop %v6317
    %v6325 = vmul.f32 %v6305, %v6324
    %6326 = vset.pattern.permute.xlu0 5
    %6327 = vperm.xlu0 %6326, %v6188
    %v6328 = vpop.permute.xlu0 %6327
    %6330 = vset.pattern.permute.xlu0 5
    %6331 = vperm.xlu0 %6330, %v6193
    %v6332 = vpop.permute.xlu0 %6331
    %6334 = vset.pattern.permute.xlu0 5
    %6335 = vperm.xlu0 %6334, %v6198
    %v6336 = vpop.permute.xlu0 %6335
    %6338 = vset.pattern.permute.xlu0 5
    %6339 = vperm.xlu0 %6338, %v6203
    %v6340 = vpop.permute.xlu0 %6339
    %v6342 = vlaneseq
    %v6343 = vshrl.u32 %v6342, 7
    %v6344 = vsub.s32 1, %v6343
    %v6345 = vrot.slane %v6222, %v6344
    %v6346 = vadd.f32 %v6328, %v6345
    %v6347 = vadd.f32 %v6332, %v6345
    %v6348 = vadd.f32 %v6336, %v6345
    %v6349 = vadd.f32 %v6340, %v6345
    %vm6350 = vcmp.gt.f32.partialorder %v6346, 0.0
    %vm6351 = vcmp.gt.f32.partialorder %v6347, 0.0
    %vm6352 = vcmp.gt.f32.partialorder %v6348, 0.0
    %vm6353 = vcmp.gt.f32.partialorder %v6349, 0.0
    %v6354 = vmul.f32 %v6346, 0.2
    %v6355 = vmul.f32 %v6347, 0.2
    %v6356 = vmul.f32 %v6348, 0.2
    %v6357 = vmul.f32 %v6349, 0.2
    %v6358 = vsel %vm6350, %v6346, %v6354
    %v6359 = vsel %vm6351, %v6347, %v6355
    %v6360 = vsel %vm6352, %v6348, %v6356
    %v6361 = vsel %vm6353, %v6349, %v6357
    %v6362 = vsel %vm5160, %v6358, -1e+30
    %v6363 = vsel %vm5161, %v6359, -1e+30
    %v6364 = vsel %vm5162, %v6360, -1e+30
    %v6365 = vsel %vm5163, %v6361, -1e+30
    %v6366 = vsel %vm5168, %v6362, -inf
    %6367 = vmax.xlane.f32.xlu0 %v6366
    %v6368 = vpop.xlane.xlu0 %6367
    %v6369 = vsel %vm5168, %v6363, -inf
    %6370 = vmax.xlane.f32.xlu0 %v6369
    %v6371 = vpop.xlane.xlu0 %6370
    %v6372 = vsel %vm5168, %v6364, -inf
    %6373 = vmax.xlane.f32.xlu0 %v6372
    %v6374 = vpop.xlane.xlu0 %6373
    %v6375 = vsel %vm5168, %v6365, -inf
    %6376 = vmax.xlane.f32.xlu0 %v6375
    %v6377 = vpop.xlane.xlu0 %6376
    %v6378 = vsub.f32 %v6362, %v6368
    %v6379 = vsub.f32 %v6363, %v6371
    %v6380 = vsub.f32 %v6364, %v6374
    %v6381 = vsub.f32 %v6365, %v6377
    %v6382 = vmul.f32 %v6378, 1.442695
    %v6383 = vpow.pop %v6382
    %v6384 = vmul.f32 %v6379, 1.442695
    %v6385 = vpow.pop %v6384
    %v6386 = vmul.f32 %v6380, 1.442695
    %v6387 = vpow.pop %v6386
    %v6388 = vmul.f32 %v6381, 1.442695
    %v6389 = vpow.pop %v6388
    %v6390 = vsel %vm5168, %v6383, 0.0
    %6391 = vadd.xlane.f32.xlu0 %v6390
    %v6392 = vpop.xlane.xlu0 %6391
    %v6393 = vsel %vm5168, %v6385, 0.0
    %6394 = vadd.xlane.f32.xlu0 %v6393
    %v6395 = vpop.xlane.xlu0 %6394
    %v6396 = vsel %vm5168, %v6387, 0.0
    %6397 = vadd.xlane.f32.xlu0 %v6396
    %v6398 = vpop.xlane.xlu0 %6397
    %v6399 = vsel %vm5168, %v6389, 0.0
    %6400 = vadd.xlane.f32.xlu0 %v6399
    %v6401 = vpop.xlane.xlu0 %6400
    %v6402 = vrcp.pop %v6392
    %v6403 = vmul.f32 %v6383, %v6402
    %v6404 = vrcp.pop %v6395
    %v6405 = vmul.f32 %v6385, %v6404
    %v6406 = vrcp.pop %v6398
    %v6407 = vmul.f32 %v6387, %v6406
    %v6408 = vrcp.pop %v6401
    %v6409 = vmul.f32 %v6389, %v6408
    %6414 = vrot.lane.b32.xlu0 %v6039, 96
    %v6415 = vpop.permute.xlu0 %6414
    %6416 = vrot.lane.b32.xlu0 %v6044, 96
    %v6417 = vpop.permute.xlu0 %6416
    %6418 = vrot.lane.b32.xlu0 %v6049, 96
    %v6419 = vpop.permute.xlu0 %6418
    %6420 = vrot.lane.b32.xlu0 %v6054, 96
    %v6421 = vpop.permute.xlu0 %6420
    %v6427 = vsel %vm5168, %v6403, 0
    %v6430 = vsel %vm5168, %v6405, 0
    %v6433 = vsel %vm5168, %v6407, 0
    %v6436 = vsel %vm5168, %v6409, 0
    %6438 = vmatprep.subr.mxu0 0.0
    %6439 = vmatpush1.msra.mxu0 %v6415
    %6440 = vmatprep.subr.mxu0 0.0
    %6441 = vmatpush1.msra.mxu0 %v6417
    %6442 = vmatprep.subr.mxu0 0.0
    %6443 = vmatpush1.msra.mxu0 %v6419
    %6444 = vmatprep.subr.mxu0 0.0
    %6445 = vmatpush1.msra.mxu0 %v6421
    %6446 = vmatprep.subr.mxu0 0.0
    %6447 = vmatpush1.msra.mxu0 0.0
    %6448 = vmatprep.subr.mxu0 0.0
    %6449 = vmatpush1.msra.mxu0 0.0
    %6450 = vmatprep.subr.mxu0 0.0
    %6451 = vmatpush1.msra.mxu0 0.0
    %6452 = vmatprep.subr.mxu0 0.0
    %6453 = vmatpush1.msra.mxu0 0.0
    %6454 = vmatprep.subr.mxu0 0.0
    %6455 = vmatpush1.msra.mxu0 0.0
    %6456 = vmatprep.subr.mxu0 0.0
    %6457 = vmatpush1.msra.mxu0 0.0
    %6458 = vmatprep.subr.mxu0 0.0
    %6459 = vmatpush1.msra.mxu0 0.0
    %6460 = vmatprep.subr.mxu0 0.0
    %6461 = vmatpush1.msra.mxu0 0.0
    %6462 = vmatprep.subr.mxu0 0.0
    %6463 = vmatpush1.msra.mxu0 0.0
    %6464 = vmatprep.subr.mxu0 0.0
    %6465 = vmatpush1.msra.mxu0 0.0
    %6466 = vmatprep.subr.mxu0 0.0
    %6467 = vmatpush1.msra.mxu0 0.0
    %6468 = vmatprep.subr.mxu0 0.0
    %6469 = vmatpush1.msra.mxu0 0.0
    %6470 = vmatprep.subr.mxu0 0.0
    %6471 = vmatpush1.msra.mxu0 0.0
    %6472 = vmatprep.subr.mxu0 0.0
    %6473 = vmatpush1.msra.mxu0 0.0
    %6474 = vmatprep.subr.mxu0 0.0
    %6475 = vmatpush1.msra.mxu0 0.0
    %6476 = vmatprep.subr.mxu0 0.0
    %6477 = vmatpush1.msra.mxu0 0.0
    %6478 = vmatprep.subr.mxu0 0.0
    %6479 = vmatpush1.msra.mxu0 0.0
    %6480 = vmatprep.subr.mxu0 0.0
    %6481 = vmatpush1.msra.mxu0 0.0
    %6482 = vmatprep.subr.mxu0 0.0
    %6483 = vmatpush1.msra.mxu0 0.0
    %6484 = vmatprep.subr.mxu0 0.0
    %6485 = vmatpush1.msra.mxu0 0.0
    %6486 = vmatprep.subr.mxu0 0.0
    %6487 = vmatpush1.msra.mxu0 0.0
    %6488 = vmatprep.subr.mxu0 0.0
    %6489 = vmatpush1.msra.mxu0 0.0
    %6490 = vmatprep.subr.mxu0 0.0
    %6491 = vmatpush1.msra.mxu0 0.0
    %6492 = vmatprep.subr.mxu0 0.0
    %6493 = vmatpush1.msra.mxu0 0.0
    %6494 = vmatprep.subr.mxu0 0.0
    %6495 = vmatpush1.msra.mxu0 0.0
    %6496 = vmatprep.subr.mxu0 0.0
    %6497 = vmatpush1.msra.mxu0 0.0
    %6498 = vmatprep.subr.mxu0 0.0
    %6499 = vmatpush1.msra.mxu0 0.0
    %6500 = vmatprep.subr.mxu0 0.0
    %6501 = vmatpush1.msra.mxu0 0.0
    %6502 = vmatprep.mubr.f32.mxu0 0.0
    %6503 = vmatmul.mubr.f32.gmra.mrb[0].mxu0 %v6427
    %v6504 = vpop.f32.mrb[0].mxu0
    %v6505 = vadd.f32 0.0, %v6504
    %v6506 = vpop.f32.mrb[0].mxu0
    %6507 = vmatprep.mubr.f32.mxu0 0.0
    %6508 = vmatmul.mubr.f32.gmra.mrb[0].mxu0 %v6430
    %v6509 = vpop.f32.mrb[0].mxu0
    %v6510 = vadd.f32 0.0, %v6509
    %v6511 = vpop.f32.mrb[0].mxu0
    %6512 = vmatprep.mubr.f32.mxu0 0.0
    %6513 = vmatmul.mubr.f32.gmra.mrb[0].mxu0 %v6433
    %v6514 = vpop.f32.mrb[0].mxu0
    %v6515 = vadd.f32 0.0, %v6514
    %v6516 = vpop.f32.mrb[0].mxu0
    %6517 = vmatprep.mubr.f32.mxu0 0.0
    %6518 = vmatmul.mubr.f32.gmra.mrb[0].mxu0 %v6436
    %v6519 = vpop.f32.mrb[0].mxu0
    %v6520 = vadd.f32 0.0, %v6519
    %v6521 = vpop.f32.mrb[0].mxu0
    %6522 = vdwg.mxu0
    %v6524 = vsel %vm5168, %v6319, 0
    %v6527 = vsel %vm5168, %v6321, 0
    %v6530 = vsel %vm5168, %v6323, 0
    %v6533 = vsel %vm5168, %v6325, 0
    %6535 = vmatprep.subr.mxu0 0.0
    %6536 = vmatpush1.msra.mxu0 %v6039
    %6537 = vmatprep.subr.mxu0 0.0
    %6538 = vmatpush1.msra.mxu0 %v6044
    %6539 = vmatprep.subr.mxu0 0.0
    %6540 = vmatpush1.msra.mxu0 %v6049
    %6541 = vmatprep.subr.mxu0 0.0
    %6542 = vmatpush1.msra.mxu0 %v6054
    %6543 = vmatprep.subr.mxu0 0.0
    %6544 = vmatpush1.msra.mxu0 0.0
    %6545 = vmatprep.subr.mxu0 0.0
    %6546 = vmatpush1.msra.mxu0 0.0
    %6547 = vmatprep.subr.mxu0 0.0
    %6548 = vmatpush1.msra.mxu0 0.0
    %6549 = vmatprep.subr.mxu0 0.0
    %6550 = vmatpush1.msra.mxu0 0.0
    %6551 = vmatprep.subr.mxu0 0.0
    %6552 = vmatpush1.msra.mxu0 0.0
    %6553 = vmatprep.subr.mxu0 0.0
    %6554 = vmatpush1.msra.mxu0 0.0
    %6555 = vmatprep.subr.mxu0 0.0
    %6556 = vmatpush1.msra.mxu0 0.0
    %6557 = vmatprep.subr.mxu0 0.0
    %6558 = vmatpush1.msra.mxu0 0.0
    %6559 = vmatprep.subr.mxu0 0.0
    %6560 = vmatpush1.msra.mxu0 0.0
    %6561 = vmatprep.subr.mxu0 0.0
    %6562 = vmatpush1.msra.mxu0 0.0
    %6563 = vmatprep.subr.mxu0 0.0
    %6564 = vmatpush1.msra.mxu0 0.0
    %6565 = vmatprep.subr.mxu0 0.0
    %6566 = vmatpush1.msra.mxu0 0.0
    %6567 = vmatprep.subr.mxu0 0.0
    %6568 = vmatpush1.msra.mxu0 0.0
    %6569 = vmatprep.subr.mxu0 0.0
    %6570 = vmatpush1.msra.mxu0 0.0
    %6571 = vmatprep.subr.mxu0 0.0
    %6572 = vmatpush1.msra.mxu0 0.0
    %6573 = vmatprep.subr.mxu0 0.0
    %6574 = vmatpush1.msra.mxu0 0.0
    %6575 = vmatprep.subr.mxu0 0.0
    %6576 = vmatpush1.msra.mxu0 0.0
    %6577 = vmatprep.subr.mxu0 0.0
    %6578 = vmatpush1.msra.mxu0 0.0
    %6579 = vmatprep.subr.mxu0 0.0
    %6580 = vmatpush1.msra.mxu0 0.0
    %6581 = vmatprep.subr.mxu0 0.0
    %6582 = vmatpush1.msra.mxu0 0.0
    %6583 = vmatprep.subr.mxu0 0.0
    %6584 = vmatpush1.msra.mxu0 0.0
    %6585 = vmatprep.subr.mxu0 0.0
    %6586 = vmatpush1.msra.mxu0 0.0
    %6587 = vmatprep.subr.mxu0 0.0
    %6588 = vmatpush1.msra.mxu0 0.0
    %6589 = vmatprep.subr.mxu0 0.0
    %6590 = vmatpush1.msra.mxu0 0.0
    %6591 = vmatprep.subr.mxu0 0.0
    %6592 = vmatpush1.msra.mxu0 0.0
    %6593 = vmatprep.subr.mxu0 0.0
    %6594 = vmatpush1.msra.mxu0 0.0
    %6595 = vmatprep.subr.mxu0 0.0
    %6596 = vmatpush1.msra.mxu0 0.0
    %6597 = vmatprep.subr.mxu0 0.0
    %6598 = vmatpush1.msra.mxu0 0.0
    %6599 = vmatprep.mubr.f32.mxu0 0.0
    %6600 = vmatmul.mubr.f32.gmra.mrb[0].mxu0 %v6524
    %v6601 = vpop.f32.mrb[0].mxu0
    %v6602 = vadd.f32 %v6505, %v6601
    %v6603 = vpop.f32.mrb[0].mxu0
    %6604 = vmatprep.mubr.f32.mxu0 0.0
    %6605 = vmatmul.mubr.f32.gmra.mrb[0].mxu0 %v6527
    %v6606 = vpop.f32.mrb[0].mxu0
    %v6607 = vadd.f32 %v6510, %v6606
    %v6608 = vpop.f32.mrb[0].mxu0
    %6609 = vmatprep.mubr.f32.mxu0 0.0
    %6610 = vmatmul.mubr.f32.gmra.mrb[0].mxu0 %v6530
    %v6611 = vpop.f32.mrb[0].mxu0
    %v6612 = vadd.f32 %v6515, %v6611
    %v6613 = vpop.f32.mrb[0].mxu0
    %6614 = vmatprep.mubr.f32.mxu0 0.0
    %6615 = vmatmul.mubr.f32.gmra.mrb[0].mxu0 %v6533
    %v6616 = vpop.f32.mrb[0].mxu0
    %v6617 = vadd.f32 %v6520, %v6616
    %v6618 = vpop.f32.mrb[0].mxu0
    %6619 = vdwg.mxu0
    %6620 = vset.pattern.permute.xlu0 6
    %6621 = vperm.xlu0 %6620, %v6188
    %v6622 = vpop.permute.xlu0 %6621
    %6624 = vset.pattern.permute.xlu0 6
    %6625 = vperm.xlu0 %6624, %v6193
    %v6626 = vpop.permute.xlu0 %6625
    %6628 = vset.pattern.permute.xlu0 6
    %6629 = vperm.xlu0 %6628, %v6198
    %v6630 = vpop.permute.xlu0 %6629
    %6632 = vset.pattern.permute.xlu0 6
    %6633 = vperm.xlu0 %6632, %v6203
    %v6634 = vpop.permute.xlu0 %6633
    %v6636 = vlaneseq
    %v6637 = vshrl.u32 %v6636, 7
    %v6638 = vsub.s32 2, %v6637
    %v6639 = vrot.slane %v6222, %v6638
    %v6640 = vadd.f32 %v6622, %v6639
    %v6641 = vadd.f32 %v6626, %v6639
    %v6642 = vadd.f32 %v6630, %v6639
    %v6643 = vadd.f32 %v6634, %v6639
    %vm6644 = vcmp.gt.f32.partialorder %v6640, 0.0
    %vm6645 = vcmp.gt.f32.partialorder %v6641, 0.0
    %vm6646 = vcmp.gt.f32.partialorder %v6642, 0.0
    %vm6647 = vcmp.gt.f32.partialorder %v6643, 0.0
    %v6648 = vmul.f32 %v6640, 0.2
    %v6649 = vmul.f32 %v6641, 0.2
    %v6650 = vmul.f32 %v6642, 0.2
    %v6651 = vmul.f32 %v6643, 0.2
    %v6652 = vsel %vm6644, %v6640, %v6648
    %v6653 = vsel %vm6645, %v6641, %v6649
    %v6654 = vsel %vm6646, %v6642, %v6650
    %v6655 = vsel %vm6647, %v6643, %v6651
    %v6656 = vsel %vm5160, %v6652, -1e+30
    %v6657 = vsel %vm5161, %v6653, -1e+30
    %v6658 = vsel %vm5162, %v6654, -1e+30
    %v6659 = vsel %vm5163, %v6655, -1e+30
    %v6660 = vsel %vm5168, %v6656, -inf
    %6661 = vmax.xlane.f32.xlu0 %v6660
    %v6662 = vpop.xlane.xlu0 %6661
    %v6663 = vsel %vm5168, %v6657, -inf
    %6664 = vmax.xlane.f32.xlu0 %v6663
    %v6665 = vpop.xlane.xlu0 %6664
    %v6666 = vsel %vm5168, %v6658, -inf
    %6667 = vmax.xlane.f32.xlu0 %v6666
    %v6668 = vpop.xlane.xlu0 %6667
    %v6669 = vsel %vm5168, %v6659, -inf
    %6670 = vmax.xlane.f32.xlu0 %v6669
    %v6671 = vpop.xlane.xlu0 %6670
    %v6672 = vsub.f32 %v6656, %v6662
    %v6673 = vsub.f32 %v6657, %v6665
    %v6674 = vsub.f32 %v6658, %v6668
    %v6675 = vsub.f32 %v6659, %v6671
    %v6676 = vmul.f32 %v6672, 1.442695
    %v6677 = vpow.pop %v6676
    %v6678 = vmul.f32 %v6673, 1.442695
    %v6679 = vpow.pop %v6678
    %v6680 = vmul.f32 %v6674, 1.442695
    %v6681 = vpow.pop %v6680
    %v6682 = vmul.f32 %v6675, 1.442695
    %v6683 = vpow.pop %v6682
    %v6684 = vsel %vm5168, %v6677, 0.0
    %6685 = vadd.xlane.f32.xlu0 %v6684
    %v6686 = vpop.xlane.xlu0 %6685
    %v6687 = vsel %vm5168, %v6679, 0.0
    %6688 = vadd.xlane.f32.xlu0 %v6687
    %v6689 = vpop.xlane.xlu0 %6688
    %v6690 = vsel %vm5168, %v6681, 0.0
    %6691 = vadd.xlane.f32.xlu0 %v6690
    %v6692 = vpop.xlane.xlu0 %6691
    %v6693 = vsel %vm5168, %v6683, 0.0
    %6694 = vadd.xlane.f32.xlu0 %v6693
    %v6695 = vpop.xlane.xlu0 %6694
    %v6696 = vrcp.pop %v6686
    %v6697 = vmul.f32 %v6677, %v6696
    %v6698 = vrcp.pop %v6689
    %v6699 = vmul.f32 %v6679, %v6698
    %v6700 = vrcp.pop %v6692
    %v6701 = vmul.f32 %v6681, %v6700
    %v6702 = vrcp.pop %v6695
    %v6703 = vmul.f32 %v6683, %v6702
    %6704 = vrot.lane.b32.xlu0 %v6039, 64
    %v6705 = vpop.permute.xlu0 %6704
    %6706 = vrot.lane.b32.xlu0 %v6044, 64
    %v6707 = vpop.permute.xlu0 %6706
    %6708 = vrot.lane.b32.xlu0 %v6049, 64
    %v6709 = vpop.permute.xlu0 %6708
    %6710 = vrot.lane.b32.xlu0 %v6054, 64
    %v6711 = vpop.permute.xlu0 %6710
    %v6717 = vsel %vm5168, %v6697, 0
    %v6720 = vsel %vm5168, %v6699, 0
    %v6723 = vsel %vm5168, %v6701, 0
    %v6726 = vsel %vm5168, %v6703, 0
    %6728 = vmatprep.subr.mxu0 0.0
    %6729 = vmatpush1.msra.mxu0 %v6705
    %6730 = vmatprep.subr.mxu0 0.0
    %6731 = vmatpush1.msra.mxu0 %v6707
    %6732 = vmatprep.subr.mxu0 0.0
    %6733 = vmatpush1.msra.mxu0 %v6709
    %6734 = vmatprep.subr.mxu0 0.0
    %6735 = vmatpush1.msra.mxu0 %v6711
    %6736 = vmatprep.subr.mxu0 0.0
    %6737 = vmatpush1.msra.mxu0 0.0
    %6738 = vmatprep.subr.mxu0 0.0
    %6739 = vmatpush1.msra.mxu0 0.0
    %6740 = vmatprep.subr.mxu0 0.0
    %6741 = vmatpush1.msra.mxu0 0.0
    %6742 = vmatprep.subr.mxu0 0.0
    %6743 = vmatpush1.msra.mxu0 0.0
    %6744 = vmatprep.subr.mxu0 0.0
    %6745 = vmatpush1.msra.mxu0 0.0
    %6746 = vmatprep.subr.mxu0 0.0
    %6747 = vmatpush1.msra.mxu0 0.0
    %6748 = vmatprep.subr.mxu0 0.0
    %6749 = vmatpush1.msra.mxu0 0.0
    %6750 = vmatprep.subr.mxu0 0.0
    %6751 = vmatpush1.msra.mxu0 0.0
    %6752 = vmatprep.subr.mxu0 0.0
    %6753 = vmatpush1.msra.mxu0 0.0
    %6754 = vmatprep.subr.mxu0 0.0
    %6755 = vmatpush1.msra.mxu0 0.0
    %6756 = vmatprep.subr.mxu0 0.0
    %6757 = vmatpush1.msra.mxu0 0.0
    %6758 = vmatprep.subr.mxu0 0.0
    %6759 = vmatpush1.msra.mxu0 0.0
    %6760 = vmatprep.subr.mxu0 0.0
    %6761 = vmatpush1.msra.mxu0 0.0
    %6762 = vmatprep.subr.mxu0 0.0
    %6763 = vmatpush1.msra.mxu0 0.0
    %6764 = vmatprep.subr.mxu0 0.0
    %6765 = vmatpush1.msra.mxu0 0.0
    %6766 = vmatprep.subr.mxu0 0.0
    %6767 = vmatpush1.msra.mxu0 0.0
    %6768 = vmatprep.subr.mxu0 0.0
    %6769 = vmatpush1.msra.mxu0 0.0
    %6770 = vmatprep.subr.mxu0 0.0
    %6771 = vmatpush1.msra.mxu0 0.0
    %6772 = vmatprep.subr.mxu0 0.0
    %6773 = vmatpush1.msra.mxu0 0.0
    %6774 = vmatprep.subr.mxu0 0.0
    %6775 = vmatpush1.msra.mxu0 0.0
    %6776 = vmatprep.subr.mxu0 0.0
    %6777 = vmatpush1.msra.mxu0 0.0
    %6778 = vmatprep.subr.mxu0 0.0
    %6779 = vmatpush1.msra.mxu0 0.0
    %6780 = vmatprep.subr.mxu0 0.0
    %6781 = vmatpush1.msra.mxu0 0.0
    %6782 = vmatprep.subr.mxu0 0.0
    %6783 = vmatpush1.msra.mxu0 0.0
    %6784 = vmatprep.subr.mxu0 0.0
    %6785 = vmatpush1.msra.mxu0 0.0
    %6786 = vmatprep.subr.mxu0 0.0
    %6787 = vmatpush1.msra.mxu0 0.0
    %6788 = vmatprep.subr.mxu0 0.0
    %6789 = vmatpush1.msra.mxu0 0.0
    %6790 = vmatprep.subr.mxu0 0.0
    %6791 = vmatpush1.msra.mxu0 0.0
    %6792 = vmatprep.mubr.f32.mxu0 0.0
    %6793 = vmatmul.mubr.f32.gmra.mrb[0].mxu0 %v6717
    %v6794 = vpop.f32.mrb[0].mxu0
    %v6795 = vadd.f32 0.0, %v6794
    %v6796 = vpop.f32.mrb[0].mxu0
    %6797 = vmatprep.mubr.f32.mxu0 0.0
    %6798 = vmatmul.mubr.f32.gmra.mrb[0].mxu0 %v6720
    %v6799 = vpop.f32.mrb[0].mxu0
    %v6800 = vadd.f32 0.0, %v6799
    %v6801 = vpop.f32.mrb[0].mxu0
    %6802 = vmatprep.mubr.f32.mxu0 0.0
    %6803 = vmatmul.mubr.f32.gmra.mrb[0].mxu0 %v6723
    %v6804 = vpop.f32.mrb[0].mxu0
    %v6805 = vadd.f32 0.0, %v6804
    %v6806 = vpop.f32.mrb[0].mxu0
    %6807 = vmatprep.mubr.f32.mxu0 0.0
    %6808 = vmatmul.mubr.f32.gmra.mrb[0].mxu0 %v6726
    %v6809 = vpop.f32.mrb[0].mxu0
    %v6810 = vadd.f32 0.0, %v6809
    %v6811 = vpop.f32.mrb[0].mxu0
    %6812 = vdwg.mxu0
    %v6813 = vadd.f32 %v6602, %v6795
    %v6814 = vadd.f32 %v6607, %v6800
    %v6815 = vadd.f32 %v6612, %v6805
    %v6816 = vadd.f32 %v6617, %v6810
    %6817 = vset.pattern.permute.xlu0 7
    %6818 = vperm.xlu0 %6817, %v6188
    %v6819 = vpop.permute.xlu0 %6818
    %6821 = vset.pattern.permute.xlu0 7
    %6822 = vperm.xlu0 %6821, %v6193
    %v6823 = vpop.permute.xlu0 %6822
    %6825 = vset.pattern.permute.xlu0 7
    %6826 = vperm.xlu0 %6825, %v6198
    %v6827 = vpop.permute.xlu0 %6826
    %6829 = vset.pattern.permute.xlu0 7
    %6830 = vperm.xlu0 %6829, %v6203
    %v6831 = vpop.permute.xlu0 %6830
    %v6833 = vlaneseq
    %v6834 = vshrl.u32 %v6833, 7
    %v6835 = vsub.s32 3, %v6834
    %v6836 = vrot.slane %v6222, %v6835
    %v6837 = vadd.f32 %v6819, %v6836
    %v6838 = vadd.f32 %v6823, %v6836
    %v6839 = vadd.f32 %v6827, %v6836
    %v6840 = vadd.f32 %v6831, %v6836
    %vm6841 = vcmp.gt.f32.partialorder %v6837, 0.0
    %vm6842 = vcmp.gt.f32.partialorder %v6838, 0.0
    %vm6843 = vcmp.gt.f32.partialorder %v6839, 0.0
    %vm6844 = vcmp.gt.f32.partialorder %v6840, 0.0
    %v6845 = vmul.f32 %v6837, 0.2
    %v6846 = vmul.f32 %v6838, 0.2
    %v6847 = vmul.f32 %v6839, 0.2
    %v6848 = vmul.f32 %v6840, 0.2
    %v6849 = vsel %vm6841, %v6837, %v6845
    %v6850 = vsel %vm6842, %v6838, %v6846
    %v6851 = vsel %vm6843, %v6839, %v6847
    %v6852 = vsel %vm6844, %v6840, %v6848
    %v6853 = vsel %vm5160, %v6849, -1e+30
    %v6854 = vsel %vm5161, %v6850, -1e+30
    %v6855 = vsel %vm5162, %v6851, -1e+30
    %v6856 = vsel %vm5163, %v6852, -1e+30
    %v6857 = vsel %vm5168, %v6853, -inf
    %6858 = vmax.xlane.f32.xlu0 %v6857
    %v6859 = vpop.xlane.xlu0 %6858
    %v6860 = vsel %vm5168, %v6854, -inf
    %6861 = vmax.xlane.f32.xlu0 %v6860
    %v6862 = vpop.xlane.xlu0 %6861
    %v6863 = vsel %vm5168, %v6855, -inf
    %6864 = vmax.xlane.f32.xlu0 %v6863
    %v6865 = vpop.xlane.xlu0 %6864
    %v6866 = vsel %vm5168, %v6856, -inf
    %6867 = vmax.xlane.f32.xlu0 %v6866
    %v6868 = vpop.xlane.xlu0 %6867
    %v6869 = vsub.f32 %v6853, %v6859
    %v6870 = vsub.f32 %v6854, %v6862
    %v6871 = vsub.f32 %v6855, %v6865
    %v6872 = vsub.f32 %v6856, %v6868
    %v6873 = vmul.f32 %v6869, 1.442695
    %v6874 = vpow.pop %v6873
    %v6875 = vmul.f32 %v6870, 1.442695
    %v6876 = vpow.pop %v6875
    %v6877 = vmul.f32 %v6871, 1.442695
    %v6878 = vpow.pop %v6877
    %v6879 = vmul.f32 %v6872, 1.442695
    %v6880 = vpow.pop %v6879
    %v6881 = vsel %vm5168, %v6874, 0.0
    %6882 = vadd.xlane.f32.xlu0 %v6881
    %v6883 = vpop.xlane.xlu0 %6882
    %v6884 = vsel %vm5168, %v6876, 0.0
    %6885 = vadd.xlane.f32.xlu0 %v6884
    %v6886 = vpop.xlane.xlu0 %6885
    %v6887 = vsel %vm5168, %v6878, 0.0
    %6888 = vadd.xlane.f32.xlu0 %v6887
    %v6889 = vpop.xlane.xlu0 %6888
    %v6890 = vsel %vm5168, %v6880, 0.0
    %6891 = vadd.xlane.f32.xlu0 %v6890
    %v6892 = vpop.xlane.xlu0 %6891
    %v6893 = vrcp.pop %v6883
    %v6894 = vmul.f32 %v6874, %v6893
    %v6895 = vrcp.pop %v6886
    %v6896 = vmul.f32 %v6876, %v6895
    %v6897 = vrcp.pop %v6889
    %v6898 = vmul.f32 %v6878, %v6897
    %v6899 = vrcp.pop %v6892
    %v6900 = vmul.f32 %v6880, %v6899
    %6901 = vrot.lane.b32.xlu0 %v6039, 32
    %v6902 = vpop.permute.xlu0 %6901
    %6903 = vrot.lane.b32.xlu0 %v6044, 32
    %v6904 = vpop.permute.xlu0 %6903
    %6905 = vrot.lane.b32.xlu0 %v6049, 32
    %v6906 = vpop.permute.xlu0 %6905
    %6907 = vrot.lane.b32.xlu0 %v6054, 32
    %v6908 = vpop.permute.xlu0 %6907
    %v6914 = vsel %vm5168, %v6894, 0
    %v6917 = vsel %vm5168, %v6896, 0
    %v6920 = vsel %vm5168, %v6898, 0
    %v6923 = vsel %vm5168, %v6900, 0
    %6925 = vmatprep.subr.mxu0 0.0
    %6926 = vmatpush1.msra.mxu0 %v6902
    %6927 = vmatprep.subr.mxu0 0.0
    %6928 = vmatpush1.msra.mxu0 %v6904
    %6929 = vmatprep.subr.mxu0 0.0
    %6930 = vmatpush1.msra.mxu0 %v6906
    %6931 = vmatprep.subr.mxu0 0.0
    %6932 = vmatpush1.msra.mxu0 %v6908
    %6933 = vmatprep.subr.mxu0 0.0
    %6934 = vmatpush1.msra.mxu0 0.0
    %6935 = vmatprep.subr.mxu0 0.0
    %6936 = vmatpush1.msra.mxu0 0.0
    %6937 = vmatprep.subr.mxu0 0.0
    %6938 = vmatpush1.msra.mxu0 0.0
    %6939 = vmatprep.subr.mxu0 0.0
    %6940 = vmatpush1.msra.mxu0 0.0
    %6941 = vmatprep.subr.mxu0 0.0
    %6942 = vmatpush1.msra.mxu0 0.0
    %6943 = vmatprep.subr.mxu0 0.0
    %6944 = vmatpush1.msra.mxu0 0.0
    %6945 = vmatprep.subr.mxu0 0.0
    %6946 = vmatpush1.msra.mxu0 0.0
    %6947 = vmatprep.subr.mxu0 0.0
    %6948 = vmatpush1.msra.mxu0 0.0
    %6949 = vmatprep.subr.mxu0 0.0
    %6950 = vmatpush1.msra.mxu0 0.0
    %6951 = vmatprep.subr.mxu0 0.0
    %6952 = vmatpush1.msra.mxu0 0.0
    %6953 = vmatprep.subr.mxu0 0.0
    %6954 = vmatpush1.msra.mxu0 0.0
    %6955 = vmatprep.subr.mxu0 0.0
    %6956 = vmatpush1.msra.mxu0 0.0
    %6957 = vmatprep.subr.mxu0 0.0
    %6958 = vmatpush1.msra.mxu0 0.0
    %6959 = vmatprep.subr.mxu0 0.0
    %6960 = vmatpush1.msra.mxu0 0.0
    %6961 = vmatprep.subr.mxu0 0.0
    %6962 = vmatpush1.msra.mxu0 0.0
    %6963 = vmatprep.subr.mxu0 0.0
    %6964 = vmatpush1.msra.mxu0 0.0
    %6965 = vmatprep.subr.mxu0 0.0
    %6966 = vmatpush1.msra.mxu0 0.0
    %6967 = vmatprep.subr.mxu0 0.0
    %6968 = vmatpush1.msra.mxu0 0.0
    %6969 = vmatprep.subr.mxu0 0.0
    %6970 = vmatpush1.msra.mxu0 0.0
    %6971 = vmatprep.subr.mxu0 0.0
    %6972 = vmatpush1.msra.mxu0 0.0
    %6973 = vmatprep.subr.mxu0 0.0
    %6974 = vmatpush1.msra.mxu0 0.0
    %6975 = vmatprep.subr.mxu0 0.0
    %6976 = vmatpush1.msra.mxu0 0.0
    %6977 = vmatprep.subr.mxu0 0.0
    %6978 = vmatpush1.msra.mxu0 0.0
    %6979 = vmatprep.subr.mxu0 0.0
    %6980 = vmatpush1.msra.mxu0 0.0
    %6981 = vmatprep.subr.mxu0 0.0
    %6982 = vmatpush1.msra.mxu0 0.0
    %6983 = vmatprep.subr.mxu0 0.0
    %6984 = vmatpush1.msra.mxu0 0.0
    %6985 = vmatprep.subr.mxu0 0.0
    %6986 = vmatpush1.msra.mxu0 0.0
    %6987 = vmatprep.subr.mxu0 0.0
    %6988 = vmatpush1.msra.mxu0 0.0
    %6989 = vmatprep.mubr.f32.mxu0 0.0
    %6990 = vmatmul.mubr.f32.gmra.mrb[0].mxu0 %v6914
    %v6991 = vpop.f32.mrb[0].mxu0
    %v6992 = vadd.f32 0.0, %v6991
    %v6993 = vpop.f32.mrb[0].mxu0
    %6994 = vmatprep.mubr.f32.mxu0 0.0
    %6995 = vmatmul.mubr.f32.gmra.mrb[0].mxu0 %v6917
    %v6996 = vpop.f32.mrb[0].mxu0
    %v6997 = vadd.f32 0.0, %v6996
    %v6998 = vpop.f32.mrb[0].mxu0
    %6999 = vmatprep.mubr.f32.mxu0 0.0
    %7000 = vmatmul.mubr.f32.gmra.mrb[0].mxu0 %v6920
    %v7001 = vpop.f32.mrb[0].mxu0
    %v7002 = vadd.f32 0.0, %v7001
    %v7003 = vpop.f32.mrb[0].mxu0
    %7004 = vmatprep.mubr.f32.mxu0 0.0
    %7005 = vmatmul.mubr.f32.gmra.mrb[0].mxu0 %v6923
    %v7006 = vpop.f32.mrb[0].mxu0
    %v7007 = vadd.f32 0.0, %v7006
    %v7008 = vpop.f32.mrb[0].mxu0
    %7009 = vdwg.mxu0
    %v7010 = vadd.f32 %v6813, %v6992
    %v7011 = vadd.f32 %v6814, %v6997
    %v7012 = vadd.f32 %v6815, %v7002
    %v7013 = vadd.f32 %v6816, %v7007
    %v7014 = vmul.f32 %v7010, 0.25
    %v7015 = vmul.f32 %v7011, 0.25
    %v7016 = vmul.f32 %v7012, 0.25
    %v7017 = vmul.f32 %v7013, 0.25
    %v7018 = vld [vmem:[%s7 + $0x4] sm:$0x1]
    %v7019 = vlaneseq
    %v7020 = vshrl.u32 %v7019, 7
    %v7021 = vsub.s32 0, %v7020
    %v7022 = vrot.slane %v7018, %v7021
    %v7023 = vadd.f32 %v7014, %v7022
    %v7024 = vadd.f32 %v7015, %v7022
    %v7025 = vadd.f32 %v7016, %v7022
    %v7026 = vadd.f32 %v7017, %v7022
    %v7027 = vld [vmem:[%s7 + $0x5] sm:$0x1]
    %v7028 = vlaneseq
    %v7029 = vshrl.u32 %v7028, 7
    %v7030 = vsub.s32 0, %v7029
    %v7031 = vrot.slane %v7027, %v7030
    %v7032 = vmul.f32 %v7023, %v7031
    %v7033 = vmul.f32 %v7024, %v7031
    %v7034 = vmul.f32 %v7025, %v7031
    %v7035 = vmul.f32 %v7026, %v7031
    %v7036 = vld [vmem:[%s7 + $0x6] sm:$0x1]
    %v7037 = vlaneseq
    %v7038 = vshrl.u32 %v7037, 7
    %v7039 = vsub.s32 0, %v7038
    %v7040 = vrot.slane %v7036, %v7039
    %v7041 = vadd.f32 %v7032, %v7040
    %v7042 = vadd.f32 %v7033, %v7040
    %v7043 = vadd.f32 %v7034, %v7040
    %v7044 = vadd.f32 %v7035, %v7040
    %v7045 = vadd.f32 %v7041, %v5952
    %v7046 = vadd.f32 %v7042, %v5953
    %v7047 = vadd.f32 %v7043, %v5954
    %v7048 = vadd.f32 %v7044, %v5955
    %v7049 = vmul.f32 %v7045, 0.5
    %v7050 = vmul.f32 %v7046, 0.5
    %v7051 = vmul.f32 %v7047, 0.5
    %v7052 = vmul.f32 %v7048, 0.5
    %v7053 = vmul.f32 %v7045, 0.70710677
    %v7054 = vmul.f32 %v7046, 0.70710677
    %v7055 = vmul.f32 %v7047, 0.70710677
    %v7056 = vmul.f32 %v7048, 0.70710677
    %v7057 = verf.f32.pop %v7053
    %v7058 = verf.f32.pop %v7054
    %v7059 = verf.f32.pop %v7055
    %v7060 = verf.f32.pop %v7056
    %v7061 = vadd.f32 %v7057, 1.0
    %v7062 = vadd.f32 %v7058, 1.0
    %v7063 = vadd.f32 %v7059, 1.0
    %v7064 = vadd.f32 %v7060, 1.0
    %v7065 = vmul.f32 %v7049, %v7061
    %v7066 = vmul.f32 %v7050, %v7062
    %v7067 = vmul.f32 %v7051, %v7063
    %v7068 = vmul.f32 %v7052, %v7064
    %v7069 = vld [vmem:[%s9] sm:$0x3]
    %v7071 = vsel %vm5168, %v7069, 0
    %7073 = vmatprep.subr.mxu0 0.0
    %7074 = vmatpush1.msra.mxu0 %v7065
    %7075 = vmatprep.subr.mxu0 0.0
    %7076 = vmatpush1.msra.mxu0 %v7066
    %7077 = vmatprep.subr.mxu0 0.0
    %7078 = vmatpush1.msra.mxu0 %v7067
    %7079 = vmatprep.subr.mxu0 0.0
    %7080 = vmatpush1.msra.mxu0 %v7068
    %7081 = vmatprep.subr.mxu0 0.0
    %7082 = vmatpush1.msra.mxu0 0.0
    %7083 = vmatprep.subr.mxu0 0.0
    %7084 = vmatpush1.msra.mxu0 0.0
    %7085 = vmatprep.subr.mxu0 0.0
    %7086 = vmatpush1.msra.mxu0 0.0
    %7087 = vmatprep.subr.mxu0 0.0
    %7088 = vmatpush1.msra.mxu0 0.0
    %7089 = vmatprep.subr.mxu0 0.0
    %7090 = vmatpush1.msra.mxu0 0.0
    %7091 = vmatprep.subr.mxu0 0.0
    %7092 = vmatpush1.msra.mxu0 0.0
    %7093 = vmatprep.subr.mxu0 0.0
    %7094 = vmatpush1.msra.mxu0 0.0
    %7095 = vmatprep.subr.mxu0 0.0
    %7096 = vmatpush1.msra.mxu0 0.0
    %7097 = vmatprep.subr.mxu0 0.0
    %7098 = vmatpush1.msra.mxu0 0.0
    %7099 = vmatprep.subr.mxu0 0.0
    %7100 = vmatpush1.msra.mxu0 0.0
    %7101 = vmatprep.subr.mxu0 0.0
    %7102 = vmatpush1.msra.mxu0 0.0
    %7103 = vmatprep.subr.mxu0 0.0
    %7104 = vmatpush1.msra.mxu0 0.0
    %7105 = vmatprep.subr.mxu0 0.0
    %7106 = vmatpush1.msra.mxu0 0.0
    %7107 = vmatprep.subr.mxu0 0.0
    %7108 = vmatpush1.msra.mxu0 0.0
    %7109 = vmatprep.subr.mxu0 0.0
    %7110 = vmatpush1.msra.mxu0 0.0
    %7111 = vmatprep.subr.mxu0 0.0
    %7112 = vmatpush1.msra.mxu0 0.0
    %7113 = vmatprep.subr.mxu0 0.0
    %7114 = vmatpush1.msra.mxu0 0.0
    %7115 = vmatprep.subr.mxu0 0.0
    %7116 = vmatpush1.msra.mxu0 0.0
    %7117 = vmatprep.subr.mxu0 0.0
    %7118 = vmatpush1.msra.mxu0 0.0
    %7119 = vmatprep.subr.mxu0 0.0
    %7120 = vmatpush1.msra.mxu0 0.0
    %7121 = vmatprep.subr.mxu0 0.0
    %7122 = vmatpush1.msra.mxu0 0.0
    %7123 = vmatprep.subr.mxu0 0.0
    %7124 = vmatpush1.msra.mxu0 0.0
    %7125 = vmatprep.subr.mxu0 0.0
    %7126 = vmatpush1.msra.mxu0 0.0
    %7127 = vmatprep.subr.mxu0 0.0
    %7128 = vmatpush1.msra.mxu0 0.0
    %7129 = vmatprep.subr.mxu0 0.0
    %7130 = vmatpush1.msra.mxu0 0.0
    %7131 = vmatprep.subr.mxu0 0.0
    %7132 = vmatpush1.msra.mxu0 0.0
    %7133 = vmatprep.subr.mxu0 0.0
    %7134 = vmatpush1.msra.mxu0 0.0
    %7135 = vmatprep.subr.mxu0 0.0
    %7136 = vmatpush1.msra.mxu0 0.0
    %7137 = vmatprep.mubr.f32.mxu0 0.0
    %7138 = vmatmul.mubr.f32.gmra.mrb[0].mxu0 %v7071
    %v7139 = vpop.f32.mrb[0].mxu0
    %v7140 = vadd.f32 0.0, %v7139
    %v7141 = vpop.f32.mrb[0].mxu0
    %7142 = vdwg.mxu0
    %v7143 = vld [vmem:[%s6 + $0x8] sm:$0xff]
    %v7144 = vld [vmem:[%s6 + $0x18] sm:$0xff]
    %v7145 = vld [vmem:[%s6 + $0x28] sm:$0xff]
    %v7146 = vld [vmem:[%s6 + $0x38] sm:$0xff]
    %v7147 = vld [vmem:[%s7 + $0x7] sm:$0x1]
    %v7148 = vlaneseq
    %v7149 = vshrl.u32 %v7148, 7
    %v7150 = vsub.s32 0, %v7149
    %v7151 = vrot.slane %v7147, %v7150
    %v7153 = vsel %vm5168, %v7140, 0
    %7155 = vmatprep.subr.mxu0 0.0
    %7156 = vmatpush1.msra.mxu0 %v7143
    %7157 = vmatprep.subr.mxu0 0.0
    %7158 = vmatpush1.msra.mxu0 %v7144
    %7159 = vmatprep.subr.mxu0 0.0
    %7160 = vmatpush1.msra.mxu0 %v7145
    %7161 = vmatprep.subr.mxu0 0.0
    %7162 = vmatpush1.msra.mxu0 %v7146
    %7163 = vmatprep.subr.mxu0 0.0
    %7164 = vmatpush1.msra.mxu0 0.0
    %7165 = vmatprep.subr.mxu0 0.0
    %7166 = vmatpush1.msra.mxu0 0.0
    %7167 = vmatprep.subr.mxu0 0.0
    %7168 = vmatpush1.msra.mxu0 0.0
    %7169 = vmatprep.subr.mxu0 0.0
    %7170 = vmatpush1.msra.mxu0 0.0
    %7171 = vmatprep.subr.mxu0 0.0
    %7172 = vmatpush1.msra.mxu0 0.0
    %7173 = vmatprep.subr.mxu0 0.0
    %7174 = vmatpush1.msra.mxu0 0.0
    %7175 = vmatprep.subr.mxu0 0.0
    %7176 = vmatpush1.msra.mxu0 0.0
    %7177 = vmatprep.subr.mxu0 0.0
    %7178 = vmatpush1.msra.mxu0 0.0
    %7179 = vmatprep.subr.mxu0 0.0
    %7180 = vmatpush1.msra.mxu0 0.0
    %7181 = vmatprep.subr.mxu0 0.0
    %7182 = vmatpush1.msra.mxu0 0.0
    %7183 = vmatprep.subr.mxu0 0.0
    %7184 = vmatpush1.msra.mxu0 0.0
    %7185 = vmatprep.subr.mxu0 0.0
    %7186 = vmatpush1.msra.mxu0 0.0
    %7187 = vmatprep.subr.mxu0 0.0
    %7188 = vmatpush1.msra.mxu0 0.0
    %7189 = vmatprep.subr.mxu0 0.0
    %7190 = vmatpush1.msra.mxu0 0.0
    %7191 = vmatprep.subr.mxu0 0.0
    %7192 = vmatpush1.msra.mxu0 0.0
    %7193 = vmatprep.subr.mxu0 0.0
    %7194 = vmatpush1.msra.mxu0 0.0
    %7195 = vmatprep.subr.mxu0 0.0
    %7196 = vmatpush1.msra.mxu0 0.0
    %7197 = vmatprep.subr.mxu0 0.0
    %7198 = vmatpush1.msra.mxu0 0.0
    %7199 = vmatprep.subr.mxu0 0.0
    %7200 = vmatpush1.msra.mxu0 0.0
    %7201 = vmatprep.subr.mxu0 0.0
    %7202 = vmatpush1.msra.mxu0 0.0
    %7203 = vmatprep.subr.mxu0 0.0
    %7204 = vmatpush1.msra.mxu0 0.0
    %7205 = vmatprep.subr.mxu0 0.0
    %7206 = vmatpush1.msra.mxu0 0.0
    %7207 = vmatprep.subr.mxu0 0.0
    %7208 = vmatpush1.msra.mxu0 0.0
    %7209 = vmatprep.subr.mxu0 0.0
    %7210 = vmatpush1.msra.mxu0 0.0
    %7211 = vmatprep.subr.mxu0 0.0
    %7212 = vmatpush1.msra.mxu0 0.0
    %7213 = vmatprep.subr.mxu0 0.0
    %7214 = vmatpush1.msra.mxu0 0.0
    %7215 = vmatprep.subr.mxu0 0.0
    %7216 = vmatpush1.msra.mxu0 0.0
    %7217 = vmatprep.subr.mxu0 0.0
    %7218 = vmatpush1.msra.mxu0 0.0
    %7219 = vmatprep.mubr.f32.mxu0 0.0
    %7220 = vmatmul.mubr.f32.gmra.mrb[0].mxu0 %v7153
    %v7221 = vpop.f32.mrb[0].mxu0
    %v7222 = vadd.f32 %v7151, %v7221
    %v7223 = vpop.f32.mrb[0].mxu0
    %7224 = vdwg.mxu0
    %vm7225 = vcmask 9216
    %7226 = vst.msk [vmem:[#allocation2] sm:$0x3] %vm7225, %v7222
    // Predicated region
    $region42: #{hybrid_eeg_gnn_forward.1} parent=1 // pred_check
      _
    $region43: #{hybrid_eeg_gnn_forward.1} parent=1 // pred_check_branch
      %7228 = sbr.rel (0) target = $region45
    $region44: #{hybrid_eeg_gnn_forward.1} parent=1 // pred_region
      %s7230 = ssub.s32 32, 32
      %7231 = vsyncadd [#allocation3], %s7230
      %s7233 = sshll.u32 [#allocation2], 4
      %s7234 = int_to_ptr.vmem [resolvable:$true] %s7233
      %7236 = dma.vmem_to_hbm [thread:$0]  %s7234, 32, %s10, [#allocation3]
    $region45: #{hybrid_eeg_gnn_forward.1} parent=1 // pred_fallthru
      _
    // Predicated region
    $region46: #{hybrid_eeg_gnn_forward.1} parent=1 // pred_check
      _
    $region47: #{hybrid_eeg_gnn_forward.1} parent=1 // pred_check_branch
      %7238 = sbr.rel (0) target = $region49
    $region48: #{hybrid_eeg_gnn_forward.1} parent=1 // pred_region
      %7239 = dma.done [#allocation3], 32
    $region49: #{hybrid_eeg_gnn_forward.1} parent=1 // pred_fallthru
      _
    %7240 = vsyncpa [#allocation3], 1

</llo_original>
